<compile_context>
chip_gen: v6e
topology: v6e:2x2x1
jax: 0.10.0
libtpu: 0.0.40
codegen_flags: <defaults>
</compile_context>

<pallas_src>
import functools

import jax
import jax.numpy as jnp
from jax.experimental import pallas as pl
from jax.experimental.pallas import tpu as pltpu

FEAT = 2048    # resnet152 fc.in_features (stand-in backbone output dim)
HID1 = 1024    # fc1 out / bn1
HID2 = 786     # fc2 out / bn2 (as in the original module)
HID2P = 896    # HID2 zero-padded to the next multiple of 128 (bit-identical)
OUT = 512      # fc3 out
BN_EPS = 1e-5

TK = 1024      # fc1 reduction tile (FEAT streamed in 2 chunks)
TM_CAP = 128   # head row-block cap (keeps v5e under its 16 MiB scoped default)
HW_CAP = 256   # stem spatial tile cap (pre-pool intermediate <= 2 MiB f32)
NB_CAP = 16    # stem frames per block cap


# ----------------------------------------------------------------------------
# Kernel 1: stand-in "resnet" feature extractor.
#   grid = (frame_blocks [parallel], hw_blocks [arbitrary/reduction])
#   x_ref  : (nb, C, HW_T)    frames in their original NCHW layout
#   wc_ref : (C, FEAT)        1x1-conv weight, lane-dense, bf16
#   o_ref  : (1, nb, FEAT)    pooled features, lane-dense rows, bf16
#   acc_ref: (nb, FEAT) f32   running sum of relu(conv) over HW chunks
# ----------------------------------------------------------------------------
def _stem_kernel(x_ref, wc_ref, o_ref, acc_ref, *, nb, inv_hw):
    h = pl.program_id(1)

    @pl.when(h == 0)
    def _init():
        acc_ref[...] = jnp.zeros_like(acc_ref)

    wc = wc_ref[...]                                   # (C, FEAT), loop-invariant

    def frame_body(n, carry):
        frame = x_ref[n].astype(jnp.bfloat16)          # (C, HW_T)
        # 1x1 conv: contract C (axis 0 of both operands) -> lane-dense (HW_T, FEAT)
        z = jax.lax.dot_general(
            frame, wc,
            dimension_numbers=(((0,), (0,)), ((), ())),
            preferred_element_type=jnp.float32)
        pooled = jnp.sum(jnp.maximum(z, 0.0), axis=0, keepdims=True)   # (1, FEAT)
        # scatter the pooled row into accumulator row n (one-hot add; avoids
        # dynamic-sublane stores, costs a few VPU vregs per frame)
        row = (jax.lax.broadcasted_iota(jnp.int32, (nb, 1), 0) == n
               ).astype(jnp.float32)                    # (nb, 1)
        acc_ref[...] += row * pooled
        return carry

    # fori_loop (not static unroll) so only one frame's (HW_T, FEAT)
    # intermediate is live at a time.
    jax.lax.fori_loop(0, nb, frame_body, 0)

    @pl.when(h == pl.num_programs(1) - 1)
    def _finish():
        o_ref[0] = (acc_ref[...] * inv_hw).astype(o_ref.dtype)   # dense (nb, FEAT) store


# ----------------------------------------------------------------------------
# Kernel 2: fused MLP head.
#   grid = (m_blocks [parallel], k_blocks [arbitrary/reduction over FEAT])
#   k < last : accumulate x_chunk @ w1_chunk into a (TM, HID1) f32 accumulator
#   k = last : +b1 -> relu -> fc2(+folded bn2) -> relu -> dropout(eval) -> fc3
# ----------------------------------------------------------------------------
def _head_kernel(x_ref, w1_ref, b1_ref, w2_ref, b2_ref, w3_ref, b3_ref,
                 o_ref, acc_ref):
    k = pl.program_id(1)

    @pl.when(k == 0)
    def _init():
        acc_ref[...] = jnp.zeros_like(acc_ref)

    acc_ref[...] += jnp.dot(x_ref[...], w1_ref[...],
                            preferred_element_type=jnp.float32)

    @pl.when(k == pl.num_programs(1) - 1)
    def _finish():
        h = jnp.maximum(acc_ref[...] + b1_ref[...], 0.0)        # fc1 + bn1 + relu
        h = jnp.dot(h.astype(jnp.bfloat16), w2_ref[...],
                    preferred_element_type=jnp.float32) + b2_ref[...]
        h = jnp.maximum(h, 0.0)                                  # fc2 + bn2 + relu
        # dropout: inference mode (identity)
        o_ref[...] = jnp.dot(h.astype(jnp.bfloat16), w3_ref[...],
                             preferred_element_type=jnp.float32) + b3_ref[...]


# ----------------------------------------------------------------------------
# Tiling pickers
# ----------------------------------------------------------------------------
def _pick_frames_per_block(n, cap=NB_CAP):
    """Largest divisor of n (<= cap) leaving >= 2 frame blocks (megacore)."""
    best = 1
    for cand in range(1, min(n, cap) + 1):
        if n % cand == 0 and (n // cand) >= 2:
            best = cand
    return best


def _pick_hw_tile(hw, cap=HW_CAP):
    """Largest divisor of hw that is a multiple of 128 and <= cap; else hw."""
    if hw <= cap:
        return hw
    best = None
    t = 128
    while t <= cap:
        if hw % t == 0:
            best = t
        t += 128
    return best if best is not None else hw


def _pick_row_block(n, cap=TM_CAP):
    """(tm, padded_n): tm divides padded_n and is a multiple of 8 (or == n)."""
    if n <= cap:
        return n, n
    for tm in range(cap, 7, -8):
        if n % tm == 0:
            return tm, n
    padded = ((n + cap - 1) // cap) * cap
    return cap, padded


# ----------------------------------------------------------------------------
# Forward
# ----------------------------------------------------------------------------
def rescnn_encoder_forward(x_3d, params):
    B, T, C, H, W = x_3d.shape
    N, HW = B * T, H * W

    # --- stem: stand-in backbone, frames read in original NCHW layout -------
    x_frames = x_3d.reshape(N, C, HW)                   # free reshape, no HBM pass
    nb = _pick_frames_per_block(N)
    hw_t = _pick_hw_tile(HW)
    n_fblocks = N // nb
    n_hblocks = HW // hw_t
    wc_bf16 = params["wc"].astype(jnp.bfloat16)         # (C, FEAT), lane-dense

    stem = pl.pallas_call(
        functools.partial(_stem_kernel, nb=nb, inv_hw=1.0 / HW),
        out_shape=jax.ShapeDtypeStruct((n_fblocks, nb, FEAT), jnp.bfloat16),
        grid=(n_fblocks, n_hblocks),
        in_specs=[
            pl.BlockSpec((nb, C, hw_t), lambda i, h: (i, 0, h)),
            pl.BlockSpec((C, FEAT), lambda i, h: (0, 0)),
        ],
        out_specs=pl.BlockSpec((1, nb, FEAT), lambda i, h: (i, 0, 0)),
        scratch_shapes=[pltpu.VMEM((nb, FEAT), jnp.float32)],
        compiler_params=pltpu.CompilerParams(
            dimension_semantics=("parallel", "arbitrary")),
    )
    feat = stem(x_frames, wc_bf16).reshape(N, FEAT)     # bf16, no transpose needed

    # --- head: fold BN, pad HID2 to 896, bf16 weights, M/K-tiled MLP --------
    s1 = params["g1"] * jax.lax.rsqrt(params["rv1"] + BN_EPS)
    w1f = (params["w1"] * s1).astype(jnp.bfloat16)                       # (FEAT, HID1)
    b1f = (params["b1"] - params["rm1"]) * s1 + params["be1"]            # (1, HID1) f32

    s2 = params["g2"] * jax.lax.rsqrt(params["rv2"] + BN_EPS)
    w2f = jnp.pad(params["w2"] * s2,
                  ((0, 0), (0, HID2P - HID2))).astype(jnp.bfloat16)      # (HID1, HID2P)
    b2f = jnp.pad((params["b2"] - params["rm2"]) * s2 + params["be2"],
                  ((0, 0), (0, HID2P - HID2)))                           # (1, HID2P) f32
    w3f = jnp.pad(params["w3"],
                  ((0, HID2P - HID2), (0, 0))).astype(jnp.bfloat16)      # (HID2P, OUT)
    b3f = params["b3"]                                                   # (1, OUT) f32

    tm, n_pad = _pick_row_block(N)
    if n_pad != N:
        feat = jnp.pad(feat, ((0, n_pad - N), (0, 0)))   # padded rows discarded below
    m_blocks = n_pad // tm
    k_blocks = FEAT // TK

    head = pl.pallas_call(
        _head_kernel,
        out_shape=jax.ShapeDtypeStruct((n_pad, OUT), jnp.float32),
        grid=(m_blocks, k_blocks),
        in_specs=[
            pl.BlockSpec((tm, TK), lambda m, k: (m, k)),
            pl.BlockSpec((TK, HID1), lambda m, k: (k, 0)),
            pl.BlockSpec((1, HID1), lambda m, k: (0, 0)),
            pl.BlockSpec((HID1, HID2P), lambda m, k: (0, 0)),
            pl.BlockSpec((1, HID2P), lambda m, k: (0, 0)),
            pl.BlockSpec((HID2P, OUT), lambda m, k: (0, 0)),
            pl.BlockSpec((1, OUT), lambda m, k: (0, 0)),
        ],
        out_specs=pl.BlockSpec((tm, OUT), lambda m, k: (m, 0)),
        scratch_shapes=[pltpu.VMEM((tm, HID1), jnp.float32)],
        compiler_params=pltpu.CompilerParams(
            dimension_semantics=("parallel", "arbitrary")),
    )
    out = head(feat, w1f, b1f, w2f, b2f, w3f, b3f)
    if n_pad != N:
        out = out[:N]
    return out.reshape(B, T, OUT)


# ----------------------------------------------------------------------------
# Parameters / pure-JAX reference
# ----------------------------------------------------------------------------
def init_params(key, C=3):
    ks = jax.random.split(key, 16)

    def lin(k, fan_in, shape):
        return (jax.random.normal(k, shape, jnp.float32) / jnp.sqrt(fan_in)).astype(jnp.float32)

    def bn(k_g, k_b, k_m, k_v, dim):
        return dict(
            g=(1.0 + 0.1 * jax.random.normal(k_g, (1, dim))).astype(jnp.float32),
            be=(0.1 * jax.random.normal(k_b, (1, dim))).astype(jnp.float32),
            rm=(0.1 * jax.random.normal(k_m, (1, dim))).astype(jnp.float32),
            rv=(1.0 + 0.1 * jnp.abs(jax.random.normal(k_v, (1, dim)))).astype(jnp.float32),
        )

    bn1 = bn(ks[4], ks[5], ks[6], ks[7], HID1)
    bn2 = bn(ks[10], ks[11], ks[12], ks[13], HID2)
    return dict(
        wc=lin(ks[0], C, (C, FEAT)),
        w1=lin(ks[1], FEAT, (FEAT, HID1)),
        b1=(0.01 * jax.random.normal(ks[2], (1, HID1))).astype(jnp.float32),
        g1=bn1["g"], be1=bn1["be"], rm1=bn1["rm"], rv1=bn1["rv"],
        w2=lin(ks[3], HID1, (HID1, HID2)),
        b2=(0.01 * jax.random.normal(ks[8], (1, HID2))).astype(jnp.float32),
        g2=bn2["g"], be2=bn2["be"], rm2=bn2["rm"], rv2=bn2["rv"],
        w3=lin(ks[9], HID2, (HID2, OUT)),
        b3=(0.01 * jax.random.normal(ks[14], (1, OUT))).astype(jnp.float32),
    )


def reference_forward(x_3d, params):
    """Pure-JAX f32 reference with the original (unfolded, unpadded) math."""
    B, T, C, H, W = x_3d.shape
    N = B * T
    frames = jnp.transpose(x_3d.reshape(N, C, H * W), (0, 2, 1))   # (N, HW, C)
    y = jnp.maximum(frames @ params["wc"], 0.0)
    feat = jnp.mean(y, axis=1)
    h = feat @ params["w1"] + params["b1"]
    h = (h - params["rm1"]) * jax.lax.rsqrt(params["rv1"] + BN_EPS) * params["g1"] + params["be1"]
    h = jnp.maximum(h, 0.0)
    h = h @ params["w2"] + params["b2"]
    h = (h - params["rm2"]) * jax.lax.rsqrt(params["rv2"] + BN_EPS) * params["g2"] + params["be2"]
    h = jnp.maximum(h, 0.0)
    out = h @ params["w3"] + params["b3"]
    return out.reshape(B, T, OUT)


if __name__ == "__main__":
    key = jax.random.PRNGKey(0)
    k_x, k_p = jax.random.split(key)

    B, T, C, H, W = 2, 4, 3, 16, 16
    x_3d = jax.random.normal(k_x, (B, T, C, H, W), dtype=jnp.float32)
    params = init_params(k_p, C=C)

    out = jax.jit(rescnn_encoder_forward)(x_3d, params)
    out = jax.block_until_ready(out)
    assert out.shape == (B, T, OUT), out.shape

    ref = reference_forward(x_3d, params)
    max_err = float(jnp.max(jnp.abs(out - ref)))
    # bf16 weights/activations with f32 accumulation vs. a pure-f32 reference:
    # mixed-precision inference tolerance.
    assert jnp.allclose(out, ref, atol=3e-2, rtol=3e-2), (
        f"mismatch vs JAX reference (max abs err {max_err})")

    print("KERNEL_OK")
</pallas_src>

<mosaic_0001>
module attributes {stable_mosaic.version = 11 : i64} {
  func.func @_stem_kernel(%arg0: i32, %arg1: i32, %arg2: memref<4x3x256xf32, #tpu.memory_space<vmem>>, %arg3: memref<3x2048xbf16, #tpu.memory_space<vmem>>, %arg4: memref<1x4x2048xbf16, #tpu.memory_space<vmem>>, %arg5: memref<4x2048xf32, #tpu.memory_space<vmem>>) attributes {dimension_semantics = [#tpu.dimension_semantics<parallel>, #tpu.dimension_semantics<arbitrary>], iteration_bounds = array<i64: 2, 1>, scalar_prefetch = 0 : i64, scratch_operands = 1 : i64, tpu.core_type = #tpu.core_type<tc>, window_params = [{transform_indices = @transform_0, window_bounds = array<i64: 4, 3, 256>}, {pipeline_mode = #tpu.pipeline_mode<synchronous>, transform_indices = @transform_1, window_bounds = array<i64: 3, 2048>}, {transform_indices = @transform_2, window_bounds = array<i64: 1, 4, 2048>}]} {
    %c0_i32 = arith.constant 0 : i32
    %0 = arith.cmpi eq, %arg1, %c0_i32 : i32
    %1 = arith.extui %0 : i1 to i32
    %c0_i32_0 = arith.constant 0 : i32
    %2 = arith.cmpi ne, %1, %c0_i32_0 : i32
    scf.if %2 {
      %cst = arith.constant 0.000000e+00 : f32
      %8 = vector.broadcast %cst : f32 to vector<4x2048xf32>
      %c0_6 = arith.constant 0 : index
      %c0_7 = arith.constant 0 : index
      %9 = vector.load %arg5[%c0_6, %c0_7] : memref<4x2048xf32, #tpu.memory_space<vmem>>, vector<4x2048xf32>
      tpu.vector_store %arg5[%c0_6, %c0_7], %8 {strides = array<i32>} : memref<4x2048xf32, #tpu.memory_space<vmem>>, vector<4x2048xf32>,
    } else {
    }
    %c0 = arith.constant 0 : index
    %c0_1 = arith.constant 0 : index
    %3 = vector.load %arg3[%c0, %c0_1] : memref<3x2048xbf16, #tpu.memory_space<vmem>>, vector<3x2048xbf16>
    %c0_i32_2 = arith.constant 0 : i32
    %c4_i32 = arith.constant 4 : i32
    %4 = arith.addi %c0_i32_2, %c4_i32 : i32
    %c1_i32 = arith.constant 1 : i32
    scf.for %arg6 = %c0_i32_2 to %4 step %c1_i32  : i32 {
      %8 = arith.index_cast %arg6 : i32 to index
      %c0_6 = arith.constant 0 : index
      %c0_7 = arith.constant 0 : index
      %9 = vector.load %arg2[%8, %c0_6, %c0_7] : memref<4x3x256xf32, #tpu.memory_space<vmem>>, vector<1x3x256xf32>
      %10 = vector.shape_cast %9 : vector<1x3x256xf32> to vector<3x256xf32>
      %11 = arith.truncf %10 : vector<3x256xf32> to vector<3x256xbf16>
      %cst = arith.constant dense<0.000000e+00> : vector<256x2048xf32>
      %12 = tpu.matmul %11, %3, %cst {dimension_numbers = #tpu.dot_dimension_numbers<[0], [0], [1], [1], [0, 1, 1, 1], [], []>} : vector<3x256xbf16>, vector<3x2048xbf16>, vector<256x2048xf32> -> vector<256x2048xf32>
      %cst_8 = arith.constant 0.000000e+00 : f32
      %13 = vector.broadcast %cst_8 : f32 to vector<256x2048xf32>
      %14 = arith.maximumf %12, %13 : vector<256x2048xf32>
      %cst_9 = arith.constant dense<0.000000e+00> : vector<2048xf32>
      %15 = vector.multi_reduction <add>, %14, %cst_9 [0] : vector<256x2048xf32> to vector<2048xf32>
      %16 = vector.shape_cast %15 : vector<2048xf32> to vector<1x2048xf32>
      %17 = tpu.iota {dimensions = array<i32: 0>} : vector<4x1xi32>
      %18 = vector.broadcast %arg6 : i32 to vector<4x1xi32>
      %19 = arith.cmpi eq, %17, %18 : vector<4x1xi32>
      %20 = arith.extui %19 : vector<4x1xi1> to vector<4x1xi32>
      %21 = arith.sitofp %20 : vector<4x1xi32> to vector<4x1xf32>
      %c0_10 = arith.constant 0 : index
      %c0_11 = arith.constant 0 : index
      %22 = vector.load %arg5[%c0_10, %c0_11] : memref<4x2048xf32, #tpu.memory_space<vmem>>, vector<4x2048xf32>
      %23 = vector.broadcast %21 : vector<4x1xf32> to vector<4x2048xf32>
      %24 = vector.broadcast %16 : vector<1x2048xf32> to vector<4x2048xf32>
      %25 = arith.mulf %23, %24 : vector<4x2048xf32>
      %26 = arith.addf %22, %25 : vector<4x2048xf32>
      %c0_12 = arith.constant 0 : index
      %c0_13 = arith.constant 0 : index
      %27 = vector.load %arg5[%c0_12, %c0_13] : memref<4x2048xf32, #tpu.memory_space<vmem>>, vector<4x2048xf32>
      tpu.vector_store %arg5[%c0_12, %c0_13], %26 {strides = array<i32>} : memref<4x2048xf32, #tpu.memory_space<vmem>>, vector<4x2048xf32>,
    }
    %c4_i32_3 = arith.constant 4 : i32
    %c0_i32_4 = arith.constant 0 : i32
    %5 = arith.cmpi eq, %arg1, %c0_i32_4 : i32
    %6 = arith.extui %5 : i1 to i32
    %c0_i32_5 = arith.constant 0 : i32
    %7 = arith.cmpi ne, %6, %c0_i32_5 : i32
    scf.if %7 {
      %c0_6 = arith.constant 0 : index
      %c0_7 = arith.constant 0 : index
      %8 = vector.load %arg5[%c0_6, %c0_7] : memref<4x2048xf32, #tpu.memory_space<vmem>>, vector<4x2048xf32>
      %cst = arith.constant 3.906250e-03 : f32
      %9 = vector.broadcast %cst : f32 to vector<4x2048xf32>
      %10 = arith.mulf %8, %9 : vector<4x2048xf32>
      %11 = arith.truncf %10 : vector<4x2048xf32> to vector<4x2048xbf16>
      %c0_8 = arith.constant 0 : index
      %c0_9 = arith.constant 0 : index
      %c0_10 = arith.constant 0 : index
      %12 = vector.load %arg4[%c0_8, %c0_9, %c0_10] : memref<1x4x2048xbf16, #tpu.memory_space<vmem>>, vector<1x4x2048xbf16>
      %13 = vector.shape_cast %12 : vector<1x4x2048xbf16> to vector<4x2048xbf16>
      %14 = vector.shape_cast %11 : vector<4x2048xbf16> to vector<1x4x2048xbf16>
      tpu.vector_store %arg4[%c0_8, %c0_9, %c0_10], %14 {strides = array<i32>} : memref<1x4x2048xbf16, #tpu.memory_space<vmem>>, vector<1x4x2048xbf16>,
    } else {
    }
    return
  }
  func.func @transform_0(%arg0: i32, %arg1: i32) -> (i32, i32, i32) {
    %c0_i32 = arith.constant 0 : i32
    %c0_i32_0 = arith.constant 0 : i32
    return %arg0, %c0_i32, %arg1 : i32, i32, i32
  }
  func.func @transform_1(%arg0: i32, %arg1: i32) -> (i32, i32) {
    %c0_i32 = arith.constant 0 : i32
    %c0_i32_0 = arith.constant 0 : i32
    %c0_i32_1 = arith.constant 0 : i32
    return %c0_i32, %c0_i32_0 : i32, i32
  }
  func.func @transform_2(%arg0: i32, %arg1: i32) -> (i32, i32, i32) {
    %c0_i32 = arith.constant 0 : i32
    %c0_i32_0 = arith.constant 0 : i32
    %c0_i32_1 = arith.constant 0 : i32
    return %arg0, %c0_i32, %c0_i32_0 : i32, i32, i32
  }
}

module attributes {stable_mosaic.version = 11 : i64} {
  func.func @_head_kernel(%arg0: i32, %arg1: i32, %arg2: memref<8x1024xbf16, #tpu.memory_space<vmem>>, %arg3: memref<1024x1024xbf16, #tpu.memory_space<vmem>>, %arg4: memref<1x1024xf32, #tpu.memory_space<vmem>>, %arg5: memref<1024x896xbf16, #tpu.memory_space<vmem>>, %arg6: memref<1x896xf32, #tpu.memory_space<vmem>>, %arg7: memref<896x512xbf16, #tpu.memory_space<vmem>>, %arg8: memref<1x512xf32, #tpu.memory_space<vmem>>, %arg9: memref<8x512xf32, #tpu.memory_space<vmem>>, %arg10: memref<8x1024xf32, #tpu.memory_space<vmem>>) attributes {dimension_semantics = [#tpu.dimension_semantics<parallel>, #tpu.dimension_semantics<arbitrary>], iteration_bounds = array<i64: 1, 2>, scalar_prefetch = 0 : i64, scratch_operands = 1 : i64, tpu.core_type = #tpu.core_type<tc>, window_params = [{transform_indices = @transform_0, window_bounds = array<i64: 8, 1024>}, {transform_indices = @transform_1, window_bounds = array<i64: 1024, 1024>}, {pipeline_mode = #tpu.pipeline_mode<synchronous>, transform_indices = @transform_2, window_bounds = array<i64: 1, 1024>}, {pipeline_mode = #tpu.pipeline_mode<synchronous>, transform_indices = @transform_3, window_bounds = array<i64: 1024, 896>}, {pipeline_mode = #tpu.pipeline_mode<synchronous>, transform_indices = @transform_4, window_bounds = array<i64: 1, 896>}, {pipeline_mode = #tpu.pipeline_mode<synchronous>, transform_indices = @transform_5, window_bounds = array<i64: 896, 512>}, {pipeline_mode = #tpu.pipeline_mode<synchronous>, transform_indices = @transform_6, window_bounds = array<i64: 1, 512>}, {transform_indices = @transform_7, window_bounds = array<i64: 8, 512>}]} {
    %c0_i32 = arith.constant 0 : i32
    %0 = arith.cmpi eq, %arg1, %c0_i32 : i32
    %1 = arith.extui %0 : i1 to i32
    %c0_i32_0 = arith.constant 0 : i32
    %2 = arith.cmpi ne, %1, %c0_i32_0 : i32
    scf.if %2 {
      %cst_9 = arith.constant 0.000000e+00 : f32
      %12 = vector.broadcast %cst_9 : f32 to vector<8x1024xf32>
      %c0_10 = arith.constant 0 : index
      %c0_11 = arith.constant 0 : index
      %13 = vector.load %arg10[%c0_10, %c0_11] : memref<8x1024xf32, #tpu.memory_space<vmem>>, vector<8x1024xf32>
      tpu.vector_store %arg10[%c0_10, %c0_11], %12 {strides = array<i32>} : memref<8x1024xf32, #tpu.memory_space<vmem>>, vector<8x1024xf32>,
    } else {
    }
    %c0 = arith.constant 0 : index
    %c0_1 = arith.constant 0 : index
    %3 = vector.load %arg10[%c0, %c0_1] : memref<8x1024xf32, #tpu.memory_space<vmem>>, vector<8x1024xf32>
    %c0_2 = arith.constant 0 : index
    %c0_3 = arith.constant 0 : index
    %4 = vector.load %arg2[%c0_2, %c0_3] : memref<8x1024xbf16, #tpu.memory_space<vmem>>, vector<8x1024xbf16>
    %c0_4 = arith.constant 0 : index
    %c0_5 = arith.constant 0 : index
    %5 = vector.load %arg3[%c0_4, %c0_5] : memref<1024x1024xbf16, #tpu.memory_space<vmem>>, vector<1024x1024xbf16>
    %cst = arith.constant dense<0.000000e+00> : vector<8x1024xf32>
    %6 = tpu.matmul %4, %5, %cst {dimension_numbers = #tpu.dot_dimension_numbers<[1], [0], [0], [1], [0, 0, 1, 1], [], []>} : vector<8x1024xbf16>, vector<1024x1024xbf16>, vector<8x1024xf32> -> vector<8x1024xf32>
    %7 = arith.addf %3, %6 : vector<8x1024xf32>
    %c0_6 = arith.constant 0 : index
    %c0_7 = arith.constant 0 : index
    %8 = vector.load %arg10[%c0_6, %c0_7] : memref<8x1024xf32, #tpu.memory_space<vmem>>, vector<8x1024xf32>
    tpu.vector_store %arg10[%c0_6, %c0_7], %7 {strides = array<i32>} : memref<8x1024xf32, #tpu.memory_space<vmem>>, vector<8x1024xf32>,
    %c1_i32 = arith.constant 1 : i32
    %9 = arith.cmpi eq, %arg1, %c1_i32 : i32
    %10 = arith.extui %9 : i1 to i32
    %c0_i32_8 = arith.constant 0 : i32
    %11 = arith.cmpi ne, %10, %c0_i32_8 : i32
    scf.if %11 {
      %c0_9 = arith.constant 0 : index
      %c0_10 = arith.constant 0 : index
      %12 = vector.load %arg10[%c0_9, %c0_10] : memref<8x1024xf32, #tpu.memory_space<vmem>>, vector<8x1024xf32>
      %c0_11 = arith.constant 0 : index
      %c0_12 = arith.constant 0 : index
      %13 = vector.load %arg4[%c0_11, %c0_12] : memref<1x1024xf32, #tpu.memory_space<vmem>>, vector<1x1024xf32>
      %14 = vector.broadcast %13 : vector<1x1024xf32> to vector<8x1024xf32>
      %15 = arith.addf %12, %14 : vector<8x1024xf32>
      %cst_13 = arith.constant 0.000000e+00 : f32
      %16 = vector.broadcast %cst_13 : f32 to vector<8x1024xf32>
      %17 = arith.maximumf %15, %16 : vector<8x1024xf32>
      %18 = arith.truncf %17 : vector<8x1024xf32> to vector<8x1024xbf16>
      %c0_14 = arith.constant 0 : index
      %c0_15 = arith.constant 0 : index
      %19 = vector.load %arg5[%c0_14, %c0_15] : memref<1024x896xbf16, #tpu.memory_space<vmem>>, vector<1024x896xbf16>
      %cst_16 = arith.constant dense<0.000000e+00> : vector<8x896xf32>
      %20 = tpu.matmul %18, %19, %cst_16 {dimension_numbers = #tpu.dot_dimension_numbers<[1], [0], [0], [1], [0, 0, 1, 1], [], []>} : vector<8x1024xbf16>, vector<1024x896xbf16>, vector<8x896xf32> -> vector<8x896xf32>
      %c0_17 = arith.constant 0 : index
      %c0_18 = arith.constant 0 : index
      %21 = vector.load %arg6[%c0_17, %c0_18] : memref<1x896xf32, #tpu.memory_space<vmem>>, vector<1x896xf32>
      %22 = vector.broadcast %21 : vector<1x896xf32> to vector<8x896xf32>
      %23 = arith.addf %20, %22 : vector<8x896xf32>
      %cst_19 = arith.constant 0.000000e+00 : f32
      %24 = vector.broadcast %cst_19 : f32 to vector<8x896xf32>
      %25 = arith.maximumf %23, %24 : vector<8x896xf32>
      %26 = arith.truncf %25 : vector<8x896xf32> to vector<8x896xbf16>
      %c0_20 = arith.constant 0 : index
      %c0_21 = arith.constant 0 : index
      %27 = vector.load %arg7[%c0_20, %c0_21] : memref<896x512xbf16, #tpu.memory_space<vmem>>, vector<896x512xbf16>
      %cst_22 = arith.constant dense<0.000000e+00> : vector<8x512xf32>
      %28 = tpu.matmul %26, %27, %cst_22 {dimension_numbers = #tpu.dot_dimension_numbers<[1], [0], [0], [1], [0, 0, 1, 1], [], []>} : vector<8x896xbf16>, vector<896x512xbf16>, vector<8x512xf32> -> vector<8x512xf32>
      %c0_23 = arith.constant 0 : index
      %c0_24 = arith.constant 0 : index
      %29 = vector.load %arg8[%c0_23, %c0_24] : memref<1x512xf32, #tpu.memory_space<vmem>>, vector<1x512xf32>
      %30 = vector.broadcast %29 : vector<1x512xf32> to vector<8x512xf32>
      %31 = arith.addf %28, %30 : vector<8x512xf32>
      %c0_25 = arith.constant 0 : index
      %c0_26 = arith.constant 0 : index
      %32 = vector.load %arg9[%c0_25, %c0_26] : memref<8x512xf32, #tpu.memory_space<vmem>>, vector<8x512xf32>
      tpu.vector_store %arg9[%c0_25, %c0_26], %31 {strides = array<i32>} : memref<8x512xf32, #tpu.memory_space<vmem>>, vector<8x512xf32>,
    } else {
    }
    return
  }
  func.func @transform_0(%arg0: i32, %arg1: i32) -> (i32, i32) {
    %c0_i32 = arith.constant 0 : i32
    return %arg0, %arg1 : i32, i32
  }
  func.func @transform_1(%arg0: i32, %arg1: i32) -> (i32, i32) {
    %c0_i32 = arith.constant 0 : i32
    %c0_i32_0 = arith.constant 0 : i32
    return %arg1, %c0_i32 : i32, i32
  }
  func.func @transform_2(%arg0: i32, %arg1: i32) -> (i32, i32) {
    %c0_i32 = arith.constant 0 : i32
    %c0_i32_0 = arith.constant 0 : i32
    %c0_i32_1 = arith.constant 0 : i32
    return %c0_i32, %c0_i32_0 : i32, i32
  }
  func.func @transform_3(%arg0: i32, %arg1: i32) -> (i32, i32) {
    %c0_i32 = arith.constant 0 : i32
    %c0_i32_0 = arith.constant 0 : i32
    %c0_i32_1 = arith.constant 0 : i32
    return %c0_i32, %c0_i32_0 : i32, i32
  }
  func.func @transform_4(%arg0: i32, %arg1: i32) -> (i32, i32) {
    %c0_i32 = arith.constant 0 : i32
    %c0_i32_0 = arith.constant 0 : i32
    %c0_i32_1 = arith.constant 0 : i32
    return %c0_i32, %c0_i32_0 : i32, i32
  }
  func.func @transform_5(%arg0: i32, %arg1: i32) -> (i32, i32) {
    %c0_i32 = arith.constant 0 : i32
    %c0_i32_0 = arith.constant 0 : i32
    %c0_i32_1 = arith.constant 0 : i32
    return %c0_i32, %c0_i32_0 : i32, i32
  }
  func.func @transform_6(%arg0: i32, %arg1: i32) -> (i32, i32) {
    %c0_i32 = arith.constant 0 : i32
    %c0_i32_0 = arith.constant 0 : i32
    %c0_i32_1 = arith.constant 0 : i32
    return %c0_i32, %c0_i32_0 : i32, i32
  }
  func.func @transform_7(%arg0: i32, %arg1: i32) -> (i32, i32) {
    %c0_i32 = arith.constant 0 : i32
    %c0_i32_0 = arith.constant 0 : i32
    return %arg0, %c0_i32 : i32, i32
  }
}

</mosaic_0001>

<llo_original>
// kernel: rescnn_encoder_forward.2
$region0: #{rescnn_encoder_forward.2}
  #allocation0 [shape = 'u32[]', space=smem, size = 0x4, offset = 0x4, fixed_abs, tag = 'smem constant byte address 0x4 - core index']
  #allocation1 [shape = 'u32[144,128]{1,0:T(1,128)}', space=vmem, size = 0x12000, scoped, tag = 'internal scratch']
  #allocation2 [shape = 'f32[4,2048]{1,0:T(4,128)}', space=vmem, size = 0x8000, scoped, tag = 'scratch operand']
  %s0 = inlined_call_operand.vmem [shape: f32[8,3,256], index: 0, kind: input, shape index: {}]
  %s1 = inlined_call_operand.vmem [shape: bf16[3,2048], index: 1, kind: input, shape index: {}]
  %s2 = inlined_call_operand.vmem [shape: bf16[2,4,2048], index: 2, kind: output, shape index: {}]
  %s3 = sld [smem:[#allocation0]]
  $region56: #{rescnn_encoder_forward.2} parent=0
    _
  %s5 = ssub.s32 1, %s3
  %s6 = scalar_select 0, %s5, %s3
  loop: start=0, step=1, limit=4
  $region2: #{rescnn_encoder_forward.2} parent=0 // loop_pre_header
    _
  $region3: #{rescnn_encoder_forward.2} parent=0 // loop_header
    %s8 = sphi 0, %s12
    %p9 = scmp.ge.s32.totalorder %s8, 4
    %s15 = sphi 0, %s27
    %s16 = sphi 0, %s23
    %s17 = sphi 0, %s15
    %s18 = sphi 0, %s16
    %s19 = sphi 0, %s17
    %s20 = sphi 0, %s18
    %s32 = sphi 0, %s34
    %s35 = sphi 0, %s32
    %s36 = sphi 0, %s35
    %s52 = sphi 0, %s36
    %s56 = sphi 0, %s56
    %s58 = sphi 0, %s56
    %s59 = sphi 0, %s58
    %s73 = sphi 0, %s59
    %s79 = sphi 0, %s81
    %s82 = sphi 0, %s79
    %s83 = sphi 0, %s82
    %s99 = sphi 0, %s83
  $region4: #{rescnn_encoder_forward.2} parent=0 // loop_header_branch
    %11 = sbr.rel (%p9) target = $region8
  $region5: #{rescnn_encoder_forward.2} parent=0 // loop_body
    %s13 = ssub.s32 %s8, 1
    %s14 = ssub.s32 %s8, 2
    %s21 = sadd.s32 1, %s16
    %p22 = scmp.ge.s32.totalorder %s21, 1
    %s23 = scalar_select %p22, 0, %s21
    %s24 = sadd.s32 1, %s15
    %s25 = scalar_select %p22, %s24, %s15
    %p26 = scmp.ge.s32.totalorder %s25, 2
    %s27 = scalar_select %p26, 0, %s25
    %s28 = ssub.s32 %s15, %s27
    %s29 = ssub.s32 %s16, %s23
    %s30 = sor.u32 %s28, %s29
    %p31 = scmp.eq.s32.totalorder %s30, 0
    %s33 = sadd.s32 %s32, 1
    %s34 = scalar_select %p31, %s32, %s33
    %p37 = pneg %p31
    %p38 = scmp.eq.s32.totalorder %s8, 1
    %p39 = por %p37, %p38
    %p40 = scmp.ne.s32.totalorder %s32, %s35
    %p41 = scmp.eq.s32.totalorder %s8, 0
    %p42 = por %p40, %p41
    %p43 = scmp.ne.s32.totalorder %s32, %s35
    %p44 = scmp.eq.s32.totalorder %s13, 1
    %p45 = por %p43, %p44
    %p46 = scmp.ne.s32.totalorder %s35, %s36
    %p47 = scmp.eq.s32.totalorder %s13, 0
    %p48 = por %p46, %p47
    %p49 = scmp.ne.s32.totalorder %s35, %s36
    %p50 = scmp.eq.s32.totalorder %s14, 1
    %p51 = por %p49, %p50
    %p53 = scmp.ne.s32.totalorder %s36, %s52
    %p54 = scmp.eq.s32.totalorder %s14, 0
    %p55 = por %p53, %p54
    %s57 = sadd.s32 %s56, 1
    %p60 = scmp.eq.s32.totalorder %s8, 1
    %p61 = scmp.ne.s32.totalorder %s56, %s58
    %p62 = scmp.eq.s32.totalorder %s8, 0
    %p63 = por %p61, %p62
    %p64 = scmp.ne.s32.totalorder %s56, %s58
    %p65 = scmp.eq.s32.totalorder %s13, 1
    %p66 = por %p64, %p65
    %p67 = scmp.ne.s32.totalorder %s58, %s59
    %p68 = scmp.eq.s32.totalorder %s13, 0
    %p69 = por %p67, %p68
    %p70 = scmp.ne.s32.totalorder %s58, %s59
    %p71 = scmp.eq.s32.totalorder %s14, 1
    %p72 = por %p70, %p71
    %p74 = scmp.ne.s32.totalorder %s59, %s73
    %p75 = scmp.eq.s32.totalorder %s14, 0
    %p76 = por %p74, %p75
    %s77 = ssub.s32 %s15, %s27
    %p78 = scmp.eq.s32.totalorder %s77, 0
    %s80 = sadd.s32 %s79, 1
    %s81 = scalar_select %p78, %s79, %s80
    %p84 = pneg %p78
    %p85 = scmp.eq.s32.totalorder %s8, 1
    %p86 = por %p84, %p85
    %p87 = scmp.ne.s32.totalorder %s79, %s82
    %p88 = scmp.eq.s32.totalorder %s8, 0
    %p89 = por %p87, %p88
    %p90 = scmp.ne.s32.totalorder %s79, %s82
    %p91 = scmp.eq.s32.totalorder %s13, 1
    %p92 = por %p90, %p91
    %p93 = scmp.ne.s32.totalorder %s82, %s83
    %p94 = scmp.eq.s32.totalorder %s13, 0
    %p95 = por %p93, %p94
    %p96 = scmp.ne.s32.totalorder %s82, %s83
    %p97 = scmp.eq.s32.totalorder %s14, 1
    %p98 = por %p96, %p97
    %p100 = scmp.ne.s32.totalorder %s83, %s99
    %p101 = scmp.eq.s32.totalorder %s14, 0
    %p102 = por %p100, %p101
    %p103 = scmp.le.s32.totalorder 1, %s8
    %p104 = scmp.lt.s32.totalorder %s8, 3
    %p105 = pnand %p103, %p104
    %p106 = pneg %p105
    // Predicated region
    $region9: #{rescnn_encoder_forward.2} parent=5 // pred_check
      _
    $region10: #{rescnn_encoder_forward.2} parent=5 // pred_check_branch
      %108 = sbr.rel (%p105) target = $region12
    $region11: #{rescnn_encoder_forward.2} parent=5 // pred_region
      %s109 = ssub.s32 %s8, 1
      // Predicated region
      $region13: #{rescnn_encoder_forward.2} parent=11 // pred_check
        %p110 = pneg %p69
      $region14: #{rescnn_encoder_forward.2} parent=11 // pred_check_branch
        %112 = sbr.rel (%p110) target = $region16
      $region15: #{rescnn_encoder_forward.2} parent=11 // pred_region
        _
      $region16: #{rescnn_encoder_forward.2} parent=11 // pred_fallthru
        _
    $region12: #{rescnn_encoder_forward.2} parent=5 // pred_fallthru
      _
    %p113 = scmp.lt.s32.totalorder %s8, 2
    // Predicated region
    $region17: #{rescnn_encoder_forward.2} parent=5 // pred_check
      %p114 = pneg %p113
    $region18: #{rescnn_encoder_forward.2} parent=5 // pred_check_branch
      %116 = sbr.rel (%p114) target = $region20
    $region19: #{rescnn_encoder_forward.2} parent=5 // pred_region
      // Predicated region
      $region21: #{rescnn_encoder_forward.2} parent=19 // pred_check
        %p117 = pneg %p42
      $region22: #{rescnn_encoder_forward.2} parent=19 // pred_check_branch
        %119 = sbr.rel (%p117) target = $region24
      $region23: #{rescnn_encoder_forward.2} parent=19 // pred_region
        %s120 = smul.u32 4, %s15
        %s121 = smul.u32 2, %s16
        %p122 = scmp.lt.s32.totalorder %s120, 7
        %s123 = scalar_select %p122, %s120, 7
        %p124 = scmp.lt.s32.totalorder %s121, 1
        %s125 = scalar_select %p124, %s121, 1
        %s126 = smul.addr %s123, 2
        %s127 = sadd.s32 %s125, %s126
        %s128 = smul.addr %s127, 4
        %s129 = scalar_lea.vmem %s0, %s128
        %s130 = smul.u32 4, %s15
        %s131 = smul.u32 2, %s16
      $region24: #{rescnn_encoder_forward.2} parent=19 // pred_fallthru
        _
    $region20: #{rescnn_encoder_forward.2} parent=5 // pred_fallthru
      _
    %p132 = scmp.le.s32.totalorder 1, %s8
    %p133 = scmp.lt.s32.totalorder %s8, 3
    %p134 = pnand %p132, %p133
    %p135 = pneg %p134
    // Predicated region
    $region25: #{rescnn_encoder_forward.2} parent=5 // pred_check
      _
    $region26: #{rescnn_encoder_forward.2} parent=5 // pred_check_branch
      %137 = sbr.rel (%p134) target = $region28
    $region27: #{rescnn_encoder_forward.2} parent=5 // pred_region
      %s138 = ssub.s32 %s8, 1
      %s139 = smul.u32 4, %s17
      %s140 = smul.u32 2, %s18
      %p141 = scmp.lt.s32.totalorder %s139, 7
      %s142 = scalar_select %p141, %s139, 7
      %p143 = scmp.lt.s32.totalorder %s140, 1
      %s144 = scalar_select %p143, %s140, 1
      %s145 = smul.addr %s142, 2
      %s146 = sadd.s32 %s144, %s145
      %s147 = smul.addr %s146, 4
      %s148 = scalar_lea.vmem %s0, %s147
      %p149 = pneg %p48
      %p150 = pneg %p45
      %p151 = pneg %p69
      %p152 = pneg %p66
      %p153 = pneg %p95
      %p154 = pneg %p92
      %p155 = scmp.lt.s32.totalorder %s17, 1
      %s156 = scalar_select %p155, %s17, 1
      %s157 = smul.addr %s156, 16
      %s158 = smul.addr %s157, 2
      %s159 = scalar_lea.vmem %s2, %s158
      %s160 = smul.u32 4, %s17
      %s161 = smul.u32 2, %s18
      %p162 = scmp.lt.s32.totalorder %s160, 7
      %s163 = scalar_select %p162, %s160, 7
      %p164 = scmp.lt.s32.totalorder %s161, 1
      %s165 = scalar_select %p164, %s161, 1
      %s166 = smul.addr %s163, 2
      %s167 = sadd.s32 %s165, %s166
      %s168 = smul.addr %s167, 4
      %s169 = scalar_lea.vmem %s0, %s168
      %s170 = smul.u32 4, %s17
      %s171 = smul.u32 2, %s18
      %p172 = scmp.lt.s32.totalorder %s17, 1
      %s173 = scalar_select %p172, %s17, 1
      %s174 = smul.addr %s173, 16
      %s175 = smul.addr %s174, 2
      %s176 = scalar_lea.vmem %s2, %s175
      %p178 = scmp.eq.s32.totalorder %s18, 0
      // Predicated region
      $region29: #{rescnn_encoder_forward.2} parent=27 // pred_check
        %p179 = pneg %p178
      $region30: #{rescnn_encoder_forward.2} parent=27 // pred_check_branch
        %181 = sbr.rel (%p179) target = $region32
      $region31: #{rescnn_encoder_forward.2} parent=27 // pred_region
        %182 = vst [vmem:[#allocation2] sm:$0xff] 0.0
        %183 = vst [vmem:[#allocation2 + $0x8] sm:$0xff] 0.0
        %184 = vst [vmem:[#allocation2 + $0x10] sm:$0xff] 0.0
        %185 = vst [vmem:[#allocation2 + $0x18] sm:$0xff] 0.0
        %186 = vst [vmem:[#allocation2 + $0x20] sm:$0xff] 0.0
        %187 = vst [vmem:[#allocation2 + $0x28] sm:$0xff] 0.0
        %188 = vst [vmem:[#allocation2 + $0x30] sm:$0xff] 0.0
        %189 = vst [vmem:[#allocation2 + $0x38] sm:$0xff] 0.0
      $region32: #{rescnn_encoder_forward.2} parent=27 // pred_fallthru
        _
      %v190 = vld [vmem:[%s1] sm:$0xff]
      %v191 = vld [vmem:[%s1 + $0x8] sm:$0xff]
      %v192 = vld [vmem:[%s1 + $0x10] sm:$0xff]
      %v193 = vld [vmem:[%s1 + $0x18] sm:$0xff]
      loop: start=0, step=1, limit=4
      $region33: #{rescnn_encoder_forward.2} parent=27 // loop_pre_header
        _
      $region34: #{rescnn_encoder_forward.2} parent=27 // loop_header
        %s195 = sphi 0, %s199
        %p196 = scmp.ge.s32.totalorder %s195, 4
      $region35: #{rescnn_encoder_forward.2} parent=27 // loop_header_branch
        %198 = sbr.rel (%p196) target = $region39
      $region36: #{rescnn_encoder_forward.2} parent=27 // loop_body
        %s200 = smul.u32 %s195, 2
        %s201 = smul.addr %s200, 4
        %s202 = scalar_lea.vmem %s169, %s201
        %v203 = vld [vmem:[%s202] sm:$0x77]
        %v205 = vcombine.high %v203, %v203
        %v207 = vpack.c.bf16 %v203, %v203
        %v208 = vpack.c.bf16 %v205, %v205
        %209 = vxpose.xlu0.c.b16.start [1/8] %v207, 128
        %210 = vxpose.xlu0.c.b16.cont [2/8] 0, 128
        %211 = vxpose.xlu0.c.b16.cont [3/8] 0, 128
        %212 = vxpose.xlu0.c.b16.cont [4/8] 0, 128
        %213 = vxpose.xlu0.c.b16.cont [5/8] 0, 128
        %214 = vxpose.xlu0.c.b16.cont [6/8] 0, 128
        %215 = vxpose.xlu0.c.b16.cont [7/8] 0, 128
        %216 = vxpose.xlu0.c.b16.end [8/8] 0, 128
        %v217 = vpop.trf.xlu0
        %v218 = vpop.trf.xlu0
        %v219 = vpop.trf.xlu0
        %v220 = vpop.trf.xlu0
        %v221 = vpop.trf.xlu0
        %v222 = vpop.trf.xlu0
        %v223 = vpop.trf.xlu0
        %v224 = vpop.trf.xlu0
        %225 = vxpose.xlu0.c.b16.start [1/8] %v208, 128
        %226 = vxpose.xlu0.c.b16.cont [2/8] 0, 128
        %227 = vxpose.xlu0.c.b16.cont [3/8] 0, 128
        %228 = vxpose.xlu0.c.b16.cont [4/8] 0, 128
        %229 = vxpose.xlu0.c.b16.cont [5/8] 0, 128
        %230 = vxpose.xlu0.c.b16.cont [6/8] 0, 128
        %231 = vxpose.xlu0.c.b16.cont [7/8] 0, 128
        %232 = vxpose.xlu0.c.b16.end [8/8] 0, 128
        %v233 = vpop.trf.xlu0
        %v234 = vpop.trf.xlu0
        %v235 = vpop.trf.xlu0
        %v236 = vpop.trf.xlu0
        %v237 = vpop.trf.xlu0
        %v238 = vpop.trf.xlu0
        %v239 = vpop.trf.xlu0
        %v240 = vpop.trf.xlu0
        %v245 = vcombine.high %v190, %v190
        %v247 = vunpack.c.l.s4 1983009808
        %v248 = vunpack.c.0.s8 %v247
        %v249 = vlaneseq
        %v250 = vshrl.u32 %v249, 7
        %v251 = vsub.s32 %v248, %v250
        %v252 = vrot.slane %v190, %v251
        %v254 = vunpack.c.l.s4 1983009808
        %v255 = vunpack.c.0.s8 %v254
        %v256 = vlaneseq
        %v257 = vshrl.u32 %v256, 7
        %v258 = vsub.s32 %v255, %v257
        %v259 = vrot.slane %v245, %v258
        %v260 = vcombine.high %v252, %v252
        %v261 = vcombine.high %v259, %v259
        %v262 = vcombine.high %v191, %v191
        %v264 = vunpack.c.l.s4 1983009808
        %v265 = vunpack.c.0.s8 %v264
        %v266 = vlaneseq
        %v267 = vshrl.u32 %v266, 7
        %v268 = vsub.s32 %v265, %v267
        %v269 = vrot.slane %v191, %v268
        %v271 = vunpack.c.l.s4 1983009808
        %v272 = vunpack.c.0.s8 %v271
        %v273 = vlaneseq
        %v274 = vshrl.u32 %v273, 7
        %v275 = vsub.s32 %v272, %v274
        %v276 = vrot.slane %v262, %v275
        %v277 = vcombine.high %v269, %v269
        %v278 = vcombine.high %v276, %v276
        %v279 = vcombine.high %v192, %v192
        %v281 = vunpack.c.l.s4 1983009808
        %v282 = vunpack.c.0.s8 %v281
        %v283 = vlaneseq
        %v284 = vshrl.u32 %v283, 7
        %v285 = vsub.s32 %v282, %v284
        %v286 = vrot.slane %v192, %v285
        %v288 = vunpack.c.l.s4 1983009808
        %v289 = vunpack.c.0.s8 %v288
        %v290 = vlaneseq
        %v291 = vshrl.u32 %v290, 7
        %v292 = vsub.s32 %v289, %v291
        %v293 = vrot.slane %v279, %v292
        %v294 = vcombine.high %v286, %v286
        %v295 = vcombine.high %v293, %v293
        %v296 = vcombine.high %v193, %v193
        %v298 = vunpack.c.l.s4 1983009808
        %v299 = vunpack.c.0.s8 %v298
        %v300 = vlaneseq
        %v301 = vshrl.u32 %v300, 7
        %v302 = vsub.s32 %v299, %v301
        %v303 = vrot.slane %v193, %v302
        %v305 = vunpack.c.l.s4 1983009808
        %v306 = vunpack.c.0.s8 %v305
        %v307 = vlaneseq
        %v308 = vshrl.u32 %v307, 7
        %v309 = vsub.s32 %v306, %v308
        %v310 = vrot.slane %v296, %v309
        %v311 = vcombine.high %v303, %v303
        %v312 = vcombine.high %v310, %v310
        %vm313 = vcmask 23552
        %v315 = vsel %vm313, %v217, 0
        %v318 = vsel %vm313, %v218, 0
        %v321 = vsel %vm313, %v219, 0
        %v324 = vsel %vm313, %v220, 0
        %v327 = vsel %vm313, %v221, 0
        %v330 = vsel %vm313, %v222, 0
        %v333 = vsel %vm313, %v223, 0
        %v336 = vsel %vm313, %v224, 0
        %v339 = vsel %vm313, %v233, 0
        %v342 = vsel %vm313, %v234, 0
        %v345 = vsel %vm313, %v235, 0
        %v348 = vsel %vm313, %v236, 0
        %v351 = vsel %vm313, %v237, 0
        %v354 = vsel %vm313, %v238, 0
        %v357 = vsel %vm313, %v239, 0
        %v360 = vsel %vm313, %v240, 0
        %vm362 = vcmask 1040384
        %vm363 = vcmask 1041408
        %v364 = vsel %vm362, 4294967295, 65535
        %v365 = vsel %vm363, %v364, 0
        %v367 = vand.u32 %v252, %v365
        %v370 = vand.u32 %v260, %v365
        %v373 = vand.u32 %v259, %v365
        %v376 = vand.u32 %v261, %v365
        %v379 = vand.u32 %v269, %v365
        %v382 = vand.u32 %v277, %v365
        %v385 = vand.u32 %v276, %v365
        %v388 = vand.u32 %v278, %v365
        %v391 = vand.u32 %v286, %v365
        %v394 = vand.u32 %v294, %v365
        %v397 = vand.u32 %v293, %v365
        %v400 = vand.u32 %v295, %v365
        %v403 = vand.u32 %v303, %v365
        %v406 = vand.u32 %v311, %v365
        %v409 = vand.u32 %v310, %v365
        %v412 = vand.u32 %v312, %v365
        %414 = vmatprep.subr.bf16.mxu0 0
        %415 = vmatpush1.bf16.msra.mxu0 0
        %416 = vmatprep.subr.bf16.mxu0 0
        %417 = vmatpush1.bf16.msra.mxu0 0
        %418 = vmatprep.subr.bf16.mxu0 0
        %419 = vmatpush1.bf16.msra.mxu0 0
        %420 = vmatprep.subr.bf16.mxu0 0
        %421 = vmatpush1.bf16.msra.mxu0 0
        %422 = vmatprep.subr.bf16.mxu0 0
        %423 = vmatpush1.bf16.msra.mxu0 0
        %424 = vmatprep.subr.bf16.mxu0 0
        %425 = vmatpush1.bf16.msra.mxu0 0
        %426 = vmatprep.subr.bf16.mxu0 0
        %427 = vmatpush1.bf16.msra.mxu0 0
        %428 = vmatprep.subr.bf16.mxu0 %v370
        %429 = vmatpush1.bf16.msra.mxu0 %v367
        %430 = vmatprep.subr.bf16.mxu0 0
        %431 = vmatpush2.bf16.msra.mxu0 0
        %432 = vmatprep.subr.bf16.mxu0 0
        %433 = vmatpush2.bf16.msra.mxu0 0
        %434 = vmatprep.subr.bf16.mxu0 0
        %435 = vmatpush2.bf16.msra.mxu0 0
        %436 = vmatprep.subr.bf16.mxu0 0
        %437 = vmatpush2.bf16.msra.mxu0 0
        %438 = vmatprep.subr.bf16.mxu0 0
        %439 = vmatpush2.bf16.msra.mxu0 0
        %440 = vmatprep.subr.bf16.mxu0 0
        %441 = vmatpush2.bf16.msra.mxu0 0
        %442 = vmatprep.subr.bf16.mxu0 0
        %443 = vmatpush2.bf16.msra.mxu0 0
        %444 = vmatprep.subr.bf16.mxu0 0
        %445 = vmatpush2.bf16.msra.mxu0 0
        %446 = vmatprep.mubr.bf16.mxu0 0
        %447 = vmatmul.mubr.bf16.gmra.mxu0 %v315
        %v448 = vpop.f32.mrf.mxu0
        %v449 = vadd.f32 0.0, %v448
        %v450 = vpop.f32.mrf.mxu0
        %v451 = vadd.f32 0.0, %v450
        %v452 = vpop.f32.mrf.mxu0
        %v453 = vadd.f32 0.0, %v452
        %v454 = vpop.f32.mrf.mxu0
        %v455 = vadd.f32 0.0, %v454
        %456 = vmatprep.mubr.bf16.mxu0 0
        %457 = vmatmul.mubr.bf16.gmra.mxu0 %v318
        %v458 = vpop.f32.mrf.mxu0
        %v459 = vadd.f32 0.0, %v458
        %v460 = vpop.f32.mrf.mxu0
        %v461 = vadd.f32 0.0, %v460
        %v462 = vpop.f32.mrf.mxu0
        %v463 = vadd.f32 0.0, %v462
        %v464 = vpop.f32.mrf.mxu0
        %v465 = vadd.f32 0.0, %v464
        %466 = vmatprep.mubr.bf16.mxu0 0
        %467 = vmatmul.mubr.bf16.gmra.mxu0 %v321
        %v468 = vpop.f32.mrf.mxu0
        %v469 = vadd.f32 0.0, %v468
        %v470 = vpop.f32.mrf.mxu0
        %v471 = vadd.f32 0.0, %v470
        %v472 = vpop.f32.mrf.mxu0
        %v473 = vadd.f32 0.0, %v472
        %v474 = vpop.f32.mrf.mxu0
        %v475 = vadd.f32 0.0, %v474
        %476 = vmatprep.mubr.bf16.mxu0 0
        %477 = vmatmul.mubr.bf16.gmra.mxu0 %v324
        %v478 = vpop.f32.mrf.mxu0
        %v479 = vadd.f32 0.0, %v478
        %v480 = vpop.f32.mrf.mxu0
        %v481 = vadd.f32 0.0, %v480
        %v482 = vpop.f32.mrf.mxu0
        %v483 = vadd.f32 0.0, %v482
        %v484 = vpop.f32.mrf.mxu0
        %v485 = vadd.f32 0.0, %v484
        %486 = vmatprep.mubr.bf16.mxu0 0
        %487 = vmatmul.mubr.bf16.gmra.mxu0 %v327
        %v488 = vpop.f32.mrf.mxu0
        %v489 = vadd.f32 0.0, %v488
        %v490 = vpop.f32.mrf.mxu0
        %v491 = vadd.f32 0.0, %v490
        %v492 = vpop.f32.mrf.mxu0
        %v493 = vadd.f32 0.0, %v492
        %v494 = vpop.f32.mrf.mxu0
        %v495 = vadd.f32 0.0, %v494
        %496 = vmatprep.mubr.bf16.mxu0 0
        %497 = vmatmul.mubr.bf16.gmra.mxu0 %v330
        %v498 = vpop.f32.mrf.mxu0
        %v499 = vadd.f32 0.0, %v498
        %v500 = vpop.f32.mrf.mxu0
        %v501 = vadd.f32 0.0, %v500
        %v502 = vpop.f32.mrf.mxu0
        %v503 = vadd.f32 0.0, %v502
        %v504 = vpop.f32.mrf.mxu0
        %v505 = vadd.f32 0.0, %v504
        %506 = vmatprep.mubr.bf16.mxu0 0
        %507 = vmatmul.mubr.bf16.gmra.mxu0 %v333
        %v508 = vpop.f32.mrf.mxu0
        %v509 = vadd.f32 0.0, %v508
        %v510 = vpop.f32.mrf.mxu0
        %v511 = vadd.f32 0.0, %v510
        %v512 = vpop.f32.mrf.mxu0
        %v513 = vadd.f32 0.0, %v512
        %v514 = vpop.f32.mrf.mxu0
        %v515 = vadd.f32 0.0, %v514
        %516 = vmatprep.mubr.bf16.mxu0 0
        %517 = vmatmul.mubr.bf16.gmra.mxu0 %v336
        %v518 = vpop.f32.mrf.mxu0
        %v519 = vadd.f32 0.0, %v518
        %v520 = vpop.f32.mrf.mxu0
        %v521 = vadd.f32 0.0, %v520
        %v522 = vpop.f32.mrf.mxu0
        %v523 = vadd.f32 0.0, %v522
        %v524 = vpop.f32.mrf.mxu0
        %v525 = vadd.f32 0.0, %v524
        %526 = vmatprep.mubr.bf16.mxu0 0
        %527 = vmatmul.mubr.bf16.gmra.mxu0 %v339
        %v528 = vpop.f32.mrf.mxu0
        %v529 = vadd.f32 0.0, %v528
        %v530 = vpop.f32.mrf.mxu0
        %v531 = vadd.f32 0.0, %v530
        %v532 = vpop.f32.mrf.mxu0
        %v533 = vadd.f32 0.0, %v532
        %v534 = vpop.f32.mrf.mxu0
        %v535 = vadd.f32 0.0, %v534
        %536 = vmatprep.mubr.bf16.mxu0 0
        %537 = vmatmul.mubr.bf16.gmra.mxu0 %v342
        %v538 = vpop.f32.mrf.mxu0
        %v539 = vadd.f32 0.0, %v538
        %v540 = vpop.f32.mrf.mxu0
        %v541 = vadd.f32 0.0, %v540
        %v542 = vpop.f32.mrf.mxu0
        %v543 = vadd.f32 0.0, %v542
        %v544 = vpop.f32.mrf.mxu0
        %v545 = vadd.f32 0.0, %v544
        %546 = vmatprep.mubr.bf16.mxu0 0
        %547 = vmatmul.mubr.bf16.gmra.mxu0 %v345
        %v548 = vpop.f32.mrf.mxu0
        %v549 = vadd.f32 0.0, %v548
        %v550 = vpop.f32.mrf.mxu0
        %v551 = vadd.f32 0.0, %v550
        %v552 = vpop.f32.mrf.mxu0
        %v553 = vadd.f32 0.0, %v552
        %v554 = vpop.f32.mrf.mxu0
        %v555 = vadd.f32 0.0, %v554
        %556 = vmatprep.mubr.bf16.mxu0 0
        %557 = vmatmul.mubr.bf16.gmra.mxu0 %v348
        %v558 = vpop.f32.mrf.mxu0
        %v559 = vadd.f32 0.0, %v558
        %v560 = vpop.f32.mrf.mxu0
        %v561 = vadd.f32 0.0, %v560
        %v562 = vpop.f32.mrf.mxu0
        %v563 = vadd.f32 0.0, %v562
        %v564 = vpop.f32.mrf.mxu0
        %v565 = vadd.f32 0.0, %v564
        %566 = vmatprep.mubr.bf16.mxu0 0
        %567 = vmatmul.mubr.bf16.gmra.mxu0 %v351
        %v568 = vpop.f32.mrf.mxu0
        %v569 = vadd.f32 0.0, %v568
        %v570 = vpop.f32.mrf.mxu0
        %v571 = vadd.f32 0.0, %v570
        %v572 = vpop.f32.mrf.mxu0
        %v573 = vadd.f32 0.0, %v572
        %v574 = vpop.f32.mrf.mxu0
        %v575 = vadd.f32 0.0, %v574
        %576 = vmatprep.mubr.bf16.mxu0 0
        %577 = vmatmul.mubr.bf16.gmra.mxu0 %v354
        %v578 = vpop.f32.mrf.mxu0
        %v579 = vadd.f32 0.0, %v578
        %v580 = vpop.f32.mrf.mxu0
        %v581 = vadd.f32 0.0, %v580
        %v582 = vpop.f32.mrf.mxu0
        %v583 = vadd.f32 0.0, %v582
        %v584 = vpop.f32.mrf.mxu0
        %v585 = vadd.f32 0.0, %v584
        %586 = vmatprep.mubr.bf16.mxu0 0
        %587 = vmatmul.mubr.bf16.gmra.mxu0 %v357
        %v588 = vpop.f32.mrf.mxu0
        %v589 = vadd.f32 0.0, %v588
        %v590 = vpop.f32.mrf.mxu0
        %v591 = vadd.f32 0.0, %v590
        %v592 = vpop.f32.mrf.mxu0
        %v593 = vadd.f32 0.0, %v592
        %v594 = vpop.f32.mrf.mxu0
        %v595 = vadd.f32 0.0, %v594
        %596 = vmatprep.mubr.bf16.mxu0 0
        %597 = vmatmul.mubr.bf16.gmra.mxu0 %v360
        %v598 = vpop.f32.mrf.mxu0
        %v599 = vadd.f32 0.0, %v598
        %v600 = vpop.f32.mrf.mxu0
        %v601 = vadd.f32 0.0, %v600
        %v602 = vpop.f32.mrf.mxu0
        %v603 = vadd.f32 0.0, %v602
        %v604 = vpop.f32.mrf.mxu0
        %v605 = vadd.f32 0.0, %v604
        %606 = vdwg.mxu0
        %607 = vmatprep.subr.bf16.mxu0 0
        %608 = vmatpush1.bf16.msra.mxu0 0
        %609 = vmatprep.subr.bf16.mxu0 0
        %610 = vmatpush1.bf16.msra.mxu0 0
        %611 = vmatprep.subr.bf16.mxu0 0
        %612 = vmatpush1.bf16.msra.mxu0 0
        %613 = vmatprep.subr.bf16.mxu0 0
        %614 = vmatpush1.bf16.msra.mxu0 0
        %615 = vmatprep.subr.bf16.mxu0 0
        %616 = vmatpush1.bf16.msra.mxu0 0
        %617 = vmatprep.subr.bf16.mxu0 0
        %618 = vmatpush1.bf16.msra.mxu0 0
        %619 = vmatprep.subr.bf16.mxu0 0
        %620 = vmatpush1.bf16.msra.mxu0 0
        %621 = vmatprep.subr.bf16.mxu0 %v376
        %622 = vmatpush1.bf16.msra.mxu0 %v373
        %623 = vmatprep.subr.bf16.mxu0 0
        %624 = vmatpush2.bf16.msra.mxu0 0
        %625 = vmatprep.subr.bf16.mxu0 0
        %626 = vmatpush2.bf16.msra.mxu0 0
        %627 = vmatprep.subr.bf16.mxu0 0
        %628 = vmatpush2.bf16.msra.mxu0 0
        %629 = vmatprep.subr.bf16.mxu0 0
        %630 = vmatpush2.bf16.msra.mxu0 0
        %631 = vmatprep.subr.bf16.mxu0 0
        %632 = vmatpush2.bf16.msra.mxu0 0
        %633 = vmatprep.subr.bf16.mxu0 0
        %634 = vmatpush2.bf16.msra.mxu0 0
        %635 = vmatprep.subr.bf16.mxu0 0
        %636 = vmatpush2.bf16.msra.mxu0 0
        %637 = vmatprep.subr.bf16.mxu0 0
        %638 = vmatpush2.bf16.msra.mxu0 0
        %639 = vmatprep.mubr.bf16.mxu0 0
        %640 = vmatmul.mubr.bf16.gmra.mxu0 %v315
        %v641 = vpop.f32.mrf.mxu0
        %v642 = vadd.f32 0.0, %v641
        %v643 = vpop.f32.mrf.mxu0
        %v644 = vadd.f32 0.0, %v643
        %v645 = vpop.f32.mrf.mxu0
        %v646 = vadd.f32 0.0, %v645
        %v647 = vpop.f32.mrf.mxu0
        %v648 = vadd.f32 0.0, %v647
        %649 = vmatprep.mubr.bf16.mxu0 0
        %650 = vmatmul.mubr.bf16.gmra.mxu0 %v318
        %v651 = vpop.f32.mrf.mxu0
        %v652 = vadd.f32 0.0, %v651
        %v653 = vpop.f32.mrf.mxu0
        %v654 = vadd.f32 0.0, %v653
        %v655 = vpop.f32.mrf.mxu0
        %v656 = vadd.f32 0.0, %v655
        %v657 = vpop.f32.mrf.mxu0
        %v658 = vadd.f32 0.0, %v657
        %659 = vmatprep.mubr.bf16.mxu0 0
        %660 = vmatmul.mubr.bf16.gmra.mxu0 %v321
        %v661 = vpop.f32.mrf.mxu0
        %v662 = vadd.f32 0.0, %v661
        %v663 = vpop.f32.mrf.mxu0
        %v664 = vadd.f32 0.0, %v663
        %v665 = vpop.f32.mrf.mxu0
        %v666 = vadd.f32 0.0, %v665
        %v667 = vpop.f32.mrf.mxu0
        %v668 = vadd.f32 0.0, %v667
        %669 = vmatprep.mubr.bf16.mxu0 0
        %670 = vmatmul.mubr.bf16.gmra.mxu0 %v324
        %v671 = vpop.f32.mrf.mxu0
        %v672 = vadd.f32 0.0, %v671
        %v673 = vpop.f32.mrf.mxu0
        %v674 = vadd.f32 0.0, %v673
        %v675 = vpop.f32.mrf.mxu0
        %v676 = vadd.f32 0.0, %v675
        %v677 = vpop.f32.mrf.mxu0
        %v678 = vadd.f32 0.0, %v677
        %679 = vmatprep.mubr.bf16.mxu0 0
        %680 = vmatmul.mubr.bf16.gmra.mxu0 %v327
        %v681 = vpop.f32.mrf.mxu0
        %v682 = vadd.f32 0.0, %v681
        %v683 = vpop.f32.mrf.mxu0
        %v684 = vadd.f32 0.0, %v683
        %v685 = vpop.f32.mrf.mxu0
        %v686 = vadd.f32 0.0, %v685
        %v687 = vpop.f32.mrf.mxu0
        %v688 = vadd.f32 0.0, %v687
        %689 = vmatprep.mubr.bf16.mxu0 0
        %690 = vmatmul.mubr.bf16.gmra.mxu0 %v330
        %v691 = vpop.f32.mrf.mxu0
        %v692 = vadd.f32 0.0, %v691
        %v693 = vpop.f32.mrf.mxu0
        %v694 = vadd.f32 0.0, %v693
        %v695 = vpop.f32.mrf.mxu0
        %v696 = vadd.f32 0.0, %v695
        %v697 = vpop.f32.mrf.mxu0
        %v698 = vadd.f32 0.0, %v697
        %699 = vmatprep.mubr.bf16.mxu0 0
        %700 = vmatmul.mubr.bf16.gmra.mxu0 %v333
        %v701 = vpop.f32.mrf.mxu0
        %v702 = vadd.f32 0.0, %v701
        %v703 = vpop.f32.mrf.mxu0
        %v704 = vadd.f32 0.0, %v703
        %v705 = vpop.f32.mrf.mxu0
        %v706 = vadd.f32 0.0, %v705
        %v707 = vpop.f32.mrf.mxu0
        %v708 = vadd.f32 0.0, %v707
        %709 = vmatprep.mubr.bf16.mxu0 0
        %710 = vmatmul.mubr.bf16.gmra.mxu0 %v336
        %v711 = vpop.f32.mrf.mxu0
        %v712 = vadd.f32 0.0, %v711
        %v713 = vpop.f32.mrf.mxu0
        %v714 = vadd.f32 0.0, %v713
        %v715 = vpop.f32.mrf.mxu0
        %v716 = vadd.f32 0.0, %v715
        %v717 = vpop.f32.mrf.mxu0
        %v718 = vadd.f32 0.0, %v717
        %719 = vmatprep.mubr.bf16.mxu0 0
        %720 = vmatmul.mubr.bf16.gmra.mxu0 %v339
        %v721 = vpop.f32.mrf.mxu0
        %v722 = vadd.f32 0.0, %v721
        %v723 = vpop.f32.mrf.mxu0
        %v724 = vadd.f32 0.0, %v723
        %v725 = vpop.f32.mrf.mxu0
        %v726 = vadd.f32 0.0, %v725
        %v727 = vpop.f32.mrf.mxu0
        %v728 = vadd.f32 0.0, %v727
        %729 = vmatprep.mubr.bf16.mxu0 0
        %730 = vmatmul.mubr.bf16.gmra.mxu0 %v342
        %v731 = vpop.f32.mrf.mxu0
        %v732 = vadd.f32 0.0, %v731
        %v733 = vpop.f32.mrf.mxu0
        %v734 = vadd.f32 0.0, %v733
        %v735 = vpop.f32.mrf.mxu0
        %v736 = vadd.f32 0.0, %v735
        %v737 = vpop.f32.mrf.mxu0
        %v738 = vadd.f32 0.0, %v737
        %739 = vmatprep.mubr.bf16.mxu0 0
        %740 = vmatmul.mubr.bf16.gmra.mxu0 %v345
        %v741 = vpop.f32.mrf.mxu0
        %v742 = vadd.f32 0.0, %v741
        %v743 = vpop.f32.mrf.mxu0
        %v744 = vadd.f32 0.0, %v743
        %v745 = vpop.f32.mrf.mxu0
        %v746 = vadd.f32 0.0, %v745
        %v747 = vpop.f32.mrf.mxu0
        %v748 = vadd.f32 0.0, %v747
        %749 = vmatprep.mubr.bf16.mxu0 0
        %750 = vmatmul.mubr.bf16.gmra.mxu0 %v348
        %v751 = vpop.f32.mrf.mxu0
        %v752 = vadd.f32 0.0, %v751
        %v753 = vpop.f32.mrf.mxu0
        %v754 = vadd.f32 0.0, %v753
        %v755 = vpop.f32.mrf.mxu0
        %v756 = vadd.f32 0.0, %v755
        %v757 = vpop.f32.mrf.mxu0
        %v758 = vadd.f32 0.0, %v757
        %759 = vmatprep.mubr.bf16.mxu0 0
        %760 = vmatmul.mubr.bf16.gmra.mxu0 %v351
        %v761 = vpop.f32.mrf.mxu0
        %v762 = vadd.f32 0.0, %v761
        %v763 = vpop.f32.mrf.mxu0
        %v764 = vadd.f32 0.0, %v763
        %v765 = vpop.f32.mrf.mxu0
        %v766 = vadd.f32 0.0, %v765
        %v767 = vpop.f32.mrf.mxu0
        %v768 = vadd.f32 0.0, %v767
        %769 = vmatprep.mubr.bf16.mxu0 0
        %770 = vmatmul.mubr.bf16.gmra.mxu0 %v354
        %v771 = vpop.f32.mrf.mxu0
        %v772 = vadd.f32 0.0, %v771
        %v773 = vpop.f32.mrf.mxu0
        %v774 = vadd.f32 0.0, %v773
        %v775 = vpop.f32.mrf.mxu0
        %v776 = vadd.f32 0.0, %v775
        %v777 = vpop.f32.mrf.mxu0
        %v778 = vadd.f32 0.0, %v777
        %779 = vmatprep.mubr.bf16.mxu0 0
        %780 = vmatmul.mubr.bf16.gmra.mxu0 %v357
        %v781 = vpop.f32.mrf.mxu0
        %v782 = vadd.f32 0.0, %v781
        %v783 = vpop.f32.mrf.mxu0
        %v784 = vadd.f32 0.0, %v783
        %v785 = vpop.f32.mrf.mxu0
        %v786 = vadd.f32 0.0, %v785
        %v787 = vpop.f32.mrf.mxu0
        %v788 = vadd.f32 0.0, %v787
        %789 = vmatprep.mubr.bf16.mxu0 0
        %790 = vmatmul.mubr.bf16.gmra.mxu0 %v360
        %v791 = vpop.f32.mrf.mxu0
        %v792 = vadd.f32 0.0, %v791
        %v793 = vpop.f32.mrf.mxu0
        %v794 = vadd.f32 0.0, %v793
        %v795 = vpop.f32.mrf.mxu0
        %v796 = vadd.f32 0.0, %v795
        %v797 = vpop.f32.mrf.mxu0
        %v798 = vadd.f32 0.0, %v797
        %799 = vdwg.mxu0
        %800 = vmatprep.subr.bf16.mxu0 0
        %801 = vmatpush1.bf16.msra.mxu0 0
        %802 = vmatprep.subr.bf16.mxu0 0
        %803 = vmatpush1.bf16.msra.mxu0 0
        %804 = vmatprep.subr.bf16.mxu0 0
        %805 = vmatpush1.bf16.msra.mxu0 0
        %806 = vmatprep.subr.bf16.mxu0 0
        %807 = vmatpush1.bf16.msra.mxu0 0
        %808 = vmatprep.subr.bf16.mxu0 0
        %809 = vmatpush1.bf16.msra.mxu0 0
        %810 = vmatprep.subr.bf16.mxu0 0
        %811 = vmatpush1.bf16.msra.mxu0 0
        %812 = vmatprep.subr.bf16.mxu0 0
        %813 = vmatpush1.bf16.msra.mxu0 0
        %814 = vmatprep.subr.bf16.mxu0 %v382
        %815 = vmatpush1.bf16.msra.mxu0 %v379
        %816 = vmatprep.subr.bf16.mxu0 0
        %817 = vmatpush2.bf16.msra.mxu0 0
        %818 = vmatprep.subr.bf16.mxu0 0
        %819 = vmatpush2.bf16.msra.mxu0 0
        %820 = vmatprep.subr.bf16.mxu0 0
        %821 = vmatpush2.bf16.msra.mxu0 0
        %822 = vmatprep.subr.bf16.mxu0 0
        %823 = vmatpush2.bf16.msra.mxu0 0
        %824 = vmatprep.subr.bf16.mxu0 0
        %825 = vmatpush2.bf16.msra.mxu0 0
        %826 = vmatprep.subr.bf16.mxu0 0
        %827 = vmatpush2.bf16.msra.mxu0 0
        %828 = vmatprep.subr.bf16.mxu0 0
        %829 = vmatpush2.bf16.msra.mxu0 0
        %830 = vmatprep.subr.bf16.mxu0 0
        %831 = vmatpush2.bf16.msra.mxu0 0
        %832 = vmatprep.mubr.bf16.mxu0 0
        %833 = vmatmul.mubr.bf16.gmra.mxu0 %v315
        %v834 = vpop.f32.mrf.mxu0
        %v835 = vadd.f32 0.0, %v834
        %v836 = vpop.f32.mrf.mxu0
        %v837 = vadd.f32 0.0, %v836
        %v838 = vpop.f32.mrf.mxu0
        %v839 = vadd.f32 0.0, %v838
        %v840 = vpop.f32.mrf.mxu0
        %v841 = vadd.f32 0.0, %v840
        %842 = vmatprep.mubr.bf16.mxu0 0
        %843 = vmatmul.mubr.bf16.gmra.mxu0 %v318
        %v844 = vpop.f32.mrf.mxu0
        %v845 = vadd.f32 0.0, %v844
        %v846 = vpop.f32.mrf.mxu0
        %v847 = vadd.f32 0.0, %v846
        %v848 = vpop.f32.mrf.mxu0
        %v849 = vadd.f32 0.0, %v848
        %v850 = vpop.f32.mrf.mxu0
        %v851 = vadd.f32 0.0, %v850
        %852 = vmatprep.mubr.bf16.mxu0 0
        %853 = vmatmul.mubr.bf16.gmra.mxu0 %v321
        %v854 = vpop.f32.mrf.mxu0
        %v855 = vadd.f32 0.0, %v854
        %v856 = vpop.f32.mrf.mxu0
        %v857 = vadd.f32 0.0, %v856
        %v858 = vpop.f32.mrf.mxu0
        %v859 = vadd.f32 0.0, %v858
        %v860 = vpop.f32.mrf.mxu0
        %v861 = vadd.f32 0.0, %v860
        %862 = vmatprep.mubr.bf16.mxu0 0
        %863 = vmatmul.mubr.bf16.gmra.mxu0 %v324
        %v864 = vpop.f32.mrf.mxu0
        %v865 = vadd.f32 0.0, %v864
        %v866 = vpop.f32.mrf.mxu0
        %v867 = vadd.f32 0.0, %v866
        %v868 = vpop.f32.mrf.mxu0
        %v869 = vadd.f32 0.0, %v868
        %v870 = vpop.f32.mrf.mxu0
        %v871 = vadd.f32 0.0, %v870
        %872 = vmatprep.mubr.bf16.mxu0 0
        %873 = vmatmul.mubr.bf16.gmra.mxu0 %v327
        %v874 = vpop.f32.mrf.mxu0
        %v875 = vadd.f32 0.0, %v874
        %v876 = vpop.f32.mrf.mxu0
        %v877 = vadd.f32 0.0, %v876
        %v878 = vpop.f32.mrf.mxu0
        %v879 = vadd.f32 0.0, %v878
        %v880 = vpop.f32.mrf.mxu0
        %v881 = vadd.f32 0.0, %v880
        %882 = vmatprep.mubr.bf16.mxu0 0
        %883 = vmatmul.mubr.bf16.gmra.mxu0 %v330
        %v884 = vpop.f32.mrf.mxu0
        %v885 = vadd.f32 0.0, %v884
        %v886 = vpop.f32.mrf.mxu0
        %v887 = vadd.f32 0.0, %v886
        %v888 = vpop.f32.mrf.mxu0
        %v889 = vadd.f32 0.0, %v888
        %v890 = vpop.f32.mrf.mxu0
        %v891 = vadd.f32 0.0, %v890
        %892 = vmatprep.mubr.bf16.mxu0 0
        %893 = vmatmul.mubr.bf16.gmra.mxu0 %v333
        %v894 = vpop.f32.mrf.mxu0
        %v895 = vadd.f32 0.0, %v894
        %v896 = vpop.f32.mrf.mxu0
        %v897 = vadd.f32 0.0, %v896
        %v898 = vpop.f32.mrf.mxu0
        %v899 = vadd.f32 0.0, %v898
        %v900 = vpop.f32.mrf.mxu0
        %v901 = vadd.f32 0.0, %v900
        %902 = vmatprep.mubr.bf16.mxu0 0
        %903 = vmatmul.mubr.bf16.gmra.mxu0 %v336
        %v904 = vpop.f32.mrf.mxu0
        %v905 = vadd.f32 0.0, %v904
        %v906 = vpop.f32.mrf.mxu0
        %v907 = vadd.f32 0.0, %v906
        %v908 = vpop.f32.mrf.mxu0
        %v909 = vadd.f32 0.0, %v908
        %v910 = vpop.f32.mrf.mxu0
        %v911 = vadd.f32 0.0, %v910
        %912 = vmatprep.mubr.bf16.mxu0 0
        %913 = vmatmul.mubr.bf16.gmra.mxu0 %v339
        %v914 = vpop.f32.mrf.mxu0
        %v915 = vadd.f32 0.0, %v914
        %v916 = vpop.f32.mrf.mxu0
        %v917 = vadd.f32 0.0, %v916
        %v918 = vpop.f32.mrf.mxu0
        %v919 = vadd.f32 0.0, %v918
        %v920 = vpop.f32.mrf.mxu0
        %v921 = vadd.f32 0.0, %v920
        %922 = vmatprep.mubr.bf16.mxu0 0
        %923 = vmatmul.mubr.bf16.gmra.mxu0 %v342
        %v924 = vpop.f32.mrf.mxu0
        %v925 = vadd.f32 0.0, %v924
        %v926 = vpop.f32.mrf.mxu0
        %v927 = vadd.f32 0.0, %v926
        %v928 = vpop.f32.mrf.mxu0
        %v929 = vadd.f32 0.0, %v928
        %v930 = vpop.f32.mrf.mxu0
        %v931 = vadd.f32 0.0, %v930
        %932 = vmatprep.mubr.bf16.mxu0 0
        %933 = vmatmul.mubr.bf16.gmra.mxu0 %v345
        %v934 = vpop.f32.mrf.mxu0
        %v935 = vadd.f32 0.0, %v934
        %v936 = vpop.f32.mrf.mxu0
        %v937 = vadd.f32 0.0, %v936
        %v938 = vpop.f32.mrf.mxu0
        %v939 = vadd.f32 0.0, %v938
        %v940 = vpop.f32.mrf.mxu0
        %v941 = vadd.f32 0.0, %v940
        %942 = vmatprep.mubr.bf16.mxu0 0
        %943 = vmatmul.mubr.bf16.gmra.mxu0 %v348
        %v944 = vpop.f32.mrf.mxu0
        %v945 = vadd.f32 0.0, %v944
        %v946 = vpop.f32.mrf.mxu0
        %v947 = vadd.f32 0.0, %v946
        %v948 = vpop.f32.mrf.mxu0
        %v949 = vadd.f32 0.0, %v948
        %v950 = vpop.f32.mrf.mxu0
        %v951 = vadd.f32 0.0, %v950
        %952 = vmatprep.mubr.bf16.mxu0 0
        %953 = vmatmul.mubr.bf16.gmra.mxu0 %v351
        %v954 = vpop.f32.mrf.mxu0
        %v955 = vadd.f32 0.0, %v954
        %v956 = vpop.f32.mrf.mxu0
        %v957 = vadd.f32 0.0, %v956
        %v958 = vpop.f32.mrf.mxu0
        %v959 = vadd.f32 0.0, %v958
        %v960 = vpop.f32.mrf.mxu0
        %v961 = vadd.f32 0.0, %v960
        %962 = vmatprep.mubr.bf16.mxu0 0
        %963 = vmatmul.mubr.bf16.gmra.mxu0 %v354
        %v964 = vpop.f32.mrf.mxu0
        %v965 = vadd.f32 0.0, %v964
        %v966 = vpop.f32.mrf.mxu0
        %v967 = vadd.f32 0.0, %v966
        %v968 = vpop.f32.mrf.mxu0
        %v969 = vadd.f32 0.0, %v968
        %v970 = vpop.f32.mrf.mxu0
        %v971 = vadd.f32 0.0, %v970
        %972 = vmatprep.mubr.bf16.mxu0 0
        %973 = vmatmul.mubr.bf16.gmra.mxu0 %v357
        %v974 = vpop.f32.mrf.mxu0
        %v975 = vadd.f32 0.0, %v974
        %v976 = vpop.f32.mrf.mxu0
        %v977 = vadd.f32 0.0, %v976
        %v978 = vpop.f32.mrf.mxu0
        %v979 = vadd.f32 0.0, %v978
        %v980 = vpop.f32.mrf.mxu0
        %v981 = vadd.f32 0.0, %v980
        %982 = vmatprep.mubr.bf16.mxu0 0
        %983 = vmatmul.mubr.bf16.gmra.mxu0 %v360
        %v984 = vpop.f32.mrf.mxu0
        %v985 = vadd.f32 0.0, %v984
        %v986 = vpop.f32.mrf.mxu0
        %v987 = vadd.f32 0.0, %v986
        %v988 = vpop.f32.mrf.mxu0
        %v989 = vadd.f32 0.0, %v988
        %v990 = vpop.f32.mrf.mxu0
        %v991 = vadd.f32 0.0, %v990
        %992 = vdwg.mxu0
        %993 = vmatprep.subr.bf16.mxu0 0
        %994 = vmatpush1.bf16.msra.mxu0 0
        %995 = vmatprep.subr.bf16.mxu0 0
        %996 = vmatpush1.bf16.msra.mxu0 0
        %997 = vmatprep.subr.bf16.mxu0 0
        %998 = vmatpush1.bf16.msra.mxu0 0
        %999 = vmatprep.subr.bf16.mxu0 0
        %1000 = vmatpush1.bf16.msra.mxu0 0
        %1001 = vmatprep.subr.bf16.mxu0 0
        %1002 = vmatpush1.bf16.msra.mxu0 0
        %1003 = vmatprep.subr.bf16.mxu0 0
        %1004 = vmatpush1.bf16.msra.mxu0 0
        %1005 = vmatprep.subr.bf16.mxu0 0
        %1006 = vmatpush1.bf16.msra.mxu0 0
        %1007 = vmatprep.subr.bf16.mxu0 %v388
        %1008 = vmatpush1.bf16.msra.mxu0 %v385
        %1009 = vmatprep.subr.bf16.mxu0 0
        %1010 = vmatpush2.bf16.msra.mxu0 0
        %1011 = vmatprep.subr.bf16.mxu0 0
        %1012 = vmatpush2.bf16.msra.mxu0 0
        %1013 = vmatprep.subr.bf16.mxu0 0
        %1014 = vmatpush2.bf16.msra.mxu0 0
        %1015 = vmatprep.subr.bf16.mxu0 0
        %1016 = vmatpush2.bf16.msra.mxu0 0
        %1017 = vmatprep.subr.bf16.mxu0 0
        %1018 = vmatpush2.bf16.msra.mxu0 0
        %1019 = vmatprep.subr.bf16.mxu0 0
        %1020 = vmatpush2.bf16.msra.mxu0 0
        %1021 = vmatprep.subr.bf16.mxu0 0
        %1022 = vmatpush2.bf16.msra.mxu0 0
        %1023 = vmatprep.subr.bf16.mxu0 0
        %1024 = vmatpush2.bf16.msra.mxu0 0
        %1025 = vmatprep.mubr.bf16.mxu0 0
        %1026 = vmatmul.mubr.bf16.gmra.mxu0 %v315
        %v1027 = vpop.f32.mrf.mxu0
        %v1028 = vadd.f32 0.0, %v1027
        %v1029 = vpop.f32.mrf.mxu0
        %v1030 = vadd.f32 0.0, %v1029
        %v1031 = vpop.f32.mrf.mxu0
        %v1032 = vadd.f32 0.0, %v1031
        %v1033 = vpop.f32.mrf.mxu0
        %v1034 = vadd.f32 0.0, %v1033
        %1035 = vmatprep.mubr.bf16.mxu0 0
        %1036 = vmatmul.mubr.bf16.gmra.mxu0 %v318
        %v1037 = vpop.f32.mrf.mxu0
        %v1038 = vadd.f32 0.0, %v1037
        %v1039 = vpop.f32.mrf.mxu0
        %v1040 = vadd.f32 0.0, %v1039
        %v1041 = vpop.f32.mrf.mxu0
        %v1042 = vadd.f32 0.0, %v1041
        %v1043 = vpop.f32.mrf.mxu0
        %v1044 = vadd.f32 0.0, %v1043
        %1045 = vmatprep.mubr.bf16.mxu0 0
        %1046 = vmatmul.mubr.bf16.gmra.mxu0 %v321
        %v1047 = vpop.f32.mrf.mxu0
        %v1048 = vadd.f32 0.0, %v1047
        %v1049 = vpop.f32.mrf.mxu0
        %v1050 = vadd.f32 0.0, %v1049
        %v1051 = vpop.f32.mrf.mxu0
        %v1052 = vadd.f32 0.0, %v1051
        %v1053 = vpop.f32.mrf.mxu0
        %v1054 = vadd.f32 0.0, %v1053
        %1055 = vmatprep.mubr.bf16.mxu0 0
        %1056 = vmatmul.mubr.bf16.gmra.mxu0 %v324
        %v1057 = vpop.f32.mrf.mxu0
        %v1058 = vadd.f32 0.0, %v1057
        %v1059 = vpop.f32.mrf.mxu0
        %v1060 = vadd.f32 0.0, %v1059
        %v1061 = vpop.f32.mrf.mxu0
        %v1062 = vadd.f32 0.0, %v1061
        %v1063 = vpop.f32.mrf.mxu0
        %v1064 = vadd.f32 0.0, %v1063
        %1065 = vmatprep.mubr.bf16.mxu0 0
        %1066 = vmatmul.mubr.bf16.gmra.mxu0 %v327
        %v1067 = vpop.f32.mrf.mxu0
        %v1068 = vadd.f32 0.0, %v1067
        %v1069 = vpop.f32.mrf.mxu0
        %v1070 = vadd.f32 0.0, %v1069
        %v1071 = vpop.f32.mrf.mxu0
        %v1072 = vadd.f32 0.0, %v1071
        %v1073 = vpop.f32.mrf.mxu0
        %v1074 = vadd.f32 0.0, %v1073
        %1075 = vmatprep.mubr.bf16.mxu0 0
        %1076 = vmatmul.mubr.bf16.gmra.mxu0 %v330
        %v1077 = vpop.f32.mrf.mxu0
        %v1078 = vadd.f32 0.0, %v1077
        %v1079 = vpop.f32.mrf.mxu0
        %v1080 = vadd.f32 0.0, %v1079
        %v1081 = vpop.f32.mrf.mxu0
        %v1082 = vadd.f32 0.0, %v1081
        %v1083 = vpop.f32.mrf.mxu0
        %v1084 = vadd.f32 0.0, %v1083
        %1085 = vmatprep.mubr.bf16.mxu0 0
        %1086 = vmatmul.mubr.bf16.gmra.mxu0 %v333
        %v1087 = vpop.f32.mrf.mxu0
        %v1088 = vadd.f32 0.0, %v1087
        %v1089 = vpop.f32.mrf.mxu0
        %v1090 = vadd.f32 0.0, %v1089
        %v1091 = vpop.f32.mrf.mxu0
        %v1092 = vadd.f32 0.0, %v1091
        %v1093 = vpop.f32.mrf.mxu0
        %v1094 = vadd.f32 0.0, %v1093
        %1095 = vmatprep.mubr.bf16.mxu0 0
        %1096 = vmatmul.mubr.bf16.gmra.mxu0 %v336
        %v1097 = vpop.f32.mrf.mxu0
        %v1098 = vadd.f32 0.0, %v1097
        %v1099 = vpop.f32.mrf.mxu0
        %v1100 = vadd.f32 0.0, %v1099
        %v1101 = vpop.f32.mrf.mxu0
        %v1102 = vadd.f32 0.0, %v1101
        %v1103 = vpop.f32.mrf.mxu0
        %v1104 = vadd.f32 0.0, %v1103
        %1105 = vmatprep.mubr.bf16.mxu0 0
        %1106 = vmatmul.mubr.bf16.gmra.mxu0 %v339
        %v1107 = vpop.f32.mrf.mxu0
        %v1108 = vadd.f32 0.0, %v1107
        %v1109 = vpop.f32.mrf.mxu0
        %v1110 = vadd.f32 0.0, %v1109
        %v1111 = vpop.f32.mrf.mxu0
        %v1112 = vadd.f32 0.0, %v1111
        %v1113 = vpop.f32.mrf.mxu0
        %v1114 = vadd.f32 0.0, %v1113
        %1115 = vmatprep.mubr.bf16.mxu0 0
        %1116 = vmatmul.mubr.bf16.gmra.mxu0 %v342
        %v1117 = vpop.f32.mrf.mxu0
        %v1118 = vadd.f32 0.0, %v1117
        %v1119 = vpop.f32.mrf.mxu0
        %v1120 = vadd.f32 0.0, %v1119
        %v1121 = vpop.f32.mrf.mxu0
        %v1122 = vadd.f32 0.0, %v1121
        %v1123 = vpop.f32.mrf.mxu0
        %v1124 = vadd.f32 0.0, %v1123
        %1125 = vmatprep.mubr.bf16.mxu0 0
        %1126 = vmatmul.mubr.bf16.gmra.mxu0 %v345
        %v1127 = vpop.f32.mrf.mxu0
        %v1128 = vadd.f32 0.0, %v1127
        %v1129 = vpop.f32.mrf.mxu0
        %v1130 = vadd.f32 0.0, %v1129
        %v1131 = vpop.f32.mrf.mxu0
        %v1132 = vadd.f32 0.0, %v1131
        %v1133 = vpop.f32.mrf.mxu0
        %v1134 = vadd.f32 0.0, %v1133
        %1135 = vmatprep.mubr.bf16.mxu0 0
        %1136 = vmatmul.mubr.bf16.gmra.mxu0 %v348
        %v1137 = vpop.f32.mrf.mxu0
        %v1138 = vadd.f32 0.0, %v1137
        %v1139 = vpop.f32.mrf.mxu0
        %v1140 = vadd.f32 0.0, %v1139
        %v1141 = vpop.f32.mrf.mxu0
        %v1142 = vadd.f32 0.0, %v1141
        %v1143 = vpop.f32.mrf.mxu0
        %v1144 = vadd.f32 0.0, %v1143
        %1145 = vmatprep.mubr.bf16.mxu0 0
        %1146 = vmatmul.mubr.bf16.gmra.mxu0 %v351
        %v1147 = vpop.f32.mrf.mxu0
        %v1148 = vadd.f32 0.0, %v1147
        %v1149 = vpop.f32.mrf.mxu0
        %v1150 = vadd.f32 0.0, %v1149
        %v1151 = vpop.f32.mrf.mxu0
        %v1152 = vadd.f32 0.0, %v1151
        %v1153 = vpop.f32.mrf.mxu0
        %v1154 = vadd.f32 0.0, %v1153
        %1155 = vmatprep.mubr.bf16.mxu0 0
        %1156 = vmatmul.mubr.bf16.gmra.mxu0 %v354
        %v1157 = vpop.f32.mrf.mxu0
        %v1158 = vadd.f32 0.0, %v1157
        %v1159 = vpop.f32.mrf.mxu0
        %v1160 = vadd.f32 0.0, %v1159
        %v1161 = vpop.f32.mrf.mxu0
        %v1162 = vadd.f32 0.0, %v1161
        %v1163 = vpop.f32.mrf.mxu0
        %v1164 = vadd.f32 0.0, %v1163
        %1165 = vmatprep.mubr.bf16.mxu0 0
        %1166 = vmatmul.mubr.bf16.gmra.mxu0 %v357
        %v1167 = vpop.f32.mrf.mxu0
        %v1168 = vadd.f32 0.0, %v1167
        %v1169 = vpop.f32.mrf.mxu0
        %v1170 = vadd.f32 0.0, %v1169
        %v1171 = vpop.f32.mrf.mxu0
        %v1172 = vadd.f32 0.0, %v1171
        %v1173 = vpop.f32.mrf.mxu0
        %v1174 = vadd.f32 0.0, %v1173
        %1175 = vmatprep.mubr.bf16.mxu0 0
        %1176 = vmatmul.mubr.bf16.gmra.mxu0 %v360
        %v1177 = vpop.f32.mrf.mxu0
        %v1178 = vadd.f32 0.0, %v1177
        %v1179 = vpop.f32.mrf.mxu0
        %v1180 = vadd.f32 0.0, %v1179
        %v1181 = vpop.f32.mrf.mxu0
        %v1182 = vadd.f32 0.0, %v1181
        %v1183 = vpop.f32.mrf.mxu0
        %v1184 = vadd.f32 0.0, %v1183
        %1185 = vdwg.mxu0
        %1186 = vmatprep.subr.bf16.mxu0 0
        %1187 = vmatpush1.bf16.msra.mxu0 0
        %1188 = vmatprep.subr.bf16.mxu0 0
        %1189 = vmatpush1.bf16.msra.mxu0 0
        %1190 = vmatprep.subr.bf16.mxu0 0
        %1191 = vmatpush1.bf16.msra.mxu0 0
        %1192 = vmatprep.subr.bf16.mxu0 0
        %1193 = vmatpush1.bf16.msra.mxu0 0
        %1194 = vmatprep.subr.bf16.mxu0 0
        %1195 = vmatpush1.bf16.msra.mxu0 0
        %1196 = vmatprep.subr.bf16.mxu0 0
        %1197 = vmatpush1.bf16.msra.mxu0 0
        %1198 = vmatprep.subr.bf16.mxu0 0
        %1199 = vmatpush1.bf16.msra.mxu0 0
        %1200 = vmatprep.subr.bf16.mxu0 %v394
        %1201 = vmatpush1.bf16.msra.mxu0 %v391
        %1202 = vmatprep.subr.bf16.mxu0 0
        %1203 = vmatpush2.bf16.msra.mxu0 0
        %1204 = vmatprep.subr.bf16.mxu0 0
        %1205 = vmatpush2.bf16.msra.mxu0 0
        %1206 = vmatprep.subr.bf16.mxu0 0
        %1207 = vmatpush2.bf16.msra.mxu0 0
        %1208 = vmatprep.subr.bf16.mxu0 0
        %1209 = vmatpush2.bf16.msra.mxu0 0
        %1210 = vmatprep.subr.bf16.mxu0 0
        %1211 = vmatpush2.bf16.msra.mxu0 0
        %1212 = vmatprep.subr.bf16.mxu0 0
        %1213 = vmatpush2.bf16.msra.mxu0 0
        %1214 = vmatprep.subr.bf16.mxu0 0
        %1215 = vmatpush2.bf16.msra.mxu0 0
        %1216 = vmatprep.subr.bf16.mxu0 0
        %1217 = vmatpush2.bf16.msra.mxu0 0
        %1218 = vmatprep.mubr.bf16.mxu0 0
        %1219 = vmatmul.mubr.bf16.gmra.mxu0 %v315
        %v1220 = vpop.f32.mrf.mxu0
        %v1221 = vadd.f32 0.0, %v1220
        %v1222 = vpop.f32.mrf.mxu0
        %v1223 = vadd.f32 0.0, %v1222
        %v1224 = vpop.f32.mrf.mxu0
        %v1225 = vadd.f32 0.0, %v1224
        %v1226 = vpop.f32.mrf.mxu0
        %v1227 = vadd.f32 0.0, %v1226
        %1228 = vmatprep.mubr.bf16.mxu0 0
        %1229 = vmatmul.mubr.bf16.gmra.mxu0 %v318
        %v1230 = vpop.f32.mrf.mxu0
        %v1231 = vadd.f32 0.0, %v1230
        %v1232 = vpop.f32.mrf.mxu0
        %v1233 = vadd.f32 0.0, %v1232
        %v1234 = vpop.f32.mrf.mxu0
        %v1235 = vadd.f32 0.0, %v1234
        %v1236 = vpop.f32.mrf.mxu0
        %v1237 = vadd.f32 0.0, %v1236
        %1238 = vmatprep.mubr.bf16.mxu0 0
        %1239 = vmatmul.mubr.bf16.gmra.mxu0 %v321
        %v1240 = vpop.f32.mrf.mxu0
        %v1241 = vadd.f32 0.0, %v1240
        %v1242 = vpop.f32.mrf.mxu0
        %v1243 = vadd.f32 0.0, %v1242
        %v1244 = vpop.f32.mrf.mxu0
        %v1245 = vadd.f32 0.0, %v1244
        %v1246 = vpop.f32.mrf.mxu0
        %v1247 = vadd.f32 0.0, %v1246
        %1248 = vmatprep.mubr.bf16.mxu0 0
        %1249 = vmatmul.mubr.bf16.gmra.mxu0 %v324
        %v1250 = vpop.f32.mrf.mxu0
        %v1251 = vadd.f32 0.0, %v1250
        %v1252 = vpop.f32.mrf.mxu0
        %v1253 = vadd.f32 0.0, %v1252
        %v1254 = vpop.f32.mrf.mxu0
        %v1255 = vadd.f32 0.0, %v1254
        %v1256 = vpop.f32.mrf.mxu0
        %v1257 = vadd.f32 0.0, %v1256
        %1258 = vmatprep.mubr.bf16.mxu0 0
        %1259 = vmatmul.mubr.bf16.gmra.mxu0 %v327
        %v1260 = vpop.f32.mrf.mxu0
        %v1261 = vadd.f32 0.0, %v1260
        %v1262 = vpop.f32.mrf.mxu0
        %v1263 = vadd.f32 0.0, %v1262
        %v1264 = vpop.f32.mrf.mxu0
        %v1265 = vadd.f32 0.0, %v1264
        %v1266 = vpop.f32.mrf.mxu0
        %v1267 = vadd.f32 0.0, %v1266
        %1268 = vmatprep.mubr.bf16.mxu0 0
        %1269 = vmatmul.mubr.bf16.gmra.mxu0 %v330
        %v1270 = vpop.f32.mrf.mxu0
        %v1271 = vadd.f32 0.0, %v1270
        %v1272 = vpop.f32.mrf.mxu0
        %v1273 = vadd.f32 0.0, %v1272
        %v1274 = vpop.f32.mrf.mxu0
        %v1275 = vadd.f32 0.0, %v1274
        %v1276 = vpop.f32.mrf.mxu0
        %v1277 = vadd.f32 0.0, %v1276
        %1278 = vmatprep.mubr.bf16.mxu0 0
        %1279 = vmatmul.mubr.bf16.gmra.mxu0 %v333
        %v1280 = vpop.f32.mrf.mxu0
        %v1281 = vadd.f32 0.0, %v1280
        %v1282 = vpop.f32.mrf.mxu0
        %v1283 = vadd.f32 0.0, %v1282
        %v1284 = vpop.f32.mrf.mxu0
        %v1285 = vadd.f32 0.0, %v1284
        %v1286 = vpop.f32.mrf.mxu0
        %v1287 = vadd.f32 0.0, %v1286
        %1288 = vmatprep.mubr.bf16.mxu0 0
        %1289 = vmatmul.mubr.bf16.gmra.mxu0 %v336
        %v1290 = vpop.f32.mrf.mxu0
        %v1291 = vadd.f32 0.0, %v1290
        %v1292 = vpop.f32.mrf.mxu0
        %v1293 = vadd.f32 0.0, %v1292
        %v1294 = vpop.f32.mrf.mxu0
        %v1295 = vadd.f32 0.0, %v1294
        %v1296 = vpop.f32.mrf.mxu0
        %v1297 = vadd.f32 0.0, %v1296
        %1298 = vmatprep.mubr.bf16.mxu0 0
        %1299 = vmatmul.mubr.bf16.gmra.mxu0 %v339
        %v1300 = vpop.f32.mrf.mxu0
        %v1301 = vadd.f32 0.0, %v1300
        %v1302 = vpop.f32.mrf.mxu0
        %v1303 = vadd.f32 0.0, %v1302
        %v1304 = vpop.f32.mrf.mxu0
        %v1305 = vadd.f32 0.0, %v1304
        %v1306 = vpop.f32.mrf.mxu0
        %v1307 = vadd.f32 0.0, %v1306
        %1308 = vmatprep.mubr.bf16.mxu0 0
        %1309 = vmatmul.mubr.bf16.gmra.mxu0 %v342
        %v1310 = vpop.f32.mrf.mxu0
        %v1311 = vadd.f32 0.0, %v1310
        %v1312 = vpop.f32.mrf.mxu0
        %v1313 = vadd.f32 0.0, %v1312
        %v1314 = vpop.f32.mrf.mxu0
        %v1315 = vadd.f32 0.0, %v1314
        %v1316 = vpop.f32.mrf.mxu0
        %v1317 = vadd.f32 0.0, %v1316
        %1318 = vmatprep.mubr.bf16.mxu0 0
        %1319 = vmatmul.mubr.bf16.gmra.mxu0 %v345
        %v1320 = vpop.f32.mrf.mxu0
        %v1321 = vadd.f32 0.0, %v1320
        %v1322 = vpop.f32.mrf.mxu0
        %v1323 = vadd.f32 0.0, %v1322
        %v1324 = vpop.f32.mrf.mxu0
        %v1325 = vadd.f32 0.0, %v1324
        %v1326 = vpop.f32.mrf.mxu0
        %v1327 = vadd.f32 0.0, %v1326
        %1328 = vmatprep.mubr.bf16.mxu0 0
        %1329 = vmatmul.mubr.bf16.gmra.mxu0 %v348
        %v1330 = vpop.f32.mrf.mxu0
        %v1331 = vadd.f32 0.0, %v1330
        %v1332 = vpop.f32.mrf.mxu0
        %v1333 = vadd.f32 0.0, %v1332
        %v1334 = vpop.f32.mrf.mxu0
        %v1335 = vadd.f32 0.0, %v1334
        %v1336 = vpop.f32.mrf.mxu0
        %v1337 = vadd.f32 0.0, %v1336
        %1338 = vmatprep.mubr.bf16.mxu0 0
        %1339 = vmatmul.mubr.bf16.gmra.mxu0 %v351
        %v1340 = vpop.f32.mrf.mxu0
        %v1341 = vadd.f32 0.0, %v1340
        %v1342 = vpop.f32.mrf.mxu0
        %v1343 = vadd.f32 0.0, %v1342
        %v1344 = vpop.f32.mrf.mxu0
        %v1345 = vadd.f32 0.0, %v1344
        %v1346 = vpop.f32.mrf.mxu0
        %v1347 = vadd.f32 0.0, %v1346
        %1348 = vmatprep.mubr.bf16.mxu0 0
        %1349 = vmatmul.mubr.bf16.gmra.mxu0 %v354
        %v1350 = vpop.f32.mrf.mxu0
        %v1351 = vadd.f32 0.0, %v1350
        %v1352 = vpop.f32.mrf.mxu0
        %v1353 = vadd.f32 0.0, %v1352
        %v1354 = vpop.f32.mrf.mxu0
        %v1355 = vadd.f32 0.0, %v1354
        %v1356 = vpop.f32.mrf.mxu0
        %v1357 = vadd.f32 0.0, %v1356
        %1358 = vmatprep.mubr.bf16.mxu0 0
        %1359 = vmatmul.mubr.bf16.gmra.mxu0 %v357
        %v1360 = vpop.f32.mrf.mxu0
        %v1361 = vadd.f32 0.0, %v1360
        %v1362 = vpop.f32.mrf.mxu0
        %v1363 = vadd.f32 0.0, %v1362
        %v1364 = vpop.f32.mrf.mxu0
        %v1365 = vadd.f32 0.0, %v1364
        %v1366 = vpop.f32.mrf.mxu0
        %v1367 = vadd.f32 0.0, %v1366
        %1368 = vmatprep.mubr.bf16.mxu0 0
        %1369 = vmatmul.mubr.bf16.gmra.mxu0 %v360
        %v1370 = vpop.f32.mrf.mxu0
        %v1371 = vadd.f32 0.0, %v1370
        %v1372 = vpop.f32.mrf.mxu0
        %v1373 = vadd.f32 0.0, %v1372
        %v1374 = vpop.f32.mrf.mxu0
        %v1375 = vadd.f32 0.0, %v1374
        %v1376 = vpop.f32.mrf.mxu0
        %v1377 = vadd.f32 0.0, %v1376
        %1378 = vdwg.mxu0
        %1379 = vmatprep.subr.bf16.mxu0 0
        %1380 = vmatpush1.bf16.msra.mxu0 0
        %1381 = vmatprep.subr.bf16.mxu0 0
        %1382 = vmatpush1.bf16.msra.mxu0 0
        %1383 = vmatprep.subr.bf16.mxu0 0
        %1384 = vmatpush1.bf16.msra.mxu0 0
        %1385 = vmatprep.subr.bf16.mxu0 0
        %1386 = vmatpush1.bf16.msra.mxu0 0
        %1387 = vmatprep.subr.bf16.mxu0 0
        %1388 = vmatpush1.bf16.msra.mxu0 0
        %1389 = vmatprep.subr.bf16.mxu0 0
        %1390 = vmatpush1.bf16.msra.mxu0 0
        %1391 = vmatprep.subr.bf16.mxu0 0
        %1392 = vmatpush1.bf16.msra.mxu0 0
        %1393 = vmatprep.subr.bf16.mxu0 %v400
        %1394 = vmatpush1.bf16.msra.mxu0 %v397
        %1395 = vmatprep.subr.bf16.mxu0 0
        %1396 = vmatpush2.bf16.msra.mxu0 0
        %1397 = vmatprep.subr.bf16.mxu0 0
        %1398 = vmatpush2.bf16.msra.mxu0 0
        %1399 = vmatprep.subr.bf16.mxu0 0
        %1400 = vmatpush2.bf16.msra.mxu0 0
        %1401 = vmatprep.subr.bf16.mxu0 0
        %1402 = vmatpush2.bf16.msra.mxu0 0
        %1403 = vmatprep.subr.bf16.mxu0 0
        %1404 = vmatpush2.bf16.msra.mxu0 0
        %1405 = vmatprep.subr.bf16.mxu0 0
        %1406 = vmatpush2.bf16.msra.mxu0 0
        %1407 = vmatprep.subr.bf16.mxu0 0
        %1408 = vmatpush2.bf16.msra.mxu0 0
        %1409 = vmatprep.subr.bf16.mxu0 0
        %1410 = vmatpush2.bf16.msra.mxu0 0
        %1411 = vmatprep.mubr.bf16.mxu0 0
        %1412 = vmatmul.mubr.bf16.gmra.mxu0 %v315
        %v1413 = vpop.f32.mrf.mxu0
        %v1414 = vadd.f32 0.0, %v1413
        %v1415 = vpop.f32.mrf.mxu0
        %v1416 = vadd.f32 0.0, %v1415
        %v1417 = vpop.f32.mrf.mxu0
        %v1418 = vadd.f32 0.0, %v1417
        %v1419 = vpop.f32.mrf.mxu0
        %v1420 = vadd.f32 0.0, %v1419
        %1421 = vmatprep.mubr.bf16.mxu0 0
        %1422 = vmatmul.mubr.bf16.gmra.mxu0 %v318
        %v1423 = vpop.f32.mrf.mxu0
        %v1424 = vadd.f32 0.0, %v1423
        %v1425 = vpop.f32.mrf.mxu0
        %v1426 = vadd.f32 0.0, %v1425
        %v1427 = vpop.f32.mrf.mxu0
        %v1428 = vadd.f32 0.0, %v1427
        %v1429 = vpop.f32.mrf.mxu0
        %v1430 = vadd.f32 0.0, %v1429
        %1431 = vmatprep.mubr.bf16.mxu0 0
        %1432 = vmatmul.mubr.bf16.gmra.mxu0 %v321
        %v1433 = vpop.f32.mrf.mxu0
        %v1434 = vadd.f32 0.0, %v1433
        %v1435 = vpop.f32.mrf.mxu0
        %v1436 = vadd.f32 0.0, %v1435
        %v1437 = vpop.f32.mrf.mxu0
        %v1438 = vadd.f32 0.0, %v1437
        %v1439 = vpop.f32.mrf.mxu0
        %v1440 = vadd.f32 0.0, %v1439
        %1441 = vmatprep.mubr.bf16.mxu0 0
        %1442 = vmatmul.mubr.bf16.gmra.mxu0 %v324
        %v1443 = vpop.f32.mrf.mxu0
        %v1444 = vadd.f32 0.0, %v1443
        %v1445 = vpop.f32.mrf.mxu0
        %v1446 = vadd.f32 0.0, %v1445
        %v1447 = vpop.f32.mrf.mxu0
        %v1448 = vadd.f32 0.0, %v1447
        %v1449 = vpop.f32.mrf.mxu0
        %v1450 = vadd.f32 0.0, %v1449
        %1451 = vmatprep.mubr.bf16.mxu0 0
        %1452 = vmatmul.mubr.bf16.gmra.mxu0 %v327
        %v1453 = vpop.f32.mrf.mxu0
        %v1454 = vadd.f32 0.0, %v1453
        %v1455 = vpop.f32.mrf.mxu0
        %v1456 = vadd.f32 0.0, %v1455
        %v1457 = vpop.f32.mrf.mxu0
        %v1458 = vadd.f32 0.0, %v1457
        %v1459 = vpop.f32.mrf.mxu0
        %v1460 = vadd.f32 0.0, %v1459
        %1461 = vmatprep.mubr.bf16.mxu0 0
        %1462 = vmatmul.mubr.bf16.gmra.mxu0 %v330
        %v1463 = vpop.f32.mrf.mxu0
        %v1464 = vadd.f32 0.0, %v1463
        %v1465 = vpop.f32.mrf.mxu0
        %v1466 = vadd.f32 0.0, %v1465
        %v1467 = vpop.f32.mrf.mxu0
        %v1468 = vadd.f32 0.0, %v1467
        %v1469 = vpop.f32.mrf.mxu0
        %v1470 = vadd.f32 0.0, %v1469
        %1471 = vmatprep.mubr.bf16.mxu0 0
        %1472 = vmatmul.mubr.bf16.gmra.mxu0 %v333
        %v1473 = vpop.f32.mrf.mxu0
        %v1474 = vadd.f32 0.0, %v1473
        %v1475 = vpop.f32.mrf.mxu0
        %v1476 = vadd.f32 0.0, %v1475
        %v1477 = vpop.f32.mrf.mxu0
        %v1478 = vadd.f32 0.0, %v1477
        %v1479 = vpop.f32.mrf.mxu0
        %v1480 = vadd.f32 0.0, %v1479
        %1481 = vmatprep.mubr.bf16.mxu0 0
        %1482 = vmatmul.mubr.bf16.gmra.mxu0 %v336
        %v1483 = vpop.f32.mrf.mxu0
        %v1484 = vadd.f32 0.0, %v1483
        %v1485 = vpop.f32.mrf.mxu0
        %v1486 = vadd.f32 0.0, %v1485
        %v1487 = vpop.f32.mrf.mxu0
        %v1488 = vadd.f32 0.0, %v1487
        %v1489 = vpop.f32.mrf.mxu0
        %v1490 = vadd.f32 0.0, %v1489
        %1491 = vmatprep.mubr.bf16.mxu0 0
        %1492 = vmatmul.mubr.bf16.gmra.mxu0 %v339
        %v1493 = vpop.f32.mrf.mxu0
        %v1494 = vadd.f32 0.0, %v1493
        %v1495 = vpop.f32.mrf.mxu0
        %v1496 = vadd.f32 0.0, %v1495
        %v1497 = vpop.f32.mrf.mxu0
        %v1498 = vadd.f32 0.0, %v1497
        %v1499 = vpop.f32.mrf.mxu0
        %v1500 = vadd.f32 0.0, %v1499
        %1501 = vmatprep.mubr.bf16.mxu0 0
        %1502 = vmatmul.mubr.bf16.gmra.mxu0 %v342
        %v1503 = vpop.f32.mrf.mxu0
        %v1504 = vadd.f32 0.0, %v1503
        %v1505 = vpop.f32.mrf.mxu0
        %v1506 = vadd.f32 0.0, %v1505
        %v1507 = vpop.f32.mrf.mxu0
        %v1508 = vadd.f32 0.0, %v1507
        %v1509 = vpop.f32.mrf.mxu0
        %v1510 = vadd.f32 0.0, %v1509
        %1511 = vmatprep.mubr.bf16.mxu0 0
        %1512 = vmatmul.mubr.bf16.gmra.mxu0 %v345
        %v1513 = vpop.f32.mrf.mxu0
        %v1514 = vadd.f32 0.0, %v1513
        %v1515 = vpop.f32.mrf.mxu0
        %v1516 = vadd.f32 0.0, %v1515
        %v1517 = vpop.f32.mrf.mxu0
        %v1518 = vadd.f32 0.0, %v1517
        %v1519 = vpop.f32.mrf.mxu0
        %v1520 = vadd.f32 0.0, %v1519
        %1521 = vmatprep.mubr.bf16.mxu0 0
        %1522 = vmatmul.mubr.bf16.gmra.mxu0 %v348
        %v1523 = vpop.f32.mrf.mxu0
        %v1524 = vadd.f32 0.0, %v1523
        %v1525 = vpop.f32.mrf.mxu0
        %v1526 = vadd.f32 0.0, %v1525
        %v1527 = vpop.f32.mrf.mxu0
        %v1528 = vadd.f32 0.0, %v1527
        %v1529 = vpop.f32.mrf.mxu0
        %v1530 = vadd.f32 0.0, %v1529
        %1531 = vmatprep.mubr.bf16.mxu0 0
        %1532 = vmatmul.mubr.bf16.gmra.mxu0 %v351
        %v1533 = vpop.f32.mrf.mxu0
        %v1534 = vadd.f32 0.0, %v1533
        %v1535 = vpop.f32.mrf.mxu0
        %v1536 = vadd.f32 0.0, %v1535
        %v1537 = vpop.f32.mrf.mxu0
        %v1538 = vadd.f32 0.0, %v1537
        %v1539 = vpop.f32.mrf.mxu0
        %v1540 = vadd.f32 0.0, %v1539
        %1541 = vmatprep.mubr.bf16.mxu0 0
        %1542 = vmatmul.mubr.bf16.gmra.mxu0 %v354
        %v1543 = vpop.f32.mrf.mxu0
        %v1544 = vadd.f32 0.0, %v1543
        %v1545 = vpop.f32.mrf.mxu0
        %v1546 = vadd.f32 0.0, %v1545
        %v1547 = vpop.f32.mrf.mxu0
        %v1548 = vadd.f32 0.0, %v1547
        %v1549 = vpop.f32.mrf.mxu0
        %v1550 = vadd.f32 0.0, %v1549
        %1551 = vmatprep.mubr.bf16.mxu0 0
        %1552 = vmatmul.mubr.bf16.gmra.mxu0 %v357
        %v1553 = vpop.f32.mrf.mxu0
        %v1554 = vadd.f32 0.0, %v1553
        %v1555 = vpop.f32.mrf.mxu0
        %v1556 = vadd.f32 0.0, %v1555
        %v1557 = vpop.f32.mrf.mxu0
        %v1558 = vadd.f32 0.0, %v1557
        %v1559 = vpop.f32.mrf.mxu0
        %v1560 = vadd.f32 0.0, %v1559
        %1561 = vmatprep.mubr.bf16.mxu0 0
        %1562 = vmatmul.mubr.bf16.gmra.mxu0 %v360
        %v1563 = vpop.f32.mrf.mxu0
        %v1564 = vadd.f32 0.0, %v1563
        %v1565 = vpop.f32.mrf.mxu0
        %v1566 = vadd.f32 0.0, %v1565
        %v1567 = vpop.f32.mrf.mxu0
        %v1568 = vadd.f32 0.0, %v1567
        %v1569 = vpop.f32.mrf.mxu0
        %v1570 = vadd.f32 0.0, %v1569
        %1571 = vdwg.mxu0
        %1572 = vmatprep.subr.bf16.mxu0 0
        %1573 = vmatpush1.bf16.msra.mxu0 0
        %1574 = vmatprep.subr.bf16.mxu0 0
        %1575 = vmatpush1.bf16.msra.mxu0 0
        %1576 = vmatprep.subr.bf16.mxu0 0
        %1577 = vmatpush1.bf16.msra.mxu0 0
        %1578 = vmatprep.subr.bf16.mxu0 0
        %1579 = vmatpush1.bf16.msra.mxu0 0
        %1580 = vmatprep.subr.bf16.mxu0 0
        %1581 = vmatpush1.bf16.msra.mxu0 0
        %1582 = vmatprep.subr.bf16.mxu0 0
        %1583 = vmatpush1.bf16.msra.mxu0 0
        %1584 = vmatprep.subr.bf16.mxu0 0
        %1585 = vmatpush1.bf16.msra.mxu0 0
        %1586 = vmatprep.subr.bf16.mxu0 %v406
        %1587 = vmatpush1.bf16.msra.mxu0 %v403
        %1588 = vmatprep.subr.bf16.mxu0 0
        %1589 = vmatpush2.bf16.msra.mxu0 0
        %1590 = vmatprep.subr.bf16.mxu0 0
        %1591 = vmatpush2.bf16.msra.mxu0 0
        %1592 = vmatprep.subr.bf16.mxu0 0
        %1593 = vmatpush2.bf16.msra.mxu0 0
        %1594 = vmatprep.subr.bf16.mxu0 0
        %1595 = vmatpush2.bf16.msra.mxu0 0
        %1596 = vmatprep.subr.bf16.mxu0 0
        %1597 = vmatpush2.bf16.msra.mxu0 0
        %1598 = vmatprep.subr.bf16.mxu0 0
        %1599 = vmatpush2.bf16.msra.mxu0 0
        %1600 = vmatprep.subr.bf16.mxu0 0
        %1601 = vmatpush2.bf16.msra.mxu0 0
        %1602 = vmatprep.subr.bf16.mxu0 0
        %1603 = vmatpush2.bf16.msra.mxu0 0
        %1604 = vmatprep.mubr.bf16.mxu0 0
        %1605 = vmatmul.mubr.bf16.gmra.mxu0 %v315
        %v1606 = vpop.f32.mrf.mxu0
        %v1607 = vadd.f32 0.0, %v1606
        %v1608 = vpop.f32.mrf.mxu0
        %v1609 = vadd.f32 0.0, %v1608
        %v1610 = vpop.f32.mrf.mxu0
        %v1611 = vadd.f32 0.0, %v1610
        %v1612 = vpop.f32.mrf.mxu0
        %v1613 = vadd.f32 0.0, %v1612
        %1614 = vmatprep.mubr.bf16.mxu0 0
        %1615 = vmatmul.mubr.bf16.gmra.mxu0 %v318
        %v1616 = vpop.f32.mrf.mxu0
        %v1617 = vadd.f32 0.0, %v1616
        %v1618 = vpop.f32.mrf.mxu0
        %v1619 = vadd.f32 0.0, %v1618
        %v1620 = vpop.f32.mrf.mxu0
        %v1621 = vadd.f32 0.0, %v1620
        %v1622 = vpop.f32.mrf.mxu0
        %v1623 = vadd.f32 0.0, %v1622
        %1624 = vmatprep.mubr.bf16.mxu0 0
        %1625 = vmatmul.mubr.bf16.gmra.mxu0 %v321
        %v1626 = vpop.f32.mrf.mxu0
        %v1627 = vadd.f32 0.0, %v1626
        %v1628 = vpop.f32.mrf.mxu0
        %v1629 = vadd.f32 0.0, %v1628
        %v1630 = vpop.f32.mrf.mxu0
        %v1631 = vadd.f32 0.0, %v1630
        %v1632 = vpop.f32.mrf.mxu0
        %v1633 = vadd.f32 0.0, %v1632
        %1634 = vmatprep.mubr.bf16.mxu0 0
        %1635 = vmatmul.mubr.bf16.gmra.mxu0 %v324
        %v1636 = vpop.f32.mrf.mxu0
        %v1637 = vadd.f32 0.0, %v1636
        %v1638 = vpop.f32.mrf.mxu0
        %v1639 = vadd.f32 0.0, %v1638
        %v1640 = vpop.f32.mrf.mxu0
        %v1641 = vadd.f32 0.0, %v1640
        %v1642 = vpop.f32.mrf.mxu0
        %v1643 = vadd.f32 0.0, %v1642
        %1644 = vmatprep.mubr.bf16.mxu0 0
        %1645 = vmatmul.mubr.bf16.gmra.mxu0 %v327
        %v1646 = vpop.f32.mrf.mxu0
        %v1647 = vadd.f32 0.0, %v1646
        %v1648 = vpop.f32.mrf.mxu0
        %v1649 = vadd.f32 0.0, %v1648
        %v1650 = vpop.f32.mrf.mxu0
        %v1651 = vadd.f32 0.0, %v1650
        %v1652 = vpop.f32.mrf.mxu0
        %v1653 = vadd.f32 0.0, %v1652
        %1654 = vmatprep.mubr.bf16.mxu0 0
        %1655 = vmatmul.mubr.bf16.gmra.mxu0 %v330
        %v1656 = vpop.f32.mrf.mxu0
        %v1657 = vadd.f32 0.0, %v1656
        %v1658 = vpop.f32.mrf.mxu0
        %v1659 = vadd.f32 0.0, %v1658
        %v1660 = vpop.f32.mrf.mxu0
        %v1661 = vadd.f32 0.0, %v1660
        %v1662 = vpop.f32.mrf.mxu0
        %v1663 = vadd.f32 0.0, %v1662
        %1664 = vmatprep.mubr.bf16.mxu0 0
        %1665 = vmatmul.mubr.bf16.gmra.mxu0 %v333
        %v1666 = vpop.f32.mrf.mxu0
        %v1667 = vadd.f32 0.0, %v1666
        %v1668 = vpop.f32.mrf.mxu0
        %v1669 = vadd.f32 0.0, %v1668
        %v1670 = vpop.f32.mrf.mxu0
        %v1671 = vadd.f32 0.0, %v1670
        %v1672 = vpop.f32.mrf.mxu0
        %v1673 = vadd.f32 0.0, %v1672
        %1674 = vmatprep.mubr.bf16.mxu0 0
        %1675 = vmatmul.mubr.bf16.gmra.mxu0 %v336
        %v1676 = vpop.f32.mrf.mxu0
        %v1677 = vadd.f32 0.0, %v1676
        %v1678 = vpop.f32.mrf.mxu0
        %v1679 = vadd.f32 0.0, %v1678
        %v1680 = vpop.f32.mrf.mxu0
        %v1681 = vadd.f32 0.0, %v1680
        %v1682 = vpop.f32.mrf.mxu0
        %v1683 = vadd.f32 0.0, %v1682
        %1684 = vmatprep.mubr.bf16.mxu0 0
        %1685 = vmatmul.mubr.bf16.gmra.mxu0 %v339
        %v1686 = vpop.f32.mrf.mxu0
        %v1687 = vadd.f32 0.0, %v1686
        %v1688 = vpop.f32.mrf.mxu0
        %v1689 = vadd.f32 0.0, %v1688
        %v1690 = vpop.f32.mrf.mxu0
        %v1691 = vadd.f32 0.0, %v1690
        %v1692 = vpop.f32.mrf.mxu0
        %v1693 = vadd.f32 0.0, %v1692
        %1694 = vmatprep.mubr.bf16.mxu0 0
        %1695 = vmatmul.mubr.bf16.gmra.mxu0 %v342
        %v1696 = vpop.f32.mrf.mxu0
        %v1697 = vadd.f32 0.0, %v1696
        %v1698 = vpop.f32.mrf.mxu0
        %v1699 = vadd.f32 0.0, %v1698
        %v1700 = vpop.f32.mrf.mxu0
        %v1701 = vadd.f32 0.0, %v1700
        %v1702 = vpop.f32.mrf.mxu0
        %v1703 = vadd.f32 0.0, %v1702
        %1704 = vmatprep.mubr.bf16.mxu0 0
        %1705 = vmatmul.mubr.bf16.gmra.mxu0 %v345
        %v1706 = vpop.f32.mrf.mxu0
        %v1707 = vadd.f32 0.0, %v1706
        %v1708 = vpop.f32.mrf.mxu0
        %v1709 = vadd.f32 0.0, %v1708
        %v1710 = vpop.f32.mrf.mxu0
        %v1711 = vadd.f32 0.0, %v1710
        %v1712 = vpop.f32.mrf.mxu0
        %v1713 = vadd.f32 0.0, %v1712
        %1714 = vmatprep.mubr.bf16.mxu0 0
        %1715 = vmatmul.mubr.bf16.gmra.mxu0 %v348
        %v1716 = vpop.f32.mrf.mxu0
        %v1717 = vadd.f32 0.0, %v1716
        %v1718 = vpop.f32.mrf.mxu0
        %v1719 = vadd.f32 0.0, %v1718
        %v1720 = vpop.f32.mrf.mxu0
        %v1721 = vadd.f32 0.0, %v1720
        %v1722 = vpop.f32.mrf.mxu0
        %v1723 = vadd.f32 0.0, %v1722
        %1724 = vmatprep.mubr.bf16.mxu0 0
        %1725 = vmatmul.mubr.bf16.gmra.mxu0 %v351
        %v1726 = vpop.f32.mrf.mxu0
        %v1727 = vadd.f32 0.0, %v1726
        %v1728 = vpop.f32.mrf.mxu0
        %v1729 = vadd.f32 0.0, %v1728
        %v1730 = vpop.f32.mrf.mxu0
        %v1731 = vadd.f32 0.0, %v1730
        %v1732 = vpop.f32.mrf.mxu0
        %v1733 = vadd.f32 0.0, %v1732
        %1734 = vmatprep.mubr.bf16.mxu0 0
        %1735 = vmatmul.mubr.bf16.gmra.mxu0 %v354
        %v1736 = vpop.f32.mrf.mxu0
        %v1737 = vadd.f32 0.0, %v1736
        %v1738 = vpop.f32.mrf.mxu0
        %v1739 = vadd.f32 0.0, %v1738
        %v1740 = vpop.f32.mrf.mxu0
        %v1741 = vadd.f32 0.0, %v1740
        %v1742 = vpop.f32.mrf.mxu0
        %v1743 = vadd.f32 0.0, %v1742
        %1744 = vmatprep.mubr.bf16.mxu0 0
        %1745 = vmatmul.mubr.bf16.gmra.mxu0 %v357
        %v1746 = vpop.f32.mrf.mxu0
        %v1747 = vadd.f32 0.0, %v1746
        %v1748 = vpop.f32.mrf.mxu0
        %v1749 = vadd.f32 0.0, %v1748
        %v1750 = vpop.f32.mrf.mxu0
        %v1751 = vadd.f32 0.0, %v1750
        %v1752 = vpop.f32.mrf.mxu0
        %v1753 = vadd.f32 0.0, %v1752
        %1754 = vmatprep.mubr.bf16.mxu0 0
        %1755 = vmatmul.mubr.bf16.gmra.mxu0 %v360
        %v1756 = vpop.f32.mrf.mxu0
        %v1757 = vadd.f32 0.0, %v1756
        %v1758 = vpop.f32.mrf.mxu0
        %v1759 = vadd.f32 0.0, %v1758
        %v1760 = vpop.f32.mrf.mxu0
        %v1761 = vadd.f32 0.0, %v1760
        %v1762 = vpop.f32.mrf.mxu0
        %v1763 = vadd.f32 0.0, %v1762
        %1764 = vdwg.mxu0
        %1765 = vmatprep.subr.bf16.mxu0 0
        %1766 = vmatpush1.bf16.msra.mxu0 0
        %1767 = vmatprep.subr.bf16.mxu0 0
        %1768 = vmatpush1.bf16.msra.mxu0 0
        %1769 = vmatprep.subr.bf16.mxu0 0
        %1770 = vmatpush1.bf16.msra.mxu0 0
        %1771 = vmatprep.subr.bf16.mxu0 0
        %1772 = vmatpush1.bf16.msra.mxu0 0
        %1773 = vmatprep.subr.bf16.mxu0 0
        %1774 = vmatpush1.bf16.msra.mxu0 0
        %1775 = vmatprep.subr.bf16.mxu0 0
        %1776 = vmatpush1.bf16.msra.mxu0 0
        %1777 = vmatprep.subr.bf16.mxu0 0
        %1778 = vmatpush1.bf16.msra.mxu0 0
        %1779 = vmatprep.subr.bf16.mxu0 %v412
        %1780 = vmatpush1.bf16.msra.mxu0 %v409
        %1781 = vmatprep.subr.bf16.mxu0 0
        %1782 = vmatpush2.bf16.msra.mxu0 0
        %1783 = vmatprep.subr.bf16.mxu0 0
        %1784 = vmatpush2.bf16.msra.mxu0 0
        %1785 = vmatprep.subr.bf16.mxu0 0
        %1786 = vmatpush2.bf16.msra.mxu0 0
        %1787 = vmatprep.subr.bf16.mxu0 0
        %1788 = vmatpush2.bf16.msra.mxu0 0
        %1789 = vmatprep.subr.bf16.mxu0 0
        %1790 = vmatpush2.bf16.msra.mxu0 0
        %1791 = vmatprep.subr.bf16.mxu0 0
        %1792 = vmatpush2.bf16.msra.mxu0 0
        %1793 = vmatprep.subr.bf16.mxu0 0
        %1794 = vmatpush2.bf16.msra.mxu0 0
        %1795 = vmatprep.subr.bf16.mxu0 0
        %1796 = vmatpush2.bf16.msra.mxu0 0
        %1797 = vmatprep.mubr.bf16.mxu0 0
        %1798 = vmatmul.mubr.bf16.gmra.mxu0 %v315
        %v1799 = vpop.f32.mrf.mxu0
        %v1800 = vadd.f32 0.0, %v1799
        %v1801 = vpop.f32.mrf.mxu0
        %v1802 = vadd.f32 0.0, %v1801
        %v1803 = vpop.f32.mrf.mxu0
        %v1804 = vadd.f32 0.0, %v1803
        %v1805 = vpop.f32.mrf.mxu0
        %v1806 = vadd.f32 0.0, %v1805
        %1807 = vmatprep.mubr.bf16.mxu0 0
        %1808 = vmatmul.mubr.bf16.gmra.mxu0 %v318
        %v1809 = vpop.f32.mrf.mxu0
        %v1810 = vadd.f32 0.0, %v1809
        %v1811 = vpop.f32.mrf.mxu0
        %v1812 = vadd.f32 0.0, %v1811
        %v1813 = vpop.f32.mrf.mxu0
        %v1814 = vadd.f32 0.0, %v1813
        %v1815 = vpop.f32.mrf.mxu0
        %v1816 = vadd.f32 0.0, %v1815
        %1817 = vmatprep.mubr.bf16.mxu0 0
        %1818 = vmatmul.mubr.bf16.gmra.mxu0 %v321
        %v1819 = vpop.f32.mrf.mxu0
        %v1820 = vadd.f32 0.0, %v1819
        %v1821 = vpop.f32.mrf.mxu0
        %v1822 = vadd.f32 0.0, %v1821
        %v1823 = vpop.f32.mrf.mxu0
        %v1824 = vadd.f32 0.0, %v1823
        %v1825 = vpop.f32.mrf.mxu0
        %v1826 = vadd.f32 0.0, %v1825
        %1827 = vmatprep.mubr.bf16.mxu0 0
        %1828 = vmatmul.mubr.bf16.gmra.mxu0 %v324
        %v1829 = vpop.f32.mrf.mxu0
        %v1830 = vadd.f32 0.0, %v1829
        %v1831 = vpop.f32.mrf.mxu0
        %v1832 = vadd.f32 0.0, %v1831
        %v1833 = vpop.f32.mrf.mxu0
        %v1834 = vadd.f32 0.0, %v1833
        %v1835 = vpop.f32.mrf.mxu0
        %v1836 = vadd.f32 0.0, %v1835
        %1837 = vmatprep.mubr.bf16.mxu0 0
        %1838 = vmatmul.mubr.bf16.gmra.mxu0 %v327
        %v1839 = vpop.f32.mrf.mxu0
        %v1840 = vadd.f32 0.0, %v1839
        %v1841 = vpop.f32.mrf.mxu0
        %v1842 = vadd.f32 0.0, %v1841
        %v1843 = vpop.f32.mrf.mxu0
        %v1844 = vadd.f32 0.0, %v1843
        %v1845 = vpop.f32.mrf.mxu0
        %v1846 = vadd.f32 0.0, %v1845
        %1847 = vmatprep.mubr.bf16.mxu0 0
        %1848 = vmatmul.mubr.bf16.gmra.mxu0 %v330
        %v1849 = vpop.f32.mrf.mxu0
        %v1850 = vadd.f32 0.0, %v1849
        %v1851 = vpop.f32.mrf.mxu0
        %v1852 = vadd.f32 0.0, %v1851
        %v1853 = vpop.f32.mrf.mxu0
        %v1854 = vadd.f32 0.0, %v1853
        %v1855 = vpop.f32.mrf.mxu0
        %v1856 = vadd.f32 0.0, %v1855
        %1857 = vmatprep.mubr.bf16.mxu0 0
        %1858 = vmatmul.mubr.bf16.gmra.mxu0 %v333
        %v1859 = vpop.f32.mrf.mxu0
        %v1860 = vadd.f32 0.0, %v1859
        %v1861 = vpop.f32.mrf.mxu0
        %v1862 = vadd.f32 0.0, %v1861
        %v1863 = vpop.f32.mrf.mxu0
        %v1864 = vadd.f32 0.0, %v1863
        %v1865 = vpop.f32.mrf.mxu0
        %v1866 = vadd.f32 0.0, %v1865
        %1867 = vmatprep.mubr.bf16.mxu0 0
        %1868 = vmatmul.mubr.bf16.gmra.mxu0 %v336
        %v1869 = vpop.f32.mrf.mxu0
        %v1870 = vadd.f32 0.0, %v1869
        %v1871 = vpop.f32.mrf.mxu0
        %v1872 = vadd.f32 0.0, %v1871
        %v1873 = vpop.f32.mrf.mxu0
        %v1874 = vadd.f32 0.0, %v1873
        %v1875 = vpop.f32.mrf.mxu0
        %v1876 = vadd.f32 0.0, %v1875
        %1877 = vmatprep.mubr.bf16.mxu0 0
        %1878 = vmatmul.mubr.bf16.gmra.mxu0 %v339
        %v1879 = vpop.f32.mrf.mxu0
        %v1880 = vadd.f32 0.0, %v1879
        %v1881 = vpop.f32.mrf.mxu0
        %v1882 = vadd.f32 0.0, %v1881
        %v1883 = vpop.f32.mrf.mxu0
        %v1884 = vadd.f32 0.0, %v1883
        %v1885 = vpop.f32.mrf.mxu0
        %v1886 = vadd.f32 0.0, %v1885
        %1887 = vmatprep.mubr.bf16.mxu0 0
        %1888 = vmatmul.mubr.bf16.gmra.mxu0 %v342
        %v1889 = vpop.f32.mrf.mxu0
        %v1890 = vadd.f32 0.0, %v1889
        %v1891 = vpop.f32.mrf.mxu0
        %v1892 = vadd.f32 0.0, %v1891
        %v1893 = vpop.f32.mrf.mxu0
        %v1894 = vadd.f32 0.0, %v1893
        %v1895 = vpop.f32.mrf.mxu0
        %v1896 = vadd.f32 0.0, %v1895
        %1897 = vmatprep.mubr.bf16.mxu0 0
        %1898 = vmatmul.mubr.bf16.gmra.mxu0 %v345
        %v1899 = vpop.f32.mrf.mxu0
        %v1900 = vadd.f32 0.0, %v1899
        %v1901 = vpop.f32.mrf.mxu0
        %v1902 = vadd.f32 0.0, %v1901
        %v1903 = vpop.f32.mrf.mxu0
        %v1904 = vadd.f32 0.0, %v1903
        %v1905 = vpop.f32.mrf.mxu0
        %v1906 = vadd.f32 0.0, %v1905
        %1907 = vmatprep.mubr.bf16.mxu0 0
        %1908 = vmatmul.mubr.bf16.gmra.mxu0 %v348
        %v1909 = vpop.f32.mrf.mxu0
        %v1910 = vadd.f32 0.0, %v1909
        %v1911 = vpop.f32.mrf.mxu0
        %v1912 = vadd.f32 0.0, %v1911
        %v1913 = vpop.f32.mrf.mxu0
        %v1914 = vadd.f32 0.0, %v1913
        %v1915 = vpop.f32.mrf.mxu0
        %v1916 = vadd.f32 0.0, %v1915
        %1917 = vmatprep.mubr.bf16.mxu0 0
        %1918 = vmatmul.mubr.bf16.gmra.mxu0 %v351
        %v1919 = vpop.f32.mrf.mxu0
        %v1920 = vadd.f32 0.0, %v1919
        %v1921 = vpop.f32.mrf.mxu0
        %v1922 = vadd.f32 0.0, %v1921
        %v1923 = vpop.f32.mrf.mxu0
        %v1924 = vadd.f32 0.0, %v1923
        %v1925 = vpop.f32.mrf.mxu0
        %v1926 = vadd.f32 0.0, %v1925
        %1927 = vmatprep.mubr.bf16.mxu0 0
        %1928 = vmatmul.mubr.bf16.gmra.mxu0 %v354
        %v1929 = vpop.f32.mrf.mxu0
        %v1930 = vadd.f32 0.0, %v1929
        %v1931 = vpop.f32.mrf.mxu0
        %v1932 = vadd.f32 0.0, %v1931
        %v1933 = vpop.f32.mrf.mxu0
        %v1934 = vadd.f32 0.0, %v1933
        %v1935 = vpop.f32.mrf.mxu0
        %v1936 = vadd.f32 0.0, %v1935
        %1937 = vmatprep.mubr.bf16.mxu0 0
        %1938 = vmatmul.mubr.bf16.gmra.mxu0 %v357
        %v1939 = vpop.f32.mrf.mxu0
        %v1940 = vadd.f32 0.0, %v1939
        %v1941 = vpop.f32.mrf.mxu0
        %v1942 = vadd.f32 0.0, %v1941
        %v1943 = vpop.f32.mrf.mxu0
        %v1944 = vadd.f32 0.0, %v1943
        %v1945 = vpop.f32.mrf.mxu0
        %v1946 = vadd.f32 0.0, %v1945
        %1947 = vmatprep.mubr.bf16.mxu0 0
        %1948 = vmatmul.mubr.bf16.gmra.mxu0 %v360
        %v1949 = vpop.f32.mrf.mxu0
        %v1950 = vadd.f32 0.0, %v1949
        %v1951 = vpop.f32.mrf.mxu0
        %v1952 = vadd.f32 0.0, %v1951
        %v1953 = vpop.f32.mrf.mxu0
        %v1954 = vadd.f32 0.0, %v1953
        %v1955 = vpop.f32.mrf.mxu0
        %v1956 = vadd.f32 0.0, %v1955
        %1957 = vdwg.mxu0
        %v1958 = vmax.f32 %v449, 0.0
        %v1959 = vmax.f32 %v451, 0.0
        %v1960 = vmax.f32 %v642, 0.0
        %v1961 = vmax.f32 %v644, 0.0
        %v1962 = vmax.f32 %v835, 0.0
        %v1963 = vmax.f32 %v837, 0.0
        %v1964 = vmax.f32 %v1028, 0.0
        %v1965 = vmax.f32 %v1030, 0.0
        %v1966 = vmax.f32 %v1221, 0.0
        %v1967 = vmax.f32 %v1223, 0.0
        %v1968 = vmax.f32 %v1414, 0.0
        %v1969 = vmax.f32 %v1416, 0.0
        %v1970 = vmax.f32 %v1607, 0.0
        %v1971 = vmax.f32 %v1609, 0.0
        %v1972 = vmax.f32 %v1800, 0.0
        %v1973 = vmax.f32 %v1802, 0.0
        %v1974 = vmax.f32 %v453, 0.0
        %v1975 = vmax.f32 %v455, 0.0
        %v1976 = vmax.f32 %v646, 0.0
        %v1977 = vmax.f32 %v648, 0.0
        %v1978 = vmax.f32 %v839, 0.0
        %v1979 = vmax.f32 %v841, 0.0
        %v1980 = vmax.f32 %v1032, 0.0
        %v1981 = vmax.f32 %v1034, 0.0
        %v1982 = vmax.f32 %v1225, 0.0
        %v1983 = vmax.f32 %v1227, 0.0
        %v1984 = vmax.f32 %v1418, 0.0
        %v1985 = vmax.f32 %v1420, 0.0
        %v1986 = vmax.f32 %v1611, 0.0
        %v1987 = vmax.f32 %v1613, 0.0
        %v1988 = vmax.f32 %v1804, 0.0
        %v1989 = vmax.f32 %v1806, 0.0
        %v1990 = vmax.f32 %v459, 0.0
        %v1991 = vmax.f32 %v461, 0.0
        %v1992 = vmax.f32 %v652, 0.0
        %v1993 = vmax.f32 %v654, 0.0
        %v1994 = vmax.f32 %v845, 0.0
        %v1995 = vmax.f32 %v847, 0.0
        %v1996 = vmax.f32 %v1038, 0.0
        %v1997 = vmax.f32 %v1040, 0.0
        %v1998 = vmax.f32 %v1231, 0.0
        %v1999 = vmax.f32 %v1233, 0.0
        %v2000 = vmax.f32 %v1424, 0.0
        %v2001 = vmax.f32 %v1426, 0.0
        %v2002 = vmax.f32 %v1617, 0.0
        %v2003 = vmax.f32 %v1619, 0.0
        %v2004 = vmax.f32 %v1810, 0.0
        %v2005 = vmax.f32 %v1812, 0.0
        %v2006 = vmax.f32 %v463, 0.0
        %v2007 = vmax.f32 %v465, 0.0
        %v2008 = vmax.f32 %v656, 0.0
        %v2009 = vmax.f32 %v658, 0.0
        %v2010 = vmax.f32 %v849, 0.0
        %v2011 = vmax.f32 %v851, 0.0
        %v2012 = vmax.f32 %v1042, 0.0
        %v2013 = vmax.f32 %v1044, 0.0
        %v2014 = vmax.f32 %v1235, 0.0
        %v2015 = vmax.f32 %v1237, 0.0
        %v2016 = vmax.f32 %v1428, 0.0
        %v2017 = vmax.f32 %v1430, 0.0
        %v2018 = vmax.f32 %v1621, 0.0
        %v2019 = vmax.f32 %v1623, 0.0
        %v2020 = vmax.f32 %v1814, 0.0
        %v2021 = vmax.f32 %v1816, 0.0
        %v2022 = vmax.f32 %v469, 0.0
        %v2023 = vmax.f32 %v471, 0.0
        %v2024 = vmax.f32 %v662, 0.0
        %v2025 = vmax.f32 %v664, 0.0
        %v2026 = vmax.f32 %v855, 0.0
        %v2027 = vmax.f32 %v857, 0.0
        %v2028 = vmax.f32 %v1048, 0.0
        %v2029 = vmax.f32 %v1050, 0.0
        %v2030 = vmax.f32 %v1241, 0.0
        %v2031 = vmax.f32 %v1243, 0.0
        %v2032 = vmax.f32 %v1434, 0.0
        %v2033 = vmax.f32 %v1436, 0.0
        %v2034 = vmax.f32 %v1627, 0.0
        %v2035 = vmax.f32 %v1629, 0.0
        %v2036 = vmax.f32 %v1820, 0.0
        %v2037 = vmax.f32 %v1822, 0.0
        %v2038 = vmax.f32 %v473, 0.0
        %v2039 = vmax.f32 %v475, 0.0
        %v2040 = vmax.f32 %v666, 0.0
        %v2041 = vmax.f32 %v668, 0.0
        %v2042 = vmax.f32 %v859, 0.0
        %v2043 = vmax.f32 %v861, 0.0
        %v2044 = vmax.f32 %v1052, 0.0
        %v2045 = vmax.f32 %v1054, 0.0
        %v2046 = vmax.f32 %v1245, 0.0
        %v2047 = vmax.f32 %v1247, 0.0
        %v2048 = vmax.f32 %v1438, 0.0
        %v2049 = vmax.f32 %v1440, 0.0
        %v2050 = vmax.f32 %v1631, 0.0
        %v2051 = vmax.f32 %v1633, 0.0
        %v2052 = vmax.f32 %v1824, 0.0
        %v2053 = vmax.f32 %v1826, 0.0
        %v2054 = vmax.f32 %v479, 0.0
        %v2055 = vmax.f32 %v481, 0.0
        %v2056 = vmax.f32 %v672, 0.0
        %v2057 = vmax.f32 %v674, 0.0
        %v2058 = vmax.f32 %v865, 0.0
        %v2059 = vmax.f32 %v867, 0.0
        %v2060 = vmax.f32 %v1058, 0.0
        %v2061 = vmax.f32 %v1060, 0.0
        %v2062 = vmax.f32 %v1251, 0.0
        %v2063 = vmax.f32 %v1253, 0.0
        %v2064 = vmax.f32 %v1444, 0.0
        %v2065 = vmax.f32 %v1446, 0.0
        %v2066 = vmax.f32 %v1637, 0.0
        %v2067 = vmax.f32 %v1639, 0.0
        %v2068 = vmax.f32 %v1830, 0.0
        %v2069 = vmax.f32 %v1832, 0.0
        %v2070 = vmax.f32 %v483, 0.0
        %v2071 = vmax.f32 %v485, 0.0
        %v2072 = vmax.f32 %v676, 0.0
        %v2073 = vmax.f32 %v678, 0.0
        %v2074 = vmax.f32 %v869, 0.0
        %v2075 = vmax.f32 %v871, 0.0
        %v2076 = vmax.f32 %v1062, 0.0
        %v2077 = vmax.f32 %v1064, 0.0
        %v2078 = vmax.f32 %v1255, 0.0
        %v2079 = vmax.f32 %v1257, 0.0
        %v2080 = vmax.f32 %v1448, 0.0
        %v2081 = vmax.f32 %v1450, 0.0
        %v2082 = vmax.f32 %v1641, 0.0
        %v2083 = vmax.f32 %v1643, 0.0
        %v2084 = vmax.f32 %v1834, 0.0
        %v2085 = vmax.f32 %v1836, 0.0
        %v2086 = vmax.f32 %v489, 0.0
        %v2087 = vmax.f32 %v491, 0.0
        %v2088 = vmax.f32 %v682, 0.0
        %v2089 = vmax.f32 %v684, 0.0
        %v2090 = vmax.f32 %v875, 0.0
        %v2091 = vmax.f32 %v877, 0.0
        %v2092 = vmax.f32 %v1068, 0.0
        %v2093 = vmax.f32 %v1070, 0.0
        %v2094 = vmax.f32 %v1261, 0.0
        %v2095 = vmax.f32 %v1263, 0.0
        %v2096 = vmax.f32 %v1454, 0.0
        %v2097 = vmax.f32 %v1456, 0.0
        %v2098 = vmax.f32 %v1647, 0.0
        %v2099 = vmax.f32 %v1649, 0.0
        %v2100 = vmax.f32 %v1840, 0.0
        %v2101 = vmax.f32 %v1842, 0.0
        %v2102 = vmax.f32 %v493, 0.0
        %v2103 = vmax.f32 %v495, 0.0
        %v2104 = vmax.f32 %v686, 0.0
        %v2105 = vmax.f32 %v688, 0.0
        %v2106 = vmax.f32 %v879, 0.0
        %v2107 = vmax.f32 %v881, 0.0
        %v2108 = vmax.f32 %v1072, 0.0
        %v2109 = vmax.f32 %v1074, 0.0
        %v2110 = vmax.f32 %v1265, 0.0
        %v2111 = vmax.f32 %v1267, 0.0
        %v2112 = vmax.f32 %v1458, 0.0
        %v2113 = vmax.f32 %v1460, 0.0
        %v2114 = vmax.f32 %v1651, 0.0
        %v2115 = vmax.f32 %v1653, 0.0
        %v2116 = vmax.f32 %v1844, 0.0
        %v2117 = vmax.f32 %v1846, 0.0
        %v2118 = vmax.f32 %v499, 0.0
        %v2119 = vmax.f32 %v501, 0.0
        %v2120 = vmax.f32 %v692, 0.0
        %v2121 = vmax.f32 %v694, 0.0
        %v2122 = vmax.f32 %v885, 0.0
        %v2123 = vmax.f32 %v887, 0.0
        %v2124 = vmax.f32 %v1078, 0.0
        %v2125 = vmax.f32 %v1080, 0.0
        %v2126 = vmax.f32 %v1271, 0.0
        %v2127 = vmax.f32 %v1273, 0.0
        %v2128 = vmax.f32 %v1464, 0.0
        %v2129 = vmax.f32 %v1466, 0.0
        %v2130 = vmax.f32 %v1657, 0.0
        %v2131 = vmax.f32 %v1659, 0.0
        %v2132 = vmax.f32 %v1850, 0.0
        %v2133 = vmax.f32 %v1852, 0.0
        %v2134 = vmax.f32 %v503, 0.0
        %v2135 = vmax.f32 %v505, 0.0
        %v2136 = vmax.f32 %v696, 0.0
        %v2137 = vmax.f32 %v698, 0.0
        %v2138 = vmax.f32 %v889, 0.0
        %v2139 = vmax.f32 %v891, 0.0
        %v2140 = vmax.f32 %v1082, 0.0
        %v2141 = vmax.f32 %v1084, 0.0
        %v2142 = vmax.f32 %v1275, 0.0
        %v2143 = vmax.f32 %v1277, 0.0
        %v2144 = vmax.f32 %v1468, 0.0
        %v2145 = vmax.f32 %v1470, 0.0
        %v2146 = vmax.f32 %v1661, 0.0
        %v2147 = vmax.f32 %v1663, 0.0
        %v2148 = vmax.f32 %v1854, 0.0
        %v2149 = vmax.f32 %v1856, 0.0
        %v2150 = vmax.f32 %v509, 0.0
        %v2151 = vmax.f32 %v511, 0.0
        %v2152 = vmax.f32 %v702, 0.0
        %v2153 = vmax.f32 %v704, 0.0
        %v2154 = vmax.f32 %v895, 0.0
        %v2155 = vmax.f32 %v897, 0.0
        %v2156 = vmax.f32 %v1088, 0.0
        %v2157 = vmax.f32 %v1090, 0.0
        %v2158 = vmax.f32 %v1281, 0.0
        %v2159 = vmax.f32 %v1283, 0.0
        %v2160 = vmax.f32 %v1474, 0.0
        %v2161 = vmax.f32 %v1476, 0.0
        %v2162 = vmax.f32 %v1667, 0.0
        %v2163 = vmax.f32 %v1669, 0.0
        %v2164 = vmax.f32 %v1860, 0.0
        %v2165 = vmax.f32 %v1862, 0.0
        %v2166 = vmax.f32 %v513, 0.0
        %v2167 = vmax.f32 %v515, 0.0
        %v2168 = vmax.f32 %v706, 0.0
        %v2169 = vmax.f32 %v708, 0.0
        %v2170 = vmax.f32 %v899, 0.0
        %v2171 = vmax.f32 %v901, 0.0
        %v2172 = vmax.f32 %v1092, 0.0
        %v2173 = vmax.f32 %v1094, 0.0
        %v2174 = vmax.f32 %v1285, 0.0
        %v2175 = vmax.f32 %v1287, 0.0
        %v2176 = vmax.f32 %v1478, 0.0
        %v2177 = vmax.f32 %v1480, 0.0
        %v2178 = vmax.f32 %v1671, 0.0
        %v2179 = vmax.f32 %v1673, 0.0
        %v2180 = vmax.f32 %v1864, 0.0
        %v2181 = vmax.f32 %v1866, 0.0
        %v2182 = vmax.f32 %v519, 0.0
        %v2183 = vmax.f32 %v521, 0.0
        %v2184 = vmax.f32 %v712, 0.0
        %v2185 = vmax.f32 %v714, 0.0
        %v2186 = vmax.f32 %v905, 0.0
        %v2187 = vmax.f32 %v907, 0.0
        %v2188 = vmax.f32 %v1098, 0.0
        %v2189 = vmax.f32 %v1100, 0.0
        %v2190 = vmax.f32 %v1291, 0.0
        %v2191 = vmax.f32 %v1293, 0.0
        %v2192 = vmax.f32 %v1484, 0.0
        %v2193 = vmax.f32 %v1486, 0.0
        %v2194 = vmax.f32 %v1677, 0.0
        %v2195 = vmax.f32 %v1679, 0.0
        %v2196 = vmax.f32 %v1870, 0.0
        %v2197 = vmax.f32 %v1872, 0.0
        %v2198 = vmax.f32 %v523, 0.0
        %v2199 = vmax.f32 %v525, 0.0
        %v2200 = vmax.f32 %v716, 0.0
        %v2201 = vmax.f32 %v718, 0.0
        %v2202 = vmax.f32 %v909, 0.0
        %v2203 = vmax.f32 %v911, 0.0
        %v2204 = vmax.f32 %v1102, 0.0
        %v2205 = vmax.f32 %v1104, 0.0
        %v2206 = vmax.f32 %v1295, 0.0
        %v2207 = vmax.f32 %v1297, 0.0
        %v2208 = vmax.f32 %v1488, 0.0
        %v2209 = vmax.f32 %v1490, 0.0
        %v2210 = vmax.f32 %v1681, 0.0
        %v2211 = vmax.f32 %v1683, 0.0
        %v2212 = vmax.f32 %v1874, 0.0
        %v2213 = vmax.f32 %v1876, 0.0
        %v2214 = vmax.f32 %v529, 0.0
        %v2215 = vmax.f32 %v531, 0.0
        %v2216 = vmax.f32 %v722, 0.0
        %v2217 = vmax.f32 %v724, 0.0
        %v2218 = vmax.f32 %v915, 0.0
        %v2219 = vmax.f32 %v917, 0.0
        %v2220 = vmax.f32 %v1108, 0.0
        %v2221 = vmax.f32 %v1110, 0.0
        %v2222 = vmax.f32 %v1301, 0.0
        %v2223 = vmax.f32 %v1303, 0.0
        %v2224 = vmax.f32 %v1494, 0.0
        %v2225 = vmax.f32 %v1496, 0.0
        %v2226 = vmax.f32 %v1687, 0.0
        %v2227 = vmax.f32 %v1689, 0.0
        %v2228 = vmax.f32 %v1880, 0.0
        %v2229 = vmax.f32 %v1882, 0.0
        %v2230 = vmax.f32 %v533, 0.0
        %v2231 = vmax.f32 %v535, 0.0
        %v2232 = vmax.f32 %v726, 0.0
        %v2233 = vmax.f32 %v728, 0.0
        %v2234 = vmax.f32 %v919, 0.0
        %v2235 = vmax.f32 %v921, 0.0
        %v2236 = vmax.f32 %v1112, 0.0
        %v2237 = vmax.f32 %v1114, 0.0
        %v2238 = vmax.f32 %v1305, 0.0
        %v2239 = vmax.f32 %v1307, 0.0
        %v2240 = vmax.f32 %v1498, 0.0
        %v2241 = vmax.f32 %v1500, 0.0
        %v2242 = vmax.f32 %v1691, 0.0
        %v2243 = vmax.f32 %v1693, 0.0
        %v2244 = vmax.f32 %v1884, 0.0
        %v2245 = vmax.f32 %v1886, 0.0
        %v2246 = vmax.f32 %v539, 0.0
        %v2247 = vmax.f32 %v541, 0.0
        %v2248 = vmax.f32 %v732, 0.0
        %v2249 = vmax.f32 %v734, 0.0
        %v2250 = vmax.f32 %v925, 0.0
        %v2251 = vmax.f32 %v927, 0.0
        %v2252 = vmax.f32 %v1118, 0.0
        %v2253 = vmax.f32 %v1120, 0.0
        %v2254 = vmax.f32 %v1311, 0.0
        %v2255 = vmax.f32 %v1313, 0.0
        %v2256 = vmax.f32 %v1504, 0.0
        %v2257 = vmax.f32 %v1506, 0.0
        %v2258 = vmax.f32 %v1697, 0.0
        %v2259 = vmax.f32 %v1699, 0.0
        %v2260 = vmax.f32 %v1890, 0.0
        %v2261 = vmax.f32 %v1892, 0.0
        %v2262 = vmax.f32 %v543, 0.0
        %v2263 = vmax.f32 %v545, 0.0
        %v2264 = vmax.f32 %v736, 0.0
        %v2265 = vmax.f32 %v738, 0.0
        %v2266 = vmax.f32 %v929, 0.0
        %v2267 = vmax.f32 %v931, 0.0
        %v2268 = vmax.f32 %v1122, 0.0
        %v2269 = vmax.f32 %v1124, 0.0
        %v2270 = vmax.f32 %v1315, 0.0
        %v2271 = vmax.f32 %v1317, 0.0
        %v2272 = vmax.f32 %v1508, 0.0
        %v2273 = vmax.f32 %v1510, 0.0
        %v2274 = vmax.f32 %v1701, 0.0
        %v2275 = vmax.f32 %v1703, 0.0
        %v2276 = vmax.f32 %v1894, 0.0
        %v2277 = vmax.f32 %v1896, 0.0
        %v2278 = vmax.f32 %v549, 0.0
        %v2279 = vmax.f32 %v551, 0.0
        %v2280 = vmax.f32 %v742, 0.0
        %v2281 = vmax.f32 %v744, 0.0
        %v2282 = vmax.f32 %v935, 0.0
        %v2283 = vmax.f32 %v937, 0.0
        %v2284 = vmax.f32 %v1128, 0.0
        %v2285 = vmax.f32 %v1130, 0.0
        %v2286 = vmax.f32 %v1321, 0.0
        %v2287 = vmax.f32 %v1323, 0.0
        %v2288 = vmax.f32 %v1514, 0.0
        %v2289 = vmax.f32 %v1516, 0.0
        %v2290 = vmax.f32 %v1707, 0.0
        %v2291 = vmax.f32 %v1709, 0.0
        %v2292 = vmax.f32 %v1900, 0.0
        %v2293 = vmax.f32 %v1902, 0.0
        %v2294 = vmax.f32 %v553, 0.0
        %v2295 = vmax.f32 %v555, 0.0
        %v2296 = vmax.f32 %v746, 0.0
        %v2297 = vmax.f32 %v748, 0.0
        %v2298 = vmax.f32 %v939, 0.0
        %v2299 = vmax.f32 %v941, 0.0
        %v2300 = vmax.f32 %v1132, 0.0
        %v2301 = vmax.f32 %v1134, 0.0
        %v2302 = vmax.f32 %v1325, 0.0
        %v2303 = vmax.f32 %v1327, 0.0
        %v2304 = vmax.f32 %v1518, 0.0
        %v2305 = vmax.f32 %v1520, 0.0
        %v2306 = vmax.f32 %v1711, 0.0
        %v2307 = vmax.f32 %v1713, 0.0
        %v2308 = vmax.f32 %v1904, 0.0
        %v2309 = vmax.f32 %v1906, 0.0
        %v2310 = vmax.f32 %v559, 0.0
        %v2311 = vmax.f32 %v561, 0.0
        %v2312 = vmax.f32 %v752, 0.0
        %v2313 = vmax.f32 %v754, 0.0
        %v2314 = vmax.f32 %v945, 0.0
        %v2315 = vmax.f32 %v947, 0.0
        %v2316 = vmax.f32 %v1138, 0.0
        %v2317 = vmax.f32 %v1140, 0.0
        %v2318 = vmax.f32 %v1331, 0.0
        %v2319 = vmax.f32 %v1333, 0.0
        %v2320 = vmax.f32 %v1524, 0.0
        %v2321 = vmax.f32 %v1526, 0.0
        %v2322 = vmax.f32 %v1717, 0.0
        %v2323 = vmax.f32 %v1719, 0.0
        %v2324 = vmax.f32 %v1910, 0.0
        %v2325 = vmax.f32 %v1912, 0.0
        %v2326 = vmax.f32 %v563, 0.0
        %v2327 = vmax.f32 %v565, 0.0
        %v2328 = vmax.f32 %v756, 0.0
        %v2329 = vmax.f32 %v758, 0.0
        %v2330 = vmax.f32 %v949, 0.0
        %v2331 = vmax.f32 %v951, 0.0
        %v2332 = vmax.f32 %v1142, 0.0
        %v2333 = vmax.f32 %v1144, 0.0
        %v2334 = vmax.f32 %v1335, 0.0
        %v2335 = vmax.f32 %v1337, 0.0
        %v2336 = vmax.f32 %v1528, 0.0
        %v2337 = vmax.f32 %v1530, 0.0
        %v2338 = vmax.f32 %v1721, 0.0
        %v2339 = vmax.f32 %v1723, 0.0
        %v2340 = vmax.f32 %v1914, 0.0
        %v2341 = vmax.f32 %v1916, 0.0
        %v2342 = vmax.f32 %v569, 0.0
        %v2343 = vmax.f32 %v571, 0.0
        %v2344 = vmax.f32 %v762, 0.0
        %v2345 = vmax.f32 %v764, 0.0
        %v2346 = vmax.f32 %v955, 0.0
        %v2347 = vmax.f32 %v957, 0.0
        %v2348 = vmax.f32 %v1148, 0.0
        %v2349 = vmax.f32 %v1150, 0.0
        %v2350 = vmax.f32 %v1341, 0.0
        %v2351 = vmax.f32 %v1343, 0.0
        %v2352 = vmax.f32 %v1534, 0.0
        %v2353 = vmax.f32 %v1536, 0.0
        %v2354 = vmax.f32 %v1727, 0.0
        %v2355 = vmax.f32 %v1729, 0.0
        %v2356 = vmax.f32 %v1920, 0.0
        %v2357 = vmax.f32 %v1922, 0.0
        %v2358 = vmax.f32 %v573, 0.0
        %v2359 = vmax.f32 %v575, 0.0
        %v2360 = vmax.f32 %v766, 0.0
        %v2361 = vmax.f32 %v768, 0.0
        %v2362 = vmax.f32 %v959, 0.0
        %v2363 = vmax.f32 %v961, 0.0
        %v2364 = vmax.f32 %v1152, 0.0
        %v2365 = vmax.f32 %v1154, 0.0
        %v2366 = vmax.f32 %v1345, 0.0
        %v2367 = vmax.f32 %v1347, 0.0
        %v2368 = vmax.f32 %v1538, 0.0
        %v2369 = vmax.f32 %v1540, 0.0
        %v2370 = vmax.f32 %v1731, 0.0
        %v2371 = vmax.f32 %v1733, 0.0
        %v2372 = vmax.f32 %v1924, 0.0
        %v2373 = vmax.f32 %v1926, 0.0
        %v2374 = vmax.f32 %v579, 0.0
        %v2375 = vmax.f32 %v581, 0.0
        %v2376 = vmax.f32 %v772, 0.0
        %v2377 = vmax.f32 %v774, 0.0
        %v2378 = vmax.f32 %v965, 0.0
        %v2379 = vmax.f32 %v967, 0.0
        %v2380 = vmax.f32 %v1158, 0.0
        %v2381 = vmax.f32 %v1160, 0.0
        %v2382 = vmax.f32 %v1351, 0.0
        %v2383 = vmax.f32 %v1353, 0.0
        %v2384 = vmax.f32 %v1544, 0.0
        %v2385 = vmax.f32 %v1546, 0.0
        %v2386 = vmax.f32 %v1737, 0.0
        %v2387 = vmax.f32 %v1739, 0.0
        %v2388 = vmax.f32 %v1930, 0.0
        %v2389 = vmax.f32 %v1932, 0.0
        %v2390 = vmax.f32 %v583, 0.0
        %v2391 = vmax.f32 %v585, 0.0
        %v2392 = vmax.f32 %v776, 0.0
        %v2393 = vmax.f32 %v778, 0.0
        %v2394 = vmax.f32 %v969, 0.0
        %v2395 = vmax.f32 %v971, 0.0
        %v2396 = vmax.f32 %v1162, 0.0
        %v2397 = vmax.f32 %v1164, 0.0
        %v2398 = vmax.f32 %v1355, 0.0
        %v2399 = vmax.f32 %v1357, 0.0
        %v2400 = vmax.f32 %v1548, 0.0
        %v2401 = vmax.f32 %v1550, 0.0
        %v2402 = vmax.f32 %v1741, 0.0
        %v2403 = vmax.f32 %v1743, 0.0
        %v2404 = vmax.f32 %v1934, 0.0
        %v2405 = vmax.f32 %v1936, 0.0
        %v2406 = vmax.f32 %v589, 0.0
        %v2407 = vmax.f32 %v591, 0.0
        %v2408 = vmax.f32 %v782, 0.0
        %v2409 = vmax.f32 %v784, 0.0
        %v2410 = vmax.f32 %v975, 0.0
        %v2411 = vmax.f32 %v977, 0.0
        %v2412 = vmax.f32 %v1168, 0.0
        %v2413 = vmax.f32 %v1170, 0.0
        %v2414 = vmax.f32 %v1361, 0.0
        %v2415 = vmax.f32 %v1363, 0.0
        %v2416 = vmax.f32 %v1554, 0.0
        %v2417 = vmax.f32 %v1556, 0.0
        %v2418 = vmax.f32 %v1747, 0.0
        %v2419 = vmax.f32 %v1749, 0.0
        %v2420 = vmax.f32 %v1940, 0.0
        %v2421 = vmax.f32 %v1942, 0.0
        %v2422 = vmax.f32 %v593, 0.0
        %v2423 = vmax.f32 %v595, 0.0
        %v2424 = vmax.f32 %v786, 0.0
        %v2425 = vmax.f32 %v788, 0.0
        %v2426 = vmax.f32 %v979, 0.0
        %v2427 = vmax.f32 %v981, 0.0
        %v2428 = vmax.f32 %v1172, 0.0
        %v2429 = vmax.f32 %v1174, 0.0
        %v2430 = vmax.f32 %v1365, 0.0
        %v2431 = vmax.f32 %v1367, 0.0
        %v2432 = vmax.f32 %v1558, 0.0
        %v2433 = vmax.f32 %v1560, 0.0
        %v2434 = vmax.f32 %v1751, 0.0
        %v2435 = vmax.f32 %v1753, 0.0
        %v2436 = vmax.f32 %v1944, 0.0
        %v2437 = vmax.f32 %v1946, 0.0
        %v2438 = vmax.f32 %v599, 0.0
        %v2439 = vmax.f32 %v601, 0.0
        %v2440 = vmax.f32 %v792, 0.0
        %v2441 = vmax.f32 %v794, 0.0
        %v2442 = vmax.f32 %v985, 0.0
        %v2443 = vmax.f32 %v987, 0.0
        %v2444 = vmax.f32 %v1178, 0.0
        %v2445 = vmax.f32 %v1180, 0.0
        %v2446 = vmax.f32 %v1371, 0.0
        %v2447 = vmax.f32 %v1373, 0.0
        %v2448 = vmax.f32 %v1564, 0.0
        %v2449 = vmax.f32 %v1566, 0.0
        %v2450 = vmax.f32 %v1757, 0.0
        %v2451 = vmax.f32 %v1759, 0.0
        %v2452 = vmax.f32 %v1950, 0.0
        %v2453 = vmax.f32 %v1952, 0.0
        %v2454 = vmax.f32 %v603, 0.0
        %v2455 = vmax.f32 %v605, 0.0
        %v2456 = vmax.f32 %v796, 0.0
        %v2457 = vmax.f32 %v798, 0.0
        %v2458 = vmax.f32 %v989, 0.0
        %v2459 = vmax.f32 %v991, 0.0
        %v2460 = vmax.f32 %v1182, 0.0
        %v2461 = vmax.f32 %v1184, 0.0
        %v2462 = vmax.f32 %v1375, 0.0
        %v2463 = vmax.f32 %v1377, 0.0
        %v2464 = vmax.f32 %v1568, 0.0
        %v2465 = vmax.f32 %v1570, 0.0
        %v2466 = vmax.f32 %v1761, 0.0
        %v2467 = vmax.f32 %v1763, 0.0
        %v2468 = vmax.f32 %v1954, 0.0
        %v2469 = vmax.f32 %v1956, 0.0
        %v2470 = vadd.f32 %v1958, %v1974
        %v2471 = vadd.f32 %v2470, %v1990
        %v2472 = vadd.f32 %v2471, %v2006
        %v2473 = vadd.f32 %v2472, %v2022
        %v2474 = vadd.f32 %v2473, %v2038
        %v2475 = vadd.f32 %v2474, %v2054
        %v2476 = vadd.f32 %v2475, %v2070
        %v2477 = vadd.f32 %v2476, %v2086
        %v2478 = vadd.f32 %v2477, %v2102
        %v2479 = vadd.f32 %v2478, %v2118
        %v2480 = vadd.f32 %v2479, %v2134
        %v2481 = vadd.f32 %v2480, %v2150
        %v2482 = vadd.f32 %v2481, %v2166
        %v2483 = vadd.f32 %v2482, %v2182
        %v2484 = vadd.f32 %v2483, %v2198
        %v2485 = vadd.f32 %v2484, %v2214
        %v2486 = vadd.f32 %v2485, %v2230
        %v2487 = vadd.f32 %v2486, %v2246
        %v2488 = vadd.f32 %v2487, %v2262
        %v2489 = vadd.f32 %v2488, %v2278
        %v2490 = vadd.f32 %v2489, %v2294
        %v2491 = vadd.f32 %v2490, %v2310
        %v2492 = vadd.f32 %v2491, %v2326
        %v2493 = vadd.f32 %v2492, %v2342
        %v2494 = vadd.f32 %v2493, %v2358
        %v2495 = vadd.f32 %v2494, %v2374
        %v2496 = vadd.f32 %v2495, %v2390
        %v2497 = vadd.f32 %v2496, %v2406
        %v2498 = vadd.f32 %v2497, %v2422
        %v2499 = vadd.f32 %v2498, %v2438
        %v2500 = vadd.f32 %v2499, %v2454
        %v2501 = vrot.slane %v2500, 4
        %v2502 = vadd.f32 %v2500, %v2501
        %v2503 = vrot.slane %v2502, 2
        %v2504 = vadd.f32 %v2502, %v2503
        %v2505 = vrot.slane %v2504, 1
        %v2506 = vadd.f32 %v2504, %v2505
        %v2507 = vadd.f32 %v1959, %v1975
        %v2508 = vadd.f32 %v2507, %v1991
        %v2509 = vadd.f32 %v2508, %v2007
        %v2510 = vadd.f32 %v2509, %v2023
        %v2511 = vadd.f32 %v2510, %v2039
        %v2512 = vadd.f32 %v2511, %v2055
        %v2513 = vadd.f32 %v2512, %v2071
        %v2514 = vadd.f32 %v2513, %v2087
        %v2515 = vadd.f32 %v2514, %v2103
        %v2516 = vadd.f32 %v2515, %v2119
        %v2517 = vadd.f32 %v2516, %v2135
        %v2518 = vadd.f32 %v2517, %v2151
        %v2519 = vadd.f32 %v2518, %v2167
        %v2520 = vadd.f32 %v2519, %v2183
        %v2521 = vadd.f32 %v2520, %v2199
        %v2522 = vadd.f32 %v2521, %v2215
        %v2523 = vadd.f32 %v2522, %v2231
        %v2524 = vadd.f32 %v2523, %v2247
        %v2525 = vadd.f32 %v2524, %v2263
        %v2526 = vadd.f32 %v2525, %v2279
        %v2527 = vadd.f32 %v2526, %v2295
        %v2528 = vadd.f32 %v2527, %v2311
        %v2529 = vadd.f32 %v2528, %v2327
        %v2530 = vadd.f32 %v2529, %v2343
        %v2531 = vadd.f32 %v2530, %v2359
        %v2532 = vadd.f32 %v2531, %v2375
        %v2533 = vadd.f32 %v2532, %v2391
        %v2534 = vadd.f32 %v2533, %v2407
        %v2535 = vadd.f32 %v2534, %v2423
        %v2536 = vadd.f32 %v2535, %v2439
        %v2537 = vadd.f32 %v2536, %v2455
        %v2538 = vrot.slane %v2537, 4
        %v2539 = vadd.f32 %v2537, %v2538
        %v2540 = vrot.slane %v2539, 2
        %v2541 = vadd.f32 %v2539, %v2540
        %v2542 = vrot.slane %v2541, 1
        %v2543 = vadd.f32 %v2541, %v2542
        %v2544 = vadd.f32 %v1960, %v1976
        %v2545 = vadd.f32 %v2544, %v1992
        %v2546 = vadd.f32 %v2545, %v2008
        %v2547 = vadd.f32 %v2546, %v2024
        %v2548 = vadd.f32 %v2547, %v2040
        %v2549 = vadd.f32 %v2548, %v2056
        %v2550 = vadd.f32 %v2549, %v2072
        %v2551 = vadd.f32 %v2550, %v2088
        %v2552 = vadd.f32 %v2551, %v2104
        %v2553 = vadd.f32 %v2552, %v2120
        %v2554 = vadd.f32 %v2553, %v2136
        %v2555 = vadd.f32 %v2554, %v2152
        %v2556 = vadd.f32 %v2555, %v2168
        %v2557 = vadd.f32 %v2556, %v2184
        %v2558 = vadd.f32 %v2557, %v2200
        %v2559 = vadd.f32 %v2558, %v2216
        %v2560 = vadd.f32 %v2559, %v2232
        %v2561 = vadd.f32 %v2560, %v2248
        %v2562 = vadd.f32 %v2561, %v2264
        %v2563 = vadd.f32 %v2562, %v2280
        %v2564 = vadd.f32 %v2563, %v2296
        %v2565 = vadd.f32 %v2564, %v2312
        %v2566 = vadd.f32 %v2565, %v2328
        %v2567 = vadd.f32 %v2566, %v2344
        %v2568 = vadd.f32 %v2567, %v2360
        %v2569 = vadd.f32 %v2568, %v2376
        %v2570 = vadd.f32 %v2569, %v2392
        %v2571 = vadd.f32 %v2570, %v2408
        %v2572 = vadd.f32 %v2571, %v2424
        %v2573 = vadd.f32 %v2572, %v2440
        %v2574 = vadd.f32 %v2573, %v2456
        %v2575 = vrot.slane %v2574, 4
        %v2576 = vadd.f32 %v2574, %v2575
        %v2577 = vrot.slane %v2576, 2
        %v2578 = vadd.f32 %v2576, %v2577
        %v2579 = vrot.slane %v2578, 1
        %v2580 = vadd.f32 %v2578, %v2579
        %v2581 = vadd.f32 %v1961, %v1977
        %v2582 = vadd.f32 %v2581, %v1993
        %v2583 = vadd.f32 %v2582, %v2009
        %v2584 = vadd.f32 %v2583, %v2025
        %v2585 = vadd.f32 %v2584, %v2041
        %v2586 = vadd.f32 %v2585, %v2057
        %v2587 = vadd.f32 %v2586, %v2073
        %v2588 = vadd.f32 %v2587, %v2089
        %v2589 = vadd.f32 %v2588, %v2105
        %v2590 = vadd.f32 %v2589, %v2121
        %v2591 = vadd.f32 %v2590, %v2137
        %v2592 = vadd.f32 %v2591, %v2153
        %v2593 = vadd.f32 %v2592, %v2169
        %v2594 = vadd.f32 %v2593, %v2185
        %v2595 = vadd.f32 %v2594, %v2201
        %v2596 = vadd.f32 %v2595, %v2217
        %v2597 = vadd.f32 %v2596, %v2233
        %v2598 = vadd.f32 %v2597, %v2249
        %v2599 = vadd.f32 %v2598, %v2265
        %v2600 = vadd.f32 %v2599, %v2281
        %v2601 = vadd.f32 %v2600, %v2297
        %v2602 = vadd.f32 %v2601, %v2313
        %v2603 = vadd.f32 %v2602, %v2329
        %v2604 = vadd.f32 %v2603, %v2345
        %v2605 = vadd.f32 %v2604, %v2361
        %v2606 = vadd.f32 %v2605, %v2377
        %v2607 = vadd.f32 %v2606, %v2393
        %v2608 = vadd.f32 %v2607, %v2409
        %v2609 = vadd.f32 %v2608, %v2425
        %v2610 = vadd.f32 %v2609, %v2441
        %v2611 = vadd.f32 %v2610, %v2457
        %v2612 = vrot.slane %v2611, 4
        %v2613 = vadd.f32 %v2611, %v2612
        %v2614 = vrot.slane %v2613, 2
        %v2615 = vadd.f32 %v2613, %v2614
        %v2616 = vrot.slane %v2615, 1
        %v2617 = vadd.f32 %v2615, %v2616
        %v2618 = vadd.f32 %v1962, %v1978
        %v2619 = vadd.f32 %v2618, %v1994
        %v2620 = vadd.f32 %v2619, %v2010
        %v2621 = vadd.f32 %v2620, %v2026
        %v2622 = vadd.f32 %v2621, %v2042
        %v2623 = vadd.f32 %v2622, %v2058
        %v2624 = vadd.f32 %v2623, %v2074
        %v2625 = vadd.f32 %v2624, %v2090
        %v2626 = vadd.f32 %v2625, %v2106
        %v2627 = vadd.f32 %v2626, %v2122
        %v2628 = vadd.f32 %v2627, %v2138
        %v2629 = vadd.f32 %v2628, %v2154
        %v2630 = vadd.f32 %v2629, %v2170
        %v2631 = vadd.f32 %v2630, %v2186
        %v2632 = vadd.f32 %v2631, %v2202
        %v2633 = vadd.f32 %v2632, %v2218
        %v2634 = vadd.f32 %v2633, %v2234
        %v2635 = vadd.f32 %v2634, %v2250
        %v2636 = vadd.f32 %v2635, %v2266
        %v2637 = vadd.f32 %v2636, %v2282
        %v2638 = vadd.f32 %v2637, %v2298
        %v2639 = vadd.f32 %v2638, %v2314
        %v2640 = vadd.f32 %v2639, %v2330
        %v2641 = vadd.f32 %v2640, %v2346
        %v2642 = vadd.f32 %v2641, %v2362
        %v2643 = vadd.f32 %v2642, %v2378
        %v2644 = vadd.f32 %v2643, %v2394
        %v2645 = vadd.f32 %v2644, %v2410
        %v2646 = vadd.f32 %v2645, %v2426
        %v2647 = vadd.f32 %v2646, %v2442
        %v2648 = vadd.f32 %v2647, %v2458
        %v2649 = vrot.slane %v2648, 4
        %v2650 = vadd.f32 %v2648, %v2649
        %v2651 = vrot.slane %v2650, 2
        %v2652 = vadd.f32 %v2650, %v2651
        %v2653 = vrot.slane %v2652, 1
        %v2654 = vadd.f32 %v2652, %v2653
        %v2655 = vadd.f32 %v1963, %v1979
        %v2656 = vadd.f32 %v2655, %v1995
        %v2657 = vadd.f32 %v2656, %v2011
        %v2658 = vadd.f32 %v2657, %v2027
        %v2659 = vadd.f32 %v2658, %v2043
        %v2660 = vadd.f32 %v2659, %v2059
        %v2661 = vadd.f32 %v2660, %v2075
        %v2662 = vadd.f32 %v2661, %v2091
        %v2663 = vadd.f32 %v2662, %v2107
        %v2664 = vadd.f32 %v2663, %v2123
        %v2665 = vadd.f32 %v2664, %v2139
        %v2666 = vadd.f32 %v2665, %v2155
        %v2667 = vadd.f32 %v2666, %v2171
        %v2668 = vadd.f32 %v2667, %v2187
        %v2669 = vadd.f32 %v2668, %v2203
        %v2670 = vadd.f32 %v2669, %v2219
        %v2671 = vadd.f32 %v2670, %v2235
        %v2672 = vadd.f32 %v2671, %v2251
        %v2673 = vadd.f32 %v2672, %v2267
        %v2674 = vadd.f32 %v2673, %v2283
        %v2675 = vadd.f32 %v2674, %v2299
        %v2676 = vadd.f32 %v2675, %v2315
        %v2677 = vadd.f32 %v2676, %v2331
        %v2678 = vadd.f32 %v2677, %v2347
        %v2679 = vadd.f32 %v2678, %v2363
        %v2680 = vadd.f32 %v2679, %v2379
        %v2681 = vadd.f32 %v2680, %v2395
        %v2682 = vadd.f32 %v2681, %v2411
        %v2683 = vadd.f32 %v2682, %v2427
        %v2684 = vadd.f32 %v2683, %v2443
        %v2685 = vadd.f32 %v2684, %v2459
        %v2686 = vrot.slane %v2685, 4
        %v2687 = vadd.f32 %v2685, %v2686
        %v2688 = vrot.slane %v2687, 2
        %v2689 = vadd.f32 %v2687, %v2688
        %v2690 = vrot.slane %v2689, 1
        %v2691 = vadd.f32 %v2689, %v2690
        %v2692 = vadd.f32 %v1964, %v1980
        %v2693 = vadd.f32 %v2692, %v1996
        %v2694 = vadd.f32 %v2693, %v2012
        %v2695 = vadd.f32 %v2694, %v2028
        %v2696 = vadd.f32 %v2695, %v2044
        %v2697 = vadd.f32 %v2696, %v2060
        %v2698 = vadd.f32 %v2697, %v2076
        %v2699 = vadd.f32 %v2698, %v2092
        %v2700 = vadd.f32 %v2699, %v2108
        %v2701 = vadd.f32 %v2700, %v2124
        %v2702 = vadd.f32 %v2701, %v2140
        %v2703 = vadd.f32 %v2702, %v2156
        %v2704 = vadd.f32 %v2703, %v2172
        %v2705 = vadd.f32 %v2704, %v2188
        %v2706 = vadd.f32 %v2705, %v2204
        %v2707 = vadd.f32 %v2706, %v2220
        %v2708 = vadd.f32 %v2707, %v2236
        %v2709 = vadd.f32 %v2708, %v2252
        %v2710 = vadd.f32 %v2709, %v2268
        %v2711 = vadd.f32 %v2710, %v2284
        %v2712 = vadd.f32 %v2711, %v2300
        %v2713 = vadd.f32 %v2712, %v2316
        %v2714 = vadd.f32 %v2713, %v2332
        %v2715 = vadd.f32 %v2714, %v2348
        %v2716 = vadd.f32 %v2715, %v2364
        %v2717 = vadd.f32 %v2716, %v2380
        %v2718 = vadd.f32 %v2717, %v2396
        %v2719 = vadd.f32 %v2718, %v2412
        %v2720 = vadd.f32 %v2719, %v2428
        %v2721 = vadd.f32 %v2720, %v2444
        %v2722 = vadd.f32 %v2721, %v2460
        %v2723 = vrot.slane %v2722, 4
        %v2724 = vadd.f32 %v2722, %v2723
        %v2725 = vrot.slane %v2724, 2
        %v2726 = vadd.f32 %v2724, %v2725
        %v2727 = vrot.slane %v2726, 1
        %v2728 = vadd.f32 %v2726, %v2727
        %v2729 = vadd.f32 %v1965, %v1981
        %v2730 = vadd.f32 %v2729, %v1997
        %v2731 = vadd.f32 %v2730, %v2013
        %v2732 = vadd.f32 %v2731, %v2029
        %v2733 = vadd.f32 %v2732, %v2045
        %v2734 = vadd.f32 %v2733, %v2061
        %v2735 = vadd.f32 %v2734, %v2077
        %v2736 = vadd.f32 %v2735, %v2093
        %v2737 = vadd.f32 %v2736, %v2109
        %v2738 = vadd.f32 %v2737, %v2125
        %v2739 = vadd.f32 %v2738, %v2141
        %v2740 = vadd.f32 %v2739, %v2157
        %v2741 = vadd.f32 %v2740, %v2173
        %v2742 = vadd.f32 %v2741, %v2189
        %v2743 = vadd.f32 %v2742, %v2205
        %v2744 = vadd.f32 %v2743, %v2221
        %v2745 = vadd.f32 %v2744, %v2237
        %v2746 = vadd.f32 %v2745, %v2253
        %v2747 = vadd.f32 %v2746, %v2269
        %v2748 = vadd.f32 %v2747, %v2285
        %v2749 = vadd.f32 %v2748, %v2301
        %v2750 = vadd.f32 %v2749, %v2317
        %v2751 = vadd.f32 %v2750, %v2333
        %v2752 = vadd.f32 %v2751, %v2349
        %v2753 = vadd.f32 %v2752, %v2365
        %v2754 = vadd.f32 %v2753, %v2381
        %v2755 = vadd.f32 %v2754, %v2397
        %v2756 = vadd.f32 %v2755, %v2413
        %v2757 = vadd.f32 %v2756, %v2429
        %v2758 = vadd.f32 %v2757, %v2445
        %v2759 = vadd.f32 %v2758, %v2461
        %v2760 = vrot.slane %v2759, 4
        %v2761 = vadd.f32 %v2759, %v2760
        %v2762 = vrot.slane %v2761, 2
        %v2763 = vadd.f32 %v2761, %v2762
        %v2764 = vrot.slane %v2763, 1
        %v2765 = vadd.f32 %v2763, %v2764
        %v2766 = vadd.f32 %v1966, %v1982
        %v2767 = vadd.f32 %v2766, %v1998
        %v2768 = vadd.f32 %v2767, %v2014
        %v2769 = vadd.f32 %v2768, %v2030
        %v2770 = vadd.f32 %v2769, %v2046
        %v2771 = vadd.f32 %v2770, %v2062
        %v2772 = vadd.f32 %v2771, %v2078
        %v2773 = vadd.f32 %v2772, %v2094
        %v2774 = vadd.f32 %v2773, %v2110
        %v2775 = vadd.f32 %v2774, %v2126
        %v2776 = vadd.f32 %v2775, %v2142
        %v2777 = vadd.f32 %v2776, %v2158
        %v2778 = vadd.f32 %v2777, %v2174
        %v2779 = vadd.f32 %v2778, %v2190
        %v2780 = vadd.f32 %v2779, %v2206
        %v2781 = vadd.f32 %v2780, %v2222
        %v2782 = vadd.f32 %v2781, %v2238
        %v2783 = vadd.f32 %v2782, %v2254
        %v2784 = vadd.f32 %v2783, %v2270
        %v2785 = vadd.f32 %v2784, %v2286
        %v2786 = vadd.f32 %v2785, %v2302
        %v2787 = vadd.f32 %v2786, %v2318
        %v2788 = vadd.f32 %v2787, %v2334
        %v2789 = vadd.f32 %v2788, %v2350
        %v2790 = vadd.f32 %v2789, %v2366
        %v2791 = vadd.f32 %v2790, %v2382
        %v2792 = vadd.f32 %v2791, %v2398
        %v2793 = vadd.f32 %v2792, %v2414
        %v2794 = vadd.f32 %v2793, %v2430
        %v2795 = vadd.f32 %v2794, %v2446
        %v2796 = vadd.f32 %v2795, %v2462
        %v2797 = vrot.slane %v2796, 4
        %v2798 = vadd.f32 %v2796, %v2797
        %v2799 = vrot.slane %v2798, 2
        %v2800 = vadd.f32 %v2798, %v2799
        %v2801 = vrot.slane %v2800, 1
        %v2802 = vadd.f32 %v2800, %v2801
        %v2803 = vadd.f32 %v1967, %v1983
        %v2804 = vadd.f32 %v2803, %v1999
        %v2805 = vadd.f32 %v2804, %v2015
        %v2806 = vadd.f32 %v2805, %v2031
        %v2807 = vadd.f32 %v2806, %v2047
        %v2808 = vadd.f32 %v2807, %v2063
        %v2809 = vadd.f32 %v2808, %v2079
        %v2810 = vadd.f32 %v2809, %v2095
        %v2811 = vadd.f32 %v2810, %v2111
        %v2812 = vadd.f32 %v2811, %v2127
        %v2813 = vadd.f32 %v2812, %v2143
        %v2814 = vadd.f32 %v2813, %v2159
        %v2815 = vadd.f32 %v2814, %v2175
        %v2816 = vadd.f32 %v2815, %v2191
        %v2817 = vadd.f32 %v2816, %v2207
        %v2818 = vadd.f32 %v2817, %v2223
        %v2819 = vadd.f32 %v2818, %v2239
        %v2820 = vadd.f32 %v2819, %v2255
        %v2821 = vadd.f32 %v2820, %v2271
        %v2822 = vadd.f32 %v2821, %v2287
        %v2823 = vadd.f32 %v2822, %v2303
        %v2824 = vadd.f32 %v2823, %v2319
        %v2825 = vadd.f32 %v2824, %v2335
        %v2826 = vadd.f32 %v2825, %v2351
        %v2827 = vadd.f32 %v2826, %v2367
        %v2828 = vadd.f32 %v2827, %v2383
        %v2829 = vadd.f32 %v2828, %v2399
        %v2830 = vadd.f32 %v2829, %v2415
        %v2831 = vadd.f32 %v2830, %v2431
        %v2832 = vadd.f32 %v2831, %v2447
        %v2833 = vadd.f32 %v2832, %v2463
        %v2834 = vrot.slane %v2833, 4
        %v2835 = vadd.f32 %v2833, %v2834
        %v2836 = vrot.slane %v2835, 2
        %v2837 = vadd.f32 %v2835, %v2836
        %v2838 = vrot.slane %v2837, 1
        %v2839 = vadd.f32 %v2837, %v2838
        %v2840 = vadd.f32 %v1968, %v1984
        %v2841 = vadd.f32 %v2840, %v2000
        %v2842 = vadd.f32 %v2841, %v2016
        %v2843 = vadd.f32 %v2842, %v2032
        %v2844 = vadd.f32 %v2843, %v2048
        %v2845 = vadd.f32 %v2844, %v2064
        %v2846 = vadd.f32 %v2845, %v2080
        %v2847 = vadd.f32 %v2846, %v2096
        %v2848 = vadd.f32 %v2847, %v2112
        %v2849 = vadd.f32 %v2848, %v2128
        %v2850 = vadd.f32 %v2849, %v2144
        %v2851 = vadd.f32 %v2850, %v2160
        %v2852 = vadd.f32 %v2851, %v2176
        %v2853 = vadd.f32 %v2852, %v2192
        %v2854 = vadd.f32 %v2853, %v2208
        %v2855 = vadd.f32 %v2854, %v2224
        %v2856 = vadd.f32 %v2855, %v2240
        %v2857 = vadd.f32 %v2856, %v2256
        %v2858 = vadd.f32 %v2857, %v2272
        %v2859 = vadd.f32 %v2858, %v2288
        %v2860 = vadd.f32 %v2859, %v2304
        %v2861 = vadd.f32 %v2860, %v2320
        %v2862 = vadd.f32 %v2861, %v2336
        %v2863 = vadd.f32 %v2862, %v2352
        %v2864 = vadd.f32 %v2863, %v2368
        %v2865 = vadd.f32 %v2864, %v2384
        %v2866 = vadd.f32 %v2865, %v2400
        %v2867 = vadd.f32 %v2866, %v2416
        %v2868 = vadd.f32 %v2867, %v2432
        %v2869 = vadd.f32 %v2868, %v2448
        %v2870 = vadd.f32 %v2869, %v2464
        %v2871 = vrot.slane %v2870, 4
        %v2872 = vadd.f32 %v2870, %v2871
        %v2873 = vrot.slane %v2872, 2
        %v2874 = vadd.f32 %v2872, %v2873
        %v2875 = vrot.slane %v2874, 1
        %v2876 = vadd.f32 %v2874, %v2875
        %v2877 = vadd.f32 %v1969, %v1985
        %v2878 = vadd.f32 %v2877, %v2001
        %v2879 = vadd.f32 %v2878, %v2017
        %v2880 = vadd.f32 %v2879, %v2033
        %v2881 = vadd.f32 %v2880, %v2049
        %v2882 = vadd.f32 %v2881, %v2065
        %v2883 = vadd.f32 %v2882, %v2081
        %v2884 = vadd.f32 %v2883, %v2097
        %v2885 = vadd.f32 %v2884, %v2113
        %v2886 = vadd.f32 %v2885, %v2129
        %v2887 = vadd.f32 %v2886, %v2145
        %v2888 = vadd.f32 %v2887, %v2161
        %v2889 = vadd.f32 %v2888, %v2177
        %v2890 = vadd.f32 %v2889, %v2193
        %v2891 = vadd.f32 %v2890, %v2209
        %v2892 = vadd.f32 %v2891, %v2225
        %v2893 = vadd.f32 %v2892, %v2241
        %v2894 = vadd.f32 %v2893, %v2257
        %v2895 = vadd.f32 %v2894, %v2273
        %v2896 = vadd.f32 %v2895, %v2289
        %v2897 = vadd.f32 %v2896, %v2305
        %v2898 = vadd.f32 %v2897, %v2321
        %v2899 = vadd.f32 %v2898, %v2337
        %v2900 = vadd.f32 %v2899, %v2353
        %v2901 = vadd.f32 %v2900, %v2369
        %v2902 = vadd.f32 %v2901, %v2385
        %v2903 = vadd.f32 %v2902, %v2401
        %v2904 = vadd.f32 %v2903, %v2417
        %v2905 = vadd.f32 %v2904, %v2433
        %v2906 = vadd.f32 %v2905, %v2449
        %v2907 = vadd.f32 %v2906, %v2465
        %v2908 = vrot.slane %v2907, 4
        %v2909 = vadd.f32 %v2907, %v2908
        %v2910 = vrot.slane %v2909, 2
        %v2911 = vadd.f32 %v2909, %v2910
        %v2912 = vrot.slane %v2911, 1
        %v2913 = vadd.f32 %v2911, %v2912
        %v2914 = vadd.f32 %v1970, %v1986
        %v2915 = vadd.f32 %v2914, %v2002
        %v2916 = vadd.f32 %v2915, %v2018
        %v2917 = vadd.f32 %v2916, %v2034
        %v2918 = vadd.f32 %v2917, %v2050
        %v2919 = vadd.f32 %v2918, %v2066
        %v2920 = vadd.f32 %v2919, %v2082
        %v2921 = vadd.f32 %v2920, %v2098
        %v2922 = vadd.f32 %v2921, %v2114
        %v2923 = vadd.f32 %v2922, %v2130
        %v2924 = vadd.f32 %v2923, %v2146
        %v2925 = vadd.f32 %v2924, %v2162
        %v2926 = vadd.f32 %v2925, %v2178
        %v2927 = vadd.f32 %v2926, %v2194
        %v2928 = vadd.f32 %v2927, %v2210
        %v2929 = vadd.f32 %v2928, %v2226
        %v2930 = vadd.f32 %v2929, %v2242
        %v2931 = vadd.f32 %v2930, %v2258
        %v2932 = vadd.f32 %v2931, %v2274
        %v2933 = vadd.f32 %v2932, %v2290
        %v2934 = vadd.f32 %v2933, %v2306
        %v2935 = vadd.f32 %v2934, %v2322
        %v2936 = vadd.f32 %v2935, %v2338
        %v2937 = vadd.f32 %v2936, %v2354
        %v2938 = vadd.f32 %v2937, %v2370
        %v2939 = vadd.f32 %v2938, %v2386
        %v2940 = vadd.f32 %v2939, %v2402
        %v2941 = vadd.f32 %v2940, %v2418
        %v2942 = vadd.f32 %v2941, %v2434
        %v2943 = vadd.f32 %v2942, %v2450
        %v2944 = vadd.f32 %v2943, %v2466
        %v2945 = vrot.slane %v2944, 4
        %v2946 = vadd.f32 %v2944, %v2945
        %v2947 = vrot.slane %v2946, 2
        %v2948 = vadd.f32 %v2946, %v2947
        %v2949 = vrot.slane %v2948, 1
        %v2950 = vadd.f32 %v2948, %v2949
        %v2951 = vadd.f32 %v1971, %v1987
        %v2952 = vadd.f32 %v2951, %v2003
        %v2953 = vadd.f32 %v2952, %v2019
        %v2954 = vadd.f32 %v2953, %v2035
        %v2955 = vadd.f32 %v2954, %v2051
        %v2956 = vadd.f32 %v2955, %v2067
        %v2957 = vadd.f32 %v2956, %v2083
        %v2958 = vadd.f32 %v2957, %v2099
        %v2959 = vadd.f32 %v2958, %v2115
        %v2960 = vadd.f32 %v2959, %v2131
        %v2961 = vadd.f32 %v2960, %v2147
        %v2962 = vadd.f32 %v2961, %v2163
        %v2963 = vadd.f32 %v2962, %v2179
        %v2964 = vadd.f32 %v2963, %v2195
        %v2965 = vadd.f32 %v2964, %v2211
        %v2966 = vadd.f32 %v2965, %v2227
        %v2967 = vadd.f32 %v2966, %v2243
        %v2968 = vadd.f32 %v2967, %v2259
        %v2969 = vadd.f32 %v2968, %v2275
        %v2970 = vadd.f32 %v2969, %v2291
        %v2971 = vadd.f32 %v2970, %v2307
        %v2972 = vadd.f32 %v2971, %v2323
        %v2973 = vadd.f32 %v2972, %v2339
        %v2974 = vadd.f32 %v2973, %v2355
        %v2975 = vadd.f32 %v2974, %v2371
        %v2976 = vadd.f32 %v2975, %v2387
        %v2977 = vadd.f32 %v2976, %v2403
        %v2978 = vadd.f32 %v2977, %v2419
        %v2979 = vadd.f32 %v2978, %v2435
        %v2980 = vadd.f32 %v2979, %v2451
        %v2981 = vadd.f32 %v2980, %v2467
        %v2982 = vrot.slane %v2981, 4
        %v2983 = vadd.f32 %v2981, %v2982
        %v2984 = vrot.slane %v2983, 2
        %v2985 = vadd.f32 %v2983, %v2984
        %v2986 = vrot.slane %v2985, 1
        %v2987 = vadd.f32 %v2985, %v2986
        %v2988 = vadd.f32 %v1972, %v1988
        %v2989 = vadd.f32 %v2988, %v2004
        %v2990 = vadd.f32 %v2989, %v2020
        %v2991 = vadd.f32 %v2990, %v2036
        %v2992 = vadd.f32 %v2991, %v2052
        %v2993 = vadd.f32 %v2992, %v2068
        %v2994 = vadd.f32 %v2993, %v2084
        %v2995 = vadd.f32 %v2994, %v2100
        %v2996 = vadd.f32 %v2995, %v2116
        %v2997 = vadd.f32 %v2996, %v2132
        %v2998 = vadd.f32 %v2997, %v2148
        %v2999 = vadd.f32 %v2998, %v2164
        %v3000 = vadd.f32 %v2999, %v2180
        %v3001 = vadd.f32 %v3000, %v2196
        %v3002 = vadd.f32 %v3001, %v2212
        %v3003 = vadd.f32 %v3002, %v2228
        %v3004 = vadd.f32 %v3003, %v2244
        %v3005 = vadd.f32 %v3004, %v2260
        %v3006 = vadd.f32 %v3005, %v2276
        %v3007 = vadd.f32 %v3006, %v2292
        %v3008 = vadd.f32 %v3007, %v2308
        %v3009 = vadd.f32 %v3008, %v2324
        %v3010 = vadd.f32 %v3009, %v2340
        %v3011 = vadd.f32 %v3010, %v2356
        %v3012 = vadd.f32 %v3011, %v2372
        %v3013 = vadd.f32 %v3012, %v2388
        %v3014 = vadd.f32 %v3013, %v2404
        %v3015 = vadd.f32 %v3014, %v2420
        %v3016 = vadd.f32 %v3015, %v2436
        %v3017 = vadd.f32 %v3016, %v2452
        %v3018 = vadd.f32 %v3017, %v2468
        %v3019 = vrot.slane %v3018, 4
        %v3020 = vadd.f32 %v3018, %v3019
        %v3021 = vrot.slane %v3020, 2
        %v3022 = vadd.f32 %v3020, %v3021
        %v3023 = vrot.slane %v3022, 1
        %v3024 = vadd.f32 %v3022, %v3023
        %v3025 = vadd.f32 %v1973, %v1989
        %v3026 = vadd.f32 %v3025, %v2005
        %v3027 = vadd.f32 %v3026, %v2021
        %v3028 = vadd.f32 %v3027, %v2037
        %v3029 = vadd.f32 %v3028, %v2053
        %v3030 = vadd.f32 %v3029, %v2069
        %v3031 = vadd.f32 %v3030, %v2085
        %v3032 = vadd.f32 %v3031, %v2101
        %v3033 = vadd.f32 %v3032, %v2117
        %v3034 = vadd.f32 %v3033, %v2133
        %v3035 = vadd.f32 %v3034, %v2149
        %v3036 = vadd.f32 %v3035, %v2165
        %v3037 = vadd.f32 %v3036, %v2181
        %v3038 = vadd.f32 %v3037, %v2197
        %v3039 = vadd.f32 %v3038, %v2213
        %v3040 = vadd.f32 %v3039, %v2229
        %v3041 = vadd.f32 %v3040, %v2245
        %v3042 = vadd.f32 %v3041, %v2261
        %v3043 = vadd.f32 %v3042, %v2277
        %v3044 = vadd.f32 %v3043, %v2293
        %v3045 = vadd.f32 %v3044, %v2309
        %v3046 = vadd.f32 %v3045, %v2325
        %v3047 = vadd.f32 %v3046, %v2341
        %v3048 = vadd.f32 %v3047, %v2357
        %v3049 = vadd.f32 %v3048, %v2373
        %v3050 = vadd.f32 %v3049, %v2389
        %v3051 = vadd.f32 %v3050, %v2405
        %v3052 = vadd.f32 %v3051, %v2421
        %v3053 = vadd.f32 %v3052, %v2437
        %v3054 = vadd.f32 %v3053, %v2453
        %v3055 = vadd.f32 %v3054, %v2469
        %v3056 = vrot.slane %v3055, 4
        %v3057 = vadd.f32 %v3055, %v3056
        %v3058 = vrot.slane %v3057, 2
        %v3059 = vadd.f32 %v3057, %v3058
        %v3060 = vrot.slane %v3059, 1
        %v3061 = vadd.f32 %v3059, %v3060
        %v3062 = vlaneseq
        %v3063 = vshrl.u32 %v3062, 7
        %v3064 = vstv %s195
        %vm3065 = vcmp.eq.s32.totalorder %v3063, %v3064
        %v3066 = vsel %vm3065, 1, 0
        %v3067 = vcvt.s32.f32 %v3066
        %v3068 = vld [vmem:[#allocation2] sm:$0xff]
        %v3069 = vld [vmem:[#allocation2 + $0x8] sm:$0xff]
        %v3070 = vld [vmem:[#allocation2 + $0x10] sm:$0xff]
        %v3071 = vld [vmem:[#allocation2 + $0x18] sm:$0xff]
        %v3072 = vld [vmem:[#allocation2 + $0x20] sm:$0xff]
        %v3073 = vld [vmem:[#allocation2 + $0x28] sm:$0xff]
        %v3074 = vld [vmem:[#allocation2 + $0x30] sm:$0xff]
        %v3075 = vld [vmem:[#allocation2 + $0x38] sm:$0xff]
        %v3076 = vmul.f32 %v3067, %v2506
        %v3077 = vmul.f32 %v3067, %v2543
        %v3078 = vmul.f32 %v3067, %v2580
        %v3079 = vmul.f32 %v3067, %v2617
        %v3080 = vmul.f32 %v3067, %v2654
        %v3081 = vmul.f32 %v3067, %v2691
        %v3082 = vmul.f32 %v3067, %v2728
        %v3083 = vmul.f32 %v3067, %v2765
        %v3084 = vmul.f32 %v3067, %v2802
        %v3085 = vmul.f32 %v3067, %v2839
        %v3086 = vmul.f32 %v3067, %v2876
        %v3087 = vmul.f32 %v3067, %v2913
        %v3088 = vmul.f32 %v3067, %v2950
        %v3089 = vmul.f32 %v3067, %v2987
        %v3090 = vmul.f32 %v3067, %v3024
        %v3091 = vmul.f32 %v3067, %v3061
        %v3108 = vcombine.low %v3076, %v3077
        %v3109 = vcombine.low %v3078, %v3079
        %v3110 = vcombine.low %v3080, %v3081
        %v3111 = vcombine.low %v3082, %v3083
        %v3112 = vcombine.low %v3084, %v3085
        %v3113 = vcombine.low %v3086, %v3087
        %v3114 = vcombine.low %v3088, %v3089
        %v3115 = vcombine.low %v3090, %v3091
        %v3124 = vadd.f32 %v3068, %v3108
        %v3125 = vadd.f32 %v3069, %v3109
        %v3126 = vadd.f32 %v3070, %v3110
        %v3127 = vadd.f32 %v3071, %v3111
        %v3128 = vadd.f32 %v3072, %v3112
        %v3129 = vadd.f32 %v3073, %v3113
        %v3130 = vadd.f32 %v3074, %v3114
        %v3131 = vadd.f32 %v3075, %v3115
        %3132 = vst [vmem:[#allocation2] sm:$0xff] %v3124
        %3133 = vst [vmem:[#allocation2 + $0x8] sm:$0xff] %v3125
        %3134 = vst [vmem:[#allocation2 + $0x10] sm:$0xff] %v3126
        %3135 = vst [vmem:[#allocation2 + $0x18] sm:$0xff] %v3127
        %3136 = vst [vmem:[#allocation2 + $0x20] sm:$0xff] %v3128
        %3137 = vst [vmem:[#allocation2 + $0x28] sm:$0xff] %v3129
        %3138 = vst [vmem:[#allocation2 + $0x30] sm:$0xff] %v3130
        %3139 = vst [vmem:[#allocation2 + $0x38] sm:$0xff] %v3131
      $region37: #{rescnn_encoder_forward.2} parent=27 // loop_footer
        %s199 = sadd.s32 1, %s195
      $region38: #{rescnn_encoder_forward.2} parent=27 // loop_footer_branch
        %194 = sbr.rel target = $region34
      $region39: #{rescnn_encoder_forward.2} parent=27 // loop_exit
        _
      // Predicated region
      $region40: #{rescnn_encoder_forward.2} parent=27 // pred_check
        %p3140 = pneg %p178
      $region41: #{rescnn_encoder_forward.2} parent=27 // pred_check_branch
        %3142 = sbr.rel (%p3140) target = $region43
      $region42: #{rescnn_encoder_forward.2} parent=27 // pred_region
        %v3143 = vld [vmem:[#allocation2] sm:$0xff]
        %v3144 = vld [vmem:[#allocation2 + $0x8] sm:$0xff]
        %v3145 = vld [vmem:[#allocation2 + $0x10] sm:$0xff]
        %v3146 = vld [vmem:[#allocation2 + $0x18] sm:$0xff]
        %v3147 = vld [vmem:[#allocation2 + $0x20] sm:$0xff]
        %v3148 = vld [vmem:[#allocation2 + $0x28] sm:$0xff]
        %v3149 = vld [vmem:[#allocation2 + $0x30] sm:$0xff]
        %v3150 = vld [vmem:[#allocation2 + $0x38] sm:$0xff]
        %v3151 = vmul.f32 %v3143, 0.00390625
        %v3152 = vmul.f32 %v3144, 0.00390625
        %v3153 = vmul.f32 %v3145, 0.00390625
        %v3154 = vmul.f32 %v3146, 0.00390625
        %v3155 = vmul.f32 %v3147, 0.00390625
        %v3156 = vmul.f32 %v3148, 0.00390625
        %v3157 = vmul.f32 %v3149, 0.00390625
        %v3158 = vmul.f32 %v3150, 0.00390625
        %v3167 = vcombine.high %v3151, %v3151
        %v3168 = vcombine.high %v3152, %v3152
        %v3169 = vcombine.high %v3153, %v3153
        %v3170 = vcombine.high %v3154, %v3154
        %v3171 = vcombine.high %v3155, %v3155
        %v3172 = vcombine.high %v3156, %v3156
        %v3173 = vcombine.high %v3157, %v3157
        %v3174 = vcombine.high %v3158, %v3158
        %v3183 = vpack.c.bf16 %v3151, %v3151
        %v3184 = vpack.c.bf16 %v3167, %v3167
        %v3185 = vpack.c.bf16 %v3152, %v3152
        %v3186 = vpack.c.bf16 %v3168, %v3168
        %v3187 = vpack.c.bf16 %v3153, %v3153
        %v3188 = vpack.c.bf16 %v3169, %v3169
        %v3189 = vpack.c.bf16 %v3154, %v3154
        %v3190 = vpack.c.bf16 %v3170, %v3170
        %v3191 = vpack.c.bf16 %v3155, %v3155
        %v3192 = vpack.c.bf16 %v3171, %v3171
        %v3193 = vpack.c.bf16 %v3156, %v3156
        %v3194 = vpack.c.bf16 %v3172, %v3172
        %v3195 = vpack.c.bf16 %v3157, %v3157
        %v3196 = vpack.c.bf16 %v3173, %v3173
        %v3197 = vpack.c.bf16 %v3158, %v3158
        %v3198 = vpack.c.bf16 %v3174, %v3174
        %v3215 = vcombine.low %v3183, %v3184
        %v3216 = vcombine.low %v3185, %v3186
        %v3218 = vunpack.c.l.s4 1983009808
        %v3219 = vunpack.c.0.s8 %v3218
        %v3220 = vlaneseq
        %v3221 = vshrl.u32 %v3220, 7
        %v3222 = vsub.s32 %v3219, %v3221
        %v3223 = vrot.slane %v3215, %v3222
        %v3225 = vunpack.c.l.s4 1983009808
        %v3226 = vunpack.c.0.s8 %v3225
        %v3227 = vlaneseq
        %v3228 = vshrl.u32 %v3227, 7
        %v3229 = vsub.s32 %v3226, %v3228
        %v3230 = vrot.slane %v3216, %v3229
        %v3231 = vcombine.low %v3223, %v3230
        %v3232 = vcombine.low %v3187, %v3188
        %v3233 = vcombine.low %v3189, %v3190
        %v3235 = vunpack.c.l.s4 1983009808
        %v3236 = vunpack.c.0.s8 %v3235
        %v3237 = vlaneseq
        %v3238 = vshrl.u32 %v3237, 7
        %v3239 = vsub.s32 %v3236, %v3238
        %v3240 = vrot.slane %v3232, %v3239
        %v3242 = vunpack.c.l.s4 1983009808
        %v3243 = vunpack.c.0.s8 %v3242
        %v3244 = vlaneseq
        %v3245 = vshrl.u32 %v3244, 7
        %v3246 = vsub.s32 %v3243, %v3245
        %v3247 = vrot.slane %v3233, %v3246
        %v3248 = vcombine.low %v3240, %v3247
        %v3249 = vcombine.low %v3191, %v3192
        %v3250 = vcombine.low %v3193, %v3194
        %v3252 = vunpack.c.l.s4 1983009808
        %v3253 = vunpack.c.0.s8 %v3252
        %v3254 = vlaneseq
        %v3255 = vshrl.u32 %v3254, 7
        %v3256 = vsub.s32 %v3253, %v3255
        %v3257 = vrot.slane %v3249, %v3256
        %v3259 = vunpack.c.l.s4 1983009808
        %v3260 = vunpack.c.0.s8 %v3259
        %v3261 = vlaneseq
        %v3262 = vshrl.u32 %v3261, 7
        %v3263 = vsub.s32 %v3260, %v3262
        %v3264 = vrot.slane %v3250, %v3263
        %v3265 = vcombine.low %v3257, %v3264
        %v3266 = vcombine.low %v3195, %v3196
        %v3267 = vcombine.low %v3197, %v3198
        %v3269 = vunpack.c.l.s4 1983009808
        %v3270 = vunpack.c.0.s8 %v3269
        %v3271 = vlaneseq
        %v3272 = vshrl.u32 %v3271, 7
        %v3273 = vsub.s32 %v3270, %v3272
        %v3274 = vrot.slane %v3266, %v3273
        %v3276 = vunpack.c.l.s4 1983009808
        %v3277 = vunpack.c.0.s8 %v3276
        %v3278 = vlaneseq
        %v3279 = vshrl.u32 %v3278, 7
        %v3280 = vsub.s32 %v3277, %v3279
        %v3281 = vrot.slane %v3267, %v3280
        %v3282 = vcombine.low %v3274, %v3281
        %3287 = vst [vmem:[%s176] sm:$0xff] %v3231
        %3288 = vst [vmem:[%s176 + $0x8] sm:$0xff] %v3248
        %3289 = vst [vmem:[%s176 + $0x10] sm:$0xff] %v3265
        %3290 = vst [vmem:[%s176 + $0x18] sm:$0xff] %v3282
      $region43: #{rescnn_encoder_forward.2} parent=27 // pred_fallthru
        _
      %p3291 = scmp.lt.s32.totalorder %s17, 1
      %s3292 = scalar_select %p3291, %s17, 1
      %s3293 = smul.addr %s3292, 16
      %s3294 = smul.addr %s3293, 2
      %s3295 = scalar_lea.vmem %s2, %s3294
      // Predicated region
      $region44: #{rescnn_encoder_forward.2} parent=27 // pred_check
        %p3296 = pneg %p92
      $region45: #{rescnn_encoder_forward.2} parent=27 // pred_check_branch
        %3298 = sbr.rel (%p3296) target = $region47
      $region46: #{rescnn_encoder_forward.2} parent=27 // pred_region
        _
      $region47: #{rescnn_encoder_forward.2} parent=27 // pred_fallthru
        _
    $region28: #{rescnn_encoder_forward.2} parent=5 // pred_fallthru
      _
    %p3299 = scmp.le.s32.totalorder 2, %s8
    // Predicated region
    $region48: #{rescnn_encoder_forward.2} parent=5 // pred_check
      %p3300 = pneg %p3299
    $region49: #{rescnn_encoder_forward.2} parent=5 // pred_check_branch
      %3302 = sbr.rel (%p3300) target = $region51
    $region50: #{rescnn_encoder_forward.2} parent=5 // pred_region
      %s3303 = ssub.s32 %s8, 2
      // Predicated region
      $region52: #{rescnn_encoder_forward.2} parent=50 // pred_check
        %p3304 = pneg %p98
      $region53: #{rescnn_encoder_forward.2} parent=50 // pred_check_branch
        %3306 = sbr.rel (%p3304) target = $region55
      $region54: #{rescnn_encoder_forward.2} parent=50 // pred_region
        %p3307 = scmp.lt.s32.totalorder %s19, 1
        %s3308 = scalar_select %p3307, %s19, 1
        %s3309 = smul.addr %s3308, 16
        %s3310 = smul.addr %s3309, 2
        %s3311 = scalar_lea.vmem %s2, %s3310
      $region55: #{rescnn_encoder_forward.2} parent=50 // pred_fallthru
        _
    $region51: #{rescnn_encoder_forward.2} parent=5 // pred_fallthru
      _
  $region6: #{rescnn_encoder_forward.2} parent=0 // loop_footer
    %s12 = sadd.s32 1, %s8
  $region7: #{rescnn_encoder_forward.2} parent=0 // loop_footer_branch
    %7 = sbr.rel target = $region3
  $region8: #{rescnn_encoder_forward.2} parent=0 // loop_exit
    _

// kernel: rescnn_encoder_forward.3
$region0: #{rescnn_encoder_forward.3}
  #allocation0 [shape = 'u32[]', space=smem, size = 0x4, offset = 0x4, fixed_abs, tag = 'smem constant byte address 0x4 - core index']
  #allocation1 [shape = 'u32[144,128]{1,0:T(1,128)}', space=vmem, size = 0x12000, scoped, tag = 'internal scratch']
  #allocation2 [shape = 'f32[8,1024]{1,0:T(8,128)}', space=vmem, size = 0x8000, scoped, tag = 'scratch operand']
  %s0 = inlined_call_operand.vmem [shape: bf16[8,2048], index: 0, kind: input, shape index: {}]
  %s1 = inlined_call_operand.vmem [shape: bf16[2048,1024], index: 1, kind: input, shape index: {}]
  %s2 = inlined_call_operand.vmem [shape: f32[1,1024], index: 2, kind: input, shape index: {}]
  %s3 = inlined_call_operand.vmem [shape: bf16[1024,896], index: 3, kind: input, shape index: {}]
  %s4 = inlined_call_operand.vmem [shape: f32[1,896], index: 4, kind: input, shape index: {}]
  %s5 = inlined_call_operand.vmem [shape: bf16[896,512], index: 5, kind: input, shape index: {}]
  %s6 = inlined_call_operand.vmem [shape: f32[1,512], index: 6, kind: input, shape index: {}]
  %s7 = inlined_call_operand.vmem [shape: f32[8,512], index: 7, kind: output, shape index: {}]
  %s8 = sld [smem:[#allocation0]]
  $region69: #{rescnn_encoder_forward.3} parent=0
    _
  %s10 = ssub.s32 1, %s8
  %s11 = scalar_select 0, %s10, %s8
  loop: start=0, step=1, limit=4
  $region2: #{rescnn_encoder_forward.3} parent=0 // loop_pre_header
    _
  $region3: #{rescnn_encoder_forward.3} parent=0 // loop_header
    %s13 = sphi 0, %s17
    %p14 = scmp.ge.s32.totalorder %s13, 4
    %s20 = sphi 0, %s32
    %s21 = sphi 0, %s28
    %s22 = sphi 0, %s20
    %s23 = sphi 0, %s21
    %s24 = sphi 0, %s22
    %s25 = sphi 0, %s23
    %s37 = sphi 0, %s39
    %s40 = sphi 0, %s37
    %s41 = sphi 0, %s40
    %s57 = sphi 0, %s41
    %s63 = sphi 0, %s65
    %s66 = sphi 0, %s63
    %s67 = sphi 0, %s66
    %s83 = sphi 0, %s67
    %s87 = sphi 0, %s87
    %s89 = sphi 0, %s87
    %s90 = sphi 0, %s89
    %s104 = sphi 0, %s90
    %s108 = sphi 0, %s108
    %s110 = sphi 0, %s108
    %s111 = sphi 0, %s110
    %s125 = sphi 0, %s111
    %s129 = sphi 0, %s129
    %s131 = sphi 0, %s129
    %s132 = sphi 0, %s131
    %s146 = sphi 0, %s132
    %s150 = sphi 0, %s150
    %s152 = sphi 0, %s150
    %s153 = sphi 0, %s152
    %s167 = sphi 0, %s153
    %s171 = sphi 0, %s171
    %s173 = sphi 0, %s171
    %s174 = sphi 0, %s173
    %s188 = sphi 0, %s174
    %s194 = sphi 0, %s196
    %s197 = sphi 0, %s194
    %s198 = sphi 0, %s197
    %s214 = sphi 0, %s198
  $region4: #{rescnn_encoder_forward.3} parent=0 // loop_header_branch
    %16 = sbr.rel (%p14) target = $region8
  $region5: #{rescnn_encoder_forward.3} parent=0 // loop_body
    %s18 = ssub.s32 %s13, 1
    %s19 = ssub.s32 %s13, 2
    %s26 = sadd.s32 1, %s21
    %p27 = scmp.ge.s32.totalorder %s26, 2
    %s28 = scalar_select %p27, 0, %s26
    %s29 = sadd.s32 1, %s20
    %s30 = scalar_select %p27, %s29, %s20
    %p31 = scmp.ge.s32.totalorder %s30, 1
    %s32 = scalar_select %p31, 0, %s30
    %s33 = ssub.s32 %s20, %s32
    %s34 = ssub.s32 %s21, %s28
    %s35 = sor.u32 %s33, %s34
    %p36 = scmp.eq.s32.totalorder %s35, 0
    %s38 = sadd.s32 %s37, 1
    %s39 = scalar_select %p36, %s37, %s38
    %p42 = pneg %p36
    %p43 = scmp.eq.s32.totalorder %s13, 1
    %p44 = por %p42, %p43
    %p45 = scmp.ne.s32.totalorder %s37, %s40
    %p46 = scmp.eq.s32.totalorder %s13, 0
    %p47 = por %p45, %p46
    %p48 = scmp.ne.s32.totalorder %s37, %s40
    %p49 = scmp.eq.s32.totalorder %s18, 1
    %p50 = por %p48, %p49
    %p51 = scmp.ne.s32.totalorder %s40, %s41
    %p52 = scmp.eq.s32.totalorder %s18, 0
    %p53 = por %p51, %p52
    %p54 = scmp.ne.s32.totalorder %s40, %s41
    %p55 = scmp.eq.s32.totalorder %s19, 1
    %p56 = por %p54, %p55
    %p58 = scmp.ne.s32.totalorder %s41, %s57
    %p59 = scmp.eq.s32.totalorder %s19, 0
    %p60 = por %p58, %p59
    %s61 = ssub.s32 %s21, %s28
    %p62 = scmp.eq.s32.totalorder %s61, 0
    %s64 = sadd.s32 %s63, 1
    %s65 = scalar_select %p62, %s63, %s64
    %p68 = pneg %p62
    %p69 = scmp.eq.s32.totalorder %s13, 1
    %p70 = por %p68, %p69
    %p71 = scmp.ne.s32.totalorder %s63, %s66
    %p72 = scmp.eq.s32.totalorder %s13, 0
    %p73 = por %p71, %p72
    %p74 = scmp.ne.s32.totalorder %s63, %s66
    %p75 = scmp.eq.s32.totalorder %s18, 1
    %p76 = por %p74, %p75
    %p77 = scmp.ne.s32.totalorder %s66, %s67
    %p78 = scmp.eq.s32.totalorder %s18, 0
    %p79 = por %p77, %p78
    %p80 = scmp.ne.s32.totalorder %s66, %s67
    %p81 = scmp.eq.s32.totalorder %s19, 1
    %p82 = por %p80, %p81
    %p84 = scmp.ne.s32.totalorder %s67, %s83
    %p85 = scmp.eq.s32.totalorder %s19, 0
    %p86 = por %p84, %p85
    %s88 = sadd.s32 %s87, 1
    %p91 = scmp.eq.s32.totalorder %s13, 1
    %p92 = scmp.ne.s32.totalorder %s87, %s89
    %p93 = scmp.eq.s32.totalorder %s13, 0
    %p94 = por %p92, %p93
    %p95 = scmp.ne.s32.totalorder %s87, %s89
    %p96 = scmp.eq.s32.totalorder %s18, 1
    %p97 = por %p95, %p96
    %p98 = scmp.ne.s32.totalorder %s89, %s90
    %p99 = scmp.eq.s32.totalorder %s18, 0
    %p100 = por %p98, %p99
    %p101 = scmp.ne.s32.totalorder %s89, %s90
    %p102 = scmp.eq.s32.totalorder %s19, 1
    %p103 = por %p101, %p102
    %p105 = scmp.ne.s32.totalorder %s90, %s104
    %p106 = scmp.eq.s32.totalorder %s19, 0
    %p107 = por %p105, %p106
    %s109 = sadd.s32 %s108, 1
    %p112 = scmp.eq.s32.totalorder %s13, 1
    %p113 = scmp.ne.s32.totalorder %s108, %s110
    %p114 = scmp.eq.s32.totalorder %s13, 0
    %p115 = por %p113, %p114
    %p116 = scmp.ne.s32.totalorder %s108, %s110
    %p117 = scmp.eq.s32.totalorder %s18, 1
    %p118 = por %p116, %p117
    %p119 = scmp.ne.s32.totalorder %s110, %s111
    %p120 = scmp.eq.s32.totalorder %s18, 0
    %p121 = por %p119, %p120
    %p122 = scmp.ne.s32.totalorder %s110, %s111
    %p123 = scmp.eq.s32.totalorder %s19, 1
    %p124 = por %p122, %p123
    %p126 = scmp.ne.s32.totalorder %s111, %s125
    %p127 = scmp.eq.s32.totalorder %s19, 0
    %p128 = por %p126, %p127
    %s130 = sadd.s32 %s129, 1
    %p133 = scmp.eq.s32.totalorder %s13, 1
    %p134 = scmp.ne.s32.totalorder %s129, %s131
    %p135 = scmp.eq.s32.totalorder %s13, 0
    %p136 = por %p134, %p135
    %p137 = scmp.ne.s32.totalorder %s129, %s131
    %p138 = scmp.eq.s32.totalorder %s18, 1
    %p139 = por %p137, %p138
    %p140 = scmp.ne.s32.totalorder %s131, %s132
    %p141 = scmp.eq.s32.totalorder %s18, 0
    %p142 = por %p140, %p141
    %p143 = scmp.ne.s32.totalorder %s131, %s132
    %p144 = scmp.eq.s32.totalorder %s19, 1
    %p145 = por %p143, %p144
    %p147 = scmp.ne.s32.totalorder %s132, %s146
    %p148 = scmp.eq.s32.totalorder %s19, 0
    %p149 = por %p147, %p148
    %s151 = sadd.s32 %s150, 1
    %p154 = scmp.eq.s32.totalorder %s13, 1
    %p155 = scmp.ne.s32.totalorder %s150, %s152
    %p156 = scmp.eq.s32.totalorder %s13, 0
    %p157 = por %p155, %p156
    %p158 = scmp.ne.s32.totalorder %s150, %s152
    %p159 = scmp.eq.s32.totalorder %s18, 1
    %p160 = por %p158, %p159
    %p161 = scmp.ne.s32.totalorder %s152, %s153
    %p162 = scmp.eq.s32.totalorder %s18, 0
    %p163 = por %p161, %p162
    %p164 = scmp.ne.s32.totalorder %s152, %s153
    %p165 = scmp.eq.s32.totalorder %s19, 1
    %p166 = por %p164, %p165
    %p168 = scmp.ne.s32.totalorder %s153, %s167
    %p169 = scmp.eq.s32.totalorder %s19, 0
    %p170 = por %p168, %p169
    %s172 = sadd.s32 %s171, 1
    %p175 = scmp.eq.s32.totalorder %s13, 1
    %p176 = scmp.ne.s32.totalorder %s171, %s173
    %p177 = scmp.eq.s32.totalorder %s13, 0
    %p178 = por %p176, %p177
    %p179 = scmp.ne.s32.totalorder %s171, %s173
    %p180 = scmp.eq.s32.totalorder %s18, 1
    %p181 = por %p179, %p180
    %p182 = scmp.ne.s32.totalorder %s173, %s174
    %p183 = scmp.eq.s32.totalorder %s18, 0
    %p184 = por %p182, %p183
    %p185 = scmp.ne.s32.totalorder %s173, %s174
    %p186 = scmp.eq.s32.totalorder %s19, 1
    %p187 = por %p185, %p186
    %p189 = scmp.ne.s32.totalorder %s174, %s188
    %p190 = scmp.eq.s32.totalorder %s19, 0
    %p191 = por %p189, %p190
    %s192 = ssub.s32 %s20, %s32
    %p193 = scmp.eq.s32.totalorder %s192, 0
    %s195 = sadd.s32 %s194, 1
    %s196 = scalar_select %p193, %s194, %s195
    %p199 = pneg %p193
    %p200 = scmp.eq.s32.totalorder %s13, 1
    %p201 = por %p199, %p200
    %p202 = scmp.ne.s32.totalorder %s194, %s197
    %p203 = scmp.eq.s32.totalorder %s13, 0
    %p204 = por %p202, %p203
    %p205 = scmp.ne.s32.totalorder %s194, %s197
    %p206 = scmp.eq.s32.totalorder %s18, 1
    %p207 = por %p205, %p206
    %p208 = scmp.ne.s32.totalorder %s197, %s198
    %p209 = scmp.eq.s32.totalorder %s18, 0
    %p210 = por %p208, %p209
    %p211 = scmp.ne.s32.totalorder %s197, %s198
    %p212 = scmp.eq.s32.totalorder %s19, 1
    %p213 = por %p211, %p212
    %p215 = scmp.ne.s32.totalorder %s198, %s214
    %p216 = scmp.eq.s32.totalorder %s19, 0
    %p217 = por %p215, %p216
    %p218 = scmp.le.s32.totalorder 1, %s13
    %p219 = scmp.lt.s32.totalorder %s13, 3
    %p220 = pnand %p218, %p219
    %p221 = pneg %p220
    // Predicated region
    $region9: #{rescnn_encoder_forward.3} parent=5 // pred_check
      _
    $region10: #{rescnn_encoder_forward.3} parent=5 // pred_check_branch
      %223 = sbr.rel (%p220) target = $region12
    $region11: #{rescnn_encoder_forward.3} parent=5 // pred_region
      %s224 = ssub.s32 %s13, 1
      // Predicated region
      $region13: #{rescnn_encoder_forward.3} parent=11 // pred_check
        %p225 = pneg %p100
      $region14: #{rescnn_encoder_forward.3} parent=11 // pred_check_branch
        %227 = sbr.rel (%p225) target = $region16
      $region15: #{rescnn_encoder_forward.3} parent=11 // pred_region
        _
      $region16: #{rescnn_encoder_forward.3} parent=11 // pred_fallthru
        _
      // Predicated region
      $region17: #{rescnn_encoder_forward.3} parent=11 // pred_check
        %p228 = pneg %p121
      $region18: #{rescnn_encoder_forward.3} parent=11 // pred_check_branch
        %230 = sbr.rel (%p228) target = $region20
      $region19: #{rescnn_encoder_forward.3} parent=11 // pred_region
        _
      $region20: #{rescnn_encoder_forward.3} parent=11 // pred_fallthru
        _
      // Predicated region
      $region21: #{rescnn_encoder_forward.3} parent=11 // pred_check
        %p231 = pneg %p142
      $region22: #{rescnn_encoder_forward.3} parent=11 // pred_check_branch
        %233 = sbr.rel (%p231) target = $region24
      $region23: #{rescnn_encoder_forward.3} parent=11 // pred_region
        _
      $region24: #{rescnn_encoder_forward.3} parent=11 // pred_fallthru
        _
      // Predicated region
      $region25: #{rescnn_encoder_forward.3} parent=11 // pred_check
        %p234 = pneg %p163
      $region26: #{rescnn_encoder_forward.3} parent=11 // pred_check_branch
        %236 = sbr.rel (%p234) target = $region28
      $region27: #{rescnn_encoder_forward.3} parent=11 // pred_region
        _
      $region28: #{rescnn_encoder_forward.3} parent=11 // pred_fallthru
        _
      // Predicated region
      $region29: #{rescnn_encoder_forward.3} parent=11 // pred_check
        %p237 = pneg %p184
      $region30: #{rescnn_encoder_forward.3} parent=11 // pred_check_branch
        %239 = sbr.rel (%p237) target = $region32
      $region31: #{rescnn_encoder_forward.3} parent=11 // pred_region
        _
      $region32: #{rescnn_encoder_forward.3} parent=11 // pred_fallthru
        _
    $region12: #{rescnn_encoder_forward.3} parent=5 // pred_fallthru
      _
    %p240 = scmp.lt.s32.totalorder %s13, 2
    // Predicated region
    $region33: #{rescnn_encoder_forward.3} parent=5 // pred_check
      %p241 = pneg %p240
    $region34: #{rescnn_encoder_forward.3} parent=5 // pred_check_branch
      %243 = sbr.rel (%p241) target = $region36
    $region35: #{rescnn_encoder_forward.3} parent=5 // pred_region
      // Predicated region
      $region37: #{rescnn_encoder_forward.3} parent=35 // pred_check
        %p244 = pneg %p47
      $region38: #{rescnn_encoder_forward.3} parent=35 // pred_check_branch
        %246 = sbr.rel (%p244) target = $region40
      $region39: #{rescnn_encoder_forward.3} parent=35 // pred_region
        %s247 = smul.u32 8, %s21
        %p248 = scmp.lt.s32.totalorder %s20, 0
        %s249 = scalar_select %p248, %s20, 0
        %p250 = scmp.lt.s32.totalorder %s247, 15
        %s251 = scalar_select %p250, %s247, 15
        %s252 = smul.addr %s249, 16
        %s253 = sadd.s32 %s251, %s252
        %s254 = smul.addr %s253, 4
        %s255 = scalar_lea.vmem %s0, %s254
        %s256 = smul.u32 8, %s21
      $region40: #{rescnn_encoder_forward.3} parent=35 // pred_fallthru
        _
      // Predicated region
      $region41: #{rescnn_encoder_forward.3} parent=35 // pred_check
        %p257 = pneg %p73
      $region42: #{rescnn_encoder_forward.3} parent=35 // pred_check_branch
        %259 = sbr.rel (%p257) target = $region44
      $region43: #{rescnn_encoder_forward.3} parent=35 // pred_region
        %s260 = smul.u32 128, %s21
        %p261 = scmp.lt.s32.totalorder %s260, 255
        %s262 = scalar_select %p261, %s260, 255
        %s263 = smul.addr %s262, 8
        %s264 = smul.addr %s263, 4
        %s265 = scalar_lea.vmem %s1, %s264
        %s266 = smul.u32 128, %s21
      $region44: #{rescnn_encoder_forward.3} parent=35 // pred_fallthru
        _
    $region36: #{rescnn_encoder_forward.3} parent=5 // pred_fallthru
      _
    %p267 = scmp.le.s32.totalorder 1, %s13
    %p268 = scmp.lt.s32.totalorder %s13, 3
    %p269 = pnand %p267, %p268
    %p270 = pneg %p269
    // Predicated region
    $region45: #{rescnn_encoder_forward.3} parent=5 // pred_check
      _
    $region46: #{rescnn_encoder_forward.3} parent=5 // pred_check_branch
      %272 = sbr.rel (%p269) target = $region48
    $region47: #{rescnn_encoder_forward.3} parent=5 // pred_region
      %s273 = ssub.s32 %s13, 1
      %s274 = smul.u32 8, %s23
      %p275 = scmp.lt.s32.totalorder %s22, 0
      %s276 = scalar_select %p275, %s22, 0
      %p277 = scmp.lt.s32.totalorder %s274, 15
      %s278 = scalar_select %p277, %s274, 15
      %s279 = smul.addr %s276, 16
      %s280 = sadd.s32 %s278, %s279
      %s281 = smul.addr %s280, 4
      %s282 = scalar_lea.vmem %s0, %s281
      %p283 = pneg %p53
      %p284 = pneg %p50
      %s285 = smul.u32 128, %s23
      %p286 = scmp.lt.s32.totalorder %s285, 255
      %s287 = scalar_select %p286, %s285, 255
      %s288 = smul.addr %s287, 8
      %s289 = smul.addr %s288, 4
      %s290 = scalar_lea.vmem %s1, %s289
      %p291 = pneg %p79
      %p292 = pneg %p76
      %p293 = pneg %p100
      %p294 = pneg %p97
      %p295 = pneg %p121
      %p296 = pneg %p118
      %p297 = pneg %p142
      %p298 = pneg %p139
      %p299 = pneg %p163
      %p300 = pneg %p160
      %p301 = pneg %p184
      %p302 = pneg %p181
      %p303 = pneg %p210
      %p304 = pneg %p207
      %p305 = scmp.lt.s32.totalorder %s22, 0
      %s306 = scalar_select %p305, %s22, 0
      %s307 = smul.addr %s306, 4
      %s308 = smul.addr %s307, 8
      %s309 = scalar_lea.vmem %s7, %s308
      %s310 = smul.u32 8, %s23
      %p311 = scmp.lt.s32.totalorder %s22, 0
      %s312 = scalar_select %p311, %s22, 0
      %p313 = scmp.lt.s32.totalorder %s310, 15
      %s314 = scalar_select %p313, %s310, 15
      %s315 = smul.addr %s312, 16
      %s316 = sadd.s32 %s314, %s315
      %s317 = smul.addr %s316, 4
      %s318 = scalar_lea.vmem %s0, %s317
      %s319 = smul.u32 8, %s23
      %s320 = smul.u32 128, %s23
      %p321 = scmp.lt.s32.totalorder %s320, 255
      %s322 = scalar_select %p321, %s320, 255
      %s323 = smul.addr %s322, 8
      %s324 = smul.addr %s323, 4
      %s325 = scalar_lea.vmem %s1, %s324
      %s326 = smul.u32 128, %s23
      %p327 = scmp.lt.s32.totalorder %s22, 0
      %s328 = scalar_select %p327, %s22, 0
      %s329 = smul.addr %s328, 4
      %s330 = smul.addr %s329, 8
      %s331 = scalar_lea.vmem %s7, %s330
      %p333 = scmp.eq.s32.totalorder %s23, 0
      // Predicated region
      $region49: #{rescnn_encoder_forward.3} parent=47 // pred_check
        %p334 = pneg %p333
      $region50: #{rescnn_encoder_forward.3} parent=47 // pred_check_branch
        %336 = sbr.rel (%p334) target = $region52
      $region51: #{rescnn_encoder_forward.3} parent=47 // pred_region
        %337 = vst [vmem:[#allocation2] sm:$0xff] 0.0
        %338 = vst [vmem:[#allocation2 + $0x8] sm:$0xff] 0.0
        %339 = vst [vmem:[#allocation2 + $0x10] sm:$0xff] 0.0
        %340 = vst [vmem:[#allocation2 + $0x18] sm:$0xff] 0.0
        %341 = vst [vmem:[#allocation2 + $0x20] sm:$0xff] 0.0
        %342 = vst [vmem:[#allocation2 + $0x28] sm:$0xff] 0.0
        %343 = vst [vmem:[#allocation2 + $0x30] sm:$0xff] 0.0
        %344 = vst [vmem:[#allocation2 + $0x38] sm:$0xff] 0.0
      $region52: #{rescnn_encoder_forward.3} parent=47 // pred_fallthru
        _
      %v345 = vld [vmem:[#allocation2] sm:$0xff]
      %v346 = vld [vmem:[#allocation2 + $0x8] sm:$0xff]
      %v347 = vld [vmem:[#allocation2 + $0x10] sm:$0xff]
      %v348 = vld [vmem:[#allocation2 + $0x18] sm:$0xff]
      %v349 = vld [vmem:[#allocation2 + $0x20] sm:$0xff]
      %v350 = vld [vmem:[#allocation2 + $0x28] sm:$0xff]
      %v351 = vld [vmem:[#allocation2 + $0x30] sm:$0xff]
      %v352 = vld [vmem:[#allocation2 + $0x38] sm:$0xff]
      %v353 = vld [vmem:[%s318] sm:$0xff]
      %v354 = vld [vmem:[%s318 + $0x8] sm:$0xff]
      %v355 = vld [vmem:[%s318 + $0x10] sm:$0xff]
      %v356 = vld [vmem:[%s318 + $0x18] sm:$0xff]
      %v357 = vld [vmem:[%s325] sm:$0xff]
      %v358 = vld [vmem:[%s325 + $0x8] sm:$0xff]
      %v359 = vld [vmem:[%s325 + $0x10] sm:$0xff]
      %v360 = vld [vmem:[%s325 + $0x18] sm:$0xff]
      %v361 = vld [vmem:[%s325 + $0x20] sm:$0xff]
      %v362 = vld [vmem:[%s325 + $0x28] sm:$0xff]
      %v363 = vld [vmem:[%s325 + $0x30] sm:$0xff]
      %v364 = vld [vmem:[%s325 + $0x38] sm:$0xff]
      %v365 = vld [vmem:[%s325 + $0x40] sm:$0xff]
      %v366 = vld [vmem:[%s325 + $0x48] sm:$0xff]
      %v367 = vld [vmem:[%s325 + $0x50] sm:$0xff]
      %v368 = vld [vmem:[%s325 + $0x58] sm:$0xff]
      %v369 = vld [vmem:[%s325 + $0x60] sm:$0xff]
      %v370 = vld [vmem:[%s325 + $0x68] sm:$0xff]
      %v371 = vld [vmem:[%s325 + $0x70] sm:$0xff]
      %v372 = vld [vmem:[%s325 + $0x78] sm:$0xff]
      %v373 = vld [vmem:[%s325 + $0x80] sm:$0xff]
      %v374 = vld [vmem:[%s325 + $0x88] sm:$0xff]
      %v375 = vld [vmem:[%s325 + $0x90] sm:$0xff]
      %v376 = vld [vmem:[%s325 + $0x98] sm:$0xff]
      %v377 = vld [vmem:[%s325 + $0xa0] sm:$0xff]
      %v378 = vld [vmem:[%s325 + $0xa8] sm:$0xff]
      %v379 = vld [vmem:[%s325 + $0xb0] sm:$0xff]
      %v380 = vld [vmem:[%s325 + $0xb8] sm:$0xff]
      %v381 = vld [vmem:[%s325 + $0xc0] sm:$0xff]
      %v382 = vld [vmem:[%s325 + $0xc8] sm:$0xff]
      %v383 = vld [vmem:[%s325 + $0xd0] sm:$0xff]
      %v384 = vld [vmem:[%s325 + $0xd8] sm:$0xff]
      %v385 = vld [vmem:[%s325 + $0xe0] sm:$0xff]
      %v386 = vld [vmem:[%s325 + $0xe8] sm:$0xff]
      %v387 = vld [vmem:[%s325 + $0xf0] sm:$0xff]
      %v388 = vld [vmem:[%s325 + $0xf8] sm:$0xff]
      %v389 = vld [vmem:[%s325 + $0x100] sm:$0xff]
      %v390 = vld [vmem:[%s325 + $0x108] sm:$0xff]
      %v391 = vld [vmem:[%s325 + $0x110] sm:$0xff]
      %v392 = vld [vmem:[%s325 + $0x118] sm:$0xff]
      %v393 = vld [vmem:[%s325 + $0x120] sm:$0xff]
      %v394 = vld [vmem:[%s325 + $0x128] sm:$0xff]
      %v395 = vld [vmem:[%s325 + $0x130] sm:$0xff]
      %v396 = vld [vmem:[%s325 + $0x138] sm:$0xff]
      %v397 = vld [vmem:[%s325 + $0x140] sm:$0xff]
      %v398 = vld [vmem:[%s325 + $0x148] sm:$0xff]
      %v399 = vld [vmem:[%s325 + $0x150] sm:$0xff]
      %v400 = vld [vmem:[%s325 + $0x158] sm:$0xff]
      %v401 = vld [vmem:[%s325 + $0x160] sm:$0xff]
      %v402 = vld [vmem:[%s325 + $0x168] sm:$0xff]
      %v403 = vld [vmem:[%s325 + $0x170] sm:$0xff]
      %v404 = vld [vmem:[%s325 + $0x178] sm:$0xff]
      %v405 = vld [vmem:[%s325 + $0x180] sm:$0xff]
      %v406 = vld [vmem:[%s325 + $0x188] sm:$0xff]
      %v407 = vld [vmem:[%s325 + $0x190] sm:$0xff]
      %v408 = vld [vmem:[%s325 + $0x198] sm:$0xff]
      %v409 = vld [vmem:[%s325 + $0x1a0] sm:$0xff]
      %v410 = vld [vmem:[%s325 + $0x1a8] sm:$0xff]
      %v411 = vld [vmem:[%s325 + $0x1b0] sm:$0xff]
      %v412 = vld [vmem:[%s325 + $0x1b8] sm:$0xff]
      %v413 = vld [vmem:[%s325 + $0x1c0] sm:$0xff]
      %v414 = vld [vmem:[%s325 + $0x1c8] sm:$0xff]
      %v415 = vld [vmem:[%s325 + $0x1d0] sm:$0xff]
      %v416 = vld [vmem:[%s325 + $0x1d8] sm:$0xff]
      %v417 = vld [vmem:[%s325 + $0x1e0] sm:$0xff]
      %v418 = vld [vmem:[%s325 + $0x1e8] sm:$0xff]
      %v419 = vld [vmem:[%s325 + $0x1f0] sm:$0xff]
      %v420 = vld [vmem:[%s325 + $0x1f8] sm:$0xff]
      %v421 = vld [vmem:[%s325 + $0x200] sm:$0xff]
      %v422 = vld [vmem:[%s325 + $0x208] sm:$0xff]
      %v423 = vld [vmem:[%s325 + $0x210] sm:$0xff]
      %v424 = vld [vmem:[%s325 + $0x218] sm:$0xff]
      %v425 = vld [vmem:[%s325 + $0x220] sm:$0xff]
      %v426 = vld [vmem:[%s325 + $0x228] sm:$0xff]
      %v427 = vld [vmem:[%s325 + $0x230] sm:$0xff]
      %v428 = vld [vmem:[%s325 + $0x238] sm:$0xff]
      %v429 = vld [vmem:[%s325 + $0x240] sm:$0xff]
      %v430 = vld [vmem:[%s325 + $0x248] sm:$0xff]
      %v431 = vld [vmem:[%s325 + $0x250] sm:$0xff]
      %v432 = vld [vmem:[%s325 + $0x258] sm:$0xff]
      %v433 = vld [vmem:[%s325 + $0x260] sm:$0xff]
      %v434 = vld [vmem:[%s325 + $0x268] sm:$0xff]
      %v435 = vld [vmem:[%s325 + $0x270] sm:$0xff]
      %v436 = vld [vmem:[%s325 + $0x278] sm:$0xff]
      %v437 = vld [vmem:[%s325 + $0x280] sm:$0xff]
      %v438 = vld [vmem:[%s325 + $0x288] sm:$0xff]
      %v439 = vld [vmem:[%s325 + $0x290] sm:$0xff]
      %v440 = vld [vmem:[%s325 + $0x298] sm:$0xff]
      %v441 = vld [vmem:[%s325 + $0x2a0] sm:$0xff]
      %v442 = vld [vmem:[%s325 + $0x2a8] sm:$0xff]
      %v443 = vld [vmem:[%s325 + $0x2b0] sm:$0xff]
      %v444 = vld [vmem:[%s325 + $0x2b8] sm:$0xff]
      %v445 = vld [vmem:[%s325 + $0x2c0] sm:$0xff]
      %v446 = vld [vmem:[%s325 + $0x2c8] sm:$0xff]
      %v447 = vld [vmem:[%s325 + $0x2d0] sm:$0xff]
      %v448 = vld [vmem:[%s325 + $0x2d8] sm:$0xff]
      %v449 = vld [vmem:[%s325 + $0x2e0] sm:$0xff]
      %v450 = vld [vmem:[%s325 + $0x2e8] sm:$0xff]
      %v451 = vld [vmem:[%s325 + $0x2f0] sm:$0xff]
      %v452 = vld [vmem:[%s325 + $0x2f8] sm:$0xff]
      %v453 = vld [vmem:[%s325 + $0x300] sm:$0xff]
      %v454 = vld [vmem:[%s325 + $0x308] sm:$0xff]
      %v455 = vld [vmem:[%s325 + $0x310] sm:$0xff]
      %v456 = vld [vmem:[%s325 + $0x318] sm:$0xff]
      %v457 = vld [vmem:[%s325 + $0x320] sm:$0xff]
      %v458 = vld [vmem:[%s325 + $0x328] sm:$0xff]
      %v459 = vld [vmem:[%s325 + $0x330] sm:$0xff]
      %v460 = vld [vmem:[%s325 + $0x338] sm:$0xff]
      %v461 = vld [vmem:[%s325 + $0x340] sm:$0xff]
      %v462 = vld [vmem:[%s325 + $0x348] sm:$0xff]
      %v463 = vld [vmem:[%s325 + $0x350] sm:$0xff]
      %v464 = vld [vmem:[%s325 + $0x358] sm:$0xff]
      %v465 = vld [vmem:[%s325 + $0x360] sm:$0xff]
      %v466 = vld [vmem:[%s325 + $0x368] sm:$0xff]
      %v467 = vld [vmem:[%s325 + $0x370] sm:$0xff]
      %v468 = vld [vmem:[%s325 + $0x378] sm:$0xff]
      %v469 = vld [vmem:[%s325 + $0x380] sm:$0xff]
      %v470 = vld [vmem:[%s325 + $0x388] sm:$0xff]
      %v471 = vld [vmem:[%s325 + $0x390] sm:$0xff]
      %v472 = vld [vmem:[%s325 + $0x398] sm:$0xff]
      %v473 = vld [vmem:[%s325 + $0x3a0] sm:$0xff]
      %v474 = vld [vmem:[%s325 + $0x3a8] sm:$0xff]
      %v475 = vld [vmem:[%s325 + $0x3b0] sm:$0xff]
      %v476 = vld [vmem:[%s325 + $0x3b8] sm:$0xff]
      %v477 = vld [vmem:[%s325 + $0x3c0] sm:$0xff]
      %v478 = vld [vmem:[%s325 + $0x3c8] sm:$0xff]
      %v479 = vld [vmem:[%s325 + $0x3d0] sm:$0xff]
      %v480 = vld [vmem:[%s325 + $0x3d8] sm:$0xff]
      %v481 = vld [vmem:[%s325 + $0x3e0] sm:$0xff]
      %v482 = vld [vmem:[%s325 + $0x3e8] sm:$0xff]
      %v483 = vld [vmem:[%s325 + $0x3f0] sm:$0xff]
      %v484 = vld [vmem:[%s325 + $0x3f8] sm:$0xff]
      %v485 = vld [vmem:[%s325 + $0x400] sm:$0xff]
      %v486 = vld [vmem:[%s325 + $0x408] sm:$0xff]
      %v487 = vld [vmem:[%s325 + $0x410] sm:$0xff]
      %v488 = vld [vmem:[%s325 + $0x418] sm:$0xff]
      %v489 = vld [vmem:[%s325 + $0x420] sm:$0xff]
      %v490 = vld [vmem:[%s325 + $0x428] sm:$0xff]
      %v491 = vld [vmem:[%s325 + $0x430] sm:$0xff]
      %v492 = vld [vmem:[%s325 + $0x438] sm:$0xff]
      %v493 = vld [vmem:[%s325 + $0x440] sm:$0xff]
      %v494 = vld [vmem:[%s325 + $0x448] sm:$0xff]
      %v495 = vld [vmem:[%s325 + $0x450] sm:$0xff]
      %v496 = vld [vmem:[%s325 + $0x458] sm:$0xff]
      %v497 = vld [vmem:[%s325 + $0x460] sm:$0xff]
      %v498 = vld [vmem:[%s325 + $0x468] sm:$0xff]
      %v499 = vld [vmem:[%s325 + $0x470] sm:$0xff]
      %v500 = vld [vmem:[%s325 + $0x478] sm:$0xff]
      %v501 = vld [vmem:[%s325 + $0x480] sm:$0xff]
      %v502 = vld [vmem:[%s325 + $0x488] sm:$0xff]
      %v503 = vld [vmem:[%s325 + $0x490] sm:$0xff]
      %v504 = vld [vmem:[%s325 + $0x498] sm:$0xff]
      %v505 = vld [vmem:[%s325 + $0x4a0] sm:$0xff]
      %v506 = vld [vmem:[%s325 + $0x4a8] sm:$0xff]
      %v507 = vld [vmem:[%s325 + $0x4b0] sm:$0xff]
      %v508 = vld [vmem:[%s325 + $0x4b8] sm:$0xff]
      %v509 = vld [vmem:[%s325 + $0x4c0] sm:$0xff]
      %v510 = vld [vmem:[%s325 + $0x4c8] sm:$0xff]
      %v511 = vld [vmem:[%s325 + $0x4d0] sm:$0xff]
      %v512 = vld [vmem:[%s325 + $0x4d8] sm:$0xff]
      %v513 = vld [vmem:[%s325 + $0x4e0] sm:$0xff]
      %v514 = vld [vmem:[%s325 + $0x4e8] sm:$0xff]
      %v515 = vld [vmem:[%s325 + $0x4f0] sm:$0xff]
      %v516 = vld [vmem:[%s325 + $0x4f8] sm:$0xff]
      %v517 = vld [vmem:[%s325 + $0x500] sm:$0xff]
      %v518 = vld [vmem:[%s325 + $0x508] sm:$0xff]
      %v519 = vld [vmem:[%s325 + $0x510] sm:$0xff]
      %v520 = vld [vmem:[%s325 + $0x518] sm:$0xff]
      %v521 = vld [vmem:[%s325 + $0x520] sm:$0xff]
      %v522 = vld [vmem:[%s325 + $0x528] sm:$0xff]
      %v523 = vld [vmem:[%s325 + $0x530] sm:$0xff]
      %v524 = vld [vmem:[%s325 + $0x538] sm:$0xff]
      %v525 = vld [vmem:[%s325 + $0x540] sm:$0xff]
      %v526 = vld [vmem:[%s325 + $0x548] sm:$0xff]
      %v527 = vld [vmem:[%s325 + $0x550] sm:$0xff]
      %v528 = vld [vmem:[%s325 + $0x558] sm:$0xff]
      %v529 = vld [vmem:[%s325 + $0x560] sm:$0xff]
      %v530 = vld [vmem:[%s325 + $0x568] sm:$0xff]
      %v531 = vld [vmem:[%s325 + $0x570] sm:$0xff]
      %v532 = vld [vmem:[%s325 + $0x578] sm:$0xff]
      %v533 = vld [vmem:[%s325 + $0x580] sm:$0xff]
      %v534 = vld [vmem:[%s325 + $0x588] sm:$0xff]
      %v535 = vld [vmem:[%s325 + $0x590] sm:$0xff]
      %v536 = vld [vmem:[%s325 + $0x598] sm:$0xff]
      %v537 = vld [vmem:[%s325 + $0x5a0] sm:$0xff]
      %v538 = vld [vmem:[%s325 + $0x5a8] sm:$0xff]
      %v539 = vld [vmem:[%s325 + $0x5b0] sm:$0xff]
      %v540 = vld [vmem:[%s325 + $0x5b8] sm:$0xff]
      %v541 = vld [vmem:[%s325 + $0x5c0] sm:$0xff]
      %v542 = vld [vmem:[%s325 + $0x5c8] sm:$0xff]
      %v543 = vld [vmem:[%s325 + $0x5d0] sm:$0xff]
      %v544 = vld [vmem:[%s325 + $0x5d8] sm:$0xff]
      %v545 = vld [vmem:[%s325 + $0x5e0] sm:$0xff]
      %v546 = vld [vmem:[%s325 + $0x5e8] sm:$0xff]
      %v547 = vld [vmem:[%s325 + $0x5f0] sm:$0xff]
      %v548 = vld [vmem:[%s325 + $0x5f8] sm:$0xff]
      %v549 = vld [vmem:[%s325 + $0x600] sm:$0xff]
      %v550 = vld [vmem:[%s325 + $0x608] sm:$0xff]
      %v551 = vld [vmem:[%s325 + $0x610] sm:$0xff]
      %v552 = vld [vmem:[%s325 + $0x618] sm:$0xff]
      %v553 = vld [vmem:[%s325 + $0x620] sm:$0xff]
      %v554 = vld [vmem:[%s325 + $0x628] sm:$0xff]
      %v555 = vld [vmem:[%s325 + $0x630] sm:$0xff]
      %v556 = vld [vmem:[%s325 + $0x638] sm:$0xff]
      %v557 = vld [vmem:[%s325 + $0x640] sm:$0xff]
      %v558 = vld [vmem:[%s325 + $0x648] sm:$0xff]
      %v559 = vld [vmem:[%s325 + $0x650] sm:$0xff]
      %v560 = vld [vmem:[%s325 + $0x658] sm:$0xff]
      %v561 = vld [vmem:[%s325 + $0x660] sm:$0xff]
      %v562 = vld [vmem:[%s325 + $0x668] sm:$0xff]
      %v563 = vld [vmem:[%s325 + $0x670] sm:$0xff]
      %v564 = vld [vmem:[%s325 + $0x678] sm:$0xff]
      %v565 = vld [vmem:[%s325 + $0x680] sm:$0xff]
      %v566 = vld [vmem:[%s325 + $0x688] sm:$0xff]
      %v567 = vld [vmem:[%s325 + $0x690] sm:$0xff]
      %v568 = vld [vmem:[%s325 + $0x698] sm:$0xff]
      %v569 = vld [vmem:[%s325 + $0x6a0] sm:$0xff]
      %v570 = vld [vmem:[%s325 + $0x6a8] sm:$0xff]
      %v571 = vld [vmem:[%s325 + $0x6b0] sm:$0xff]
      %v572 = vld [vmem:[%s325 + $0x6b8] sm:$0xff]
      %v573 = vld [vmem:[%s325 + $0x6c0] sm:$0xff]
      %v574 = vld [vmem:[%s325 + $0x6c8] sm:$0xff]
      %v575 = vld [vmem:[%s325 + $0x6d0] sm:$0xff]
      %v576 = vld [vmem:[%s325 + $0x6d8] sm:$0xff]
      %v577 = vld [vmem:[%s325 + $0x6e0] sm:$0xff]
      %v578 = vld [vmem:[%s325 + $0x6e8] sm:$0xff]
      %v579 = vld [vmem:[%s325 + $0x6f0] sm:$0xff]
      %v580 = vld [vmem:[%s325 + $0x6f8] sm:$0xff]
      %v581 = vld [vmem:[%s325 + $0x700] sm:$0xff]
      %v582 = vld [vmem:[%s325 + $0x708] sm:$0xff]
      %v583 = vld [vmem:[%s325 + $0x710] sm:$0xff]
      %v584 = vld [vmem:[%s325 + $0x718] sm:$0xff]
      %v585 = vld [vmem:[%s325 + $0x720] sm:$0xff]
      %v586 = vld [vmem:[%s325 + $0x728] sm:$0xff]
      %v587 = vld [vmem:[%s325 + $0x730] sm:$0xff]
      %v588 = vld [vmem:[%s325 + $0x738] sm:$0xff]
      %v589 = vld [vmem:[%s325 + $0x740] sm:$0xff]
      %v590 = vld [vmem:[%s325 + $0x748] sm:$0xff]
      %v591 = vld [vmem:[%s325 + $0x750] sm:$0xff]
      %v592 = vld [vmem:[%s325 + $0x758] sm:$0xff]
      %v593 = vld [vmem:[%s325 + $0x760] sm:$0xff]
      %v594 = vld [vmem:[%s325 + $0x768] sm:$0xff]
      %v595 = vld [vmem:[%s325 + $0x770] sm:$0xff]
      %v596 = vld [vmem:[%s325 + $0x778] sm:$0xff]
      %v597 = vld [vmem:[%s325 + $0x780] sm:$0xff]
      %v598 = vld [vmem:[%s325 + $0x788] sm:$0xff]
      %v599 = vld [vmem:[%s325 + $0x790] sm:$0xff]
      %v600 = vld [vmem:[%s325 + $0x798] sm:$0xff]
      %v601 = vld [vmem:[%s325 + $0x7a0] sm:$0xff]
      %v602 = vld [vmem:[%s325 + $0x7a8] sm:$0xff]
      %v603 = vld [vmem:[%s325 + $0x7b0] sm:$0xff]
      %v604 = vld [vmem:[%s325 + $0x7b8] sm:$0xff]
      %v605 = vld [vmem:[%s325 + $0x7c0] sm:$0xff]
      %v606 = vld [vmem:[%s325 + $0x7c8] sm:$0xff]
      %v607 = vld [vmem:[%s325 + $0x7d0] sm:$0xff]
      %v608 = vld [vmem:[%s325 + $0x7d8] sm:$0xff]
      %v609 = vld [vmem:[%s325 + $0x7e0] sm:$0xff]
      %v610 = vld [vmem:[%s325 + $0x7e8] sm:$0xff]
      %v611 = vld [vmem:[%s325 + $0x7f0] sm:$0xff]
      %v612 = vld [vmem:[%s325 + $0x7f8] sm:$0xff]
      %v613 = vld [vmem:[%s325 + $0x800] sm:$0xff]
      %v614 = vld [vmem:[%s325 + $0x808] sm:$0xff]
      %v615 = vld [vmem:[%s325 + $0x810] sm:$0xff]
      %v616 = vld [vmem:[%s325 + $0x818] sm:$0xff]
      %v617 = vld [vmem:[%s325 + $0x820] sm:$0xff]
      %v618 = vld [vmem:[%s325 + $0x828] sm:$0xff]
      %v619 = vld [vmem:[%s325 + $0x830] sm:$0xff]
      %v620 = vld [vmem:[%s325 + $0x838] sm:$0xff]
      %v621 = vld [vmem:[%s325 + $0x840] sm:$0xff]
      %v622 = vld [vmem:[%s325 + $0x848] sm:$0xff]
      %v623 = vld [vmem:[%s325 + $0x850] sm:$0xff]
      %v624 = vld [vmem:[%s325 + $0x858] sm:$0xff]
      %v625 = vld [vmem:[%s325 + $0x860] sm:$0xff]
      %v626 = vld [vmem:[%s325 + $0x868] sm:$0xff]
      %v627 = vld [vmem:[%s325 + $0x870] sm:$0xff]
      %v628 = vld [vmem:[%s325 + $0x878] sm:$0xff]
      %v629 = vld [vmem:[%s325 + $0x880] sm:$0xff]
      %v630 = vld [vmem:[%s325 + $0x888] sm:$0xff]
      %v631 = vld [vmem:[%s325 + $0x890] sm:$0xff]
      %v632 = vld [vmem:[%s325 + $0x898] sm:$0xff]
      %v633 = vld [vmem:[%s325 + $0x8a0] sm:$0xff]
      %v634 = vld [vmem:[%s325 + $0x8a8] sm:$0xff]
      %v635 = vld [vmem:[%s325 + $0x8b0] sm:$0xff]
      %v636 = vld [vmem:[%s325 + $0x8b8] sm:$0xff]
      %v637 = vld [vmem:[%s325 + $0x8c0] sm:$0xff]
      %v638 = vld [vmem:[%s325 + $0x8c8] sm:$0xff]
      %v639 = vld [vmem:[%s325 + $0x8d0] sm:$0xff]
      %v640 = vld [vmem:[%s325 + $0x8d8] sm:$0xff]
      %v641 = vld [vmem:[%s325 + $0x8e0] sm:$0xff]
      %v642 = vld [vmem:[%s325 + $0x8e8] sm:$0xff]
      %v643 = vld [vmem:[%s325 + $0x8f0] sm:$0xff]
      %v644 = vld [vmem:[%s325 + $0x8f8] sm:$0xff]
      %v645 = vld [vmem:[%s325 + $0x900] sm:$0xff]
      %v646 = vld [vmem:[%s325 + $0x908] sm:$0xff]
      %v647 = vld [vmem:[%s325 + $0x910] sm:$0xff]
      %v648 = vld [vmem:[%s325 + $0x918] sm:$0xff]
      %v649 = vld [vmem:[%s325 + $0x920] sm:$0xff]
      %v650 = vld [vmem:[%s325 + $0x928] sm:$0xff]
      %v651 = vld [vmem:[%s325 + $0x930] sm:$0xff]
      %v652 = vld [vmem:[%s325 + $0x938] sm:$0xff]
      %v653 = vld [vmem:[%s325 + $0x940] sm:$0xff]
      %v654 = vld [vmem:[%s325 + $0x948] sm:$0xff]
      %v655 = vld [vmem:[%s325 + $0x950] sm:$0xff]
      %v656 = vld [vmem:[%s325 + $0x958] sm:$0xff]
      %v657 = vld [vmem:[%s325 + $0x960] sm:$0xff]
      %v658 = vld [vmem:[%s325 + $0x968] sm:$0xff]
      %v659 = vld [vmem:[%s325 + $0x970] sm:$0xff]
      %v660 = vld [vmem:[%s325 + $0x978] sm:$0xff]
      %v661 = vld [vmem:[%s325 + $0x980] sm:$0xff]
      %v662 = vld [vmem:[%s325 + $0x988] sm:$0xff]
      %v663 = vld [vmem:[%s325 + $0x990] sm:$0xff]
      %v664 = vld [vmem:[%s325 + $0x998] sm:$0xff]
      %v665 = vld [vmem:[%s325 + $0x9a0] sm:$0xff]
      %v666 = vld [vmem:[%s325 + $0x9a8] sm:$0xff]
      %v667 = vld [vmem:[%s325 + $0x9b0] sm:$0xff]
      %v668 = vld [vmem:[%s325 + $0x9b8] sm:$0xff]
      %v669 = vld [vmem:[%s325 + $0x9c0] sm:$0xff]
      %v670 = vld [vmem:[%s325 + $0x9c8] sm:$0xff]
      %v671 = vld [vmem:[%s325 + $0x9d0] sm:$0xff]
      %v672 = vld [vmem:[%s325 + $0x9d8] sm:$0xff]
      %v673 = vld [vmem:[%s325 + $0x9e0] sm:$0xff]
      %v674 = vld [vmem:[%s325 + $0x9e8] sm:$0xff]
      %v675 = vld [vmem:[%s325 + $0x9f0] sm:$0xff]
      %v676 = vld [vmem:[%s325 + $0x9f8] sm:$0xff]
      %v677 = vld [vmem:[%s325 + $0xa00] sm:$0xff]
      %v678 = vld [vmem:[%s325 + $0xa08] sm:$0xff]
      %v679 = vld [vmem:[%s325 + $0xa10] sm:$0xff]
      %v680 = vld [vmem:[%s325 + $0xa18] sm:$0xff]
      %v681 = vld [vmem:[%s325 + $0xa20] sm:$0xff]
      %v682 = vld [vmem:[%s325 + $0xa28] sm:$0xff]
      %v683 = vld [vmem:[%s325 + $0xa30] sm:$0xff]
      %v684 = vld [vmem:[%s325 + $0xa38] sm:$0xff]
      %v685 = vld [vmem:[%s325 + $0xa40] sm:$0xff]
      %v686 = vld [vmem:[%s325 + $0xa48] sm:$0xff]
      %v687 = vld [vmem:[%s325 + $0xa50] sm:$0xff]
      %v688 = vld [vmem:[%s325 + $0xa58] sm:$0xff]
      %v689 = vld [vmem:[%s325 + $0xa60] sm:$0xff]
      %v690 = vld [vmem:[%s325 + $0xa68] sm:$0xff]
      %v691 = vld [vmem:[%s325 + $0xa70] sm:$0xff]
      %v692 = vld [vmem:[%s325 + $0xa78] sm:$0xff]
      %v693 = vld [vmem:[%s325 + $0xa80] sm:$0xff]
      %v694 = vld [vmem:[%s325 + $0xa88] sm:$0xff]
      %v695 = vld [vmem:[%s325 + $0xa90] sm:$0xff]
      %v696 = vld [vmem:[%s325 + $0xa98] sm:$0xff]
      %v697 = vld [vmem:[%s325 + $0xaa0] sm:$0xff]
      %v698 = vld [vmem:[%s325 + $0xaa8] sm:$0xff]
      %v699 = vld [vmem:[%s325 + $0xab0] sm:$0xff]
      %v700 = vld [vmem:[%s325 + $0xab8] sm:$0xff]
      %v701 = vld [vmem:[%s325 + $0xac0] sm:$0xff]
      %v702 = vld [vmem:[%s325 + $0xac8] sm:$0xff]
      %v703 = vld [vmem:[%s325 + $0xad0] sm:$0xff]
      %v704 = vld [vmem:[%s325 + $0xad8] sm:$0xff]
      %v705 = vld [vmem:[%s325 + $0xae0] sm:$0xff]
      %v706 = vld [vmem:[%s325 + $0xae8] sm:$0xff]
      %v707 = vld [vmem:[%s325 + $0xaf0] sm:$0xff]
      %v708 = vld [vmem:[%s325 + $0xaf8] sm:$0xff]
      %v709 = vld [vmem:[%s325 + $0xb00] sm:$0xff]
      %v710 = vld [vmem:[%s325 + $0xb08] sm:$0xff]
      %v711 = vld [vmem:[%s325 + $0xb10] sm:$0xff]
      %v712 = vld [vmem:[%s325 + $0xb18] sm:$0xff]
      %v713 = vld [vmem:[%s325 + $0xb20] sm:$0xff]
      %v714 = vld [vmem:[%s325 + $0xb28] sm:$0xff]
      %v715 = vld [vmem:[%s325 + $0xb30] sm:$0xff]
      %v716 = vld [vmem:[%s325 + $0xb38] sm:$0xff]
      %v717 = vld [vmem:[%s325 + $0xb40] sm:$0xff]
      %v718 = vld [vmem:[%s325 + $0xb48] sm:$0xff]
      %v719 = vld [vmem:[%s325 + $0xb50] sm:$0xff]
      %v720 = vld [vmem:[%s325 + $0xb58] sm:$0xff]
      %v721 = vld [vmem:[%s325 + $0xb60] sm:$0xff]
      %v722 = vld [vmem:[%s325 + $0xb68] sm:$0xff]
      %v723 = vld [vmem:[%s325 + $0xb70] sm:$0xff]
      %v724 = vld [vmem:[%s325 + $0xb78] sm:$0xff]
      %v725 = vld [vmem:[%s325 + $0xb80] sm:$0xff]
      %v726 = vld [vmem:[%s325 + $0xb88] sm:$0xff]
      %v727 = vld [vmem:[%s325 + $0xb90] sm:$0xff]
      %v728 = vld [vmem:[%s325 + $0xb98] sm:$0xff]
      %v729 = vld [vmem:[%s325 + $0xba0] sm:$0xff]
      %v730 = vld [vmem:[%s325 + $0xba8] sm:$0xff]
      %v731 = vld [vmem:[%s325 + $0xbb0] sm:$0xff]
      %v732 = vld [vmem:[%s325 + $0xbb8] sm:$0xff]
      %v733 = vld [vmem:[%s325 + $0xbc0] sm:$0xff]
      %v734 = vld [vmem:[%s325 + $0xbc8] sm:$0xff]
      %v735 = vld [vmem:[%s325 + $0xbd0] sm:$0xff]
      %v736 = vld [vmem:[%s325 + $0xbd8] sm:$0xff]
      %v737 = vld [vmem:[%s325 + $0xbe0] sm:$0xff]
      %v738 = vld [vmem:[%s325 + $0xbe8] sm:$0xff]
      %v739 = vld [vmem:[%s325 + $0xbf0] sm:$0xff]
      %v740 = vld [vmem:[%s325 + $0xbf8] sm:$0xff]
      %v741 = vld [vmem:[%s325 + $0xc00] sm:$0xff]
      %v742 = vld [vmem:[%s325 + $0xc08] sm:$0xff]
      %v743 = vld [vmem:[%s325 + $0xc10] sm:$0xff]
      %v744 = vld [vmem:[%s325 + $0xc18] sm:$0xff]
      %v745 = vld [vmem:[%s325 + $0xc20] sm:$0xff]
      %v746 = vld [vmem:[%s325 + $0xc28] sm:$0xff]
      %v747 = vld [vmem:[%s325 + $0xc30] sm:$0xff]
      %v748 = vld [vmem:[%s325 + $0xc38] sm:$0xff]
      %v749 = vld [vmem:[%s325 + $0xc40] sm:$0xff]
      %v750 = vld [vmem:[%s325 + $0xc48] sm:$0xff]
      %v751 = vld [vmem:[%s325 + $0xc50] sm:$0xff]
      %v752 = vld [vmem:[%s325 + $0xc58] sm:$0xff]
      %v753 = vld [vmem:[%s325 + $0xc60] sm:$0xff]
      %v754 = vld [vmem:[%s325 + $0xc68] sm:$0xff]
      %v755 = vld [vmem:[%s325 + $0xc70] sm:$0xff]
      %v756 = vld [vmem:[%s325 + $0xc78] sm:$0xff]
      %v757 = vld [vmem:[%s325 + $0xc80] sm:$0xff]
      %v758 = vld [vmem:[%s325 + $0xc88] sm:$0xff]
      %v759 = vld [vmem:[%s325 + $0xc90] sm:$0xff]
      %v760 = vld [vmem:[%s325 + $0xc98] sm:$0xff]
      %v761 = vld [vmem:[%s325 + $0xca0] sm:$0xff]
      %v762 = vld [vmem:[%s325 + $0xca8] sm:$0xff]
      %v763 = vld [vmem:[%s325 + $0xcb0] sm:$0xff]
      %v764 = vld [vmem:[%s325 + $0xcb8] sm:$0xff]
      %v765 = vld [vmem:[%s325 + $0xcc0] sm:$0xff]
      %v766 = vld [vmem:[%s325 + $0xcc8] sm:$0xff]
      %v767 = vld [vmem:[%s325 + $0xcd0] sm:$0xff]
      %v768 = vld [vmem:[%s325 + $0xcd8] sm:$0xff]
      %v769 = vld [vmem:[%s325 + $0xce0] sm:$0xff]
      %v770 = vld [vmem:[%s325 + $0xce8] sm:$0xff]
      %v771 = vld [vmem:[%s325 + $0xcf0] sm:$0xff]
      %v772 = vld [vmem:[%s325 + $0xcf8] sm:$0xff]
      %v773 = vld [vmem:[%s325 + $0xd00] sm:$0xff]
      %v774 = vld [vmem:[%s325 + $0xd08] sm:$0xff]
      %v775 = vld [vmem:[%s325 + $0xd10] sm:$0xff]
      %v776 = vld [vmem:[%s325 + $0xd18] sm:$0xff]
      %v777 = vld [vmem:[%s325 + $0xd20] sm:$0xff]
      %v778 = vld [vmem:[%s325 + $0xd28] sm:$0xff]
      %v779 = vld [vmem:[%s325 + $0xd30] sm:$0xff]
      %v780 = vld [vmem:[%s325 + $0xd38] sm:$0xff]
      %v781 = vld [vmem:[%s325 + $0xd40] sm:$0xff]
      %v782 = vld [vmem:[%s325 + $0xd48] sm:$0xff]
      %v783 = vld [vmem:[%s325 + $0xd50] sm:$0xff]
      %v784 = vld [vmem:[%s325 + $0xd58] sm:$0xff]
      %v785 = vld [vmem:[%s325 + $0xd60] sm:$0xff]
      %v786 = vld [vmem:[%s325 + $0xd68] sm:$0xff]
      %v787 = vld [vmem:[%s325 + $0xd70] sm:$0xff]
      %v788 = vld [vmem:[%s325 + $0xd78] sm:$0xff]
      %v789 = vld [vmem:[%s325 + $0xd80] sm:$0xff]
      %v790 = vld [vmem:[%s325 + $0xd88] sm:$0xff]
      %v791 = vld [vmem:[%s325 + $0xd90] sm:$0xff]
      %v792 = vld [vmem:[%s325 + $0xd98] sm:$0xff]
      %v793 = vld [vmem:[%s325 + $0xda0] sm:$0xff]
      %v794 = vld [vmem:[%s325 + $0xda8] sm:$0xff]
      %v795 = vld [vmem:[%s325 + $0xdb0] sm:$0xff]
      %v796 = vld [vmem:[%s325 + $0xdb8] sm:$0xff]
      %v797 = vld [vmem:[%s325 + $0xdc0] sm:$0xff]
      %v798 = vld [vmem:[%s325 + $0xdc8] sm:$0xff]
      %v799 = vld [vmem:[%s325 + $0xdd0] sm:$0xff]
      %v800 = vld [vmem:[%s325 + $0xdd8] sm:$0xff]
      %v801 = vld [vmem:[%s325 + $0xde0] sm:$0xff]
      %v802 = vld [vmem:[%s325 + $0xde8] sm:$0xff]
      %v803 = vld [vmem:[%s325 + $0xdf0] sm:$0xff]
      %v804 = vld [vmem:[%s325 + $0xdf8] sm:$0xff]
      %v805 = vld [vmem:[%s325 + $0xe00] sm:$0xff]
      %v806 = vld [vmem:[%s325 + $0xe08] sm:$0xff]
      %v807 = vld [vmem:[%s325 + $0xe10] sm:$0xff]
      %v808 = vld [vmem:[%s325 + $0xe18] sm:$0xff]
      %v809 = vld [vmem:[%s325 + $0xe20] sm:$0xff]
      %v810 = vld [vmem:[%s325 + $0xe28] sm:$0xff]
      %v811 = vld [vmem:[%s325 + $0xe30] sm:$0xff]
      %v812 = vld [vmem:[%s325 + $0xe38] sm:$0xff]
      %v813 = vld [vmem:[%s325 + $0xe40] sm:$0xff]
      %v814 = vld [vmem:[%s325 + $0xe48] sm:$0xff]
      %v815 = vld [vmem:[%s325 + $0xe50] sm:$0xff]
      %v816 = vld [vmem:[%s325 + $0xe58] sm:$0xff]
      %v817 = vld [vmem:[%s325 + $0xe60] sm:$0xff]
      %v818 = vld [vmem:[%s325 + $0xe68] sm:$0xff]
      %v819 = vld [vmem:[%s325 + $0xe70] sm:$0xff]
      %v820 = vld [vmem:[%s325 + $0xe78] sm:$0xff]
      %v821 = vld [vmem:[%s325 + $0xe80] sm:$0xff]
      %v822 = vld [vmem:[%s325 + $0xe88] sm:$0xff]
      %v823 = vld [vmem:[%s325 + $0xe90] sm:$0xff]
      %v824 = vld [vmem:[%s325 + $0xe98] sm:$0xff]
      %v825 = vld [vmem:[%s325 + $0xea0] sm:$0xff]
      %v826 = vld [vmem:[%s325 + $0xea8] sm:$0xff]
      %v827 = vld [vmem:[%s325 + $0xeb0] sm:$0xff]
      %v828 = vld [vmem:[%s325 + $0xeb8] sm:$0xff]
      %v829 = vld [vmem:[%s325 + $0xec0] sm:$0xff]
      %v830 = vld [vmem:[%s325 + $0xec8] sm:$0xff]
      %v831 = vld [vmem:[%s325 + $0xed0] sm:$0xff]
      %v832 = vld [vmem:[%s325 + $0xed8] sm:$0xff]
      %v833 = vld [vmem:[%s325 + $0xee0] sm:$0xff]
      %v834 = vld [vmem:[%s325 + $0xee8] sm:$0xff]
      %v835 = vld [vmem:[%s325 + $0xef0] sm:$0xff]
      %v836 = vld [vmem:[%s325 + $0xef8] sm:$0xff]
      %v837 = vld [vmem:[%s325 + $0xf00] sm:$0xff]
      %v838 = vld [vmem:[%s325 + $0xf08] sm:$0xff]
      %v839 = vld [vmem:[%s325 + $0xf10] sm:$0xff]
      %v840 = vld [vmem:[%s325 + $0xf18] sm:$0xff]
      %v841 = vld [vmem:[%s325 + $0xf20] sm:$0xff]
      %v842 = vld [vmem:[%s325 + $0xf28] sm:$0xff]
      %v843 = vld [vmem:[%s325 + $0xf30] sm:$0xff]
      %v844 = vld [vmem:[%s325 + $0xf38] sm:$0xff]
      %v845 = vld [vmem:[%s325 + $0xf40] sm:$0xff]
      %v846 = vld [vmem:[%s325 + $0xf48] sm:$0xff]
      %v847 = vld [vmem:[%s325 + $0xf50] sm:$0xff]
      %v848 = vld [vmem:[%s325 + $0xf58] sm:$0xff]
      %v849 = vld [vmem:[%s325 + $0xf60] sm:$0xff]
      %v850 = vld [vmem:[%s325 + $0xf68] sm:$0xff]
      %v851 = vld [vmem:[%s325 + $0xf70] sm:$0xff]
      %v852 = vld [vmem:[%s325 + $0xf78] sm:$0xff]
      %v853 = vld [vmem:[%s325 + $0xf80] sm:$0xff]
      %v854 = vld [vmem:[%s325 + $0xf88] sm:$0xff]
      %v855 = vld [vmem:[%s325 + $0xf90] sm:$0xff]
      %v856 = vld [vmem:[%s325 + $0xf98] sm:$0xff]
      %v857 = vld [vmem:[%s325 + $0xfa0] sm:$0xff]
      %v858 = vld [vmem:[%s325 + $0xfa8] sm:$0xff]
      %v859 = vld [vmem:[%s325 + $0xfb0] sm:$0xff]
      %v860 = vld [vmem:[%s325 + $0xfb8] sm:$0xff]
      %v861 = vld [vmem:[%s325 + $0xfc0] sm:$0xff]
      %v862 = vld [vmem:[%s325 + $0xfc8] sm:$0xff]
      %v863 = vld [vmem:[%s325 + $0xfd0] sm:$0xff]
      %v864 = vld [vmem:[%s325 + $0xfd8] sm:$0xff]
      %v865 = vld [vmem:[%s325 + $0xfe0] sm:$0xff]
      %v866 = vld [vmem:[%s325 + $0xfe8] sm:$0xff]
      %v867 = vld [vmem:[%s325 + $0xff0] sm:$0xff]
      %v868 = vld [vmem:[%s325 + $0xff8] sm:$0xff]
      %v873 = vunpack.c.l.b16 %v353
      %v874 = vunpack.c.h.b16 %v353
      %v875 = vunpack.c.l.b16 %v354
      %v876 = vunpack.c.h.b16 %v354
      %v877 = vunpack.c.l.b16 %v355
      %v878 = vunpack.c.h.b16 %v355
      %v879 = vunpack.c.l.b16 %v356
      %v880 = vunpack.c.h.b16 %v356
      %v881 = vpack.c.b16 %v873, %v873
      %v882 = vpack.c.b16 %v874, %v874
      %v883 = vpack.c.b16 %v875, %v875
      %v884 = vpack.c.b16 %v876, %v876
      %v885 = vpack.c.b16 %v877, %v877
      %v886 = vpack.c.b16 %v878, %v878
      %v887 = vpack.c.b16 %v879, %v879
      %v888 = vpack.c.b16 %v880, %v880
      %v1409 = vunpack.c.l.b16 %v357
      %v1410 = vunpack.c.h.b16 %v357
      %v1411 = vunpack.c.l.b16 %v358
      %v1412 = vunpack.c.h.b16 %v358
      %v1413 = vunpack.c.l.b16 %v359
      %v1414 = vunpack.c.h.b16 %v359
      %v1415 = vunpack.c.l.b16 %v360
      %v1416 = vunpack.c.h.b16 %v360
      %v1417 = vunpack.c.l.b16 %v361
      %v1418 = vunpack.c.h.b16 %v361
      %v1419 = vunpack.c.l.b16 %v362
      %v1420 = vunpack.c.h.b16 %v362
      %v1421 = vunpack.c.l.b16 %v363
      %v1422 = vunpack.c.h.b16 %v363
      %v1423 = vunpack.c.l.b16 %v364
      %v1424 = vunpack.c.h.b16 %v364
      %v1425 = vunpack.c.l.b16 %v365
      %v1426 = vunpack.c.h.b16 %v365
      %v1427 = vunpack.c.l.b16 %v366
      %v1428 = vunpack.c.h.b16 %v366
      %v1429 = vunpack.c.l.b16 %v367
      %v1430 = vunpack.c.h.b16 %v367
      %v1431 = vunpack.c.l.b16 %v368
      %v1432 = vunpack.c.h.b16 %v368
      %v1433 = vunpack.c.l.b16 %v369
      %v1434 = vunpack.c.h.b16 %v369
      %v1435 = vunpack.c.l.b16 %v370
      %v1436 = vunpack.c.h.b16 %v370
      %v1437 = vunpack.c.l.b16 %v371
      %v1438 = vunpack.c.h.b16 %v371
      %v1439 = vunpack.c.l.b16 %v372
      %v1440 = vunpack.c.h.b16 %v372
      %v1441 = vunpack.c.l.b16 %v373
      %v1442 = vunpack.c.h.b16 %v373
      %v1443 = vunpack.c.l.b16 %v374
      %v1444 = vunpack.c.h.b16 %v374
      %v1445 = vunpack.c.l.b16 %v375
      %v1446 = vunpack.c.h.b16 %v375
      %v1447 = vunpack.c.l.b16 %v376
      %v1448 = vunpack.c.h.b16 %v376
      %v1449 = vunpack.c.l.b16 %v377
      %v1450 = vunpack.c.h.b16 %v377
      %v1451 = vunpack.c.l.b16 %v378
      %v1452 = vunpack.c.h.b16 %v378
      %v1453 = vunpack.c.l.b16 %v379
      %v1454 = vunpack.c.h.b16 %v379
      %v1455 = vunpack.c.l.b16 %v380
      %v1456 = vunpack.c.h.b16 %v380
      %v1457 = vunpack.c.l.b16 %v381
      %v1458 = vunpack.c.h.b16 %v381
      %v1459 = vunpack.c.l.b16 %v382
      %v1460 = vunpack.c.h.b16 %v382
      %v1461 = vunpack.c.l.b16 %v383
      %v1462 = vunpack.c.h.b16 %v383
      %v1463 = vunpack.c.l.b16 %v384
      %v1464 = vunpack.c.h.b16 %v384
      %v1465 = vunpack.c.l.b16 %v385
      %v1466 = vunpack.c.h.b16 %v385
      %v1467 = vunpack.c.l.b16 %v386
      %v1468 = vunpack.c.h.b16 %v386
      %v1469 = vunpack.c.l.b16 %v387
      %v1470 = vunpack.c.h.b16 %v387
      %v1471 = vunpack.c.l.b16 %v388
      %v1472 = vunpack.c.h.b16 %v388
      %v1473 = vunpack.c.l.b16 %v389
      %v1474 = vunpack.c.h.b16 %v389
      %v1475 = vunpack.c.l.b16 %v390
      %v1476 = vunpack.c.h.b16 %v390
      %v1477 = vunpack.c.l.b16 %v391
      %v1478 = vunpack.c.h.b16 %v391
      %v1479 = vunpack.c.l.b16 %v392
      %v1480 = vunpack.c.h.b16 %v392
      %v1481 = vunpack.c.l.b16 %v393
      %v1482 = vunpack.c.h.b16 %v393
      %v1483 = vunpack.c.l.b16 %v394
      %v1484 = vunpack.c.h.b16 %v394
      %v1485 = vunpack.c.l.b16 %v395
      %v1486 = vunpack.c.h.b16 %v395
      %v1487 = vunpack.c.l.b16 %v396
      %v1488 = vunpack.c.h.b16 %v396
      %v1489 = vunpack.c.l.b16 %v397
      %v1490 = vunpack.c.h.b16 %v397
      %v1491 = vunpack.c.l.b16 %v398
      %v1492 = vunpack.c.h.b16 %v398
      %v1493 = vunpack.c.l.b16 %v399
      %v1494 = vunpack.c.h.b16 %v399
      %v1495 = vunpack.c.l.b16 %v400
      %v1496 = vunpack.c.h.b16 %v400
      %v1497 = vunpack.c.l.b16 %v401
      %v1498 = vunpack.c.h.b16 %v401
      %v1499 = vunpack.c.l.b16 %v402
      %v1500 = vunpack.c.h.b16 %v402
      %v1501 = vunpack.c.l.b16 %v403
      %v1502 = vunpack.c.h.b16 %v403
      %v1503 = vunpack.c.l.b16 %v404
      %v1504 = vunpack.c.h.b16 %v404
      %v1505 = vunpack.c.l.b16 %v405
      %v1506 = vunpack.c.h.b16 %v405
      %v1507 = vunpack.c.l.b16 %v406
      %v1508 = vunpack.c.h.b16 %v406
      %v1509 = vunpack.c.l.b16 %v407
      %v1510 = vunpack.c.h.b16 %v407
      %v1511 = vunpack.c.l.b16 %v408
      %v1512 = vunpack.c.h.b16 %v408
      %v1513 = vunpack.c.l.b16 %v409
      %v1514 = vunpack.c.h.b16 %v409
      %v1515 = vunpack.c.l.b16 %v410
      %v1516 = vunpack.c.h.b16 %v410
      %v1517 = vunpack.c.l.b16 %v411
      %v1518 = vunpack.c.h.b16 %v411
      %v1519 = vunpack.c.l.b16 %v412
      %v1520 = vunpack.c.h.b16 %v412
      %v1521 = vunpack.c.l.b16 %v413
      %v1522 = vunpack.c.h.b16 %v413
      %v1523 = vunpack.c.l.b16 %v414
      %v1524 = vunpack.c.h.b16 %v414
      %v1525 = vunpack.c.l.b16 %v415
      %v1526 = vunpack.c.h.b16 %v415
      %v1527 = vunpack.c.l.b16 %v416
      %v1528 = vunpack.c.h.b16 %v416
      %v1529 = vunpack.c.l.b16 %v417
      %v1530 = vunpack.c.h.b16 %v417
      %v1531 = vunpack.c.l.b16 %v418
      %v1532 = vunpack.c.h.b16 %v418
      %v1533 = vunpack.c.l.b16 %v419
      %v1534 = vunpack.c.h.b16 %v419
      %v1535 = vunpack.c.l.b16 %v420
      %v1536 = vunpack.c.h.b16 %v420
      %v1537 = vunpack.c.l.b16 %v421
      %v1538 = vunpack.c.h.b16 %v421
      %v1539 = vunpack.c.l.b16 %v422
      %v1540 = vunpack.c.h.b16 %v422
      %v1541 = vunpack.c.l.b16 %v423
      %v1542 = vunpack.c.h.b16 %v423
      %v1543 = vunpack.c.l.b16 %v424
      %v1544 = vunpack.c.h.b16 %v424
      %v1545 = vunpack.c.l.b16 %v425
      %v1546 = vunpack.c.h.b16 %v425
      %v1547 = vunpack.c.l.b16 %v426
      %v1548 = vunpack.c.h.b16 %v426
      %v1549 = vunpack.c.l.b16 %v427
      %v1550 = vunpack.c.h.b16 %v427
      %v1551 = vunpack.c.l.b16 %v428
      %v1552 = vunpack.c.h.b16 %v428
      %v1553 = vunpack.c.l.b16 %v429
      %v1554 = vunpack.c.h.b16 %v429
      %v1555 = vunpack.c.l.b16 %v430
      %v1556 = vunpack.c.h.b16 %v430
      %v1557 = vunpack.c.l.b16 %v431
      %v1558 = vunpack.c.h.b16 %v431
      %v1559 = vunpack.c.l.b16 %v432
      %v1560 = vunpack.c.h.b16 %v432
      %v1561 = vunpack.c.l.b16 %v433
      %v1562 = vunpack.c.h.b16 %v433
      %v1563 = vunpack.c.l.b16 %v434
      %v1564 = vunpack.c.h.b16 %v434
      %v1565 = vunpack.c.l.b16 %v435
      %v1566 = vunpack.c.h.b16 %v435
      %v1567 = vunpack.c.l.b16 %v436
      %v1568 = vunpack.c.h.b16 %v436
      %v1569 = vunpack.c.l.b16 %v437
      %v1570 = vunpack.c.h.b16 %v437
      %v1571 = vunpack.c.l.b16 %v438
      %v1572 = vunpack.c.h.b16 %v438
      %v1573 = vunpack.c.l.b16 %v439
      %v1574 = vunpack.c.h.b16 %v439
      %v1575 = vunpack.c.l.b16 %v440
      %v1576 = vunpack.c.h.b16 %v440
      %v1577 = vunpack.c.l.b16 %v441
      %v1578 = vunpack.c.h.b16 %v441
      %v1579 = vunpack.c.l.b16 %v442
      %v1580 = vunpack.c.h.b16 %v442
      %v1581 = vunpack.c.l.b16 %v443
      %v1582 = vunpack.c.h.b16 %v443
      %v1583 = vunpack.c.l.b16 %v444
      %v1584 = vunpack.c.h.b16 %v444
      %v1585 = vunpack.c.l.b16 %v445
      %v1586 = vunpack.c.h.b16 %v445
      %v1587 = vunpack.c.l.b16 %v446
      %v1588 = vunpack.c.h.b16 %v446
      %v1589 = vunpack.c.l.b16 %v447
      %v1590 = vunpack.c.h.b16 %v447
      %v1591 = vunpack.c.l.b16 %v448
      %v1592 = vunpack.c.h.b16 %v448
      %v1593 = vunpack.c.l.b16 %v449
      %v1594 = vunpack.c.h.b16 %v449
      %v1595 = vunpack.c.l.b16 %v450
      %v1596 = vunpack.c.h.b16 %v450
      %v1597 = vunpack.c.l.b16 %v451
      %v1598 = vunpack.c.h.b16 %v451
      %v1599 = vunpack.c.l.b16 %v452
      %v1600 = vunpack.c.h.b16 %v452
      %v1601 = vunpack.c.l.b16 %v453
      %v1602 = vunpack.c.h.b16 %v453
      %v1603 = vunpack.c.l.b16 %v454
      %v1604 = vunpack.c.h.b16 %v454
      %v1605 = vunpack.c.l.b16 %v455
      %v1606 = vunpack.c.h.b16 %v455
      %v1607 = vunpack.c.l.b16 %v456
      %v1608 = vunpack.c.h.b16 %v456
      %v1609 = vunpack.c.l.b16 %v457
      %v1610 = vunpack.c.h.b16 %v457
      %v1611 = vunpack.c.l.b16 %v458
      %v1612 = vunpack.c.h.b16 %v458
      %v1613 = vunpack.c.l.b16 %v459
      %v1614 = vunpack.c.h.b16 %v459
      %v1615 = vunpack.c.l.b16 %v460
      %v1616 = vunpack.c.h.b16 %v460
      %v1617 = vunpack.c.l.b16 %v461
      %v1618 = vunpack.c.h.b16 %v461
      %v1619 = vunpack.c.l.b16 %v462
      %v1620 = vunpack.c.h.b16 %v462
      %v1621 = vunpack.c.l.b16 %v463
      %v1622 = vunpack.c.h.b16 %v463
      %v1623 = vunpack.c.l.b16 %v464
      %v1624 = vunpack.c.h.b16 %v464
      %v1625 = vunpack.c.l.b16 %v465
      %v1626 = vunpack.c.h.b16 %v465
      %v1627 = vunpack.c.l.b16 %v466
      %v1628 = vunpack.c.h.b16 %v466
      %v1629 = vunpack.c.l.b16 %v467
      %v1630 = vunpack.c.h.b16 %v467
      %v1631 = vunpack.c.l.b16 %v468
      %v1632 = vunpack.c.h.b16 %v468
      %v1633 = vunpack.c.l.b16 %v469
      %v1634 = vunpack.c.h.b16 %v469
      %v1635 = vunpack.c.l.b16 %v470
      %v1636 = vunpack.c.h.b16 %v470
      %v1637 = vunpack.c.l.b16 %v471
      %v1638 = vunpack.c.h.b16 %v471
      %v1639 = vunpack.c.l.b16 %v472
      %v1640 = vunpack.c.h.b16 %v472
      %v1641 = vunpack.c.l.b16 %v473
      %v1642 = vunpack.c.h.b16 %v473
      %v1643 = vunpack.c.l.b16 %v474
      %v1644 = vunpack.c.h.b16 %v474
      %v1645 = vunpack.c.l.b16 %v475
      %v1646 = vunpack.c.h.b16 %v475
      %v1647 = vunpack.c.l.b16 %v476
      %v1648 = vunpack.c.h.b16 %v476
      %v1649 = vunpack.c.l.b16 %v477
      %v1650 = vunpack.c.h.b16 %v477
      %v1651 = vunpack.c.l.b16 %v478
      %v1652 = vunpack.c.h.b16 %v478
      %v1653 = vunpack.c.l.b16 %v479
      %v1654 = vunpack.c.h.b16 %v479
      %v1655 = vunpack.c.l.b16 %v480
      %v1656 = vunpack.c.h.b16 %v480
      %v1657 = vunpack.c.l.b16 %v481
      %v1658 = vunpack.c.h.b16 %v481
      %v1659 = vunpack.c.l.b16 %v482
      %v1660 = vunpack.c.h.b16 %v482
      %v1661 = vunpack.c.l.b16 %v483
      %v1662 = vunpack.c.h.b16 %v483
      %v1663 = vunpack.c.l.b16 %v484
      %v1664 = vunpack.c.h.b16 %v484
      %v1665 = vunpack.c.l.b16 %v485
      %v1666 = vunpack.c.h.b16 %v485
      %v1667 = vunpack.c.l.b16 %v486
      %v1668 = vunpack.c.h.b16 %v486
      %v1669 = vunpack.c.l.b16 %v487
      %v1670 = vunpack.c.h.b16 %v487
      %v1671 = vunpack.c.l.b16 %v488
      %v1672 = vunpack.c.h.b16 %v488
      %v1673 = vunpack.c.l.b16 %v489
      %v1674 = vunpack.c.h.b16 %v489
      %v1675 = vunpack.c.l.b16 %v490
      %v1676 = vunpack.c.h.b16 %v490
      %v1677 = vunpack.c.l.b16 %v491
      %v1678 = vunpack.c.h.b16 %v491
      %v1679 = vunpack.c.l.b16 %v492
      %v1680 = vunpack.c.h.b16 %v492
      %v1681 = vunpack.c.l.b16 %v493
      %v1682 = vunpack.c.h.b16 %v493
      %v1683 = vunpack.c.l.b16 %v494
      %v1684 = vunpack.c.h.b16 %v494
      %v1685 = vunpack.c.l.b16 %v495
      %v1686 = vunpack.c.h.b16 %v495
      %v1687 = vunpack.c.l.b16 %v496
      %v1688 = vunpack.c.h.b16 %v496
      %v1689 = vunpack.c.l.b16 %v497
      %v1690 = vunpack.c.h.b16 %v497
      %v1691 = vunpack.c.l.b16 %v498
      %v1692 = vunpack.c.h.b16 %v498
      %v1693 = vunpack.c.l.b16 %v499
      %v1694 = vunpack.c.h.b16 %v499
      %v1695 = vunpack.c.l.b16 %v500
      %v1696 = vunpack.c.h.b16 %v500
      %v1697 = vunpack.c.l.b16 %v501
      %v1698 = vunpack.c.h.b16 %v501
      %v1699 = vunpack.c.l.b16 %v502
      %v1700 = vunpack.c.h.b16 %v502
      %v1701 = vunpack.c.l.b16 %v503
      %v1702 = vunpack.c.h.b16 %v503
      %v1703 = vunpack.c.l.b16 %v504
      %v1704 = vunpack.c.h.b16 %v504
      %v1705 = vunpack.c.l.b16 %v505
      %v1706 = vunpack.c.h.b16 %v505
      %v1707 = vunpack.c.l.b16 %v506
      %v1708 = vunpack.c.h.b16 %v506
      %v1709 = vunpack.c.l.b16 %v507
      %v1710 = vunpack.c.h.b16 %v507
      %v1711 = vunpack.c.l.b16 %v508
      %v1712 = vunpack.c.h.b16 %v508
      %v1713 = vunpack.c.l.b16 %v509
      %v1714 = vunpack.c.h.b16 %v509
      %v1715 = vunpack.c.l.b16 %v510
      %v1716 = vunpack.c.h.b16 %v510
      %v1717 = vunpack.c.l.b16 %v511
      %v1718 = vunpack.c.h.b16 %v511
      %v1719 = vunpack.c.l.b16 %v512
      %v1720 = vunpack.c.h.b16 %v512
      %v1721 = vunpack.c.l.b16 %v513
      %v1722 = vunpack.c.h.b16 %v513
      %v1723 = vunpack.c.l.b16 %v514
      %v1724 = vunpack.c.h.b16 %v514
      %v1725 = vunpack.c.l.b16 %v515
      %v1726 = vunpack.c.h.b16 %v515
      %v1727 = vunpack.c.l.b16 %v516
      %v1728 = vunpack.c.h.b16 %v516
      %v1729 = vunpack.c.l.b16 %v517
      %v1730 = vunpack.c.h.b16 %v517
      %v1731 = vunpack.c.l.b16 %v518
      %v1732 = vunpack.c.h.b16 %v518
      %v1733 = vunpack.c.l.b16 %v519
      %v1734 = vunpack.c.h.b16 %v519
      %v1735 = vunpack.c.l.b16 %v520
      %v1736 = vunpack.c.h.b16 %v520
      %v1737 = vunpack.c.l.b16 %v521
      %v1738 = vunpack.c.h.b16 %v521
      %v1739 = vunpack.c.l.b16 %v522
      %v1740 = vunpack.c.h.b16 %v522
      %v1741 = vunpack.c.l.b16 %v523
      %v1742 = vunpack.c.h.b16 %v523
      %v1743 = vunpack.c.l.b16 %v524
      %v1744 = vunpack.c.h.b16 %v524
      %v1745 = vunpack.c.l.b16 %v525
      %v1746 = vunpack.c.h.b16 %v525
      %v1747 = vunpack.c.l.b16 %v526
      %v1748 = vunpack.c.h.b16 %v526
      %v1749 = vunpack.c.l.b16 %v527
      %v1750 = vunpack.c.h.b16 %v527
      %v1751 = vunpack.c.l.b16 %v528
      %v1752 = vunpack.c.h.b16 %v528
      %v1753 = vunpack.c.l.b16 %v529
      %v1754 = vunpack.c.h.b16 %v529
      %v1755 = vunpack.c.l.b16 %v530
      %v1756 = vunpack.c.h.b16 %v530
      %v1757 = vunpack.c.l.b16 %v531
      %v1758 = vunpack.c.h.b16 %v531
      %v1759 = vunpack.c.l.b16 %v532
      %v1760 = vunpack.c.h.b16 %v532
      %v1761 = vunpack.c.l.b16 %v533
      %v1762 = vunpack.c.h.b16 %v533
      %v1763 = vunpack.c.l.b16 %v534
      %v1764 = vunpack.c.h.b16 %v534
      %v1765 = vunpack.c.l.b16 %v535
      %v1766 = vunpack.c.h.b16 %v535
      %v1767 = vunpack.c.l.b16 %v536
      %v1768 = vunpack.c.h.b16 %v536
      %v1769 = vunpack.c.l.b16 %v537
      %v1770 = vunpack.c.h.b16 %v537
      %v1771 = vunpack.c.l.b16 %v538
      %v1772 = vunpack.c.h.b16 %v538
      %v1773 = vunpack.c.l.b16 %v539
      %v1774 = vunpack.c.h.b16 %v539
      %v1775 = vunpack.c.l.b16 %v540
      %v1776 = vunpack.c.h.b16 %v540
      %v1777 = vunpack.c.l.b16 %v541
      %v1778 = vunpack.c.h.b16 %v541
      %v1779 = vunpack.c.l.b16 %v542
      %v1780 = vunpack.c.h.b16 %v542
      %v1781 = vunpack.c.l.b16 %v543
      %v1782 = vunpack.c.h.b16 %v543
      %v1783 = vunpack.c.l.b16 %v544
      %v1784 = vunpack.c.h.b16 %v544
      %v1785 = vunpack.c.l.b16 %v545
      %v1786 = vunpack.c.h.b16 %v545
      %v1787 = vunpack.c.l.b16 %v546
      %v1788 = vunpack.c.h.b16 %v546
      %v1789 = vunpack.c.l.b16 %v547
      %v1790 = vunpack.c.h.b16 %v547
      %v1791 = vunpack.c.l.b16 %v548
      %v1792 = vunpack.c.h.b16 %v548
      %v1793 = vunpack.c.l.b16 %v549
      %v1794 = vunpack.c.h.b16 %v549
      %v1795 = vunpack.c.l.b16 %v550
      %v1796 = vunpack.c.h.b16 %v550
      %v1797 = vunpack.c.l.b16 %v551
      %v1798 = vunpack.c.h.b16 %v551
      %v1799 = vunpack.c.l.b16 %v552
      %v1800 = vunpack.c.h.b16 %v552
      %v1801 = vunpack.c.l.b16 %v553
      %v1802 = vunpack.c.h.b16 %v553
      %v1803 = vunpack.c.l.b16 %v554
      %v1804 = vunpack.c.h.b16 %v554
      %v1805 = vunpack.c.l.b16 %v555
      %v1806 = vunpack.c.h.b16 %v555
      %v1807 = vunpack.c.l.b16 %v556
      %v1808 = vunpack.c.h.b16 %v556
      %v1809 = vunpack.c.l.b16 %v557
      %v1810 = vunpack.c.h.b16 %v557
      %v1811 = vunpack.c.l.b16 %v558
      %v1812 = vunpack.c.h.b16 %v558
      %v1813 = vunpack.c.l.b16 %v559
      %v1814 = vunpack.c.h.b16 %v559
      %v1815 = vunpack.c.l.b16 %v560
      %v1816 = vunpack.c.h.b16 %v560
      %v1817 = vunpack.c.l.b16 %v561
      %v1818 = vunpack.c.h.b16 %v561
      %v1819 = vunpack.c.l.b16 %v562
      %v1820 = vunpack.c.h.b16 %v562
      %v1821 = vunpack.c.l.b16 %v563
      %v1822 = vunpack.c.h.b16 %v563
      %v1823 = vunpack.c.l.b16 %v564
      %v1824 = vunpack.c.h.b16 %v564
      %v1825 = vunpack.c.l.b16 %v565
      %v1826 = vunpack.c.h.b16 %v565
      %v1827 = vunpack.c.l.b16 %v566
      %v1828 = vunpack.c.h.b16 %v566
      %v1829 = vunpack.c.l.b16 %v567
      %v1830 = vunpack.c.h.b16 %v567
      %v1831 = vunpack.c.l.b16 %v568
      %v1832 = vunpack.c.h.b16 %v568
      %v1833 = vunpack.c.l.b16 %v569
      %v1834 = vunpack.c.h.b16 %v569
      %v1835 = vunpack.c.l.b16 %v570
      %v1836 = vunpack.c.h.b16 %v570
      %v1837 = vunpack.c.l.b16 %v571
      %v1838 = vunpack.c.h.b16 %v571
      %v1839 = vunpack.c.l.b16 %v572
      %v1840 = vunpack.c.h.b16 %v572
      %v1841 = vunpack.c.l.b16 %v573
      %v1842 = vunpack.c.h.b16 %v573
      %v1843 = vunpack.c.l.b16 %v574
      %v1844 = vunpack.c.h.b16 %v574
      %v1845 = vunpack.c.l.b16 %v575
      %v1846 = vunpack.c.h.b16 %v575
      %v1847 = vunpack.c.l.b16 %v576
      %v1848 = vunpack.c.h.b16 %v576
      %v1849 = vunpack.c.l.b16 %v577
      %v1850 = vunpack.c.h.b16 %v577
      %v1851 = vunpack.c.l.b16 %v578
      %v1852 = vunpack.c.h.b16 %v578
      %v1853 = vunpack.c.l.b16 %v579
      %v1854 = vunpack.c.h.b16 %v579
      %v1855 = vunpack.c.l.b16 %v580
      %v1856 = vunpack.c.h.b16 %v580
      %v1857 = vunpack.c.l.b16 %v581
      %v1858 = vunpack.c.h.b16 %v581
      %v1859 = vunpack.c.l.b16 %v582
      %v1860 = vunpack.c.h.b16 %v582
      %v1861 = vunpack.c.l.b16 %v583
      %v1862 = vunpack.c.h.b16 %v583
      %v1863 = vunpack.c.l.b16 %v584
      %v1864 = vunpack.c.h.b16 %v584
      %v1865 = vunpack.c.l.b16 %v585
      %v1866 = vunpack.c.h.b16 %v585
      %v1867 = vunpack.c.l.b16 %v586
      %v1868 = vunpack.c.h.b16 %v586
      %v1869 = vunpack.c.l.b16 %v587
      %v1870 = vunpack.c.h.b16 %v587
      %v1871 = vunpack.c.l.b16 %v588
      %v1872 = vunpack.c.h.b16 %v588
      %v1873 = vunpack.c.l.b16 %v589
      %v1874 = vunpack.c.h.b16 %v589
      %v1875 = vunpack.c.l.b16 %v590
      %v1876 = vunpack.c.h.b16 %v590
      %v1877 = vunpack.c.l.b16 %v591
      %v1878 = vunpack.c.h.b16 %v591
      %v1879 = vunpack.c.l.b16 %v592
      %v1880 = vunpack.c.h.b16 %v592
      %v1881 = vunpack.c.l.b16 %v593
      %v1882 = vunpack.c.h.b16 %v593
      %v1883 = vunpack.c.l.b16 %v594
      %v1884 = vunpack.c.h.b16 %v594
      %v1885 = vunpack.c.l.b16 %v595
      %v1886 = vunpack.c.h.b16 %v595
      %v1887 = vunpack.c.l.b16 %v596
      %v1888 = vunpack.c.h.b16 %v596
      %v1889 = vunpack.c.l.b16 %v597
      %v1890 = vunpack.c.h.b16 %v597
      %v1891 = vunpack.c.l.b16 %v598
      %v1892 = vunpack.c.h.b16 %v598
      %v1893 = vunpack.c.l.b16 %v599
      %v1894 = vunpack.c.h.b16 %v599
      %v1895 = vunpack.c.l.b16 %v600
      %v1896 = vunpack.c.h.b16 %v600
      %v1897 = vunpack.c.l.b16 %v601
      %v1898 = vunpack.c.h.b16 %v601
      %v1899 = vunpack.c.l.b16 %v602
      %v1900 = vunpack.c.h.b16 %v602
      %v1901 = vunpack.c.l.b16 %v603
      %v1902 = vunpack.c.h.b16 %v603
      %v1903 = vunpack.c.l.b16 %v604
      %v1904 = vunpack.c.h.b16 %v604
      %v1905 = vunpack.c.l.b16 %v605
      %v1906 = vunpack.c.h.b16 %v605
      %v1907 = vunpack.c.l.b16 %v606
      %v1908 = vunpack.c.h.b16 %v606
      %v1909 = vunpack.c.l.b16 %v607
      %v1910 = vunpack.c.h.b16 %v607
      %v1911 = vunpack.c.l.b16 %v608
      %v1912 = vunpack.c.h.b16 %v608
      %v1913 = vunpack.c.l.b16 %v609
      %v1914 = vunpack.c.h.b16 %v609
      %v1915 = vunpack.c.l.b16 %v610
      %v1916 = vunpack.c.h.b16 %v610
      %v1917 = vunpack.c.l.b16 %v611
      %v1918 = vunpack.c.h.b16 %v611
      %v1919 = vunpack.c.l.b16 %v612
      %v1920 = vunpack.c.h.b16 %v612
      %v1921 = vunpack.c.l.b16 %v613
      %v1922 = vunpack.c.h.b16 %v613
      %v1923 = vunpack.c.l.b16 %v614
      %v1924 = vunpack.c.h.b16 %v614
      %v1925 = vunpack.c.l.b16 %v615
      %v1926 = vunpack.c.h.b16 %v615
      %v1927 = vunpack.c.l.b16 %v616
      %v1928 = vunpack.c.h.b16 %v616
      %v1929 = vunpack.c.l.b16 %v617
      %v1930 = vunpack.c.h.b16 %v617
      %v1931 = vunpack.c.l.b16 %v618
      %v1932 = vunpack.c.h.b16 %v618
      %v1933 = vunpack.c.l.b16 %v619
      %v1934 = vunpack.c.h.b16 %v619
      %v1935 = vunpack.c.l.b16 %v620
      %v1936 = vunpack.c.h.b16 %v620
      %v1937 = vunpack.c.l.b16 %v621
      %v1938 = vunpack.c.h.b16 %v621
      %v1939 = vunpack.c.l.b16 %v622
      %v1940 = vunpack.c.h.b16 %v622
      %v1941 = vunpack.c.l.b16 %v623
      %v1942 = vunpack.c.h.b16 %v623
      %v1943 = vunpack.c.l.b16 %v624
      %v1944 = vunpack.c.h.b16 %v624
      %v1945 = vunpack.c.l.b16 %v625
      %v1946 = vunpack.c.h.b16 %v625
      %v1947 = vunpack.c.l.b16 %v626
      %v1948 = vunpack.c.h.b16 %v626
      %v1949 = vunpack.c.l.b16 %v627
      %v1950 = vunpack.c.h.b16 %v627
      %v1951 = vunpack.c.l.b16 %v628
      %v1952 = vunpack.c.h.b16 %v628
      %v1953 = vunpack.c.l.b16 %v629
      %v1954 = vunpack.c.h.b16 %v629
      %v1955 = vunpack.c.l.b16 %v630
      %v1956 = vunpack.c.h.b16 %v630
      %v1957 = vunpack.c.l.b16 %v631
      %v1958 = vunpack.c.h.b16 %v631
      %v1959 = vunpack.c.l.b16 %v632
      %v1960 = vunpack.c.h.b16 %v632
      %v1961 = vunpack.c.l.b16 %v633
      %v1962 = vunpack.c.h.b16 %v633
      %v1963 = vunpack.c.l.b16 %v634
      %v1964 = vunpack.c.h.b16 %v634
      %v1965 = vunpack.c.l.b16 %v635
      %v1966 = vunpack.c.h.b16 %v635
      %v1967 = vunpack.c.l.b16 %v636
      %v1968 = vunpack.c.h.b16 %v636
      %v1969 = vunpack.c.l.b16 %v637
      %v1970 = vunpack.c.h.b16 %v637
      %v1971 = vunpack.c.l.b16 %v638
      %v1972 = vunpack.c.h.b16 %v638
      %v1973 = vunpack.c.l.b16 %v639
      %v1974 = vunpack.c.h.b16 %v639
      %v1975 = vunpack.c.l.b16 %v640
      %v1976 = vunpack.c.h.b16 %v640
      %v1977 = vunpack.c.l.b16 %v641
      %v1978 = vunpack.c.h.b16 %v641
      %v1979 = vunpack.c.l.b16 %v642
      %v1980 = vunpack.c.h.b16 %v642
      %v1981 = vunpack.c.l.b16 %v643
      %v1982 = vunpack.c.h.b16 %v643
      %v1983 = vunpack.c.l.b16 %v644
      %v1984 = vunpack.c.h.b16 %v644
      %v1985 = vunpack.c.l.b16 %v645
      %v1986 = vunpack.c.h.b16 %v645
      %v1987 = vunpack.c.l.b16 %v646
      %v1988 = vunpack.c.h.b16 %v646
      %v1989 = vunpack.c.l.b16 %v647
      %v1990 = vunpack.c.h.b16 %v647
      %v1991 = vunpack.c.l.b16 %v648
      %v1992 = vunpack.c.h.b16 %v648
      %v1993 = vunpack.c.l.b16 %v649
      %v1994 = vunpack.c.h.b16 %v649
      %v1995 = vunpack.c.l.b16 %v650
      %v1996 = vunpack.c.h.b16 %v650
      %v1997 = vunpack.c.l.b16 %v651
      %v1998 = vunpack.c.h.b16 %v651
      %v1999 = vunpack.c.l.b16 %v652
      %v2000 = vunpack.c.h.b16 %v652
      %v2001 = vunpack.c.l.b16 %v653
      %v2002 = vunpack.c.h.b16 %v653
      %v2003 = vunpack.c.l.b16 %v654
      %v2004 = vunpack.c.h.b16 %v654
      %v2005 = vunpack.c.l.b16 %v655
      %v2006 = vunpack.c.h.b16 %v655
      %v2007 = vunpack.c.l.b16 %v656
      %v2008 = vunpack.c.h.b16 %v656
      %v2009 = vunpack.c.l.b16 %v657
      %v2010 = vunpack.c.h.b16 %v657
      %v2011 = vunpack.c.l.b16 %v658
      %v2012 = vunpack.c.h.b16 %v658
      %v2013 = vunpack.c.l.b16 %v659
      %v2014 = vunpack.c.h.b16 %v659
      %v2015 = vunpack.c.l.b16 %v660
      %v2016 = vunpack.c.h.b16 %v660
      %v2017 = vunpack.c.l.b16 %v661
      %v2018 = vunpack.c.h.b16 %v661
      %v2019 = vunpack.c.l.b16 %v662
      %v2020 = vunpack.c.h.b16 %v662
      %v2021 = vunpack.c.l.b16 %v663
      %v2022 = vunpack.c.h.b16 %v663
      %v2023 = vunpack.c.l.b16 %v664
      %v2024 = vunpack.c.h.b16 %v664
      %v2025 = vunpack.c.l.b16 %v665
      %v2026 = vunpack.c.h.b16 %v665
      %v2027 = vunpack.c.l.b16 %v666
      %v2028 = vunpack.c.h.b16 %v666
      %v2029 = vunpack.c.l.b16 %v667
      %v2030 = vunpack.c.h.b16 %v667
      %v2031 = vunpack.c.l.b16 %v668
      %v2032 = vunpack.c.h.b16 %v668
      %v2033 = vunpack.c.l.b16 %v669
      %v2034 = vunpack.c.h.b16 %v669
      %v2035 = vunpack.c.l.b16 %v670
      %v2036 = vunpack.c.h.b16 %v670
      %v2037 = vunpack.c.l.b16 %v671
      %v2038 = vunpack.c.h.b16 %v671
      %v2039 = vunpack.c.l.b16 %v672
      %v2040 = vunpack.c.h.b16 %v672
      %v2041 = vunpack.c.l.b16 %v673
      %v2042 = vunpack.c.h.b16 %v673
      %v2043 = vunpack.c.l.b16 %v674
      %v2044 = vunpack.c.h.b16 %v674
      %v2045 = vunpack.c.l.b16 %v675
      %v2046 = vunpack.c.h.b16 %v675
      %v2047 = vunpack.c.l.b16 %v676
      %v2048 = vunpack.c.h.b16 %v676
      %v2049 = vunpack.c.l.b16 %v677
      %v2050 = vunpack.c.h.b16 %v677
      %v2051 = vunpack.c.l.b16 %v678
      %v2052 = vunpack.c.h.b16 %v678
      %v2053 = vunpack.c.l.b16 %v679
      %v2054 = vunpack.c.h.b16 %v679
      %v2055 = vunpack.c.l.b16 %v680
      %v2056 = vunpack.c.h.b16 %v680
      %v2057 = vunpack.c.l.b16 %v681
      %v2058 = vunpack.c.h.b16 %v681
      %v2059 = vunpack.c.l.b16 %v682
      %v2060 = vunpack.c.h.b16 %v682
      %v2061 = vunpack.c.l.b16 %v683
      %v2062 = vunpack.c.h.b16 %v683
      %v2063 = vunpack.c.l.b16 %v684
      %v2064 = vunpack.c.h.b16 %v684
      %v2065 = vunpack.c.l.b16 %v685
      %v2066 = vunpack.c.h.b16 %v685
      %v2067 = vunpack.c.l.b16 %v686
      %v2068 = vunpack.c.h.b16 %v686
      %v2069 = vunpack.c.l.b16 %v687
      %v2070 = vunpack.c.h.b16 %v687
      %v2071 = vunpack.c.l.b16 %v688
      %v2072 = vunpack.c.h.b16 %v688
      %v2073 = vunpack.c.l.b16 %v689
      %v2074 = vunpack.c.h.b16 %v689
      %v2075 = vunpack.c.l.b16 %v690
      %v2076 = vunpack.c.h.b16 %v690
      %v2077 = vunpack.c.l.b16 %v691
      %v2078 = vunpack.c.h.b16 %v691
      %v2079 = vunpack.c.l.b16 %v692
      %v2080 = vunpack.c.h.b16 %v692
      %v2081 = vunpack.c.l.b16 %v693
      %v2082 = vunpack.c.h.b16 %v693
      %v2083 = vunpack.c.l.b16 %v694
      %v2084 = vunpack.c.h.b16 %v694
      %v2085 = vunpack.c.l.b16 %v695
      %v2086 = vunpack.c.h.b16 %v695
      %v2087 = vunpack.c.l.b16 %v696
      %v2088 = vunpack.c.h.b16 %v696
      %v2089 = vunpack.c.l.b16 %v697
      %v2090 = vunpack.c.h.b16 %v697
      %v2091 = vunpack.c.l.b16 %v698
      %v2092 = vunpack.c.h.b16 %v698
      %v2093 = vunpack.c.l.b16 %v699
      %v2094 = vunpack.c.h.b16 %v699
      %v2095 = vunpack.c.l.b16 %v700
      %v2096 = vunpack.c.h.b16 %v700
      %v2097 = vunpack.c.l.b16 %v701
      %v2098 = vunpack.c.h.b16 %v701
      %v2099 = vunpack.c.l.b16 %v702
      %v2100 = vunpack.c.h.b16 %v702
      %v2101 = vunpack.c.l.b16 %v703
      %v2102 = vunpack.c.h.b16 %v703
      %v2103 = vunpack.c.l.b16 %v704
      %v2104 = vunpack.c.h.b16 %v704
      %v2105 = vunpack.c.l.b16 %v705
      %v2106 = vunpack.c.h.b16 %v705
      %v2107 = vunpack.c.l.b16 %v706
      %v2108 = vunpack.c.h.b16 %v706
      %v2109 = vunpack.c.l.b16 %v707
      %v2110 = vunpack.c.h.b16 %v707
      %v2111 = vunpack.c.l.b16 %v708
      %v2112 = vunpack.c.h.b16 %v708
      %v2113 = vunpack.c.l.b16 %v709
      %v2114 = vunpack.c.h.b16 %v709
      %v2115 = vunpack.c.l.b16 %v710
      %v2116 = vunpack.c.h.b16 %v710
      %v2117 = vunpack.c.l.b16 %v711
      %v2118 = vunpack.c.h.b16 %v711
      %v2119 = vunpack.c.l.b16 %v712
      %v2120 = vunpack.c.h.b16 %v712
      %v2121 = vunpack.c.l.b16 %v713
      %v2122 = vunpack.c.h.b16 %v713
      %v2123 = vunpack.c.l.b16 %v714
      %v2124 = vunpack.c.h.b16 %v714
      %v2125 = vunpack.c.l.b16 %v715
      %v2126 = vunpack.c.h.b16 %v715
      %v2127 = vunpack.c.l.b16 %v716
      %v2128 = vunpack.c.h.b16 %v716
      %v2129 = vunpack.c.l.b16 %v717
      %v2130 = vunpack.c.h.b16 %v717
      %v2131 = vunpack.c.l.b16 %v718
      %v2132 = vunpack.c.h.b16 %v718
      %v2133 = vunpack.c.l.b16 %v719
      %v2134 = vunpack.c.h.b16 %v719
      %v2135 = vunpack.c.l.b16 %v720
      %v2136 = vunpack.c.h.b16 %v720
      %v2137 = vunpack.c.l.b16 %v721
      %v2138 = vunpack.c.h.b16 %v721
      %v2139 = vunpack.c.l.b16 %v722
      %v2140 = vunpack.c.h.b16 %v722
      %v2141 = vunpack.c.l.b16 %v723
      %v2142 = vunpack.c.h.b16 %v723
      %v2143 = vunpack.c.l.b16 %v724
      %v2144 = vunpack.c.h.b16 %v724
      %v2145 = vunpack.c.l.b16 %v725
      %v2146 = vunpack.c.h.b16 %v725
      %v2147 = vunpack.c.l.b16 %v726
      %v2148 = vunpack.c.h.b16 %v726
      %v2149 = vunpack.c.l.b16 %v727
      %v2150 = vunpack.c.h.b16 %v727
      %v2151 = vunpack.c.l.b16 %v728
      %v2152 = vunpack.c.h.b16 %v728
      %v2153 = vunpack.c.l.b16 %v729
      %v2154 = vunpack.c.h.b16 %v729
      %v2155 = vunpack.c.l.b16 %v730
      %v2156 = vunpack.c.h.b16 %v730
      %v2157 = vunpack.c.l.b16 %v731
      %v2158 = vunpack.c.h.b16 %v731
      %v2159 = vunpack.c.l.b16 %v732
      %v2160 = vunpack.c.h.b16 %v732
      %v2161 = vunpack.c.l.b16 %v733
      %v2162 = vunpack.c.h.b16 %v733
      %v2163 = vunpack.c.l.b16 %v734
      %v2164 = vunpack.c.h.b16 %v734
      %v2165 = vunpack.c.l.b16 %v735
      %v2166 = vunpack.c.h.b16 %v735
      %v2167 = vunpack.c.l.b16 %v736
      %v2168 = vunpack.c.h.b16 %v736
      %v2169 = vunpack.c.l.b16 %v737
      %v2170 = vunpack.c.h.b16 %v737
      %v2171 = vunpack.c.l.b16 %v738
      %v2172 = vunpack.c.h.b16 %v738
      %v2173 = vunpack.c.l.b16 %v739
      %v2174 = vunpack.c.h.b16 %v739
      %v2175 = vunpack.c.l.b16 %v740
      %v2176 = vunpack.c.h.b16 %v740
      %v2177 = vunpack.c.l.b16 %v741
      %v2178 = vunpack.c.h.b16 %v741
      %v2179 = vunpack.c.l.b16 %v742
      %v2180 = vunpack.c.h.b16 %v742
      %v2181 = vunpack.c.l.b16 %v743
      %v2182 = vunpack.c.h.b16 %v743
      %v2183 = vunpack.c.l.b16 %v744
      %v2184 = vunpack.c.h.b16 %v744
      %v2185 = vunpack.c.l.b16 %v745
      %v2186 = vunpack.c.h.b16 %v745
      %v2187 = vunpack.c.l.b16 %v746
      %v2188 = vunpack.c.h.b16 %v746
      %v2189 = vunpack.c.l.b16 %v747
      %v2190 = vunpack.c.h.b16 %v747
      %v2191 = vunpack.c.l.b16 %v748
      %v2192 = vunpack.c.h.b16 %v748
      %v2193 = vunpack.c.l.b16 %v749
      %v2194 = vunpack.c.h.b16 %v749
      %v2195 = vunpack.c.l.b16 %v750
      %v2196 = vunpack.c.h.b16 %v750
      %v2197 = vunpack.c.l.b16 %v751
      %v2198 = vunpack.c.h.b16 %v751
      %v2199 = vunpack.c.l.b16 %v752
      %v2200 = vunpack.c.h.b16 %v752
      %v2201 = vunpack.c.l.b16 %v753
      %v2202 = vunpack.c.h.b16 %v753
      %v2203 = vunpack.c.l.b16 %v754
      %v2204 = vunpack.c.h.b16 %v754
      %v2205 = vunpack.c.l.b16 %v755
      %v2206 = vunpack.c.h.b16 %v755
      %v2207 = vunpack.c.l.b16 %v756
      %v2208 = vunpack.c.h.b16 %v756
      %v2209 = vunpack.c.l.b16 %v757
      %v2210 = vunpack.c.h.b16 %v757
      %v2211 = vunpack.c.l.b16 %v758
      %v2212 = vunpack.c.h.b16 %v758
      %v2213 = vunpack.c.l.b16 %v759
      %v2214 = vunpack.c.h.b16 %v759
      %v2215 = vunpack.c.l.b16 %v760
      %v2216 = vunpack.c.h.b16 %v760
      %v2217 = vunpack.c.l.b16 %v761
      %v2218 = vunpack.c.h.b16 %v761
      %v2219 = vunpack.c.l.b16 %v762
      %v2220 = vunpack.c.h.b16 %v762
      %v2221 = vunpack.c.l.b16 %v763
      %v2222 = vunpack.c.h.b16 %v763
      %v2223 = vunpack.c.l.b16 %v764
      %v2224 = vunpack.c.h.b16 %v764
      %v2225 = vunpack.c.l.b16 %v765
      %v2226 = vunpack.c.h.b16 %v765
      %v2227 = vunpack.c.l.b16 %v766
      %v2228 = vunpack.c.h.b16 %v766
      %v2229 = vunpack.c.l.b16 %v767
      %v2230 = vunpack.c.h.b16 %v767
      %v2231 = vunpack.c.l.b16 %v768
      %v2232 = vunpack.c.h.b16 %v768
      %v2233 = vunpack.c.l.b16 %v769
      %v2234 = vunpack.c.h.b16 %v769
      %v2235 = vunpack.c.l.b16 %v770
      %v2236 = vunpack.c.h.b16 %v770
      %v2237 = vunpack.c.l.b16 %v771
      %v2238 = vunpack.c.h.b16 %v771
      %v2239 = vunpack.c.l.b16 %v772
      %v2240 = vunpack.c.h.b16 %v772
      %v2241 = vunpack.c.l.b16 %v773
      %v2242 = vunpack.c.h.b16 %v773
      %v2243 = vunpack.c.l.b16 %v774
      %v2244 = vunpack.c.h.b16 %v774
      %v2245 = vunpack.c.l.b16 %v775
      %v2246 = vunpack.c.h.b16 %v775
      %v2247 = vunpack.c.l.b16 %v776
      %v2248 = vunpack.c.h.b16 %v776
      %v2249 = vunpack.c.l.b16 %v777
      %v2250 = vunpack.c.h.b16 %v777
      %v2251 = vunpack.c.l.b16 %v778
      %v2252 = vunpack.c.h.b16 %v778
      %v2253 = vunpack.c.l.b16 %v779
      %v2254 = vunpack.c.h.b16 %v779
      %v2255 = vunpack.c.l.b16 %v780
      %v2256 = vunpack.c.h.b16 %v780
      %v2257 = vunpack.c.l.b16 %v781
      %v2258 = vunpack.c.h.b16 %v781
      %v2259 = vunpack.c.l.b16 %v782
      %v2260 = vunpack.c.h.b16 %v782
      %v2261 = vunpack.c.l.b16 %v783
      %v2262 = vunpack.c.h.b16 %v783
      %v2263 = vunpack.c.l.b16 %v784
      %v2264 = vunpack.c.h.b16 %v784
      %v2265 = vunpack.c.l.b16 %v785
      %v2266 = vunpack.c.h.b16 %v785
      %v2267 = vunpack.c.l.b16 %v786
      %v2268 = vunpack.c.h.b16 %v786
      %v2269 = vunpack.c.l.b16 %v787
      %v2270 = vunpack.c.h.b16 %v787
      %v2271 = vunpack.c.l.b16 %v788
      %v2272 = vunpack.c.h.b16 %v788
      %v2273 = vunpack.c.l.b16 %v789
      %v2274 = vunpack.c.h.b16 %v789
      %v2275 = vunpack.c.l.b16 %v790
      %v2276 = vunpack.c.h.b16 %v790
      %v2277 = vunpack.c.l.b16 %v791
      %v2278 = vunpack.c.h.b16 %v791
      %v2279 = vunpack.c.l.b16 %v792
      %v2280 = vunpack.c.h.b16 %v792
      %v2281 = vunpack.c.l.b16 %v793
      %v2282 = vunpack.c.h.b16 %v793
      %v2283 = vunpack.c.l.b16 %v794
      %v2284 = vunpack.c.h.b16 %v794
      %v2285 = vunpack.c.l.b16 %v795
      %v2286 = vunpack.c.h.b16 %v795
      %v2287 = vunpack.c.l.b16 %v796
      %v2288 = vunpack.c.h.b16 %v796
      %v2289 = vunpack.c.l.b16 %v797
      %v2290 = vunpack.c.h.b16 %v797
      %v2291 = vunpack.c.l.b16 %v798
      %v2292 = vunpack.c.h.b16 %v798
      %v2293 = vunpack.c.l.b16 %v799
      %v2294 = vunpack.c.h.b16 %v799
      %v2295 = vunpack.c.l.b16 %v800
      %v2296 = vunpack.c.h.b16 %v800
      %v2297 = vunpack.c.l.b16 %v801
      %v2298 = vunpack.c.h.b16 %v801
      %v2299 = vunpack.c.l.b16 %v802
      %v2300 = vunpack.c.h.b16 %v802
      %v2301 = vunpack.c.l.b16 %v803
      %v2302 = vunpack.c.h.b16 %v803
      %v2303 = vunpack.c.l.b16 %v804
      %v2304 = vunpack.c.h.b16 %v804
      %v2305 = vunpack.c.l.b16 %v805
      %v2306 = vunpack.c.h.b16 %v805
      %v2307 = vunpack.c.l.b16 %v806
      %v2308 = vunpack.c.h.b16 %v806
      %v2309 = vunpack.c.l.b16 %v807
      %v2310 = vunpack.c.h.b16 %v807
      %v2311 = vunpack.c.l.b16 %v808
      %v2312 = vunpack.c.h.b16 %v808
      %v2313 = vunpack.c.l.b16 %v809
      %v2314 = vunpack.c.h.b16 %v809
      %v2315 = vunpack.c.l.b16 %v810
      %v2316 = vunpack.c.h.b16 %v810
      %v2317 = vunpack.c.l.b16 %v811
      %v2318 = vunpack.c.h.b16 %v811
      %v2319 = vunpack.c.l.b16 %v812
      %v2320 = vunpack.c.h.b16 %v812
      %v2321 = vunpack.c.l.b16 %v813
      %v2322 = vunpack.c.h.b16 %v813
      %v2323 = vunpack.c.l.b16 %v814
      %v2324 = vunpack.c.h.b16 %v814
      %v2325 = vunpack.c.l.b16 %v815
      %v2326 = vunpack.c.h.b16 %v815
      %v2327 = vunpack.c.l.b16 %v816
      %v2328 = vunpack.c.h.b16 %v816
      %v2329 = vunpack.c.l.b16 %v817
      %v2330 = vunpack.c.h.b16 %v817
      %v2331 = vunpack.c.l.b16 %v818
      %v2332 = vunpack.c.h.b16 %v818
      %v2333 = vunpack.c.l.b16 %v819
      %v2334 = vunpack.c.h.b16 %v819
      %v2335 = vunpack.c.l.b16 %v820
      %v2336 = vunpack.c.h.b16 %v820
      %v2337 = vunpack.c.l.b16 %v821
      %v2338 = vunpack.c.h.b16 %v821
      %v2339 = vunpack.c.l.b16 %v822
      %v2340 = vunpack.c.h.b16 %v822
      %v2341 = vunpack.c.l.b16 %v823
      %v2342 = vunpack.c.h.b16 %v823
      %v2343 = vunpack.c.l.b16 %v824
      %v2344 = vunpack.c.h.b16 %v824
      %v2345 = vunpack.c.l.b16 %v825
      %v2346 = vunpack.c.h.b16 %v825
      %v2347 = vunpack.c.l.b16 %v826
      %v2348 = vunpack.c.h.b16 %v826
      %v2349 = vunpack.c.l.b16 %v827
      %v2350 = vunpack.c.h.b16 %v827
      %v2351 = vunpack.c.l.b16 %v828
      %v2352 = vunpack.c.h.b16 %v828
      %v2353 = vunpack.c.l.b16 %v829
      %v2354 = vunpack.c.h.b16 %v829
      %v2355 = vunpack.c.l.b16 %v830
      %v2356 = vunpack.c.h.b16 %v830
      %v2357 = vunpack.c.l.b16 %v831
      %v2358 = vunpack.c.h.b16 %v831
      %v2359 = vunpack.c.l.b16 %v832
      %v2360 = vunpack.c.h.b16 %v832
      %v2361 = vunpack.c.l.b16 %v833
      %v2362 = vunpack.c.h.b16 %v833
      %v2363 = vunpack.c.l.b16 %v834
      %v2364 = vunpack.c.h.b16 %v834
      %v2365 = vunpack.c.l.b16 %v835
      %v2366 = vunpack.c.h.b16 %v835
      %v2367 = vunpack.c.l.b16 %v836
      %v2368 = vunpack.c.h.b16 %v836
      %v2369 = vunpack.c.l.b16 %v837
      %v2370 = vunpack.c.h.b16 %v837
      %v2371 = vunpack.c.l.b16 %v838
      %v2372 = vunpack.c.h.b16 %v838
      %v2373 = vunpack.c.l.b16 %v839
      %v2374 = vunpack.c.h.b16 %v839
      %v2375 = vunpack.c.l.b16 %v840
      %v2376 = vunpack.c.h.b16 %v840
      %v2377 = vunpack.c.l.b16 %v841
      %v2378 = vunpack.c.h.b16 %v841
      %v2379 = vunpack.c.l.b16 %v842
      %v2380 = vunpack.c.h.b16 %v842
      %v2381 = vunpack.c.l.b16 %v843
      %v2382 = vunpack.c.h.b16 %v843
      %v2383 = vunpack.c.l.b16 %v844
      %v2384 = vunpack.c.h.b16 %v844
      %v2385 = vunpack.c.l.b16 %v845
      %v2386 = vunpack.c.h.b16 %v845
      %v2387 = vunpack.c.l.b16 %v846
      %v2388 = vunpack.c.h.b16 %v846
      %v2389 = vunpack.c.l.b16 %v847
      %v2390 = vunpack.c.h.b16 %v847
      %v2391 = vunpack.c.l.b16 %v848
      %v2392 = vunpack.c.h.b16 %v848
      %v2393 = vunpack.c.l.b16 %v849
      %v2394 = vunpack.c.h.b16 %v849
      %v2395 = vunpack.c.l.b16 %v850
      %v2396 = vunpack.c.h.b16 %v850
      %v2397 = vunpack.c.l.b16 %v851
      %v2398 = vunpack.c.h.b16 %v851
      %v2399 = vunpack.c.l.b16 %v852
      %v2400 = vunpack.c.h.b16 %v852
      %v2401 = vunpack.c.l.b16 %v853
      %v2402 = vunpack.c.h.b16 %v853
      %v2403 = vunpack.c.l.b16 %v854
      %v2404 = vunpack.c.h.b16 %v854
      %v2405 = vunpack.c.l.b16 %v855
      %v2406 = vunpack.c.h.b16 %v855
      %v2407 = vunpack.c.l.b16 %v856
      %v2408 = vunpack.c.h.b16 %v856
      %v2409 = vunpack.c.l.b16 %v857
      %v2410 = vunpack.c.h.b16 %v857
      %v2411 = vunpack.c.l.b16 %v858
      %v2412 = vunpack.c.h.b16 %v858
      %v2413 = vunpack.c.l.b16 %v859
      %v2414 = vunpack.c.h.b16 %v859
      %v2415 = vunpack.c.l.b16 %v860
      %v2416 = vunpack.c.h.b16 %v860
      %v2417 = vunpack.c.l.b16 %v861
      %v2418 = vunpack.c.h.b16 %v861
      %v2419 = vunpack.c.l.b16 %v862
      %v2420 = vunpack.c.h.b16 %v862
      %v2421 = vunpack.c.l.b16 %v863
      %v2422 = vunpack.c.h.b16 %v863
      %v2423 = vunpack.c.l.b16 %v864
      %v2424 = vunpack.c.h.b16 %v864
      %v2425 = vunpack.c.l.b16 %v865
      %v2426 = vunpack.c.h.b16 %v865
      %v2427 = vunpack.c.l.b16 %v866
      %v2428 = vunpack.c.h.b16 %v866
      %v2429 = vunpack.c.l.b16 %v867
      %v2430 = vunpack.c.h.b16 %v867
      %v2431 = vunpack.c.l.b16 %v868
      %v2432 = vunpack.c.h.b16 %v868
      %v2433 = vpack.c.b16 %v1417, %v1409
      %v2434 = vpack.c.b16 %v1418, %v1410
      %v2435 = vpack.c.b16 %v1419, %v1411
      %v2436 = vpack.c.b16 %v1420, %v1412
      %v2437 = vpack.c.b16 %v1421, %v1413
      %v2438 = vpack.c.b16 %v1422, %v1414
      %v2439 = vpack.c.b16 %v1423, %v1415
      %v2440 = vpack.c.b16 %v1424, %v1416
      %v2441 = vpack.c.b16 %v1433, %v1425
      %v2442 = vpack.c.b16 %v1434, %v1426
      %v2443 = vpack.c.b16 %v1435, %v1427
      %v2444 = vpack.c.b16 %v1436, %v1428
      %v2445 = vpack.c.b16 %v1437, %v1429
      %v2446 = vpack.c.b16 %v1438, %v1430
      %v2447 = vpack.c.b16 %v1439, %v1431
      %v2448 = vpack.c.b16 %v1440, %v1432
      %v2449 = vpack.c.b16 %v1449, %v1441
      %v2450 = vpack.c.b16 %v1450, %v1442
      %v2451 = vpack.c.b16 %v1451, %v1443
      %v2452 = vpack.c.b16 %v1452, %v1444
      %v2453 = vpack.c.b16 %v1453, %v1445
      %v2454 = vpack.c.b16 %v1454, %v1446
      %v2455 = vpack.c.b16 %v1455, %v1447
      %v2456 = vpack.c.b16 %v1456, %v1448
      %v2457 = vpack.c.b16 %v1465, %v1457
      %v2458 = vpack.c.b16 %v1466, %v1458
      %v2459 = vpack.c.b16 %v1467, %v1459
      %v2460 = vpack.c.b16 %v1468, %v1460
      %v2461 = vpack.c.b16 %v1469, %v1461
      %v2462 = vpack.c.b16 %v1470, %v1462
      %v2463 = vpack.c.b16 %v1471, %v1463
      %v2464 = vpack.c.b16 %v1472, %v1464
      %v2465 = vpack.c.b16 %v1481, %v1473
      %v2466 = vpack.c.b16 %v1482, %v1474
      %v2467 = vpack.c.b16 %v1483, %v1475
      %v2468 = vpack.c.b16 %v1484, %v1476
      %v2469 = vpack.c.b16 %v1485, %v1477
      %v2470 = vpack.c.b16 %v1486, %v1478
      %v2471 = vpack.c.b16 %v1487, %v1479
      %v2472 = vpack.c.b16 %v1488, %v1480
      %v2473 = vpack.c.b16 %v1497, %v1489
      %v2474 = vpack.c.b16 %v1498, %v1490
      %v2475 = vpack.c.b16 %v1499, %v1491
      %v2476 = vpack.c.b16 %v1500, %v1492
      %v2477 = vpack.c.b16 %v1501, %v1493
      %v2478 = vpack.c.b16 %v1502, %v1494
      %v2479 = vpack.c.b16 %v1503, %v1495
      %v2480 = vpack.c.b16 %v1504, %v1496
      %v2481 = vpack.c.b16 %v1513, %v1505
      %v2482 = vpack.c.b16 %v1514, %v1506
      %v2483 = vpack.c.b16 %v1515, %v1507
      %v2484 = vpack.c.b16 %v1516, %v1508
      %v2485 = vpack.c.b16 %v1517, %v1509
      %v2486 = vpack.c.b16 %v1518, %v1510
      %v2487 = vpack.c.b16 %v1519, %v1511
      %v2488 = vpack.c.b16 %v1520, %v1512
      %v2489 = vpack.c.b16 %v1529, %v1521
      %v2490 = vpack.c.b16 %v1530, %v1522
      %v2491 = vpack.c.b16 %v1531, %v1523
      %v2492 = vpack.c.b16 %v1532, %v1524
      %v2493 = vpack.c.b16 %v1533, %v1525
      %v2494 = vpack.c.b16 %v1534, %v1526
      %v2495 = vpack.c.b16 %v1535, %v1527
      %v2496 = vpack.c.b16 %v1536, %v1528
      %v2497 = vpack.c.b16 %v1545, %v1537
      %v2498 = vpack.c.b16 %v1546, %v1538
      %v2499 = vpack.c.b16 %v1547, %v1539
      %v2500 = vpack.c.b16 %v1548, %v1540
      %v2501 = vpack.c.b16 %v1549, %v1541
      %v2502 = vpack.c.b16 %v1550, %v1542
      %v2503 = vpack.c.b16 %v1551, %v1543
      %v2504 = vpack.c.b16 %v1552, %v1544
      %v2505 = vpack.c.b16 %v1561, %v1553
      %v2506 = vpack.c.b16 %v1562, %v1554
      %v2507 = vpack.c.b16 %v1563, %v1555
      %v2508 = vpack.c.b16 %v1564, %v1556
      %v2509 = vpack.c.b16 %v1565, %v1557
      %v2510 = vpack.c.b16 %v1566, %v1558
      %v2511 = vpack.c.b16 %v1567, %v1559
      %v2512 = vpack.c.b16 %v1568, %v1560
      %v2513 = vpack.c.b16 %v1577, %v1569
      %v2514 = vpack.c.b16 %v1578, %v1570
      %v2515 = vpack.c.b16 %v1579, %v1571
      %v2516 = vpack.c.b16 %v1580, %v1572
      %v2517 = vpack.c.b16 %v1581, %v1573
      %v2518 = vpack.c.b16 %v1582, %v1574
      %v2519 = vpack.c.b16 %v1583, %v1575
      %v2520 = vpack.c.b16 %v1584, %v1576
      %v2521 = vpack.c.b16 %v1593, %v1585
      %v2522 = vpack.c.b16 %v1594, %v1586
      %v2523 = vpack.c.b16 %v1595, %v1587
      %v2524 = vpack.c.b16 %v1596, %v1588
      %v2525 = vpack.c.b16 %v1597, %v1589
      %v2526 = vpack.c.b16 %v1598, %v1590
      %v2527 = vpack.c.b16 %v1599, %v1591
      %v2528 = vpack.c.b16 %v1600, %v1592
      %v2529 = vpack.c.b16 %v1609, %v1601
      %v2530 = vpack.c.b16 %v1610, %v1602
      %v2531 = vpack.c.b16 %v1611, %v1603
      %v2532 = vpack.c.b16 %v1612, %v1604
      %v2533 = vpack.c.b16 %v1613, %v1605
      %v2534 = vpack.c.b16 %v1614, %v1606
      %v2535 = vpack.c.b16 %v1615, %v1607
      %v2536 = vpack.c.b16 %v1616, %v1608
      %v2537 = vpack.c.b16 %v1625, %v1617
      %v2538 = vpack.c.b16 %v1626, %v1618
      %v2539 = vpack.c.b16 %v1627, %v1619
      %v2540 = vpack.c.b16 %v1628, %v1620
      %v2541 = vpack.c.b16 %v1629, %v1621
      %v2542 = vpack.c.b16 %v1630, %v1622
      %v2543 = vpack.c.b16 %v1631, %v1623
      %v2544 = vpack.c.b16 %v1632, %v1624
      %v2545 = vpack.c.b16 %v1641, %v1633
      %v2546 = vpack.c.b16 %v1642, %v1634
      %v2547 = vpack.c.b16 %v1643, %v1635
      %v2548 = vpack.c.b16 %v1644, %v1636
      %v2549 = vpack.c.b16 %v1645, %v1637
      %v2550 = vpack.c.b16 %v1646, %v1638
      %v2551 = vpack.c.b16 %v1647, %v1639
      %v2552 = vpack.c.b16 %v1648, %v1640
      %v2553 = vpack.c.b16 %v1657, %v1649
      %v2554 = vpack.c.b16 %v1658, %v1650
      %v2555 = vpack.c.b16 %v1659, %v1651
      %v2556 = vpack.c.b16 %v1660, %v1652
      %v2557 = vpack.c.b16 %v1661, %v1653
      %v2558 = vpack.c.b16 %v1662, %v1654
      %v2559 = vpack.c.b16 %v1663, %v1655
      %v2560 = vpack.c.b16 %v1664, %v1656
      %v2561 = vpack.c.b16 %v1673, %v1665
      %v2562 = vpack.c.b16 %v1674, %v1666
      %v2563 = vpack.c.b16 %v1675, %v1667
      %v2564 = vpack.c.b16 %v1676, %v1668
      %v2565 = vpack.c.b16 %v1677, %v1669
      %v2566 = vpack.c.b16 %v1678, %v1670
      %v2567 = vpack.c.b16 %v1679, %v1671
      %v2568 = vpack.c.b16 %v1680, %v1672
      %v2569 = vpack.c.b16 %v1689, %v1681
      %v2570 = vpack.c.b16 %v1690, %v1682
      %v2571 = vpack.c.b16 %v1691, %v1683
      %v2572 = vpack.c.b16 %v1692, %v1684
      %v2573 = vpack.c.b16 %v1693, %v1685
      %v2574 = vpack.c.b16 %v1694, %v1686
      %v2575 = vpack.c.b16 %v1695, %v1687
      %v2576 = vpack.c.b16 %v1696, %v1688
      %v2577 = vpack.c.b16 %v1705, %v1697
      %v2578 = vpack.c.b16 %v1706, %v1698
      %v2579 = vpack.c.b16 %v1707, %v1699
      %v2580 = vpack.c.b16 %v1708, %v1700
      %v2581 = vpack.c.b16 %v1709, %v1701
      %v2582 = vpack.c.b16 %v1710, %v1702
      %v2583 = vpack.c.b16 %v1711, %v1703
      %v2584 = vpack.c.b16 %v1712, %v1704
      %v2585 = vpack.c.b16 %v1721, %v1713
      %v2586 = vpack.c.b16 %v1722, %v1714
      %v2587 = vpack.c.b16 %v1723, %v1715
      %v2588 = vpack.c.b16 %v1724, %v1716
      %v2589 = vpack.c.b16 %v1725, %v1717
      %v2590 = vpack.c.b16 %v1726, %v1718
      %v2591 = vpack.c.b16 %v1727, %v1719
      %v2592 = vpack.c.b16 %v1728, %v1720
      %v2593 = vpack.c.b16 %v1737, %v1729
      %v2594 = vpack.c.b16 %v1738, %v1730
      %v2595 = vpack.c.b16 %v1739, %v1731
      %v2596 = vpack.c.b16 %v1740, %v1732
      %v2597 = vpack.c.b16 %v1741, %v1733
      %v2598 = vpack.c.b16 %v1742, %v1734
      %v2599 = vpack.c.b16 %v1743, %v1735
      %v2600 = vpack.c.b16 %v1744, %v1736
      %v2601 = vpack.c.b16 %v1753, %v1745
      %v2602 = vpack.c.b16 %v1754, %v1746
      %v2603 = vpack.c.b16 %v1755, %v1747
      %v2604 = vpack.c.b16 %v1756, %v1748
      %v2605 = vpack.c.b16 %v1757, %v1749
      %v2606 = vpack.c.b16 %v1758, %v1750
      %v2607 = vpack.c.b16 %v1759, %v1751
      %v2608 = vpack.c.b16 %v1760, %v1752
      %v2609 = vpack.c.b16 %v1769, %v1761
      %v2610 = vpack.c.b16 %v1770, %v1762
      %v2611 = vpack.c.b16 %v1771, %v1763
      %v2612 = vpack.c.b16 %v1772, %v1764
      %v2613 = vpack.c.b16 %v1773, %v1765
      %v2614 = vpack.c.b16 %v1774, %v1766
      %v2615 = vpack.c.b16 %v1775, %v1767
      %v2616 = vpack.c.b16 %v1776, %v1768
      %v2617 = vpack.c.b16 %v1785, %v1777
      %v2618 = vpack.c.b16 %v1786, %v1778
      %v2619 = vpack.c.b16 %v1787, %v1779
      %v2620 = vpack.c.b16 %v1788, %v1780
      %v2621 = vpack.c.b16 %v1789, %v1781
      %v2622 = vpack.c.b16 %v1790, %v1782
      %v2623 = vpack.c.b16 %v1791, %v1783
      %v2624 = vpack.c.b16 %v1792, %v1784
      %v2625 = vpack.c.b16 %v1801, %v1793
      %v2626 = vpack.c.b16 %v1802, %v1794
      %v2627 = vpack.c.b16 %v1803, %v1795
      %v2628 = vpack.c.b16 %v1804, %v1796
      %v2629 = vpack.c.b16 %v1805, %v1797
      %v2630 = vpack.c.b16 %v1806, %v1798
      %v2631 = vpack.c.b16 %v1807, %v1799
      %v2632 = vpack.c.b16 %v1808, %v1800
      %v2633 = vpack.c.b16 %v1817, %v1809
      %v2634 = vpack.c.b16 %v1818, %v1810
      %v2635 = vpack.c.b16 %v1819, %v1811
      %v2636 = vpack.c.b16 %v1820, %v1812
      %v2637 = vpack.c.b16 %v1821, %v1813
      %v2638 = vpack.c.b16 %v1822, %v1814
      %v2639 = vpack.c.b16 %v1823, %v1815
      %v2640 = vpack.c.b16 %v1824, %v1816
      %v2641 = vpack.c.b16 %v1833, %v1825
      %v2642 = vpack.c.b16 %v1834, %v1826
      %v2643 = vpack.c.b16 %v1835, %v1827
      %v2644 = vpack.c.b16 %v1836, %v1828
      %v2645 = vpack.c.b16 %v1837, %v1829
      %v2646 = vpack.c.b16 %v1838, %v1830
      %v2647 = vpack.c.b16 %v1839, %v1831
      %v2648 = vpack.c.b16 %v1840, %v1832
      %v2649 = vpack.c.b16 %v1849, %v1841
      %v2650 = vpack.c.b16 %v1850, %v1842
      %v2651 = vpack.c.b16 %v1851, %v1843
      %v2652 = vpack.c.b16 %v1852, %v1844
      %v2653 = vpack.c.b16 %v1853, %v1845
      %v2654 = vpack.c.b16 %v1854, %v1846
      %v2655 = vpack.c.b16 %v1855, %v1847
      %v2656 = vpack.c.b16 %v1856, %v1848
      %v2657 = vpack.c.b16 %v1865, %v1857
      %v2658 = vpack.c.b16 %v1866, %v1858
      %v2659 = vpack.c.b16 %v1867, %v1859
      %v2660 = vpack.c.b16 %v1868, %v1860
      %v2661 = vpack.c.b16 %v1869, %v1861
      %v2662 = vpack.c.b16 %v1870, %v1862
      %v2663 = vpack.c.b16 %v1871, %v1863
      %v2664 = vpack.c.b16 %v1872, %v1864
      %v2665 = vpack.c.b16 %v1881, %v1873
      %v2666 = vpack.c.b16 %v1882, %v1874
      %v2667 = vpack.c.b16 %v1883, %v1875
      %v2668 = vpack.c.b16 %v1884, %v1876
      %v2669 = vpack.c.b16 %v1885, %v1877
      %v2670 = vpack.c.b16 %v1886, %v1878
      %v2671 = vpack.c.b16 %v1887, %v1879
      %v2672 = vpack.c.b16 %v1888, %v1880
      %v2673 = vpack.c.b16 %v1897, %v1889
      %v2674 = vpack.c.b16 %v1898, %v1890
      %v2675 = vpack.c.b16 %v1899, %v1891
      %v2676 = vpack.c.b16 %v1900, %v1892
      %v2677 = vpack.c.b16 %v1901, %v1893
      %v2678 = vpack.c.b16 %v1902, %v1894
      %v2679 = vpack.c.b16 %v1903, %v1895
      %v2680 = vpack.c.b16 %v1904, %v1896
      %v2681 = vpack.c.b16 %v1913, %v1905
      %v2682 = vpack.c.b16 %v1914, %v1906
      %v2683 = vpack.c.b16 %v1915, %v1907
      %v2684 = vpack.c.b16 %v1916, %v1908
      %v2685 = vpack.c.b16 %v1917, %v1909
      %v2686 = vpack.c.b16 %v1918, %v1910
      %v2687 = vpack.c.b16 %v1919, %v1911
      %v2688 = vpack.c.b16 %v1920, %v1912
      %v2689 = vpack.c.b16 %v1929, %v1921
      %v2690 = vpack.c.b16 %v1930, %v1922
      %v2691 = vpack.c.b16 %v1931, %v1923
      %v2692 = vpack.c.b16 %v1932, %v1924
      %v2693 = vpack.c.b16 %v1933, %v1925
      %v2694 = vpack.c.b16 %v1934, %v1926
      %v2695 = vpack.c.b16 %v1935, %v1927
      %v2696 = vpack.c.b16 %v1936, %v1928
      %v2697 = vpack.c.b16 %v1945, %v1937
      %v2698 = vpack.c.b16 %v1946, %v1938
      %v2699 = vpack.c.b16 %v1947, %v1939
      %v2700 = vpack.c.b16 %v1948, %v1940
      %v2701 = vpack.c.b16 %v1949, %v1941
      %v2702 = vpack.c.b16 %v1950, %v1942
      %v2703 = vpack.c.b16 %v1951, %v1943
      %v2704 = vpack.c.b16 %v1952, %v1944
      %v2705 = vpack.c.b16 %v1961, %v1953
      %v2706 = vpack.c.b16 %v1962, %v1954
      %v2707 = vpack.c.b16 %v1963, %v1955
      %v2708 = vpack.c.b16 %v1964, %v1956
      %v2709 = vpack.c.b16 %v1965, %v1957
      %v2710 = vpack.c.b16 %v1966, %v1958
      %v2711 = vpack.c.b16 %v1967, %v1959
      %v2712 = vpack.c.b16 %v1968, %v1960
      %v2713 = vpack.c.b16 %v1977, %v1969
      %v2714 = vpack.c.b16 %v1978, %v1970
      %v2715 = vpack.c.b16 %v1979, %v1971
      %v2716 = vpack.c.b16 %v1980, %v1972
      %v2717 = vpack.c.b16 %v1981, %v1973
      %v2718 = vpack.c.b16 %v1982, %v1974
      %v2719 = vpack.c.b16 %v1983, %v1975
      %v2720 = vpack.c.b16 %v1984, %v1976
      %v2721 = vpack.c.b16 %v1993, %v1985
      %v2722 = vpack.c.b16 %v1994, %v1986
      %v2723 = vpack.c.b16 %v1995, %v1987
      %v2724 = vpack.c.b16 %v1996, %v1988
      %v2725 = vpack.c.b16 %v1997, %v1989
      %v2726 = vpack.c.b16 %v1998, %v1990
      %v2727 = vpack.c.b16 %v1999, %v1991
      %v2728 = vpack.c.b16 %v2000, %v1992
      %v2729 = vpack.c.b16 %v2009, %v2001
      %v2730 = vpack.c.b16 %v2010, %v2002
      %v2731 = vpack.c.b16 %v2011, %v2003
      %v2732 = vpack.c.b16 %v2012, %v2004
      %v2733 = vpack.c.b16 %v2013, %v2005
      %v2734 = vpack.c.b16 %v2014, %v2006
      %v2735 = vpack.c.b16 %v2015, %v2007
      %v2736 = vpack.c.b16 %v2016, %v2008
      %v2737 = vpack.c.b16 %v2025, %v2017
      %v2738 = vpack.c.b16 %v2026, %v2018
      %v2739 = vpack.c.b16 %v2027, %v2019
      %v2740 = vpack.c.b16 %v2028, %v2020
      %v2741 = vpack.c.b16 %v2029, %v2021
      %v2742 = vpack.c.b16 %v2030, %v2022
      %v2743 = vpack.c.b16 %v2031, %v2023
      %v2744 = vpack.c.b16 %v2032, %v2024
      %v2745 = vpack.c.b16 %v2041, %v2033
      %v2746 = vpack.c.b16 %v2042, %v2034
      %v2747 = vpack.c.b16 %v2043, %v2035
      %v2748 = vpack.c.b16 %v2044, %v2036
      %v2749 = vpack.c.b16 %v2045, %v2037
      %v2750 = vpack.c.b16 %v2046, %v2038
      %v2751 = vpack.c.b16 %v2047, %v2039
      %v2752 = vpack.c.b16 %v2048, %v2040
      %v2753 = vpack.c.b16 %v2057, %v2049
      %v2754 = vpack.c.b16 %v2058, %v2050
      %v2755 = vpack.c.b16 %v2059, %v2051
      %v2756 = vpack.c.b16 %v2060, %v2052
      %v2757 = vpack.c.b16 %v2061, %v2053
      %v2758 = vpack.c.b16 %v2062, %v2054
      %v2759 = vpack.c.b16 %v2063, %v2055
      %v2760 = vpack.c.b16 %v2064, %v2056
      %v2761 = vpack.c.b16 %v2073, %v2065
      %v2762 = vpack.c.b16 %v2074, %v2066
      %v2763 = vpack.c.b16 %v2075, %v2067
      %v2764 = vpack.c.b16 %v2076, %v2068
      %v2765 = vpack.c.b16 %v2077, %v2069
      %v2766 = vpack.c.b16 %v2078, %v2070
      %v2767 = vpack.c.b16 %v2079, %v2071
      %v2768 = vpack.c.b16 %v2080, %v2072
      %v2769 = vpack.c.b16 %v2089, %v2081
      %v2770 = vpack.c.b16 %v2090, %v2082
      %v2771 = vpack.c.b16 %v2091, %v2083
      %v2772 = vpack.c.b16 %v2092, %v2084
      %v2773 = vpack.c.b16 %v2093, %v2085
      %v2774 = vpack.c.b16 %v2094, %v2086
      %v2775 = vpack.c.b16 %v2095, %v2087
      %v2776 = vpack.c.b16 %v2096, %v2088
      %v2777 = vpack.c.b16 %v2105, %v2097
      %v2778 = vpack.c.b16 %v2106, %v2098
      %v2779 = vpack.c.b16 %v2107, %v2099
      %v2780 = vpack.c.b16 %v2108, %v2100
      %v2781 = vpack.c.b16 %v2109, %v2101
      %v2782 = vpack.c.b16 %v2110, %v2102
      %v2783 = vpack.c.b16 %v2111, %v2103
      %v2784 = vpack.c.b16 %v2112, %v2104
      %v2785 = vpack.c.b16 %v2121, %v2113
      %v2786 = vpack.c.b16 %v2122, %v2114
      %v2787 = vpack.c.b16 %v2123, %v2115
      %v2788 = vpack.c.b16 %v2124, %v2116
      %v2789 = vpack.c.b16 %v2125, %v2117
      %v2790 = vpack.c.b16 %v2126, %v2118
      %v2791 = vpack.c.b16 %v2127, %v2119
      %v2792 = vpack.c.b16 %v2128, %v2120
      %v2793 = vpack.c.b16 %v2137, %v2129
      %v2794 = vpack.c.b16 %v2138, %v2130
      %v2795 = vpack.c.b16 %v2139, %v2131
      %v2796 = vpack.c.b16 %v2140, %v2132
      %v2797 = vpack.c.b16 %v2141, %v2133
      %v2798 = vpack.c.b16 %v2142, %v2134
      %v2799 = vpack.c.b16 %v2143, %v2135
      %v2800 = vpack.c.b16 %v2144, %v2136
      %v2801 = vpack.c.b16 %v2153, %v2145
      %v2802 = vpack.c.b16 %v2154, %v2146
      %v2803 = vpack.c.b16 %v2155, %v2147
      %v2804 = vpack.c.b16 %v2156, %v2148
      %v2805 = vpack.c.b16 %v2157, %v2149
      %v2806 = vpack.c.b16 %v2158, %v2150
      %v2807 = vpack.c.b16 %v2159, %v2151
      %v2808 = vpack.c.b16 %v2160, %v2152
      %v2809 = vpack.c.b16 %v2169, %v2161
      %v2810 = vpack.c.b16 %v2170, %v2162
      %v2811 = vpack.c.b16 %v2171, %v2163
      %v2812 = vpack.c.b16 %v2172, %v2164
      %v2813 = vpack.c.b16 %v2173, %v2165
      %v2814 = vpack.c.b16 %v2174, %v2166
      %v2815 = vpack.c.b16 %v2175, %v2167
      %v2816 = vpack.c.b16 %v2176, %v2168
      %v2817 = vpack.c.b16 %v2185, %v2177
      %v2818 = vpack.c.b16 %v2186, %v2178
      %v2819 = vpack.c.b16 %v2187, %v2179
      %v2820 = vpack.c.b16 %v2188, %v2180
      %v2821 = vpack.c.b16 %v2189, %v2181
      %v2822 = vpack.c.b16 %v2190, %v2182
      %v2823 = vpack.c.b16 %v2191, %v2183
      %v2824 = vpack.c.b16 %v2192, %v2184
      %v2825 = vpack.c.b16 %v2201, %v2193
      %v2826 = vpack.c.b16 %v2202, %v2194
      %v2827 = vpack.c.b16 %v2203, %v2195
      %v2828 = vpack.c.b16 %v2204, %v2196
      %v2829 = vpack.c.b16 %v2205, %v2197
      %v2830 = vpack.c.b16 %v2206, %v2198
      %v2831 = vpack.c.b16 %v2207, %v2199
      %v2832 = vpack.c.b16 %v2208, %v2200
      %v2833 = vpack.c.b16 %v2217, %v2209
      %v2834 = vpack.c.b16 %v2218, %v2210
      %v2835 = vpack.c.b16 %v2219, %v2211
      %v2836 = vpack.c.b16 %v2220, %v2212
      %v2837 = vpack.c.b16 %v2221, %v2213
      %v2838 = vpack.c.b16 %v2222, %v2214
      %v2839 = vpack.c.b16 %v2223, %v2215
      %v2840 = vpack.c.b16 %v2224, %v2216
      %v2841 = vpack.c.b16 %v2233, %v2225
      %v2842 = vpack.c.b16 %v2234, %v2226
      %v2843 = vpack.c.b16 %v2235, %v2227
      %v2844 = vpack.c.b16 %v2236, %v2228
      %v2845 = vpack.c.b16 %v2237, %v2229
      %v2846 = vpack.c.b16 %v2238, %v2230
      %v2847 = vpack.c.b16 %v2239, %v2231
      %v2848 = vpack.c.b16 %v2240, %v2232
      %v2849 = vpack.c.b16 %v2249, %v2241
      %v2850 = vpack.c.b16 %v2250, %v2242
      %v2851 = vpack.c.b16 %v2251, %v2243
      %v2852 = vpack.c.b16 %v2252, %v2244
      %v2853 = vpack.c.b16 %v2253, %v2245
      %v2854 = vpack.c.b16 %v2254, %v2246
      %v2855 = vpack.c.b16 %v2255, %v2247
      %v2856 = vpack.c.b16 %v2256, %v2248
      %v2857 = vpack.c.b16 %v2265, %v2257
      %v2858 = vpack.c.b16 %v2266, %v2258
      %v2859 = vpack.c.b16 %v2267, %v2259
      %v2860 = vpack.c.b16 %v2268, %v2260
      %v2861 = vpack.c.b16 %v2269, %v2261
      %v2862 = vpack.c.b16 %v2270, %v2262
      %v2863 = vpack.c.b16 %v2271, %v2263
      %v2864 = vpack.c.b16 %v2272, %v2264
      %v2865 = vpack.c.b16 %v2281, %v2273
      %v2866 = vpack.c.b16 %v2282, %v2274
      %v2867 = vpack.c.b16 %v2283, %v2275
      %v2868 = vpack.c.b16 %v2284, %v2276
      %v2869 = vpack.c.b16 %v2285, %v2277
      %v2870 = vpack.c.b16 %v2286, %v2278
      %v2871 = vpack.c.b16 %v2287, %v2279
      %v2872 = vpack.c.b16 %v2288, %v2280
      %v2873 = vpack.c.b16 %v2297, %v2289
      %v2874 = vpack.c.b16 %v2298, %v2290
      %v2875 = vpack.c.b16 %v2299, %v2291
      %v2876 = vpack.c.b16 %v2300, %v2292
      %v2877 = vpack.c.b16 %v2301, %v2293
      %v2878 = vpack.c.b16 %v2302, %v2294
      %v2879 = vpack.c.b16 %v2303, %v2295
      %v2880 = vpack.c.b16 %v2304, %v2296
      %v2881 = vpack.c.b16 %v2313, %v2305
      %v2882 = vpack.c.b16 %v2314, %v2306
      %v2883 = vpack.c.b16 %v2315, %v2307
      %v2884 = vpack.c.b16 %v2316, %v2308
      %v2885 = vpack.c.b16 %v2317, %v2309
      %v2886 = vpack.c.b16 %v2318, %v2310
      %v2887 = vpack.c.b16 %v2319, %v2311
      %v2888 = vpack.c.b16 %v2320, %v2312
      %v2889 = vpack.c.b16 %v2329, %v2321
      %v2890 = vpack.c.b16 %v2330, %v2322
      %v2891 = vpack.c.b16 %v2331, %v2323
      %v2892 = vpack.c.b16 %v2332, %v2324
      %v2893 = vpack.c.b16 %v2333, %v2325
      %v2894 = vpack.c.b16 %v2334, %v2326
      %v2895 = vpack.c.b16 %v2335, %v2327
      %v2896 = vpack.c.b16 %v2336, %v2328
      %v2897 = vpack.c.b16 %v2345, %v2337
      %v2898 = vpack.c.b16 %v2346, %v2338
      %v2899 = vpack.c.b16 %v2347, %v2339
      %v2900 = vpack.c.b16 %v2348, %v2340
      %v2901 = vpack.c.b16 %v2349, %v2341
      %v2902 = vpack.c.b16 %v2350, %v2342
      %v2903 = vpack.c.b16 %v2351, %v2343
      %v2904 = vpack.c.b16 %v2352, %v2344
      %v2905 = vpack.c.b16 %v2361, %v2353
      %v2906 = vpack.c.b16 %v2362, %v2354
      %v2907 = vpack.c.b16 %v2363, %v2355
      %v2908 = vpack.c.b16 %v2364, %v2356
      %v2909 = vpack.c.b16 %v2365, %v2357
      %v2910 = vpack.c.b16 %v2366, %v2358
      %v2911 = vpack.c.b16 %v2367, %v2359
      %v2912 = vpack.c.b16 %v2368, %v2360
      %v2913 = vpack.c.b16 %v2377, %v2369
      %v2914 = vpack.c.b16 %v2378, %v2370
      %v2915 = vpack.c.b16 %v2379, %v2371
      %v2916 = vpack.c.b16 %v2380, %v2372
      %v2917 = vpack.c.b16 %v2381, %v2373
      %v2918 = vpack.c.b16 %v2382, %v2374
      %v2919 = vpack.c.b16 %v2383, %v2375
      %v2920 = vpack.c.b16 %v2384, %v2376
      %v2921 = vpack.c.b16 %v2393, %v2385
      %v2922 = vpack.c.b16 %v2394, %v2386
      %v2923 = vpack.c.b16 %v2395, %v2387
      %v2924 = vpack.c.b16 %v2396, %v2388
      %v2925 = vpack.c.b16 %v2397, %v2389
      %v2926 = vpack.c.b16 %v2398, %v2390
      %v2927 = vpack.c.b16 %v2399, %v2391
      %v2928 = vpack.c.b16 %v2400, %v2392
      %v2929 = vpack.c.b16 %v2409, %v2401
      %v2930 = vpack.c.b16 %v2410, %v2402
      %v2931 = vpack.c.b16 %v2411, %v2403
      %v2932 = vpack.c.b16 %v2412, %v2404
      %v2933 = vpack.c.b16 %v2413, %v2405
      %v2934 = vpack.c.b16 %v2414, %v2406
      %v2935 = vpack.c.b16 %v2415, %v2407
      %v2936 = vpack.c.b16 %v2416, %v2408
      %v2937 = vpack.c.b16 %v2425, %v2417
      %v2938 = vpack.c.b16 %v2426, %v2418
      %v2939 = vpack.c.b16 %v2427, %v2419
      %v2940 = vpack.c.b16 %v2428, %v2420
      %v2941 = vpack.c.b16 %v2429, %v2421
      %v2942 = vpack.c.b16 %v2430, %v2422
      %v2943 = vpack.c.b16 %v2431, %v2423
      %v2944 = vpack.c.b16 %v2432, %v2424
      %3457 = vmatprep.subr.bf16.mxu0 %v2490
      %3458 = vmatpush1.bf16.msra.mxu0 %v2489
      %3459 = vmatprep.subr.bf16.mxu0 %v2482
      %3460 = vmatpush1.bf16.msra.mxu0 %v2481
      %3461 = vmatprep.subr.bf16.mxu0 %v2474
      %3462 = vmatpush1.bf16.msra.mxu0 %v2473
      %3463 = vmatprep.subr.bf16.mxu0 %v2466
      %3464 = vmatpush1.bf16.msra.mxu0 %v2465
      %3465 = vmatprep.subr.bf16.mxu0 %v2458
      %3466 = vmatpush1.bf16.msra.mxu0 %v2457
      %3467 = vmatprep.subr.bf16.mxu0 %v2450
      %3468 = vmatpush1.bf16.msra.mxu0 %v2449
      %3469 = vmatprep.subr.bf16.mxu0 %v2442
      %3470 = vmatpush1.bf16.msra.mxu0 %v2441
      %3471 = vmatprep.subr.bf16.mxu0 %v2434
      %3472 = vmatpush1.bf16.msra.mxu0 %v2433
      %3473 = vmatprep.subr.bf16.mxu0 %v2554
      %3474 = vmatpush2.bf16.msra.mxu0 %v2553
      %3475 = vmatprep.subr.bf16.mxu0 %v2546
      %3476 = vmatpush2.bf16.msra.mxu0 %v2545
      %3477 = vmatprep.subr.bf16.mxu0 %v2538
      %3478 = vmatpush2.bf16.msra.mxu0 %v2537
      %3479 = vmatprep.subr.bf16.mxu0 %v2530
      %3480 = vmatpush2.bf16.msra.mxu0 %v2529
      %3481 = vmatprep.subr.bf16.mxu0 %v2522
      %3482 = vmatpush2.bf16.msra.mxu0 %v2521
      %3483 = vmatprep.subr.bf16.mxu0 %v2514
      %3484 = vmatpush2.bf16.msra.mxu0 %v2513
      %3485 = vmatprep.subr.bf16.mxu0 %v2506
      %3486 = vmatpush2.bf16.msra.mxu0 %v2505
      %3487 = vmatprep.subr.bf16.mxu0 %v2498
      %3488 = vmatpush2.bf16.msra.mxu0 %v2497
      %3489 = vmatprep.mubr.bf16.mxu0 %v882
      %3490 = vmatmul.mubr.bf16.gmra.mxu0 %v881
      %v3491 = vpop.f32.mrf.mxu0
      %v3492 = vadd.f32 0.0, %v3491
      %v3493 = vpop.f32.mrf.mxu0
      %v3494 = vadd.f32 0.0, %v3493
      %v3495 = vpop.f32.mrf.mxu0
      %v3496 = vpop.f32.mrf.mxu0
      %3497 = vdwg.mxu0
      %3498 = vmatprep.subr.bf16.mxu0 %v2618
      %3499 = vmatpush1.bf16.msra.mxu0 %v2617
      %3500 = vmatprep.subr.bf16.mxu0 %v2610
      %3501 = vmatpush1.bf16.msra.mxu0 %v2609
      %3502 = vmatprep.subr.bf16.mxu0 %v2602
      %3503 = vmatpush1.bf16.msra.mxu0 %v2601
      %3504 = vmatprep.subr.bf16.mxu0 %v2594
      %3505 = vmatpush1.bf16.msra.mxu0 %v2593
      %3506 = vmatprep.subr.bf16.mxu0 %v2586
      %3507 = vmatpush1.bf16.msra.mxu0 %v2585
      %3508 = vmatprep.subr.bf16.mxu0 %v2578
      %3509 = vmatpush1.bf16.msra.mxu0 %v2577
      %3510 = vmatprep.subr.bf16.mxu0 %v2570
      %3511 = vmatpush1.bf16.msra.mxu0 %v2569
      %3512 = vmatprep.subr.bf16.mxu0 %v2562
      %3513 = vmatpush1.bf16.msra.mxu0 %v2561
      %3514 = vmatprep.subr.bf16.mxu0 %v2682
      %3515 = vmatpush2.bf16.msra.mxu0 %v2681
      %3516 = vmatprep.subr.bf16.mxu0 %v2674
      %3517 = vmatpush2.bf16.msra.mxu0 %v2673
      %3518 = vmatprep.subr.bf16.mxu0 %v2666
      %3519 = vmatpush2.bf16.msra.mxu0 %v2665
      %3520 = vmatprep.subr.bf16.mxu0 %v2658
      %3521 = vmatpush2.bf16.msra.mxu0 %v2657
      %3522 = vmatprep.subr.bf16.mxu0 %v2650
      %3523 = vmatpush2.bf16.msra.mxu0 %v2649
      %3524 = vmatprep.subr.bf16.mxu0 %v2642
      %3525 = vmatpush2.bf16.msra.mxu0 %v2641
      %3526 = vmatprep.subr.bf16.mxu0 %v2634
      %3527 = vmatpush2.bf16.msra.mxu0 %v2633
      %3528 = vmatprep.subr.bf16.mxu0 %v2626
      %3529 = vmatpush2.bf16.msra.mxu0 %v2625
      %3530 = vmatprep.mubr.bf16.mxu0 %v884
      %3531 = vmatmul.mubr.bf16.gmra.mxu0 %v883
      %v3532 = vpop.f32.mrf.mxu0
      %v3533 = vadd.f32 %v3492, %v3532
      %v3534 = vpop.f32.mrf.mxu0
      %v3535 = vadd.f32 %v3494, %v3534
      %v3536 = vpop.f32.mrf.mxu0
      %v3537 = vpop.f32.mrf.mxu0
      %3538 = vdwg.mxu0
      %3539 = vmatprep.subr.bf16.mxu0 %v2746
      %3540 = vmatpush1.bf16.msra.mxu0 %v2745
      %3541 = vmatprep.subr.bf16.mxu0 %v2738
      %3542 = vmatpush1.bf16.msra.mxu0 %v2737
      %3543 = vmatprep.subr.bf16.mxu0 %v2730
      %3544 = vmatpush1.bf16.msra.mxu0 %v2729
      %3545 = vmatprep.subr.bf16.mxu0 %v2722
      %3546 = vmatpush1.bf16.msra.mxu0 %v2721
      %3547 = vmatprep.subr.bf16.mxu0 %v2714
      %3548 = vmatpush1.bf16.msra.mxu0 %v2713
      %3549 = vmatprep.subr.bf16.mxu0 %v2706
      %3550 = vmatpush1.bf16.msra.mxu0 %v2705
      %3551 = vmatprep.subr.bf16.mxu0 %v2698
      %3552 = vmatpush1.bf16.msra.mxu0 %v2697
      %3553 = vmatprep.subr.bf16.mxu0 %v2690
      %3554 = vmatpush1.bf16.msra.mxu0 %v2689
      %3555 = vmatprep.subr.bf16.mxu0 %v2810
      %3556 = vmatpush2.bf16.msra.mxu0 %v2809
      %3557 = vmatprep.subr.bf16.mxu0 %v2802
      %3558 = vmatpush2.bf16.msra.mxu0 %v2801
      %3559 = vmatprep.subr.bf16.mxu0 %v2794
      %3560 = vmatpush2.bf16.msra.mxu0 %v2793
      %3561 = vmatprep.subr.bf16.mxu0 %v2786
      %3562 = vmatpush2.bf16.msra.mxu0 %v2785
      %3563 = vmatprep.subr.bf16.mxu0 %v2778
      %3564 = vmatpush2.bf16.msra.mxu0 %v2777
      %3565 = vmatprep.subr.bf16.mxu0 %v2770
      %3566 = vmatpush2.bf16.msra.mxu0 %v2769
      %3567 = vmatprep.subr.bf16.mxu0 %v2762
      %3568 = vmatpush2.bf16.msra.mxu0 %v2761
      %3569 = vmatprep.subr.bf16.mxu0 %v2754
      %3570 = vmatpush2.bf16.msra.mxu0 %v2753
      %3571 = vmatprep.mubr.bf16.mxu0 %v886
      %3572 = vmatmul.mubr.bf16.gmra.mxu0 %v885
      %v3573 = vpop.f32.mrf.mxu0
      %v3574 = vadd.f32 %v3533, %v3573
      %v3575 = vpop.f32.mrf.mxu0
      %v3576 = vadd.f32 %v3535, %v3575
      %v3577 = vpop.f32.mrf.mxu0
      %v3578 = vpop.f32.mrf.mxu0
      %3579 = vdwg.mxu0
      %3580 = vmatprep.subr.bf16.mxu0 %v2874
      %3581 = vmatpush1.bf16.msra.mxu0 %v2873
      %3582 = vmatprep.subr.bf16.mxu0 %v2866
      %3583 = vmatpush1.bf16.msra.mxu0 %v2865
      %3584 = vmatprep.subr.bf16.mxu0 %v2858
      %3585 = vmatpush1.bf16.msra.mxu0 %v2857
      %3586 = vmatprep.subr.bf16.mxu0 %v2850
      %3587 = vmatpush1.bf16.msra.mxu0 %v2849
      %3588 = vmatprep.subr.bf16.mxu0 %v2842
      %3589 = vmatpush1.bf16.msra.mxu0 %v2841
      %3590 = vmatprep.subr.bf16.mxu0 %v2834
      %3591 = vmatpush1.bf16.msra.mxu0 %v2833
      %3592 = vmatprep.subr.bf16.mxu0 %v2826
      %3593 = vmatpush1.bf16.msra.mxu0 %v2825
      %3594 = vmatprep.subr.bf16.mxu0 %v2818
      %3595 = vmatpush1.bf16.msra.mxu0 %v2817
      %3596 = vmatprep.subr.bf16.mxu0 %v2938
      %3597 = vmatpush2.bf16.msra.mxu0 %v2937
      %3598 = vmatprep.subr.bf16.mxu0 %v2930
      %3599 = vmatpush2.bf16.msra.mxu0 %v2929
      %3600 = vmatprep.subr.bf16.mxu0 %v2922
      %3601 = vmatpush2.bf16.msra.mxu0 %v2921
      %3602 = vmatprep.subr.bf16.mxu0 %v2914
      %3603 = vmatpush2.bf16.msra.mxu0 %v2913
      %3604 = vmatprep.subr.bf16.mxu0 %v2906
      %3605 = vmatpush2.bf16.msra.mxu0 %v2905
      %3606 = vmatprep.subr.bf16.mxu0 %v2898
      %3607 = vmatpush2.bf16.msra.mxu0 %v2897
      %3608 = vmatprep.subr.bf16.mxu0 %v2890
      %3609 = vmatpush2.bf16.msra.mxu0 %v2889
      %3610 = vmatprep.subr.bf16.mxu0 %v2882
      %3611 = vmatpush2.bf16.msra.mxu0 %v2881
      %3612 = vmatprep.mubr.bf16.mxu0 %v888
      %3613 = vmatmul.mubr.bf16.gmra.mxu0 %v887
      %v3614 = vpop.f32.mrf.mxu0
      %v3615 = vadd.f32 %v3574, %v3614
      %v3616 = vpop.f32.mrf.mxu0
      %v3617 = vadd.f32 %v3576, %v3616
      %v3618 = vpop.f32.mrf.mxu0
      %v3619 = vpop.f32.mrf.mxu0
      %3620 = vdwg.mxu0
      %3621 = vmatprep.subr.bf16.mxu0 %v2492
      %3622 = vmatpush1.bf16.msra.mxu0 %v2491
      %3623 = vmatprep.subr.bf16.mxu0 %v2484
      %3624 = vmatpush1.bf16.msra.mxu0 %v2483
      %3625 = vmatprep.subr.bf16.mxu0 %v2476
      %3626 = vmatpush1.bf16.msra.mxu0 %v2475
      %3627 = vmatprep.subr.bf16.mxu0 %v2468
      %3628 = vmatpush1.bf16.msra.mxu0 %v2467
      %3629 = vmatprep.subr.bf16.mxu0 %v2460
      %3630 = vmatpush1.bf16.msra.mxu0 %v2459
      %3631 = vmatprep.subr.bf16.mxu0 %v2452
      %3632 = vmatpush1.bf16.msra.mxu0 %v2451
      %3633 = vmatprep.subr.bf16.mxu0 %v2444
      %3634 = vmatpush1.bf16.msra.mxu0 %v2443
      %3635 = vmatprep.subr.bf16.mxu0 %v2436
      %3636 = vmatpush1.bf16.msra.mxu0 %v2435
      %3637 = vmatprep.subr.bf16.mxu0 %v2556
      %3638 = vmatpush2.bf16.msra.mxu0 %v2555
      %3639 = vmatprep.subr.bf16.mxu0 %v2548
      %3640 = vmatpush2.bf16.msra.mxu0 %v2547
      %3641 = vmatprep.subr.bf16.mxu0 %v2540
      %3642 = vmatpush2.bf16.msra.mxu0 %v2539
      %3643 = vmatprep.subr.bf16.mxu0 %v2532
      %3644 = vmatpush2.bf16.msra.mxu0 %v2531
      %3645 = vmatprep.subr.bf16.mxu0 %v2524
      %3646 = vmatpush2.bf16.msra.mxu0 %v2523
      %3647 = vmatprep.subr.bf16.mxu0 %v2516
      %3648 = vmatpush2.bf16.msra.mxu0 %v2515
      %3649 = vmatprep.subr.bf16.mxu0 %v2508
      %3650 = vmatpush2.bf16.msra.mxu0 %v2507
      %3651 = vmatprep.subr.bf16.mxu0 %v2500
      %3652 = vmatpush2.bf16.msra.mxu0 %v2499
      %3653 = vmatprep.mubr.bf16.mxu0 %v882
      %3654 = vmatmul.mubr.bf16.gmra.mxu0 %v881
      %v3655 = vpop.f32.mrf.mxu0
      %v3656 = vadd.f32 0.0, %v3655
      %v3657 = vpop.f32.mrf.mxu0
      %v3658 = vadd.f32 0.0, %v3657
      %v3659 = vpop.f32.mrf.mxu0
      %v3660 = vpop.f32.mrf.mxu0
      %3661 = vdwg.mxu0
      %3662 = vmatprep.subr.bf16.mxu0 %v2620
      %3663 = vmatpush1.bf16.msra.mxu0 %v2619
      %3664 = vmatprep.subr.bf16.mxu0 %v2612
      %3665 = vmatpush1.bf16.msra.mxu0 %v2611
      %3666 = vmatprep.subr.bf16.mxu0 %v2604
      %3667 = vmatpush1.bf16.msra.mxu0 %v2603
      %3668 = vmatprep.subr.bf16.mxu0 %v2596
      %3669 = vmatpush1.bf16.msra.mxu0 %v2595
      %3670 = vmatprep.subr.bf16.mxu0 %v2588
      %3671 = vmatpush1.bf16.msra.mxu0 %v2587
      %3672 = vmatprep.subr.bf16.mxu0 %v2580
      %3673 = vmatpush1.bf16.msra.mxu0 %v2579
      %3674 = vmatprep.subr.bf16.mxu0 %v2572
      %3675 = vmatpush1.bf16.msra.mxu0 %v2571
      %3676 = vmatprep.subr.bf16.mxu0 %v2564
      %3677 = vmatpush1.bf16.msra.mxu0 %v2563
      %3678 = vmatprep.subr.bf16.mxu0 %v2684
      %3679 = vmatpush2.bf16.msra.mxu0 %v2683
      %3680 = vmatprep.subr.bf16.mxu0 %v2676
      %3681 = vmatpush2.bf16.msra.mxu0 %v2675
      %3682 = vmatprep.subr.bf16.mxu0 %v2668
      %3683 = vmatpush2.bf16.msra.mxu0 %v2667
      %3684 = vmatprep.subr.bf16.mxu0 %v2660
      %3685 = vmatpush2.bf16.msra.mxu0 %v2659
      %3686 = vmatprep.subr.bf16.mxu0 %v2652
      %3687 = vmatpush2.bf16.msra.mxu0 %v2651
      %3688 = vmatprep.subr.bf16.mxu0 %v2644
      %3689 = vmatpush2.bf16.msra.mxu0 %v2643
      %3690 = vmatprep.subr.bf16.mxu0 %v2636
      %3691 = vmatpush2.bf16.msra.mxu0 %v2635
      %3692 = vmatprep.subr.bf16.mxu0 %v2628
      %3693 = vmatpush2.bf16.msra.mxu0 %v2627
      %3694 = vmatprep.mubr.bf16.mxu0 %v884
      %3695 = vmatmul.mubr.bf16.gmra.mxu0 %v883
      %v3696 = vpop.f32.mrf.mxu0
      %v3697 = vadd.f32 %v3656, %v3696
      %v3698 = vpop.f32.mrf.mxu0
      %v3699 = vadd.f32 %v3658, %v3698
      %v3700 = vpop.f32.mrf.mxu0
      %v3701 = vpop.f32.mrf.mxu0
      %3702 = vdwg.mxu0
      %3703 = vmatprep.subr.bf16.mxu0 %v2748
      %3704 = vmatpush1.bf16.msra.mxu0 %v2747
      %3705 = vmatprep.subr.bf16.mxu0 %v2740
      %3706 = vmatpush1.bf16.msra.mxu0 %v2739
      %3707 = vmatprep.subr.bf16.mxu0 %v2732
      %3708 = vmatpush1.bf16.msra.mxu0 %v2731
      %3709 = vmatprep.subr.bf16.mxu0 %v2724
      %3710 = vmatpush1.bf16.msra.mxu0 %v2723
      %3711 = vmatprep.subr.bf16.mxu0 %v2716
      %3712 = vmatpush1.bf16.msra.mxu0 %v2715
      %3713 = vmatprep.subr.bf16.mxu0 %v2708
      %3714 = vmatpush1.bf16.msra.mxu0 %v2707
      %3715 = vmatprep.subr.bf16.mxu0 %v2700
      %3716 = vmatpush1.bf16.msra.mxu0 %v2699
      %3717 = vmatprep.subr.bf16.mxu0 %v2692
      %3718 = vmatpush1.bf16.msra.mxu0 %v2691
      %3719 = vmatprep.subr.bf16.mxu0 %v2812
      %3720 = vmatpush2.bf16.msra.mxu0 %v2811
      %3721 = vmatprep.subr.bf16.mxu0 %v2804
      %3722 = vmatpush2.bf16.msra.mxu0 %v2803
      %3723 = vmatprep.subr.bf16.mxu0 %v2796
      %3724 = vmatpush2.bf16.msra.mxu0 %v2795
      %3725 = vmatprep.subr.bf16.mxu0 %v2788
      %3726 = vmatpush2.bf16.msra.mxu0 %v2787
      %3727 = vmatprep.subr.bf16.mxu0 %v2780
      %3728 = vmatpush2.bf16.msra.mxu0 %v2779
      %3729 = vmatprep.subr.bf16.mxu0 %v2772
      %3730 = vmatpush2.bf16.msra.mxu0 %v2771
      %3731 = vmatprep.subr.bf16.mxu0 %v2764
      %3732 = vmatpush2.bf16.msra.mxu0 %v2763
      %3733 = vmatprep.subr.bf16.mxu0 %v2756
      %3734 = vmatpush2.bf16.msra.mxu0 %v2755
      %3735 = vmatprep.mubr.bf16.mxu0 %v886
      %3736 = vmatmul.mubr.bf16.gmra.mxu0 %v885
      %v3737 = vpop.f32.mrf.mxu0
      %v3738 = vadd.f32 %v3697, %v3737
      %v3739 = vpop.f32.mrf.mxu0
      %v3740 = vadd.f32 %v3699, %v3739
      %v3741 = vpop.f32.mrf.mxu0
      %v3742 = vpop.f32.mrf.mxu0
      %3743 = vdwg.mxu0
      %3744 = vmatprep.subr.bf16.mxu0 %v2876
      %3745 = vmatpush1.bf16.msra.mxu0 %v2875
      %3746 = vmatprep.subr.bf16.mxu0 %v2868
      %3747 = vmatpush1.bf16.msra.mxu0 %v2867
      %3748 = vmatprep.subr.bf16.mxu0 %v2860
      %3749 = vmatpush1.bf16.msra.mxu0 %v2859
      %3750 = vmatprep.subr.bf16.mxu0 %v2852
      %3751 = vmatpush1.bf16.msra.mxu0 %v2851
      %3752 = vmatprep.subr.bf16.mxu0 %v2844
      %3753 = vmatpush1.bf16.msra.mxu0 %v2843
      %3754 = vmatprep.subr.bf16.mxu0 %v2836
      %3755 = vmatpush1.bf16.msra.mxu0 %v2835
      %3756 = vmatprep.subr.bf16.mxu0 %v2828
      %3757 = vmatpush1.bf16.msra.mxu0 %v2827
      %3758 = vmatprep.subr.bf16.mxu0 %v2820
      %3759 = vmatpush1.bf16.msra.mxu0 %v2819
      %3760 = vmatprep.subr.bf16.mxu0 %v2940
      %3761 = vmatpush2.bf16.msra.mxu0 %v2939
      %3762 = vmatprep.subr.bf16.mxu0 %v2932
      %3763 = vmatpush2.bf16.msra.mxu0 %v2931
      %3764 = vmatprep.subr.bf16.mxu0 %v2924
      %3765 = vmatpush2.bf16.msra.mxu0 %v2923
      %3766 = vmatprep.subr.bf16.mxu0 %v2916
      %3767 = vmatpush2.bf16.msra.mxu0 %v2915
      %3768 = vmatprep.subr.bf16.mxu0 %v2908
      %3769 = vmatpush2.bf16.msra.mxu0 %v2907
      %3770 = vmatprep.subr.bf16.mxu0 %v2900
      %3771 = vmatpush2.bf16.msra.mxu0 %v2899
      %3772 = vmatprep.subr.bf16.mxu0 %v2892
      %3773 = vmatpush2.bf16.msra.mxu0 %v2891
      %3774 = vmatprep.subr.bf16.mxu0 %v2884
      %3775 = vmatpush2.bf16.msra.mxu0 %v2883
      %3776 = vmatprep.mubr.bf16.mxu0 %v888
      %3777 = vmatmul.mubr.bf16.gmra.mxu0 %v887
      %v3778 = vpop.f32.mrf.mxu0
      %v3779 = vadd.f32 %v3738, %v3778
      %v3780 = vpop.f32.mrf.mxu0
      %v3781 = vadd.f32 %v3740, %v3780
      %v3782 = vpop.f32.mrf.mxu0
      %v3783 = vpop.f32.mrf.mxu0
      %3784 = vdwg.mxu0
      %3785 = vmatprep.subr.bf16.mxu0 %v2494
      %3786 = vmatpush1.bf16.msra.mxu0 %v2493
      %3787 = vmatprep.subr.bf16.mxu0 %v2486
      %3788 = vmatpush1.bf16.msra.mxu0 %v2485
      %3789 = vmatprep.subr.bf16.mxu0 %v2478
      %3790 = vmatpush1.bf16.msra.mxu0 %v2477
      %3791 = vmatprep.subr.bf16.mxu0 %v2470
      %3792 = vmatpush1.bf16.msra.mxu0 %v2469
      %3793 = vmatprep.subr.bf16.mxu0 %v2462
      %3794 = vmatpush1.bf16.msra.mxu0 %v2461
      %3795 = vmatprep.subr.bf16.mxu0 %v2454
      %3796 = vmatpush1.bf16.msra.mxu0 %v2453
      %3797 = vmatprep.subr.bf16.mxu0 %v2446
      %3798 = vmatpush1.bf16.msra.mxu0 %v2445
      %3799 = vmatprep.subr.bf16.mxu0 %v2438
      %3800 = vmatpush1.bf16.msra.mxu0 %v2437
      %3801 = vmatprep.subr.bf16.mxu0 %v2558
      %3802 = vmatpush2.bf16.msra.mxu0 %v2557
      %3803 = vmatprep.subr.bf16.mxu0 %v2550
      %3804 = vmatpush2.bf16.msra.mxu0 %v2549
      %3805 = vmatprep.subr.bf16.mxu0 %v2542
      %3806 = vmatpush2.bf16.msra.mxu0 %v2541
      %3807 = vmatprep.subr.bf16.mxu0 %v2534
      %3808 = vmatpush2.bf16.msra.mxu0 %v2533
      %3809 = vmatprep.subr.bf16.mxu0 %v2526
      %3810 = vmatpush2.bf16.msra.mxu0 %v2525
      %3811 = vmatprep.subr.bf16.mxu0 %v2518
      %3812 = vmatpush2.bf16.msra.mxu0 %v2517
      %3813 = vmatprep.subr.bf16.mxu0 %v2510
      %3814 = vmatpush2.bf16.msra.mxu0 %v2509
      %3815 = vmatprep.subr.bf16.mxu0 %v2502
      %3816 = vmatpush2.bf16.msra.mxu0 %v2501
      %3817 = vmatprep.mubr.bf16.mxu0 %v882
      %3818 = vmatmul.mubr.bf16.gmra.mxu0 %v881
      %v3819 = vpop.f32.mrf.mxu0
      %v3820 = vadd.f32 0.0, %v3819
      %v3821 = vpop.f32.mrf.mxu0
      %v3822 = vadd.f32 0.0, %v3821
      %v3823 = vpop.f32.mrf.mxu0
      %v3824 = vpop.f32.mrf.mxu0
      %3825 = vdwg.mxu0
      %3826 = vmatprep.subr.bf16.mxu0 %v2622
      %3827 = vmatpush1.bf16.msra.mxu0 %v2621
      %3828 = vmatprep.subr.bf16.mxu0 %v2614
      %3829 = vmatpush1.bf16.msra.mxu0 %v2613
      %3830 = vmatprep.subr.bf16.mxu0 %v2606
      %3831 = vmatpush1.bf16.msra.mxu0 %v2605
      %3832 = vmatprep.subr.bf16.mxu0 %v2598
      %3833 = vmatpush1.bf16.msra.mxu0 %v2597
      %3834 = vmatprep.subr.bf16.mxu0 %v2590
      %3835 = vmatpush1.bf16.msra.mxu0 %v2589
      %3836 = vmatprep.subr.bf16.mxu0 %v2582
      %3837 = vmatpush1.bf16.msra.mxu0 %v2581
      %3838 = vmatprep.subr.bf16.mxu0 %v2574
      %3839 = vmatpush1.bf16.msra.mxu0 %v2573
      %3840 = vmatprep.subr.bf16.mxu0 %v2566
      %3841 = vmatpush1.bf16.msra.mxu0 %v2565
      %3842 = vmatprep.subr.bf16.mxu0 %v2686
      %3843 = vmatpush2.bf16.msra.mxu0 %v2685
      %3844 = vmatprep.subr.bf16.mxu0 %v2678
      %3845 = vmatpush2.bf16.msra.mxu0 %v2677
      %3846 = vmatprep.subr.bf16.mxu0 %v2670
      %3847 = vmatpush2.bf16.msra.mxu0 %v2669
      %3848 = vmatprep.subr.bf16.mxu0 %v2662
      %3849 = vmatpush2.bf16.msra.mxu0 %v2661
      %3850 = vmatprep.subr.bf16.mxu0 %v2654
      %3851 = vmatpush2.bf16.msra.mxu0 %v2653
      %3852 = vmatprep.subr.bf16.mxu0 %v2646
      %3853 = vmatpush2.bf16.msra.mxu0 %v2645
      %3854 = vmatprep.subr.bf16.mxu0 %v2638
      %3855 = vmatpush2.bf16.msra.mxu0 %v2637
      %3856 = vmatprep.subr.bf16.mxu0 %v2630
      %3857 = vmatpush2.bf16.msra.mxu0 %v2629
      %3858 = vmatprep.mubr.bf16.mxu0 %v884
      %3859 = vmatmul.mubr.bf16.gmra.mxu0 %v883
      %v3860 = vpop.f32.mrf.mxu0
      %v3861 = vadd.f32 %v3820, %v3860
      %v3862 = vpop.f32.mrf.mxu0
      %v3863 = vadd.f32 %v3822, %v3862
      %v3864 = vpop.f32.mrf.mxu0
      %v3865 = vpop.f32.mrf.mxu0
      %3866 = vdwg.mxu0
      %3867 = vmatprep.subr.bf16.mxu0 %v2750
      %3868 = vmatpush1.bf16.msra.mxu0 %v2749
      %3869 = vmatprep.subr.bf16.mxu0 %v2742
      %3870 = vmatpush1.bf16.msra.mxu0 %v2741
      %3871 = vmatprep.subr.bf16.mxu0 %v2734
      %3872 = vmatpush1.bf16.msra.mxu0 %v2733
      %3873 = vmatprep.subr.bf16.mxu0 %v2726
      %3874 = vmatpush1.bf16.msra.mxu0 %v2725
      %3875 = vmatprep.subr.bf16.mxu0 %v2718
      %3876 = vmatpush1.bf16.msra.mxu0 %v2717
      %3877 = vmatprep.subr.bf16.mxu0 %v2710
      %3878 = vmatpush1.bf16.msra.mxu0 %v2709
      %3879 = vmatprep.subr.bf16.mxu0 %v2702
      %3880 = vmatpush1.bf16.msra.mxu0 %v2701
      %3881 = vmatprep.subr.bf16.mxu0 %v2694
      %3882 = vmatpush1.bf16.msra.mxu0 %v2693
      %3883 = vmatprep.subr.bf16.mxu0 %v2814
      %3884 = vmatpush2.bf16.msra.mxu0 %v2813
      %3885 = vmatprep.subr.bf16.mxu0 %v2806
      %3886 = vmatpush2.bf16.msra.mxu0 %v2805
      %3887 = vmatprep.subr.bf16.mxu0 %v2798
      %3888 = vmatpush2.bf16.msra.mxu0 %v2797
      %3889 = vmatprep.subr.bf16.mxu0 %v2790
      %3890 = vmatpush2.bf16.msra.mxu0 %v2789
      %3891 = vmatprep.subr.bf16.mxu0 %v2782
      %3892 = vmatpush2.bf16.msra.mxu0 %v2781
      %3893 = vmatprep.subr.bf16.mxu0 %v2774
      %3894 = vmatpush2.bf16.msra.mxu0 %v2773
      %3895 = vmatprep.subr.bf16.mxu0 %v2766
      %3896 = vmatpush2.bf16.msra.mxu0 %v2765
      %3897 = vmatprep.subr.bf16.mxu0 %v2758
      %3898 = vmatpush2.bf16.msra.mxu0 %v2757
      %3899 = vmatprep.mubr.bf16.mxu0 %v886
      %3900 = vmatmul.mubr.bf16.gmra.mxu0 %v885
      %v3901 = vpop.f32.mrf.mxu0
      %v3902 = vadd.f32 %v3861, %v3901
      %v3903 = vpop.f32.mrf.mxu0
      %v3904 = vadd.f32 %v3863, %v3903
      %v3905 = vpop.f32.mrf.mxu0
      %v3906 = vpop.f32.mrf.mxu0
      %3907 = vdwg.mxu0
      %3908 = vmatprep.subr.bf16.mxu0 %v2878
      %3909 = vmatpush1.bf16.msra.mxu0 %v2877
      %3910 = vmatprep.subr.bf16.mxu0 %v2870
      %3911 = vmatpush1.bf16.msra.mxu0 %v2869
      %3912 = vmatprep.subr.bf16.mxu0 %v2862
      %3913 = vmatpush1.bf16.msra.mxu0 %v2861
      %3914 = vmatprep.subr.bf16.mxu0 %v2854
      %3915 = vmatpush1.bf16.msra.mxu0 %v2853
      %3916 = vmatprep.subr.bf16.mxu0 %v2846
      %3917 = vmatpush1.bf16.msra.mxu0 %v2845
      %3918 = vmatprep.subr.bf16.mxu0 %v2838
      %3919 = vmatpush1.bf16.msra.mxu0 %v2837
      %3920 = vmatprep.subr.bf16.mxu0 %v2830
      %3921 = vmatpush1.bf16.msra.mxu0 %v2829
      %3922 = vmatprep.subr.bf16.mxu0 %v2822
      %3923 = vmatpush1.bf16.msra.mxu0 %v2821
      %3924 = vmatprep.subr.bf16.mxu0 %v2942
      %3925 = vmatpush2.bf16.msra.mxu0 %v2941
      %3926 = vmatprep.subr.bf16.mxu0 %v2934
      %3927 = vmatpush2.bf16.msra.mxu0 %v2933
      %3928 = vmatprep.subr.bf16.mxu0 %v2926
      %3929 = vmatpush2.bf16.msra.mxu0 %v2925
      %3930 = vmatprep.subr.bf16.mxu0 %v2918
      %3931 = vmatpush2.bf16.msra.mxu0 %v2917
      %3932 = vmatprep.subr.bf16.mxu0 %v2910
      %3933 = vmatpush2.bf16.msra.mxu0 %v2909
      %3934 = vmatprep.subr.bf16.mxu0 %v2902
      %3935 = vmatpush2.bf16.msra.mxu0 %v2901
      %3936 = vmatprep.subr.bf16.mxu0 %v2894
      %3937 = vmatpush2.bf16.msra.mxu0 %v2893
      %3938 = vmatprep.subr.bf16.mxu0 %v2886
      %3939 = vmatpush2.bf16.msra.mxu0 %v2885
      %3940 = vmatprep.mubr.bf16.mxu0 %v888
      %3941 = vmatmul.mubr.bf16.gmra.mxu0 %v887
      %v3942 = vpop.f32.mrf.mxu0
      %v3943 = vadd.f32 %v3902, %v3942
      %v3944 = vpop.f32.mrf.mxu0
      %v3945 = vadd.f32 %v3904, %v3944
      %v3946 = vpop.f32.mrf.mxu0
      %v3947 = vpop.f32.mrf.mxu0
      %3948 = vdwg.mxu0
      %3949 = vmatprep.subr.bf16.mxu0 %v2496
      %3950 = vmatpush1.bf16.msra.mxu0 %v2495
      %3951 = vmatprep.subr.bf16.mxu0 %v2488
      %3952 = vmatpush1.bf16.msra.mxu0 %v2487
      %3953 = vmatprep.subr.bf16.mxu0 %v2480
      %3954 = vmatpush1.bf16.msra.mxu0 %v2479
      %3955 = vmatprep.subr.bf16.mxu0 %v2472
      %3956 = vmatpush1.bf16.msra.mxu0 %v2471
      %3957 = vmatprep.subr.bf16.mxu0 %v2464
      %3958 = vmatpush1.bf16.msra.mxu0 %v2463
      %3959 = vmatprep.subr.bf16.mxu0 %v2456
      %3960 = vmatpush1.bf16.msra.mxu0 %v2455
      %3961 = vmatprep.subr.bf16.mxu0 %v2448
      %3962 = vmatpush1.bf16.msra.mxu0 %v2447
      %3963 = vmatprep.subr.bf16.mxu0 %v2440
      %3964 = vmatpush1.bf16.msra.mxu0 %v2439
      %3965 = vmatprep.subr.bf16.mxu0 %v2560
      %3966 = vmatpush2.bf16.msra.mxu0 %v2559
      %3967 = vmatprep.subr.bf16.mxu0 %v2552
      %3968 = vmatpush2.bf16.msra.mxu0 %v2551
      %3969 = vmatprep.subr.bf16.mxu0 %v2544
      %3970 = vmatpush2.bf16.msra.mxu0 %v2543
      %3971 = vmatprep.subr.bf16.mxu0 %v2536
      %3972 = vmatpush2.bf16.msra.mxu0 %v2535
      %3973 = vmatprep.subr.bf16.mxu0 %v2528
      %3974 = vmatpush2.bf16.msra.mxu0 %v2527
      %3975 = vmatprep.subr.bf16.mxu0 %v2520
      %3976 = vmatpush2.bf16.msra.mxu0 %v2519
      %3977 = vmatprep.subr.bf16.mxu0 %v2512
      %3978 = vmatpush2.bf16.msra.mxu0 %v2511
      %3979 = vmatprep.subr.bf16.mxu0 %v2504
      %3980 = vmatpush2.bf16.msra.mxu0 %v2503
      %3981 = vmatprep.mubr.bf16.mxu0 %v882
      %3982 = vmatmul.mubr.bf16.gmra.mxu0 %v881
      %v3983 = vpop.f32.mrf.mxu0
      %v3984 = vadd.f32 0.0, %v3983
      %v3985 = vpop.f32.mrf.mxu0
      %v3986 = vadd.f32 0.0, %v3985
      %v3987 = vpop.f32.mrf.mxu0
      %v3988 = vpop.f32.mrf.mxu0
      %3989 = vdwg.mxu0
      %3990 = vmatprep.subr.bf16.mxu0 %v2624
      %3991 = vmatpush1.bf16.msra.mxu0 %v2623
      %3992 = vmatprep.subr.bf16.mxu0 %v2616
      %3993 = vmatpush1.bf16.msra.mxu0 %v2615
      %3994 = vmatprep.subr.bf16.mxu0 %v2608
      %3995 = vmatpush1.bf16.msra.mxu0 %v2607
      %3996 = vmatprep.subr.bf16.mxu0 %v2600
      %3997 = vmatpush1.bf16.msra.mxu0 %v2599
      %3998 = vmatprep.subr.bf16.mxu0 %v2592
      %3999 = vmatpush1.bf16.msra.mxu0 %v2591
      %4000 = vmatprep.subr.bf16.mxu0 %v2584
      %4001 = vmatpush1.bf16.msra.mxu0 %v2583
      %4002 = vmatprep.subr.bf16.mxu0 %v2576
      %4003 = vmatpush1.bf16.msra.mxu0 %v2575
      %4004 = vmatprep.subr.bf16.mxu0 %v2568
      %4005 = vmatpush1.bf16.msra.mxu0 %v2567
      %4006 = vmatprep.subr.bf16.mxu0 %v2688
      %4007 = vmatpush2.bf16.msra.mxu0 %v2687
      %4008 = vmatprep.subr.bf16.mxu0 %v2680
      %4009 = vmatpush2.bf16.msra.mxu0 %v2679
      %4010 = vmatprep.subr.bf16.mxu0 %v2672
      %4011 = vmatpush2.bf16.msra.mxu0 %v2671
      %4012 = vmatprep.subr.bf16.mxu0 %v2664
      %4013 = vmatpush2.bf16.msra.mxu0 %v2663
      %4014 = vmatprep.subr.bf16.mxu0 %v2656
      %4015 = vmatpush2.bf16.msra.mxu0 %v2655
      %4016 = vmatprep.subr.bf16.mxu0 %v2648
      %4017 = vmatpush2.bf16.msra.mxu0 %v2647
      %4018 = vmatprep.subr.bf16.mxu0 %v2640
      %4019 = vmatpush2.bf16.msra.mxu0 %v2639
      %4020 = vmatprep.subr.bf16.mxu0 %v2632
      %4021 = vmatpush2.bf16.msra.mxu0 %v2631
      %4022 = vmatprep.mubr.bf16.mxu0 %v884
      %4023 = vmatmul.mubr.bf16.gmra.mxu0 %v883
      %v4024 = vpop.f32.mrf.mxu0
      %v4025 = vadd.f32 %v3984, %v4024
      %v4026 = vpop.f32.mrf.mxu0
      %v4027 = vadd.f32 %v3986, %v4026
      %v4028 = vpop.f32.mrf.mxu0
      %v4029 = vpop.f32.mrf.mxu0
      %4030 = vdwg.mxu0
      %4031 = vmatprep.subr.bf16.mxu0 %v2752
      %4032 = vmatpush1.bf16.msra.mxu0 %v2751
      %4033 = vmatprep.subr.bf16.mxu0 %v2744
      %4034 = vmatpush1.bf16.msra.mxu0 %v2743
      %4035 = vmatprep.subr.bf16.mxu0 %v2736
      %4036 = vmatpush1.bf16.msra.mxu0 %v2735
      %4037 = vmatprep.subr.bf16.mxu0 %v2728
      %4038 = vmatpush1.bf16.msra.mxu0 %v2727
      %4039 = vmatprep.subr.bf16.mxu0 %v2720
      %4040 = vmatpush1.bf16.msra.mxu0 %v2719
      %4041 = vmatprep.subr.bf16.mxu0 %v2712
      %4042 = vmatpush1.bf16.msra.mxu0 %v2711
      %4043 = vmatprep.subr.bf16.mxu0 %v2704
      %4044 = vmatpush1.bf16.msra.mxu0 %v2703
      %4045 = vmatprep.subr.bf16.mxu0 %v2696
      %4046 = vmatpush1.bf16.msra.mxu0 %v2695
      %4047 = vmatprep.subr.bf16.mxu0 %v2816
      %4048 = vmatpush2.bf16.msra.mxu0 %v2815
      %4049 = vmatprep.subr.bf16.mxu0 %v2808
      %4050 = vmatpush2.bf16.msra.mxu0 %v2807
      %4051 = vmatprep.subr.bf16.mxu0 %v2800
      %4052 = vmatpush2.bf16.msra.mxu0 %v2799
      %4053 = vmatprep.subr.bf16.mxu0 %v2792
      %4054 = vmatpush2.bf16.msra.mxu0 %v2791
      %4055 = vmatprep.subr.bf16.mxu0 %v2784
      %4056 = vmatpush2.bf16.msra.mxu0 %v2783
      %4057 = vmatprep.subr.bf16.mxu0 %v2776
      %4058 = vmatpush2.bf16.msra.mxu0 %v2775
      %4059 = vmatprep.subr.bf16.mxu0 %v2768
      %4060 = vmatpush2.bf16.msra.mxu0 %v2767
      %4061 = vmatprep.subr.bf16.mxu0 %v2760
      %4062 = vmatpush2.bf16.msra.mxu0 %v2759
      %4063 = vmatprep.mubr.bf16.mxu0 %v886
      %4064 = vmatmul.mubr.bf16.gmra.mxu0 %v885
      %v4065 = vpop.f32.mrf.mxu0
      %v4066 = vadd.f32 %v4025, %v4065
      %v4067 = vpop.f32.mrf.mxu0
      %v4068 = vadd.f32 %v4027, %v4067
      %v4069 = vpop.f32.mrf.mxu0
      %v4070 = vpop.f32.mrf.mxu0
      %4071 = vdwg.mxu0
      %4072 = vmatprep.subr.bf16.mxu0 %v2880
      %4073 = vmatpush1.bf16.msra.mxu0 %v2879
      %4074 = vmatprep.subr.bf16.mxu0 %v2872
      %4075 = vmatpush1.bf16.msra.mxu0 %v2871
      %4076 = vmatprep.subr.bf16.mxu0 %v2864
      %4077 = vmatpush1.bf16.msra.mxu0 %v2863
      %4078 = vmatprep.subr.bf16.mxu0 %v2856
      %4079 = vmatpush1.bf16.msra.mxu0 %v2855
      %4080 = vmatprep.subr.bf16.mxu0 %v2848
      %4081 = vmatpush1.bf16.msra.mxu0 %v2847
      %4082 = vmatprep.subr.bf16.mxu0 %v2840
      %4083 = vmatpush1.bf16.msra.mxu0 %v2839
      %4084 = vmatprep.subr.bf16.mxu0 %v2832
      %4085 = vmatpush1.bf16.msra.mxu0 %v2831
      %4086 = vmatprep.subr.bf16.mxu0 %v2824
      %4087 = vmatpush1.bf16.msra.mxu0 %v2823
      %4088 = vmatprep.subr.bf16.mxu0 %v2944
      %4089 = vmatpush2.bf16.msra.mxu0 %v2943
      %4090 = vmatprep.subr.bf16.mxu0 %v2936
      %4091 = vmatpush2.bf16.msra.mxu0 %v2935
      %4092 = vmatprep.subr.bf16.mxu0 %v2928
      %4093 = vmatpush2.bf16.msra.mxu0 %v2927
      %4094 = vmatprep.subr.bf16.mxu0 %v2920
      %4095 = vmatpush2.bf16.msra.mxu0 %v2919
      %4096 = vmatprep.subr.bf16.mxu0 %v2912
      %4097 = vmatpush2.bf16.msra.mxu0 %v2911
      %4098 = vmatprep.subr.bf16.mxu0 %v2904
      %4099 = vmatpush2.bf16.msra.mxu0 %v2903
      %4100 = vmatprep.subr.bf16.mxu0 %v2896
      %4101 = vmatpush2.bf16.msra.mxu0 %v2895
      %4102 = vmatprep.subr.bf16.mxu0 %v2888
      %4103 = vmatpush2.bf16.msra.mxu0 %v2887
      %4104 = vmatprep.mubr.bf16.mxu0 %v888
      %4105 = vmatmul.mubr.bf16.gmra.mxu0 %v887
      %v4106 = vpop.f32.mrf.mxu0
      %v4107 = vadd.f32 %v4066, %v4106
      %v4108 = vpop.f32.mrf.mxu0
      %v4109 = vadd.f32 %v4068, %v4108
      %v4110 = vpop.f32.mrf.mxu0
      %v4111 = vpop.f32.mrf.mxu0
      %4112 = vdwg.mxu0
      %v4113 = vadd.f32 %v345, %v3615
      %v4114 = vadd.f32 %v346, %v3617
      %v4115 = vadd.f32 %v347, %v3779
      %v4116 = vadd.f32 %v348, %v3781
      %v4117 = vadd.f32 %v349, %v3943
      %v4118 = vadd.f32 %v350, %v3945
      %v4119 = vadd.f32 %v351, %v4107
      %v4120 = vadd.f32 %v352, %v4109
      %4121 = vst [vmem:[#allocation2] sm:$0xff] %v4113
      %4122 = vst [vmem:[#allocation2 + $0x8] sm:$0xff] %v4114
      %4123 = vst [vmem:[#allocation2 + $0x10] sm:$0xff] %v4115
      %4124 = vst [vmem:[#allocation2 + $0x18] sm:$0xff] %v4116
      %4125 = vst [vmem:[#allocation2 + $0x20] sm:$0xff] %v4117
      %4126 = vst [vmem:[#allocation2 + $0x28] sm:$0xff] %v4118
      %4127 = vst [vmem:[#allocation2 + $0x30] sm:$0xff] %v4119
      %4128 = vst [vmem:[#allocation2 + $0x38] sm:$0xff] %v4120
      %p4129 = scmp.eq.s32.totalorder %s23, 1
      // Predicated region
      $region53: #{rescnn_encoder_forward.3} parent=47 // pred_check
        %p4130 = pneg %p4129
      $region54: #{rescnn_encoder_forward.3} parent=47 // pred_check_branch
        %4132 = sbr.rel (%p4130) target = $region56
      $region55: #{rescnn_encoder_forward.3} parent=47 // pred_region
        %v4133 = vld [vmem:[#allocation2] sm:$0xff]
        %v4134 = vld [vmem:[#allocation2 + $0x8] sm:$0xff]
        %v4135 = vld [vmem:[#allocation2 + $0x10] sm:$0xff]
        %v4136 = vld [vmem:[#allocation2 + $0x18] sm:$0xff]
        %v4137 = vld [vmem:[#allocation2 + $0x20] sm:$0xff]
        %v4138 = vld [vmem:[#allocation2 + $0x28] sm:$0xff]
        %v4139 = vld [vmem:[#allocation2 + $0x30] sm:$0xff]
        %v4140 = vld [vmem:[#allocation2 + $0x38] sm:$0xff]
        %v4141 = vld [vmem:[%s2] sm:$0xff]
        %v4143 = vlaneseq
        %v4144 = vshrl.u32 %v4143, 7
        %v4145 = vsub.s32 0, %v4144
        %v4146 = vrot.slane %v4141, %v4145
        %v4147 = vlaneseq
        %v4148 = vshrl.u32 %v4147, 7
        %v4149 = vsub.s32 1, %v4148
        %v4150 = vrot.slane %v4141, %v4149
        %v4151 = vlaneseq
        %v4152 = vshrl.u32 %v4151, 7
        %v4153 = vsub.s32 2, %v4152
        %v4154 = vrot.slane %v4141, %v4153
        %v4155 = vlaneseq
        %v4156 = vshrl.u32 %v4155, 7
        %v4157 = vsub.s32 3, %v4156
        %v4158 = vrot.slane %v4141, %v4157
        %v4159 = vlaneseq
        %v4160 = vshrl.u32 %v4159, 7
        %v4161 = vsub.s32 4, %v4160
        %v4162 = vrot.slane %v4141, %v4161
        %v4163 = vlaneseq
        %v4164 = vshrl.u32 %v4163, 7
        %v4165 = vsub.s32 5, %v4164
        %v4166 = vrot.slane %v4141, %v4165
        %v4167 = vlaneseq
        %v4168 = vshrl.u32 %v4167, 7
        %v4169 = vsub.s32 6, %v4168
        %v4170 = vrot.slane %v4141, %v4169
        %v4171 = vlaneseq
        %v4172 = vshrl.u32 %v4171, 7
        %v4173 = vsub.s32 7, %v4172
        %v4174 = vrot.slane %v4141, %v4173
        %v4183 = vadd.f32 %v4133, %v4146
        %v4184 = vadd.f32 %v4134, %v4150
        %v4185 = vadd.f32 %v4135, %v4154
        %v4186 = vadd.f32 %v4136, %v4158
        %v4187 = vadd.f32 %v4137, %v4162
        %v4188 = vadd.f32 %v4138, %v4166
        %v4189 = vadd.f32 %v4139, %v4170
        %v4190 = vadd.f32 %v4140, %v4174
        %v4191 = vmax.f32 %v4183, 0.0
        %v4192 = vmax.f32 %v4184, 0.0
        %v4193 = vmax.f32 %v4185, 0.0
        %v4194 = vmax.f32 %v4186, 0.0
        %v4195 = vmax.f32 %v4187, 0.0
        %v4196 = vmax.f32 %v4188, 0.0
        %v4197 = vmax.f32 %v4189, 0.0
        %v4198 = vmax.f32 %v4190, 0.0
        %v4199 = vpack.c.bf16 %v4191, %v4191
        %v4200 = vpack.c.bf16 %v4192, %v4192
        %v4201 = vpack.c.bf16 %v4193, %v4193
        %v4202 = vpack.c.bf16 %v4194, %v4194
        %v4203 = vpack.c.bf16 %v4195, %v4195
        %v4204 = vpack.c.bf16 %v4196, %v4196
        %v4205 = vpack.c.bf16 %v4197, %v4197
        %v4206 = vpack.c.bf16 %v4198, %v4198
        %v4207 = vld [vmem:[%s3] sm:$0xff]
        %v4208 = vld [vmem:[%s3 + $0x8] sm:$0xff]
        %v4209 = vld [vmem:[%s3 + $0x10] sm:$0xff]
        %v4210 = vld [vmem:[%s3 + $0x18] sm:$0xf]
        %v4211 = vld [vmem:[%s3 + $0x1c] sm:$0xff]
        %v4212 = vld [vmem:[%s3 + $0x24] sm:$0xff]
        %v4213 = vld [vmem:[%s3 + $0x2c] sm:$0xff]
        %v4214 = vld [vmem:[%s3 + $0x34] sm:$0xf]
        %v4215 = vld [vmem:[%s3 + $0x38] sm:$0xff]
        %v4216 = vld [vmem:[%s3 + $0x40] sm:$0xff]
        %v4217 = vld [vmem:[%s3 + $0x48] sm:$0xff]
        %v4218 = vld [vmem:[%s3 + $0x50] sm:$0xf]
        %v4219 = vld [vmem:[%s3 + $0x54] sm:$0xff]
        %v4220 = vld [vmem:[%s3 + $0x5c] sm:$0xff]
        %v4221 = vld [vmem:[%s3 + $0x64] sm:$0xff]
        %v4222 = vld [vmem:[%s3 + $0x6c] sm:$0xf]
        %v4223 = vld [vmem:[%s3 + $0x70] sm:$0xff]
        %v4224 = vld [vmem:[%s3 + $0x78] sm:$0xff]
        %v4225 = vld [vmem:[%s3 + $0x80] sm:$0xff]
        %v4226 = vld [vmem:[%s3 + $0x88] sm:$0xf]
        %v4227 = vld [vmem:[%s3 + $0x8c] sm:$0xff]
        %v4228 = vld [vmem:[%s3 + $0x94] sm:$0xff]
        %v4229 = vld [vmem:[%s3 + $0x9c] sm:$0xff]
        %v4230 = vld [vmem:[%s3 + $0xa4] sm:$0xf]
        %v4231 = vld [vmem:[%s3 + $0xa8] sm:$0xff]
        %v4232 = vld [vmem:[%s3 + $0xb0] sm:$0xff]
        %v4233 = vld [vmem:[%s3 + $0xb8] sm:$0xff]
        %v4234 = vld [vmem:[%s3 + $0xc0] sm:$0xf]
        %v4235 = vld [vmem:[%s3 + $0xc4] sm:$0xff]
        %v4236 = vld [vmem:[%s3 + $0xcc] sm:$0xff]
        %v4237 = vld [vmem:[%s3 + $0xd4] sm:$0xff]
        %v4238 = vld [vmem:[%s3 + $0xdc] sm:$0xf]
        %v4239 = vld [vmem:[%s3 + $0xe0] sm:$0xff]
        %v4240 = vld [vmem:[%s3 + $0xe8] sm:$0xff]
        %v4241 = vld [vmem:[%s3 + $0xf0] sm:$0xff]
        %v4242 = vld [vmem:[%s3 + $0xf8] sm:$0xf]
        %v4243 = vld [vmem:[%s3 + $0xfc] sm:$0xff]
        %v4244 = vld [vmem:[%s3 + $0x104] sm:$0xff]
        %v4245 = vld [vmem:[%s3 + $0x10c] sm:$0xff]
        %v4246 = vld [vmem:[%s3 + $0x114] sm:$0xf]
        %v4247 = vld [vmem:[%s3 + $0x118] sm:$0xff]
        %v4248 = vld [vmem:[%s3 + $0x120] sm:$0xff]
        %v4249 = vld [vmem:[%s3 + $0x128] sm:$0xff]
        %v4250 = vld [vmem:[%s3 + $0x130] sm:$0xf]
        %v4251 = vld [vmem:[%s3 + $0x134] sm:$0xff]
        %v4252 = vld [vmem:[%s3 + $0x13c] sm:$0xff]
        %v4253 = vld [vmem:[%s3 + $0x144] sm:$0xff]
        %v4254 = vld [vmem:[%s3 + $0x14c] sm:$0xf]
        %v4255 = vld [vmem:[%s3 + $0x150] sm:$0xff]
        %v4256 = vld [vmem:[%s3 + $0x158] sm:$0xff]
        %v4257 = vld [vmem:[%s3 + $0x160] sm:$0xff]
        %v4258 = vld [vmem:[%s3 + $0x168] sm:$0xf]
        %v4259 = vld [vmem:[%s3 + $0x16c] sm:$0xff]
        %v4260 = vld [vmem:[%s3 + $0x174] sm:$0xff]
        %v4261 = vld [vmem:[%s3 + $0x17c] sm:$0xff]
        %v4262 = vld [vmem:[%s3 + $0x184] sm:$0xf]
        %v4263 = vld [vmem:[%s3 + $0x188] sm:$0xff]
        %v4264 = vld [vmem:[%s3 + $0x190] sm:$0xff]
        %v4265 = vld [vmem:[%s3 + $0x198] sm:$0xff]
        %v4266 = vld [vmem:[%s3 + $0x1a0] sm:$0xf]
        %v4267 = vld [vmem:[%s3 + $0x1a4] sm:$0xff]
        %v4268 = vld [vmem:[%s3 + $0x1ac] sm:$0xff]
        %v4269 = vld [vmem:[%s3 + $0x1b4] sm:$0xff]
        %v4270 = vld [vmem:[%s3 + $0x1bc] sm:$0xf]
        %v4271 = vld [vmem:[%s3 + $0x1c0] sm:$0xff]
        %v4272 = vld [vmem:[%s3 + $0x1c8] sm:$0xff]
        %v4273 = vld [vmem:[%s3 + $0x1d0] sm:$0xff]
        %v4274 = vld [vmem:[%s3 + $0x1d8] sm:$0xf]
        %v4275 = vld [vmem:[%s3 + $0x1dc] sm:$0xff]
        %v4276 = vld [vmem:[%s3 + $0x1e4] sm:$0xff]
        %v4277 = vld [vmem:[%s3 + $0x1ec] sm:$0xff]
        %v4278 = vld [vmem:[%s3 + $0x1f4] sm:$0xf]
        %v4279 = vld [vmem:[%s3 + $0x1f8] sm:$0xff]
        %v4280 = vld [vmem:[%s3 + $0x200] sm:$0xff]
        %v4281 = vld [vmem:[%s3 + $0x208] sm:$0xff]
        %v4282 = vld [vmem:[%s3 + $0x210] sm:$0xf]
        %v4283 = vld [vmem:[%s3 + $0x214] sm:$0xff]
        %v4284 = vld [vmem:[%s3 + $0x21c] sm:$0xff]
        %v4285 = vld [vmem:[%s3 + $0x224] sm:$0xff]
        %v4286 = vld [vmem:[%s3 + $0x22c] sm:$0xf]
        %v4287 = vld [vmem:[%s3 + $0x230] sm:$0xff]
        %v4288 = vld [vmem:[%s3 + $0x238] sm:$0xff]
        %v4289 = vld [vmem:[%s3 + $0x240] sm:$0xff]
        %v4290 = vld [vmem:[%s3 + $0x248] sm:$0xf]
        %v4291 = vld [vmem:[%s3 + $0x24c] sm:$0xff]
        %v4292 = vld [vmem:[%s3 + $0x254] sm:$0xff]
        %v4293 = vld [vmem:[%s3 + $0x25c] sm:$0xff]
        %v4294 = vld [vmem:[%s3 + $0x264] sm:$0xf]
        %v4295 = vld [vmem:[%s3 + $0x268] sm:$0xff]
        %v4296 = vld [vmem:[%s3 + $0x270] sm:$0xff]
        %v4297 = vld [vmem:[%s3 + $0x278] sm:$0xff]
        %v4298 = vld [vmem:[%s3 + $0x280] sm:$0xf]
        %v4299 = vld [vmem:[%s3 + $0x284] sm:$0xff]
        %v4300 = vld [vmem:[%s3 + $0x28c] sm:$0xff]
        %v4301 = vld [vmem:[%s3 + $0x294] sm:$0xff]
        %v4302 = vld [vmem:[%s3 + $0x29c] sm:$0xf]
        %v4303 = vld [vmem:[%s3 + $0x2a0] sm:$0xff]
        %v4304 = vld [vmem:[%s3 + $0x2a8] sm:$0xff]
        %v4305 = vld [vmem:[%s3 + $0x2b0] sm:$0xff]
        %v4306 = vld [vmem:[%s3 + $0x2b8] sm:$0xf]
        %v4307 = vld [vmem:[%s3 + $0x2bc] sm:$0xff]
        %v4308 = vld [vmem:[%s3 + $0x2c4] sm:$0xff]
        %v4309 = vld [vmem:[%s3 + $0x2cc] sm:$0xff]
        %v4310 = vld [vmem:[%s3 + $0x2d4] sm:$0xf]
        %v4311 = vld [vmem:[%s3 + $0x2d8] sm:$0xff]
        %v4312 = vld [vmem:[%s3 + $0x2e0] sm:$0xff]
        %v4313 = vld [vmem:[%s3 + $0x2e8] sm:$0xff]
        %v4314 = vld [vmem:[%s3 + $0x2f0] sm:$0xf]
        %v4315 = vld [vmem:[%s3 + $0x2f4] sm:$0xff]
        %v4316 = vld [vmem:[%s3 + $0x2fc] sm:$0xff]
        %v4317 = vld [vmem:[%s3 + $0x304] sm:$0xff]
        %v4318 = vld [vmem:[%s3 + $0x30c] sm:$0xf]
        %v4319 = vld [vmem:[%s3 + $0x310] sm:$0xff]
        %v4320 = vld [vmem:[%s3 + $0x318] sm:$0xff]
        %v4321 = vld [vmem:[%s3 + $0x320] sm:$0xff]
        %v4322 = vld [vmem:[%s3 + $0x328] sm:$0xf]
        %v4323 = vld [vmem:[%s3 + $0x32c] sm:$0xff]
        %v4324 = vld [vmem:[%s3 + $0x334] sm:$0xff]
        %v4325 = vld [vmem:[%s3 + $0x33c] sm:$0xff]
        %v4326 = vld [vmem:[%s3 + $0x344] sm:$0xf]
        %v4327 = vld [vmem:[%s3 + $0x348] sm:$0xff]
        %v4328 = vld [vmem:[%s3 + $0x350] sm:$0xff]
        %v4329 = vld [vmem:[%s3 + $0x358] sm:$0xff]
        %v4330 = vld [vmem:[%s3 + $0x360] sm:$0xf]
        %v4331 = vld [vmem:[%s3 + $0x364] sm:$0xff]
        %v4332 = vld [vmem:[%s3 + $0x36c] sm:$0xff]
        %v4333 = vld [vmem:[%s3 + $0x374] sm:$0xff]
        %v4334 = vld [vmem:[%s3 + $0x37c] sm:$0xf]
        %v4335 = vld [vmem:[%s3 + $0x380] sm:$0xff]
        %v4336 = vld [vmem:[%s3 + $0x388] sm:$0xff]
        %v4337 = vld [vmem:[%s3 + $0x390] sm:$0xff]
        %v4338 = vld [vmem:[%s3 + $0x398] sm:$0xf]
        %v4339 = vld [vmem:[%s3 + $0x39c] sm:$0xff]
        %v4340 = vld [vmem:[%s3 + $0x3a4] sm:$0xff]
        %v4341 = vld [vmem:[%s3 + $0x3ac] sm:$0xff]
        %v4342 = vld [vmem:[%s3 + $0x3b4] sm:$0xf]
        %v4343 = vld [vmem:[%s3 + $0x3b8] sm:$0xff]
        %v4344 = vld [vmem:[%s3 + $0x3c0] sm:$0xff]
        %v4345 = vld [vmem:[%s3 + $0x3c8] sm:$0xff]
        %v4346 = vld [vmem:[%s3 + $0x3d0] sm:$0xf]
        %v4347 = vld [vmem:[%s3 + $0x3d4] sm:$0xff]
        %v4348 = vld [vmem:[%s3 + $0x3dc] sm:$0xff]
        %v4349 = vld [vmem:[%s3 + $0x3e4] sm:$0xff]
        %v4350 = vld [vmem:[%s3 + $0x3ec] sm:$0xf]
        %v4351 = vld [vmem:[%s3 + $0x3f0] sm:$0xff]
        %v4352 = vld [vmem:[%s3 + $0x3f8] sm:$0xff]
        %v4353 = vld [vmem:[%s3 + $0x400] sm:$0xff]
        %v4354 = vld [vmem:[%s3 + $0x408] sm:$0xf]
        %v4355 = vld [vmem:[%s3 + $0x40c] sm:$0xff]
        %v4356 = vld [vmem:[%s3 + $0x414] sm:$0xff]
        %v4357 = vld [vmem:[%s3 + $0x41c] sm:$0xff]
        %v4358 = vld [vmem:[%s3 + $0x424] sm:$0xf]
        %v4359 = vld [vmem:[%s3 + $0x428] sm:$0xff]
        %v4360 = vld [vmem:[%s3 + $0x430] sm:$0xff]
        %v4361 = vld [vmem:[%s3 + $0x438] sm:$0xff]
        %v4362 = vld [vmem:[%s3 + $0x440] sm:$0xf]
        %v4363 = vld [vmem:[%s3 + $0x444] sm:$0xff]
        %v4364 = vld [vmem:[%s3 + $0x44c] sm:$0xff]
        %v4365 = vld [vmem:[%s3 + $0x454] sm:$0xff]
        %v4366 = vld [vmem:[%s3 + $0x45c] sm:$0xf]
        %v4367 = vld [vmem:[%s3 + $0x460] sm:$0xff]
        %v4368 = vld [vmem:[%s3 + $0x468] sm:$0xff]
        %v4369 = vld [vmem:[%s3 + $0x470] sm:$0xff]
        %v4370 = vld [vmem:[%s3 + $0x478] sm:$0xf]
        %v4371 = vld [vmem:[%s3 + $0x47c] sm:$0xff]
        %v4372 = vld [vmem:[%s3 + $0x484] sm:$0xff]
        %v4373 = vld [vmem:[%s3 + $0x48c] sm:$0xff]
        %v4374 = vld [vmem:[%s3 + $0x494] sm:$0xf]
        %v4375 = vld [vmem:[%s3 + $0x498] sm:$0xff]
        %v4376 = vld [vmem:[%s3 + $0x4a0] sm:$0xff]
        %v4377 = vld [vmem:[%s3 + $0x4a8] sm:$0xff]
        %v4378 = vld [vmem:[%s3 + $0x4b0] sm:$0xf]
        %v4379 = vld [vmem:[%s3 + $0x4b4] sm:$0xff]
        %v4380 = vld [vmem:[%s3 + $0x4bc] sm:$0xff]
        %v4381 = vld [vmem:[%s3 + $0x4c4] sm:$0xff]
        %v4382 = vld [vmem:[%s3 + $0x4cc] sm:$0xf]
        %v4383 = vld [vmem:[%s3 + $0x4d0] sm:$0xff]
        %v4384 = vld [vmem:[%s3 + $0x4d8] sm:$0xff]
        %v4385 = vld [vmem:[%s3 + $0x4e0] sm:$0xff]
        %v4386 = vld [vmem:[%s3 + $0x4e8] sm:$0xf]
        %v4387 = vld [vmem:[%s3 + $0x4ec] sm:$0xff]
        %v4388 = vld [vmem:[%s3 + $0x4f4] sm:$0xff]
        %v4389 = vld [vmem:[%s3 + $0x4fc] sm:$0xff]
        %v4390 = vld [vmem:[%s3 + $0x504] sm:$0xf]
        %v4391 = vld [vmem:[%s3 + $0x508] sm:$0xff]
        %v4392 = vld [vmem:[%s3 + $0x510] sm:$0xff]
        %v4393 = vld [vmem:[%s3 + $0x518] sm:$0xff]
        %v4394 = vld [vmem:[%s3 + $0x520] sm:$0xf]
        %v4395 = vld [vmem:[%s3 + $0x524] sm:$0xff]
        %v4396 = vld [vmem:[%s3 + $0x52c] sm:$0xff]
        %v4397 = vld [vmem:[%s3 + $0x534] sm:$0xff]
        %v4398 = vld [vmem:[%s3 + $0x53c] sm:$0xf]
        %v4399 = vld [vmem:[%s3 + $0x540] sm:$0xff]
        %v4400 = vld [vmem:[%s3 + $0x548] sm:$0xff]
        %v4401 = vld [vmem:[%s3 + $0x550] sm:$0xff]
        %v4402 = vld [vmem:[%s3 + $0x558] sm:$0xf]
        %v4403 = vld [vmem:[%s3 + $0x55c] sm:$0xff]
        %v4404 = vld [vmem:[%s3 + $0x564] sm:$0xff]
        %v4405 = vld [vmem:[%s3 + $0x56c] sm:$0xff]
        %v4406 = vld [vmem:[%s3 + $0x574] sm:$0xf]
        %v4407 = vld [vmem:[%s3 + $0x578] sm:$0xff]
        %v4408 = vld [vmem:[%s3 + $0x580] sm:$0xff]
        %v4409 = vld [vmem:[%s3 + $0x588] sm:$0xff]
        %v4410 = vld [vmem:[%s3 + $0x590] sm:$0xf]
        %v4411 = vld [vmem:[%s3 + $0x594] sm:$0xff]
        %v4412 = vld [vmem:[%s3 + $0x59c] sm:$0xff]
        %v4413 = vld [vmem:[%s3 + $0x5a4] sm:$0xff]
        %v4414 = vld [vmem:[%s3 + $0x5ac] sm:$0xf]
        %v4415 = vld [vmem:[%s3 + $0x5b0] sm:$0xff]
        %v4416 = vld [vmem:[%s3 + $0x5b8] sm:$0xff]
        %v4417 = vld [vmem:[%s3 + $0x5c0] sm:$0xff]
        %v4418 = vld [vmem:[%s3 + $0x5c8] sm:$0xf]
        %v4419 = vld [vmem:[%s3 + $0x5cc] sm:$0xff]
        %v4420 = vld [vmem:[%s3 + $0x5d4] sm:$0xff]
        %v4421 = vld [vmem:[%s3 + $0x5dc] sm:$0xff]
        %v4422 = vld [vmem:[%s3 + $0x5e4] sm:$0xf]
        %v4423 = vld [vmem:[%s3 + $0x5e8] sm:$0xff]
        %v4424 = vld [vmem:[%s3 + $0x5f0] sm:$0xff]
        %v4425 = vld [vmem:[%s3 + $0x5f8] sm:$0xff]
        %v4426 = vld [vmem:[%s3 + $0x600] sm:$0xf]
        %v4427 = vld [vmem:[%s3 + $0x604] sm:$0xff]
        %v4428 = vld [vmem:[%s3 + $0x60c] sm:$0xff]
        %v4429 = vld [vmem:[%s3 + $0x614] sm:$0xff]
        %v4430 = vld [vmem:[%s3 + $0x61c] sm:$0xf]
        %v4431 = vld [vmem:[%s3 + $0x620] sm:$0xff]
        %v4432 = vld [vmem:[%s3 + $0x628] sm:$0xff]
        %v4433 = vld [vmem:[%s3 + $0x630] sm:$0xff]
        %v4434 = vld [vmem:[%s3 + $0x638] sm:$0xf]
        %v4435 = vld [vmem:[%s3 + $0x63c] sm:$0xff]
        %v4436 = vld [vmem:[%s3 + $0x644] sm:$0xff]
        %v4437 = vld [vmem:[%s3 + $0x64c] sm:$0xff]
        %v4438 = vld [vmem:[%s3 + $0x654] sm:$0xf]
        %v4439 = vld [vmem:[%s3 + $0x658] sm:$0xff]
        %v4440 = vld [vmem:[%s3 + $0x660] sm:$0xff]
        %v4441 = vld [vmem:[%s3 + $0x668] sm:$0xff]
        %v4442 = vld [vmem:[%s3 + $0x670] sm:$0xf]
        %v4443 = vld [vmem:[%s3 + $0x674] sm:$0xff]
        %v4444 = vld [vmem:[%s3 + $0x67c] sm:$0xff]
        %v4445 = vld [vmem:[%s3 + $0x684] sm:$0xff]
        %v4446 = vld [vmem:[%s3 + $0x68c] sm:$0xf]
        %v4447 = vld [vmem:[%s3 + $0x690] sm:$0xff]
        %v4448 = vld [vmem:[%s3 + $0x698] sm:$0xff]
        %v4449 = vld [vmem:[%s3 + $0x6a0] sm:$0xff]
        %v4450 = vld [vmem:[%s3 + $0x6a8] sm:$0xf]
        %v4451 = vld [vmem:[%s3 + $0x6ac] sm:$0xff]
        %v4452 = vld [vmem:[%s3 + $0x6b4] sm:$0xff]
        %v4453 = vld [vmem:[%s3 + $0x6bc] sm:$0xff]
        %v4454 = vld [vmem:[%s3 + $0x6c4] sm:$0xf]
        %v4455 = vld [vmem:[%s3 + $0x6c8] sm:$0xff]
        %v4456 = vld [vmem:[%s3 + $0x6d0] sm:$0xff]
        %v4457 = vld [vmem:[%s3 + $0x6d8] sm:$0xff]
        %v4458 = vld [vmem:[%s3 + $0x6e0] sm:$0xf]
        %v4459 = vld [vmem:[%s3 + $0x6e4] sm:$0xff]
        %v4460 = vld [vmem:[%s3 + $0x6ec] sm:$0xff]
        %v4461 = vld [vmem:[%s3 + $0x6f4] sm:$0xff]
        %v4462 = vld [vmem:[%s3 + $0x6fc] sm:$0xf]
        %v4463 = vld [vmem:[%s3 + $0x700] sm:$0xff]
        %v4464 = vld [vmem:[%s3 + $0x708] sm:$0xff]
        %v4465 = vld [vmem:[%s3 + $0x710] sm:$0xff]
        %v4466 = vld [vmem:[%s3 + $0x718] sm:$0xf]
        %v4467 = vld [vmem:[%s3 + $0x71c] sm:$0xff]
        %v4468 = vld [vmem:[%s3 + $0x724] sm:$0xff]
        %v4469 = vld [vmem:[%s3 + $0x72c] sm:$0xff]
        %v4470 = vld [vmem:[%s3 + $0x734] sm:$0xf]
        %v4471 = vld [vmem:[%s3 + $0x738] sm:$0xff]
        %v4472 = vld [vmem:[%s3 + $0x740] sm:$0xff]
        %v4473 = vld [vmem:[%s3 + $0x748] sm:$0xff]
        %v4474 = vld [vmem:[%s3 + $0x750] sm:$0xf]
        %v4475 = vld [vmem:[%s3 + $0x754] sm:$0xff]
        %v4476 = vld [vmem:[%s3 + $0x75c] sm:$0xff]
        %v4477 = vld [vmem:[%s3 + $0x764] sm:$0xff]
        %v4478 = vld [vmem:[%s3 + $0x76c] sm:$0xf]
        %v4479 = vld [vmem:[%s3 + $0x770] sm:$0xff]
        %v4480 = vld [vmem:[%s3 + $0x778] sm:$0xff]
        %v4481 = vld [vmem:[%s3 + $0x780] sm:$0xff]
        %v4482 = vld [vmem:[%s3 + $0x788] sm:$0xf]
        %v4483 = vld [vmem:[%s3 + $0x78c] sm:$0xff]
        %v4484 = vld [vmem:[%s3 + $0x794] sm:$0xff]
        %v4485 = vld [vmem:[%s3 + $0x79c] sm:$0xff]
        %v4486 = vld [vmem:[%s3 + $0x7a4] sm:$0xf]
        %v4487 = vld [vmem:[%s3 + $0x7a8] sm:$0xff]
        %v4488 = vld [vmem:[%s3 + $0x7b0] sm:$0xff]
        %v4489 = vld [vmem:[%s3 + $0x7b8] sm:$0xff]
        %v4490 = vld [vmem:[%s3 + $0x7c0] sm:$0xf]
        %v4491 = vld [vmem:[%s3 + $0x7c4] sm:$0xff]
        %v4492 = vld [vmem:[%s3 + $0x7cc] sm:$0xff]
        %v4493 = vld [vmem:[%s3 + $0x7d4] sm:$0xff]
        %v4494 = vld [vmem:[%s3 + $0x7dc] sm:$0xf]
        %v4495 = vld [vmem:[%s3 + $0x7e0] sm:$0xff]
        %v4496 = vld [vmem:[%s3 + $0x7e8] sm:$0xff]
        %v4497 = vld [vmem:[%s3 + $0x7f0] sm:$0xff]
        %v4498 = vld [vmem:[%s3 + $0x7f8] sm:$0xf]
        %v4499 = vld [vmem:[%s3 + $0x7fc] sm:$0xff]
        %v4500 = vld [vmem:[%s3 + $0x804] sm:$0xff]
        %v4501 = vld [vmem:[%s3 + $0x80c] sm:$0xff]
        %v4502 = vld [vmem:[%s3 + $0x814] sm:$0xf]
        %v4503 = vld [vmem:[%s3 + $0x818] sm:$0xff]
        %v4504 = vld [vmem:[%s3 + $0x820] sm:$0xff]
        %v4505 = vld [vmem:[%s3 + $0x828] sm:$0xff]
        %v4506 = vld [vmem:[%s3 + $0x830] sm:$0xf]
        %v4507 = vld [vmem:[%s3 + $0x834] sm:$0xff]
        %v4508 = vld [vmem:[%s3 + $0x83c] sm:$0xff]
        %v4509 = vld [vmem:[%s3 + $0x844] sm:$0xff]
        %v4510 = vld [vmem:[%s3 + $0x84c] sm:$0xf]
        %v4511 = vld [vmem:[%s3 + $0x850] sm:$0xff]
        %v4512 = vld [vmem:[%s3 + $0x858] sm:$0xff]
        %v4513 = vld [vmem:[%s3 + $0x860] sm:$0xff]
        %v4514 = vld [vmem:[%s3 + $0x868] sm:$0xf]
        %v4515 = vld [vmem:[%s3 + $0x86c] sm:$0xff]
        %v4516 = vld [vmem:[%s3 + $0x874] sm:$0xff]
        %v4517 = vld [vmem:[%s3 + $0x87c] sm:$0xff]
        %v4518 = vld [vmem:[%s3 + $0x884] sm:$0xf]
        %v4519 = vld [vmem:[%s3 + $0x888] sm:$0xff]
        %v4520 = vld [vmem:[%s3 + $0x890] sm:$0xff]
        %v4521 = vld [vmem:[%s3 + $0x898] sm:$0xff]
        %v4522 = vld [vmem:[%s3 + $0x8a0] sm:$0xf]
        %v4523 = vld [vmem:[%s3 + $0x8a4] sm:$0xff]
        %v4524 = vld [vmem:[%s3 + $0x8ac] sm:$0xff]
        %v4525 = vld [vmem:[%s3 + $0x8b4] sm:$0xff]
        %v4526 = vld [vmem:[%s3 + $0x8bc] sm:$0xf]
        %v4527 = vld [vmem:[%s3 + $0x8c0] sm:$0xff]
        %v4528 = vld [vmem:[%s3 + $0x8c8] sm:$0xff]
        %v4529 = vld [vmem:[%s3 + $0x8d0] sm:$0xff]
        %v4530 = vld [vmem:[%s3 + $0x8d8] sm:$0xf]
        %v4531 = vld [vmem:[%s3 + $0x8dc] sm:$0xff]
        %v4532 = vld [vmem:[%s3 + $0x8e4] sm:$0xff]
        %v4533 = vld [vmem:[%s3 + $0x8ec] sm:$0xff]
        %v4534 = vld [vmem:[%s3 + $0x8f4] sm:$0xf]
        %v4535 = vld [vmem:[%s3 + $0x8f8] sm:$0xff]
        %v4536 = vld [vmem:[%s3 + $0x900] sm:$0xff]
        %v4537 = vld [vmem:[%s3 + $0x908] sm:$0xff]
        %v4538 = vld [vmem:[%s3 + $0x910] sm:$0xf]
        %v4539 = vld [vmem:[%s3 + $0x914] sm:$0xff]
        %v4540 = vld [vmem:[%s3 + $0x91c] sm:$0xff]
        %v4541 = vld [vmem:[%s3 + $0x924] sm:$0xff]
        %v4542 = vld [vmem:[%s3 + $0x92c] sm:$0xf]
        %v4543 = vld [vmem:[%s3 + $0x930] sm:$0xff]
        %v4544 = vld [vmem:[%s3 + $0x938] sm:$0xff]
        %v4545 = vld [vmem:[%s3 + $0x940] sm:$0xff]
        %v4546 = vld [vmem:[%s3 + $0x948] sm:$0xf]
        %v4547 = vld [vmem:[%s3 + $0x94c] sm:$0xff]
        %v4548 = vld [vmem:[%s3 + $0x954] sm:$0xff]
        %v4549 = vld [vmem:[%s3 + $0x95c] sm:$0xff]
        %v4550 = vld [vmem:[%s3 + $0x964] sm:$0xf]
        %v4551 = vld [vmem:[%s3 + $0x968] sm:$0xff]
        %v4552 = vld [vmem:[%s3 + $0x970] sm:$0xff]
        %v4553 = vld [vmem:[%s3 + $0x978] sm:$0xff]
        %v4554 = vld [vmem:[%s3 + $0x980] sm:$0xf]
        %v4555 = vld [vmem:[%s3 + $0x984] sm:$0xff]
        %v4556 = vld [vmem:[%s3 + $0x98c] sm:$0xff]
        %v4557 = vld [vmem:[%s3 + $0x994] sm:$0xff]
        %v4558 = vld [vmem:[%s3 + $0x99c] sm:$0xf]
        %v4559 = vld [vmem:[%s3 + $0x9a0] sm:$0xff]
        %v4560 = vld [vmem:[%s3 + $0x9a8] sm:$0xff]
        %v4561 = vld [vmem:[%s3 + $0x9b0] sm:$0xff]
        %v4562 = vld [vmem:[%s3 + $0x9b8] sm:$0xf]
        %v4563 = vld [vmem:[%s3 + $0x9bc] sm:$0xff]
        %v4564 = vld [vmem:[%s3 + $0x9c4] sm:$0xff]
        %v4565 = vld [vmem:[%s3 + $0x9cc] sm:$0xff]
        %v4566 = vld [vmem:[%s3 + $0x9d4] sm:$0xf]
        %v4567 = vld [vmem:[%s3 + $0x9d8] sm:$0xff]
        %v4568 = vld [vmem:[%s3 + $0x9e0] sm:$0xff]
        %v4569 = vld [vmem:[%s3 + $0x9e8] sm:$0xff]
        %v4570 = vld [vmem:[%s3 + $0x9f0] sm:$0xf]
        %v4571 = vld [vmem:[%s3 + $0x9f4] sm:$0xff]
        %v4572 = vld [vmem:[%s3 + $0x9fc] sm:$0xff]
        %v4573 = vld [vmem:[%s3 + $0xa04] sm:$0xff]
        %v4574 = vld [vmem:[%s3 + $0xa0c] sm:$0xf]
        %v4575 = vld [vmem:[%s3 + $0xa10] sm:$0xff]
        %v4576 = vld [vmem:[%s3 + $0xa18] sm:$0xff]
        %v4577 = vld [vmem:[%s3 + $0xa20] sm:$0xff]
        %v4578 = vld [vmem:[%s3 + $0xa28] sm:$0xf]
        %v4579 = vld [vmem:[%s3 + $0xa2c] sm:$0xff]
        %v4580 = vld [vmem:[%s3 + $0xa34] sm:$0xff]
        %v4581 = vld [vmem:[%s3 + $0xa3c] sm:$0xff]
        %v4582 = vld [vmem:[%s3 + $0xa44] sm:$0xf]
        %v4583 = vld [vmem:[%s3 + $0xa48] sm:$0xff]
        %v4584 = vld [vmem:[%s3 + $0xa50] sm:$0xff]
        %v4585 = vld [vmem:[%s3 + $0xa58] sm:$0xff]
        %v4586 = vld [vmem:[%s3 + $0xa60] sm:$0xf]
        %v4587 = vld [vmem:[%s3 + $0xa64] sm:$0xff]
        %v4588 = vld [vmem:[%s3 + $0xa6c] sm:$0xff]
        %v4589 = vld [vmem:[%s3 + $0xa74] sm:$0xff]
        %v4590 = vld [vmem:[%s3 + $0xa7c] sm:$0xf]
        %v4591 = vld [vmem:[%s3 + $0xa80] sm:$0xff]
        %v4592 = vld [vmem:[%s3 + $0xa88] sm:$0xff]
        %v4593 = vld [vmem:[%s3 + $0xa90] sm:$0xff]
        %v4594 = vld [vmem:[%s3 + $0xa98] sm:$0xf]
        %v4595 = vld [vmem:[%s3 + $0xa9c] sm:$0xff]
        %v4596 = vld [vmem:[%s3 + $0xaa4] sm:$0xff]
        %v4597 = vld [vmem:[%s3 + $0xaac] sm:$0xff]
        %v4598 = vld [vmem:[%s3 + $0xab4] sm:$0xf]
        %v4599 = vld [vmem:[%s3 + $0xab8] sm:$0xff]
        %v4600 = vld [vmem:[%s3 + $0xac0] sm:$0xff]
        %v4601 = vld [vmem:[%s3 + $0xac8] sm:$0xff]
        %v4602 = vld [vmem:[%s3 + $0xad0] sm:$0xf]
        %v4603 = vld [vmem:[%s3 + $0xad4] sm:$0xff]
        %v4604 = vld [vmem:[%s3 + $0xadc] sm:$0xff]
        %v4605 = vld [vmem:[%s3 + $0xae4] sm:$0xff]
        %v4606 = vld [vmem:[%s3 + $0xaec] sm:$0xf]
        %v4607 = vld [vmem:[%s3 + $0xaf0] sm:$0xff]
        %v4608 = vld [vmem:[%s3 + $0xaf8] sm:$0xff]
        %v4609 = vld [vmem:[%s3 + $0xb00] sm:$0xff]
        %v4610 = vld [vmem:[%s3 + $0xb08] sm:$0xf]
        %v4611 = vld [vmem:[%s3 + $0xb0c] sm:$0xff]
        %v4612 = vld [vmem:[%s3 + $0xb14] sm:$0xff]
        %v4613 = vld [vmem:[%s3 + $0xb1c] sm:$0xff]
        %v4614 = vld [vmem:[%s3 + $0xb24] sm:$0xf]
        %v4615 = vld [vmem:[%s3 + $0xb28] sm:$0xff]
        %v4616 = vld [vmem:[%s3 + $0xb30] sm:$0xff]
        %v4617 = vld [vmem:[%s3 + $0xb38] sm:$0xff]
        %v4618 = vld [vmem:[%s3 + $0xb40] sm:$0xf]
        %v4619 = vld [vmem:[%s3 + $0xb44] sm:$0xff]
        %v4620 = vld [vmem:[%s3 + $0xb4c] sm:$0xff]
        %v4621 = vld [vmem:[%s3 + $0xb54] sm:$0xff]
        %v4622 = vld [vmem:[%s3 + $0xb5c] sm:$0xf]
        %v4623 = vld [vmem:[%s3 + $0xb60] sm:$0xff]
        %v4624 = vld [vmem:[%s3 + $0xb68] sm:$0xff]
        %v4625 = vld [vmem:[%s3 + $0xb70] sm:$0xff]
        %v4626 = vld [vmem:[%s3 + $0xb78] sm:$0xf]
        %v4627 = vld [vmem:[%s3 + $0xb7c] sm:$0xff]
        %v4628 = vld [vmem:[%s3 + $0xb84] sm:$0xff]
        %v4629 = vld [vmem:[%s3 + $0xb8c] sm:$0xff]
        %v4630 = vld [vmem:[%s3 + $0xb94] sm:$0xf]
        %v4631 = vld [vmem:[%s3 + $0xb98] sm:$0xff]
        %v4632 = vld [vmem:[%s3 + $0xba0] sm:$0xff]
        %v4633 = vld [vmem:[%s3 + $0xba8] sm:$0xff]
        %v4634 = vld [vmem:[%s3 + $0xbb0] sm:$0xf]
        %v4635 = vld [vmem:[%s3 + $0xbb4] sm:$0xff]
        %v4636 = vld [vmem:[%s3 + $0xbbc] sm:$0xff]
        %v4637 = vld [vmem:[%s3 + $0xbc4] sm:$0xff]
        %v4638 = vld [vmem:[%s3 + $0xbcc] sm:$0xf]
        %v4639 = vld [vmem:[%s3 + $0xbd0] sm:$0xff]
        %v4640 = vld [vmem:[%s3 + $0xbd8] sm:$0xff]
        %v4641 = vld [vmem:[%s3 + $0xbe0] sm:$0xff]
        %v4642 = vld [vmem:[%s3 + $0xbe8] sm:$0xf]
        %v4643 = vld [vmem:[%s3 + $0xbec] sm:$0xff]
        %v4644 = vld [vmem:[%s3 + $0xbf4] sm:$0xff]
        %v4645 = vld [vmem:[%s3 + $0xbfc] sm:$0xff]
        %v4646 = vld [vmem:[%s3 + $0xc04] sm:$0xf]
        %v4647 = vld [vmem:[%s3 + $0xc08] sm:$0xff]
        %v4648 = vld [vmem:[%s3 + $0xc10] sm:$0xff]
        %v4649 = vld [vmem:[%s3 + $0xc18] sm:$0xff]
        %v4650 = vld [vmem:[%s3 + $0xc20] sm:$0xf]
        %v4651 = vld [vmem:[%s3 + $0xc24] sm:$0xff]
        %v4652 = vld [vmem:[%s3 + $0xc2c] sm:$0xff]
        %v4653 = vld [vmem:[%s3 + $0xc34] sm:$0xff]
        %v4654 = vld [vmem:[%s3 + $0xc3c] sm:$0xf]
        %v4655 = vld [vmem:[%s3 + $0xc40] sm:$0xff]
        %v4656 = vld [vmem:[%s3 + $0xc48] sm:$0xff]
        %v4657 = vld [vmem:[%s3 + $0xc50] sm:$0xff]
        %v4658 = vld [vmem:[%s3 + $0xc58] sm:$0xf]
        %v4659 = vld [vmem:[%s3 + $0xc5c] sm:$0xff]
        %v4660 = vld [vmem:[%s3 + $0xc64] sm:$0xff]
        %v4661 = vld [vmem:[%s3 + $0xc6c] sm:$0xff]
        %v4662 = vld [vmem:[%s3 + $0xc74] sm:$0xf]
        %v4663 = vld [vmem:[%s3 + $0xc78] sm:$0xff]
        %v4664 = vld [vmem:[%s3 + $0xc80] sm:$0xff]
        %v4665 = vld [vmem:[%s3 + $0xc88] sm:$0xff]
        %v4666 = vld [vmem:[%s3 + $0xc90] sm:$0xf]
        %v4667 = vld [vmem:[%s3 + $0xc94] sm:$0xff]
        %v4668 = vld [vmem:[%s3 + $0xc9c] sm:$0xff]
        %v4669 = vld [vmem:[%s3 + $0xca4] sm:$0xff]
        %v4670 = vld [vmem:[%s3 + $0xcac] sm:$0xf]
        %v4671 = vld [vmem:[%s3 + $0xcb0] sm:$0xff]
        %v4672 = vld [vmem:[%s3 + $0xcb8] sm:$0xff]
        %v4673 = vld [vmem:[%s3 + $0xcc0] sm:$0xff]
        %v4674 = vld [vmem:[%s3 + $0xcc8] sm:$0xf]
        %v4675 = vld [vmem:[%s3 + $0xccc] sm:$0xff]
        %v4676 = vld [vmem:[%s3 + $0xcd4] sm:$0xff]
        %v4677 = vld [vmem:[%s3 + $0xcdc] sm:$0xff]
        %v4678 = vld [vmem:[%s3 + $0xce4] sm:$0xf]
        %v4679 = vld [vmem:[%s3 + $0xce8] sm:$0xff]
        %v4680 = vld [vmem:[%s3 + $0xcf0] sm:$0xff]
        %v4681 = vld [vmem:[%s3 + $0xcf8] sm:$0xff]
        %v4682 = vld [vmem:[%s3 + $0xd00] sm:$0xf]
        %v4683 = vld [vmem:[%s3 + $0xd04] sm:$0xff]
        %v4684 = vld [vmem:[%s3 + $0xd0c] sm:$0xff]
        %v4685 = vld [vmem:[%s3 + $0xd14] sm:$0xff]
        %v4686 = vld [vmem:[%s3 + $0xd1c] sm:$0xf]
        %v4687 = vld [vmem:[%s3 + $0xd20] sm:$0xff]
        %v4688 = vld [vmem:[%s3 + $0xd28] sm:$0xff]
        %v4689 = vld [vmem:[%s3 + $0xd30] sm:$0xff]
        %v4690 = vld [vmem:[%s3 + $0xd38] sm:$0xf]
        %v4691 = vld [vmem:[%s3 + $0xd3c] sm:$0xff]
        %v4692 = vld [vmem:[%s3 + $0xd44] sm:$0xff]
        %v4693 = vld [vmem:[%s3 + $0xd4c] sm:$0xff]
        %v4694 = vld [vmem:[%s3 + $0xd54] sm:$0xf]
        %v4695 = vld [vmem:[%s3 + $0xd58] sm:$0xff]
        %v4696 = vld [vmem:[%s3 + $0xd60] sm:$0xff]
        %v4697 = vld [vmem:[%s3 + $0xd68] sm:$0xff]
        %v4698 = vld [vmem:[%s3 + $0xd70] sm:$0xf]
        %v4699 = vld [vmem:[%s3 + $0xd74] sm:$0xff]
        %v4700 = vld [vmem:[%s3 + $0xd7c] sm:$0xff]
        %v4701 = vld [vmem:[%s3 + $0xd84] sm:$0xff]
        %v4702 = vld [vmem:[%s3 + $0xd8c] sm:$0xf]
        %v4703 = vld [vmem:[%s3 + $0xd90] sm:$0xff]
        %v4704 = vld [vmem:[%s3 + $0xd98] sm:$0xff]
        %v4705 = vld [vmem:[%s3 + $0xda0] sm:$0xff]
        %v4706 = vld [vmem:[%s3 + $0xda8] sm:$0xf]
        %v4707 = vld [vmem:[%s3 + $0xdac] sm:$0xff]
        %v4708 = vld [vmem:[%s3 + $0xdb4] sm:$0xff]
        %v4709 = vld [vmem:[%s3 + $0xdbc] sm:$0xff]
        %v4710 = vld [vmem:[%s3 + $0xdc4] sm:$0xf]
        %v4711 = vld [vmem:[%s3 + $0xdc8] sm:$0xff]
        %v4712 = vld [vmem:[%s3 + $0xdd0] sm:$0xff]
        %v4713 = vld [vmem:[%s3 + $0xdd8] sm:$0xff]
        %v4714 = vld [vmem:[%s3 + $0xde0] sm:$0xf]
        %v4715 = vld [vmem:[%s3 + $0xde4] sm:$0xff]
        %v4716 = vld [vmem:[%s3 + $0xdec] sm:$0xff]
        %v4717 = vld [vmem:[%s3 + $0xdf4] sm:$0xff]
        %v4718 = vld [vmem:[%s3 + $0xdfc] sm:$0xf]
        %v4719 = vld [vmem:[%s4] sm:$0xff]
        %v4721 = vlaneseq
        %v4722 = vshrl.u32 %v4721, 7
        %v4723 = vsub.s32 0, %v4722
        %v4724 = vrot.slane %v4719, %v4723
        %v4725 = vlaneseq
        %v4726 = vshrl.u32 %v4725, 7
        %v4727 = vsub.s32 1, %v4726
        %v4728 = vrot.slane %v4719, %v4727
        %v4729 = vlaneseq
        %v4730 = vshrl.u32 %v4729, 7
        %v4731 = vsub.s32 2, %v4730
        %v4732 = vrot.slane %v4719, %v4731
        %v4733 = vlaneseq
        %v4734 = vshrl.u32 %v4733, 7
        %v4735 = vsub.s32 3, %v4734
        %v4736 = vrot.slane %v4719, %v4735
        %v4737 = vlaneseq
        %v4738 = vshrl.u32 %v4737, 7
        %v4739 = vsub.s32 4, %v4738
        %v4740 = vrot.slane %v4719, %v4739
        %v4741 = vlaneseq
        %v4742 = vshrl.u32 %v4741, 7
        %v4743 = vsub.s32 5, %v4742
        %v4744 = vrot.slane %v4719, %v4743
        %v4745 = vlaneseq
        %v4746 = vshrl.u32 %v4745, 7
        %v4747 = vsub.s32 6, %v4746
        %v4748 = vrot.slane %v4719, %v4747
        %v5268 = vunpack.c.l.b16 %v4207
        %v5269 = vunpack.c.h.b16 %v4207
        %v5270 = vunpack.c.l.b16 %v4208
        %v5271 = vunpack.c.h.b16 %v4208
        %v5272 = vunpack.c.l.b16 %v4209
        %v5273 = vunpack.c.h.b16 %v4209
        %v5274 = vunpack.c.l.b16 %v4210
        %v5275 = vunpack.c.l.b16 %v4211
        %v5276 = vunpack.c.h.b16 %v4211
        %v5277 = vunpack.c.l.b16 %v4212
        %v5278 = vunpack.c.h.b16 %v4212
        %v5279 = vunpack.c.l.b16 %v4213
        %v5280 = vunpack.c.h.b16 %v4213
        %v5281 = vunpack.c.l.b16 %v4214
        %v5282 = vunpack.c.l.b16 %v4215
        %v5283 = vunpack.c.h.b16 %v4215
        %v5284 = vunpack.c.l.b16 %v4216
        %v5285 = vunpack.c.h.b16 %v4216
        %v5286 = vunpack.c.l.b16 %v4217
        %v5287 = vunpack.c.h.b16 %v4217
        %v5288 = vunpack.c.l.b16 %v4218
        %v5289 = vunpack.c.l.b16 %v4219
        %v5290 = vunpack.c.h.b16 %v4219
        %v5291 = vunpack.c.l.b16 %v4220
        %v5292 = vunpack.c.h.b16 %v4220
        %v5293 = vunpack.c.l.b16 %v4221
        %v5294 = vunpack.c.h.b16 %v4221
        %v5295 = vunpack.c.l.b16 %v4222
        %v5296 = vunpack.c.l.b16 %v4223
        %v5297 = vunpack.c.h.b16 %v4223
        %v5298 = vunpack.c.l.b16 %v4224
        %v5299 = vunpack.c.h.b16 %v4224
        %v5300 = vunpack.c.l.b16 %v4225
        %v5301 = vunpack.c.h.b16 %v4225
        %v5302 = vunpack.c.l.b16 %v4226
        %v5303 = vunpack.c.l.b16 %v4227
        %v5304 = vunpack.c.h.b16 %v4227
        %v5305 = vunpack.c.l.b16 %v4228
        %v5306 = vunpack.c.h.b16 %v4228
        %v5307 = vunpack.c.l.b16 %v4229
        %v5308 = vunpack.c.h.b16 %v4229
        %v5309 = vunpack.c.l.b16 %v4230
        %v5310 = vunpack.c.l.b16 %v4231
        %v5311 = vunpack.c.h.b16 %v4231
        %v5312 = vunpack.c.l.b16 %v4232
        %v5313 = vunpack.c.h.b16 %v4232
        %v5314 = vunpack.c.l.b16 %v4233
        %v5315 = vunpack.c.h.b16 %v4233
        %v5316 = vunpack.c.l.b16 %v4234
        %v5317 = vunpack.c.l.b16 %v4235
        %v5318 = vunpack.c.h.b16 %v4235
        %v5319 = vunpack.c.l.b16 %v4236
        %v5320 = vunpack.c.h.b16 %v4236
        %v5321 = vunpack.c.l.b16 %v4237
        %v5322 = vunpack.c.h.b16 %v4237
        %v5323 = vunpack.c.l.b16 %v4238
        %v5324 = vunpack.c.l.b16 %v4239
        %v5325 = vunpack.c.h.b16 %v4239
        %v5326 = vunpack.c.l.b16 %v4240
        %v5327 = vunpack.c.h.b16 %v4240
        %v5328 = vunpack.c.l.b16 %v4241
        %v5329 = vunpack.c.h.b16 %v4241
        %v5330 = vunpack.c.l.b16 %v4242
        %v5331 = vunpack.c.l.b16 %v4243
        %v5332 = vunpack.c.h.b16 %v4243
        %v5333 = vunpack.c.l.b16 %v4244
        %v5334 = vunpack.c.h.b16 %v4244
        %v5335 = vunpack.c.l.b16 %v4245
        %v5336 = vunpack.c.h.b16 %v4245
        %v5337 = vunpack.c.l.b16 %v4246
        %v5338 = vunpack.c.l.b16 %v4247
        %v5339 = vunpack.c.h.b16 %v4247
        %v5340 = vunpack.c.l.b16 %v4248
        %v5341 = vunpack.c.h.b16 %v4248
        %v5342 = vunpack.c.l.b16 %v4249
        %v5343 = vunpack.c.h.b16 %v4249
        %v5344 = vunpack.c.l.b16 %v4250
        %v5345 = vunpack.c.l.b16 %v4251
        %v5346 = vunpack.c.h.b16 %v4251
        %v5347 = vunpack.c.l.b16 %v4252
        %v5348 = vunpack.c.h.b16 %v4252
        %v5349 = vunpack.c.l.b16 %v4253
        %v5350 = vunpack.c.h.b16 %v4253
        %v5351 = vunpack.c.l.b16 %v4254
        %v5352 = vunpack.c.l.b16 %v4255
        %v5353 = vunpack.c.h.b16 %v4255
        %v5354 = vunpack.c.l.b16 %v4256
        %v5355 = vunpack.c.h.b16 %v4256
        %v5356 = vunpack.c.l.b16 %v4257
        %v5357 = vunpack.c.h.b16 %v4257
        %v5358 = vunpack.c.l.b16 %v4258
        %v5359 = vunpack.c.l.b16 %v4259
        %v5360 = vunpack.c.h.b16 %v4259
        %v5361 = vunpack.c.l.b16 %v4260
        %v5362 = vunpack.c.h.b16 %v4260
        %v5363 = vunpack.c.l.b16 %v4261
        %v5364 = vunpack.c.h.b16 %v4261
        %v5365 = vunpack.c.l.b16 %v4262
        %v5366 = vunpack.c.l.b16 %v4263
        %v5367 = vunpack.c.h.b16 %v4263
        %v5368 = vunpack.c.l.b16 %v4264
        %v5369 = vunpack.c.h.b16 %v4264
        %v5370 = vunpack.c.l.b16 %v4265
        %v5371 = vunpack.c.h.b16 %v4265
        %v5372 = vunpack.c.l.b16 %v4266
        %v5373 = vunpack.c.l.b16 %v4267
        %v5374 = vunpack.c.h.b16 %v4267
        %v5375 = vunpack.c.l.b16 %v4268
        %v5376 = vunpack.c.h.b16 %v4268
        %v5377 = vunpack.c.l.b16 %v4269
        %v5378 = vunpack.c.h.b16 %v4269
        %v5379 = vunpack.c.l.b16 %v4270
        %v5380 = vunpack.c.l.b16 %v4271
        %v5381 = vunpack.c.h.b16 %v4271
        %v5382 = vunpack.c.l.b16 %v4272
        %v5383 = vunpack.c.h.b16 %v4272
        %v5384 = vunpack.c.l.b16 %v4273
        %v5385 = vunpack.c.h.b16 %v4273
        %v5386 = vunpack.c.l.b16 %v4274
        %v5387 = vunpack.c.l.b16 %v4275
        %v5388 = vunpack.c.h.b16 %v4275
        %v5389 = vunpack.c.l.b16 %v4276
        %v5390 = vunpack.c.h.b16 %v4276
        %v5391 = vunpack.c.l.b16 %v4277
        %v5392 = vunpack.c.h.b16 %v4277
        %v5393 = vunpack.c.l.b16 %v4278
        %v5394 = vunpack.c.l.b16 %v4279
        %v5395 = vunpack.c.h.b16 %v4279
        %v5396 = vunpack.c.l.b16 %v4280
        %v5397 = vunpack.c.h.b16 %v4280
        %v5398 = vunpack.c.l.b16 %v4281
        %v5399 = vunpack.c.h.b16 %v4281
        %v5400 = vunpack.c.l.b16 %v4282
        %v5401 = vunpack.c.l.b16 %v4283
        %v5402 = vunpack.c.h.b16 %v4283
        %v5403 = vunpack.c.l.b16 %v4284
        %v5404 = vunpack.c.h.b16 %v4284
        %v5405 = vunpack.c.l.b16 %v4285
        %v5406 = vunpack.c.h.b16 %v4285
        %v5407 = vunpack.c.l.b16 %v4286
        %v5408 = vunpack.c.l.b16 %v4287
        %v5409 = vunpack.c.h.b16 %v4287
        %v5410 = vunpack.c.l.b16 %v4288
        %v5411 = vunpack.c.h.b16 %v4288
        %v5412 = vunpack.c.l.b16 %v4289
        %v5413 = vunpack.c.h.b16 %v4289
        %v5414 = vunpack.c.l.b16 %v4290
        %v5415 = vunpack.c.l.b16 %v4291
        %v5416 = vunpack.c.h.b16 %v4291
        %v5417 = vunpack.c.l.b16 %v4292
        %v5418 = vunpack.c.h.b16 %v4292
        %v5419 = vunpack.c.l.b16 %v4293
        %v5420 = vunpack.c.h.b16 %v4293
        %v5421 = vunpack.c.l.b16 %v4294
        %v5422 = vunpack.c.l.b16 %v4295
        %v5423 = vunpack.c.h.b16 %v4295
        %v5424 = vunpack.c.l.b16 %v4296
        %v5425 = vunpack.c.h.b16 %v4296
        %v5426 = vunpack.c.l.b16 %v4297
        %v5427 = vunpack.c.h.b16 %v4297
        %v5428 = vunpack.c.l.b16 %v4298
        %v5429 = vunpack.c.l.b16 %v4299
        %v5430 = vunpack.c.h.b16 %v4299
        %v5431 = vunpack.c.l.b16 %v4300
        %v5432 = vunpack.c.h.b16 %v4300
        %v5433 = vunpack.c.l.b16 %v4301
        %v5434 = vunpack.c.h.b16 %v4301
        %v5435 = vunpack.c.l.b16 %v4302
        %v5436 = vunpack.c.l.b16 %v4303
        %v5437 = vunpack.c.h.b16 %v4303
        %v5438 = vunpack.c.l.b16 %v4304
        %v5439 = vunpack.c.h.b16 %v4304
        %v5440 = vunpack.c.l.b16 %v4305
        %v5441 = vunpack.c.h.b16 %v4305
        %v5442 = vunpack.c.l.b16 %v4306
        %v5443 = vunpack.c.l.b16 %v4307
        %v5444 = vunpack.c.h.b16 %v4307
        %v5445 = vunpack.c.l.b16 %v4308
        %v5446 = vunpack.c.h.b16 %v4308
        %v5447 = vunpack.c.l.b16 %v4309
        %v5448 = vunpack.c.h.b16 %v4309
        %v5449 = vunpack.c.l.b16 %v4310
        %v5450 = vunpack.c.l.b16 %v4311
        %v5451 = vunpack.c.h.b16 %v4311
        %v5452 = vunpack.c.l.b16 %v4312
        %v5453 = vunpack.c.h.b16 %v4312
        %v5454 = vunpack.c.l.b16 %v4313
        %v5455 = vunpack.c.h.b16 %v4313
        %v5456 = vunpack.c.l.b16 %v4314
        %v5457 = vunpack.c.l.b16 %v4315
        %v5458 = vunpack.c.h.b16 %v4315
        %v5459 = vunpack.c.l.b16 %v4316
        %v5460 = vunpack.c.h.b16 %v4316
        %v5461 = vunpack.c.l.b16 %v4317
        %v5462 = vunpack.c.h.b16 %v4317
        %v5463 = vunpack.c.l.b16 %v4318
        %v5464 = vunpack.c.l.b16 %v4319
        %v5465 = vunpack.c.h.b16 %v4319
        %v5466 = vunpack.c.l.b16 %v4320
        %v5467 = vunpack.c.h.b16 %v4320
        %v5468 = vunpack.c.l.b16 %v4321
        %v5469 = vunpack.c.h.b16 %v4321
        %v5470 = vunpack.c.l.b16 %v4322
        %v5471 = vunpack.c.l.b16 %v4323
        %v5472 = vunpack.c.h.b16 %v4323
        %v5473 = vunpack.c.l.b16 %v4324
        %v5474 = vunpack.c.h.b16 %v4324
        %v5475 = vunpack.c.l.b16 %v4325
        %v5476 = vunpack.c.h.b16 %v4325
        %v5477 = vunpack.c.l.b16 %v4326
        %v5478 = vunpack.c.l.b16 %v4327
        %v5479 = vunpack.c.h.b16 %v4327
        %v5480 = vunpack.c.l.b16 %v4328
        %v5481 = vunpack.c.h.b16 %v4328
        %v5482 = vunpack.c.l.b16 %v4329
        %v5483 = vunpack.c.h.b16 %v4329
        %v5484 = vunpack.c.l.b16 %v4330
        %v5485 = vunpack.c.l.b16 %v4331
        %v5486 = vunpack.c.h.b16 %v4331
        %v5487 = vunpack.c.l.b16 %v4332
        %v5488 = vunpack.c.h.b16 %v4332
        %v5489 = vunpack.c.l.b16 %v4333
        %v5490 = vunpack.c.h.b16 %v4333
        %v5491 = vunpack.c.l.b16 %v4334
        %v5492 = vunpack.c.l.b16 %v4335
        %v5493 = vunpack.c.h.b16 %v4335
        %v5494 = vunpack.c.l.b16 %v4336
        %v5495 = vunpack.c.h.b16 %v4336
        %v5496 = vunpack.c.l.b16 %v4337
        %v5497 = vunpack.c.h.b16 %v4337
        %v5498 = vunpack.c.l.b16 %v4338
        %v5499 = vunpack.c.l.b16 %v4339
        %v5500 = vunpack.c.h.b16 %v4339
        %v5501 = vunpack.c.l.b16 %v4340
        %v5502 = vunpack.c.h.b16 %v4340
        %v5503 = vunpack.c.l.b16 %v4341
        %v5504 = vunpack.c.h.b16 %v4341
        %v5505 = vunpack.c.l.b16 %v4342
        %v5506 = vunpack.c.l.b16 %v4343
        %v5507 = vunpack.c.h.b16 %v4343
        %v5508 = vunpack.c.l.b16 %v4344
        %v5509 = vunpack.c.h.b16 %v4344
        %v5510 = vunpack.c.l.b16 %v4345
        %v5511 = vunpack.c.h.b16 %v4345
        %v5512 = vunpack.c.l.b16 %v4346
        %v5513 = vunpack.c.l.b16 %v4347
        %v5514 = vunpack.c.h.b16 %v4347
        %v5515 = vunpack.c.l.b16 %v4348
        %v5516 = vunpack.c.h.b16 %v4348
        %v5517 = vunpack.c.l.b16 %v4349
        %v5518 = vunpack.c.h.b16 %v4349
        %v5519 = vunpack.c.l.b16 %v4350
        %v5520 = vunpack.c.l.b16 %v4351
        %v5521 = vunpack.c.h.b16 %v4351
        %v5522 = vunpack.c.l.b16 %v4352
        %v5523 = vunpack.c.h.b16 %v4352
        %v5524 = vunpack.c.l.b16 %v4353
        %v5525 = vunpack.c.h.b16 %v4353
        %v5526 = vunpack.c.l.b16 %v4354
        %v5527 = vunpack.c.l.b16 %v4355
        %v5528 = vunpack.c.h.b16 %v4355
        %v5529 = vunpack.c.l.b16 %v4356
        %v5530 = vunpack.c.h.b16 %v4356
        %v5531 = vunpack.c.l.b16 %v4357
        %v5532 = vunpack.c.h.b16 %v4357
        %v5533 = vunpack.c.l.b16 %v4358
        %v5534 = vunpack.c.l.b16 %v4359
        %v5535 = vunpack.c.h.b16 %v4359
        %v5536 = vunpack.c.l.b16 %v4360
        %v5537 = vunpack.c.h.b16 %v4360
        %v5538 = vunpack.c.l.b16 %v4361
        %v5539 = vunpack.c.h.b16 %v4361
        %v5540 = vunpack.c.l.b16 %v4362
        %v5541 = vunpack.c.l.b16 %v4363
        %v5542 = vunpack.c.h.b16 %v4363
        %v5543 = vunpack.c.l.b16 %v4364
        %v5544 = vunpack.c.h.b16 %v4364
        %v5545 = vunpack.c.l.b16 %v4365
        %v5546 = vunpack.c.h.b16 %v4365
        %v5547 = vunpack.c.l.b16 %v4366
        %v5548 = vunpack.c.l.b16 %v4367
        %v5549 = vunpack.c.h.b16 %v4367
        %v5550 = vunpack.c.l.b16 %v4368
        %v5551 = vunpack.c.h.b16 %v4368
        %v5552 = vunpack.c.l.b16 %v4369
        %v5553 = vunpack.c.h.b16 %v4369
        %v5554 = vunpack.c.l.b16 %v4370
        %v5555 = vunpack.c.l.b16 %v4371
        %v5556 = vunpack.c.h.b16 %v4371
        %v5557 = vunpack.c.l.b16 %v4372
        %v5558 = vunpack.c.h.b16 %v4372
        %v5559 = vunpack.c.l.b16 %v4373
        %v5560 = vunpack.c.h.b16 %v4373
        %v5561 = vunpack.c.l.b16 %v4374
        %v5562 = vunpack.c.l.b16 %v4375
        %v5563 = vunpack.c.h.b16 %v4375
        %v5564 = vunpack.c.l.b16 %v4376
        %v5565 = vunpack.c.h.b16 %v4376
        %v5566 = vunpack.c.l.b16 %v4377
        %v5567 = vunpack.c.h.b16 %v4377
        %v5568 = vunpack.c.l.b16 %v4378
        %v5569 = vunpack.c.l.b16 %v4379
        %v5570 = vunpack.c.h.b16 %v4379
        %v5571 = vunpack.c.l.b16 %v4380
        %v5572 = vunpack.c.h.b16 %v4380
        %v5573 = vunpack.c.l.b16 %v4381
        %v5574 = vunpack.c.h.b16 %v4381
        %v5575 = vunpack.c.l.b16 %v4382
        %v5576 = vunpack.c.l.b16 %v4383
        %v5577 = vunpack.c.h.b16 %v4383
        %v5578 = vunpack.c.l.b16 %v4384
        %v5579 = vunpack.c.h.b16 %v4384
        %v5580 = vunpack.c.l.b16 %v4385
        %v5581 = vunpack.c.h.b16 %v4385
        %v5582 = vunpack.c.l.b16 %v4386
        %v5583 = vunpack.c.l.b16 %v4387
        %v5584 = vunpack.c.h.b16 %v4387
        %v5585 = vunpack.c.l.b16 %v4388
        %v5586 = vunpack.c.h.b16 %v4388
        %v5587 = vunpack.c.l.b16 %v4389
        %v5588 = vunpack.c.h.b16 %v4389
        %v5589 = vunpack.c.l.b16 %v4390
        %v5590 = vunpack.c.l.b16 %v4391
        %v5591 = vunpack.c.h.b16 %v4391
        %v5592 = vunpack.c.l.b16 %v4392
        %v5593 = vunpack.c.h.b16 %v4392
        %v5594 = vunpack.c.l.b16 %v4393
        %v5595 = vunpack.c.h.b16 %v4393
        %v5596 = vunpack.c.l.b16 %v4394
        %v5597 = vunpack.c.l.b16 %v4395
        %v5598 = vunpack.c.h.b16 %v4395
        %v5599 = vunpack.c.l.b16 %v4396
        %v5600 = vunpack.c.h.b16 %v4396
        %v5601 = vunpack.c.l.b16 %v4397
        %v5602 = vunpack.c.h.b16 %v4397
        %v5603 = vunpack.c.l.b16 %v4398
        %v5604 = vunpack.c.l.b16 %v4399
        %v5605 = vunpack.c.h.b16 %v4399
        %v5606 = vunpack.c.l.b16 %v4400
        %v5607 = vunpack.c.h.b16 %v4400
        %v5608 = vunpack.c.l.b16 %v4401
        %v5609 = vunpack.c.h.b16 %v4401
        %v5610 = vunpack.c.l.b16 %v4402
        %v5611 = vunpack.c.l.b16 %v4403
        %v5612 = vunpack.c.h.b16 %v4403
        %v5613 = vunpack.c.l.b16 %v4404
        %v5614 = vunpack.c.h.b16 %v4404
        %v5615 = vunpack.c.l.b16 %v4405
        %v5616 = vunpack.c.h.b16 %v4405
        %v5617 = vunpack.c.l.b16 %v4406
        %v5618 = vunpack.c.l.b16 %v4407
        %v5619 = vunpack.c.h.b16 %v4407
        %v5620 = vunpack.c.l.b16 %v4408
        %v5621 = vunpack.c.h.b16 %v4408
        %v5622 = vunpack.c.l.b16 %v4409
        %v5623 = vunpack.c.h.b16 %v4409
        %v5624 = vunpack.c.l.b16 %v4410
        %v5625 = vunpack.c.l.b16 %v4411
        %v5626 = vunpack.c.h.b16 %v4411
        %v5627 = vunpack.c.l.b16 %v4412
        %v5628 = vunpack.c.h.b16 %v4412
        %v5629 = vunpack.c.l.b16 %v4413
        %v5630 = vunpack.c.h.b16 %v4413
        %v5631 = vunpack.c.l.b16 %v4414
        %v5632 = vunpack.c.l.b16 %v4415
        %v5633 = vunpack.c.h.b16 %v4415
        %v5634 = vunpack.c.l.b16 %v4416
        %v5635 = vunpack.c.h.b16 %v4416
        %v5636 = vunpack.c.l.b16 %v4417
        %v5637 = vunpack.c.h.b16 %v4417
        %v5638 = vunpack.c.l.b16 %v4418
        %v5639 = vunpack.c.l.b16 %v4419
        %v5640 = vunpack.c.h.b16 %v4419
        %v5641 = vunpack.c.l.b16 %v4420
        %v5642 = vunpack.c.h.b16 %v4420
        %v5643 = vunpack.c.l.b16 %v4421
        %v5644 = vunpack.c.h.b16 %v4421
        %v5645 = vunpack.c.l.b16 %v4422
        %v5646 = vunpack.c.l.b16 %v4423
        %v5647 = vunpack.c.h.b16 %v4423
        %v5648 = vunpack.c.l.b16 %v4424
        %v5649 = vunpack.c.h.b16 %v4424
        %v5650 = vunpack.c.l.b16 %v4425
        %v5651 = vunpack.c.h.b16 %v4425
        %v5652 = vunpack.c.l.b16 %v4426
        %v5653 = vunpack.c.l.b16 %v4427
        %v5654 = vunpack.c.h.b16 %v4427
        %v5655 = vunpack.c.l.b16 %v4428
        %v5656 = vunpack.c.h.b16 %v4428
        %v5657 = vunpack.c.l.b16 %v4429
        %v5658 = vunpack.c.h.b16 %v4429
        %v5659 = vunpack.c.l.b16 %v4430
        %v5660 = vunpack.c.l.b16 %v4431
        %v5661 = vunpack.c.h.b16 %v4431
        %v5662 = vunpack.c.l.b16 %v4432
        %v5663 = vunpack.c.h.b16 %v4432
        %v5664 = vunpack.c.l.b16 %v4433
        %v5665 = vunpack.c.h.b16 %v4433
        %v5666 = vunpack.c.l.b16 %v4434
        %v5667 = vunpack.c.l.b16 %v4435
        %v5668 = vunpack.c.h.b16 %v4435
        %v5669 = vunpack.c.l.b16 %v4436
        %v5670 = vunpack.c.h.b16 %v4436
        %v5671 = vunpack.c.l.b16 %v4437
        %v5672 = vunpack.c.h.b16 %v4437
        %v5673 = vunpack.c.l.b16 %v4438
        %v5674 = vunpack.c.l.b16 %v4439
        %v5675 = vunpack.c.h.b16 %v4439
        %v5676 = vunpack.c.l.b16 %v4440
        %v5677 = vunpack.c.h.b16 %v4440
        %v5678 = vunpack.c.l.b16 %v4441
        %v5679 = vunpack.c.h.b16 %v4441
        %v5680 = vunpack.c.l.b16 %v4442
        %v5681 = vunpack.c.l.b16 %v4443
        %v5682 = vunpack.c.h.b16 %v4443
        %v5683 = vunpack.c.l.b16 %v4444
        %v5684 = vunpack.c.h.b16 %v4444
        %v5685 = vunpack.c.l.b16 %v4445
        %v5686 = vunpack.c.h.b16 %v4445
        %v5687 = vunpack.c.l.b16 %v4446
        %v5688 = vunpack.c.l.b16 %v4447
        %v5689 = vunpack.c.h.b16 %v4447
        %v5690 = vunpack.c.l.b16 %v4448
        %v5691 = vunpack.c.h.b16 %v4448
        %v5692 = vunpack.c.l.b16 %v4449
        %v5693 = vunpack.c.h.b16 %v4449
        %v5694 = vunpack.c.l.b16 %v4450
        %v5695 = vunpack.c.l.b16 %v4451
        %v5696 = vunpack.c.h.b16 %v4451
        %v5697 = vunpack.c.l.b16 %v4452
        %v5698 = vunpack.c.h.b16 %v4452
        %v5699 = vunpack.c.l.b16 %v4453
        %v5700 = vunpack.c.h.b16 %v4453
        %v5701 = vunpack.c.l.b16 %v4454
        %v5702 = vunpack.c.l.b16 %v4455
        %v5703 = vunpack.c.h.b16 %v4455
        %v5704 = vunpack.c.l.b16 %v4456
        %v5705 = vunpack.c.h.b16 %v4456
        %v5706 = vunpack.c.l.b16 %v4457
        %v5707 = vunpack.c.h.b16 %v4457
        %v5708 = vunpack.c.l.b16 %v4458
        %v5709 = vunpack.c.l.b16 %v4459
        %v5710 = vunpack.c.h.b16 %v4459
        %v5711 = vunpack.c.l.b16 %v4460
        %v5712 = vunpack.c.h.b16 %v4460
        %v5713 = vunpack.c.l.b16 %v4461
        %v5714 = vunpack.c.h.b16 %v4461
        %v5715 = vunpack.c.l.b16 %v4462
        %v5716 = vunpack.c.l.b16 %v4463
        %v5717 = vunpack.c.h.b16 %v4463
        %v5718 = vunpack.c.l.b16 %v4464
        %v5719 = vunpack.c.h.b16 %v4464
        %v5720 = vunpack.c.l.b16 %v4465
        %v5721 = vunpack.c.h.b16 %v4465
        %v5722 = vunpack.c.l.b16 %v4466
        %v5723 = vunpack.c.l.b16 %v4467
        %v5724 = vunpack.c.h.b16 %v4467
        %v5725 = vunpack.c.l.b16 %v4468
        %v5726 = vunpack.c.h.b16 %v4468
        %v5727 = vunpack.c.l.b16 %v4469
        %v5728 = vunpack.c.h.b16 %v4469
        %v5729 = vunpack.c.l.b16 %v4470
        %v5730 = vunpack.c.l.b16 %v4471
        %v5731 = vunpack.c.h.b16 %v4471
        %v5732 = vunpack.c.l.b16 %v4472
        %v5733 = vunpack.c.h.b16 %v4472
        %v5734 = vunpack.c.l.b16 %v4473
        %v5735 = vunpack.c.h.b16 %v4473
        %v5736 = vunpack.c.l.b16 %v4474
        %v5737 = vunpack.c.l.b16 %v4475
        %v5738 = vunpack.c.h.b16 %v4475
        %v5739 = vunpack.c.l.b16 %v4476
        %v5740 = vunpack.c.h.b16 %v4476
        %v5741 = vunpack.c.l.b16 %v4477
        %v5742 = vunpack.c.h.b16 %v4477
        %v5743 = vunpack.c.l.b16 %v4478
        %v5744 = vunpack.c.l.b16 %v4479
        %v5745 = vunpack.c.h.b16 %v4479
        %v5746 = vunpack.c.l.b16 %v4480
        %v5747 = vunpack.c.h.b16 %v4480
        %v5748 = vunpack.c.l.b16 %v4481
        %v5749 = vunpack.c.h.b16 %v4481
        %v5750 = vunpack.c.l.b16 %v4482
        %v5751 = vunpack.c.l.b16 %v4483
        %v5752 = vunpack.c.h.b16 %v4483
        %v5753 = vunpack.c.l.b16 %v4484
        %v5754 = vunpack.c.h.b16 %v4484
        %v5755 = vunpack.c.l.b16 %v4485
        %v5756 = vunpack.c.h.b16 %v4485
        %v5757 = vunpack.c.l.b16 %v4486
        %v5758 = vunpack.c.l.b16 %v4487
        %v5759 = vunpack.c.h.b16 %v4487
        %v5760 = vunpack.c.l.b16 %v4488
        %v5761 = vunpack.c.h.b16 %v4488
        %v5762 = vunpack.c.l.b16 %v4489
        %v5763 = vunpack.c.h.b16 %v4489
        %v5764 = vunpack.c.l.b16 %v4490
        %v5765 = vunpack.c.l.b16 %v4491
        %v5766 = vunpack.c.h.b16 %v4491
        %v5767 = vunpack.c.l.b16 %v4492
        %v5768 = vunpack.c.h.b16 %v4492
        %v5769 = vunpack.c.l.b16 %v4493
        %v5770 = vunpack.c.h.b16 %v4493
        %v5771 = vunpack.c.l.b16 %v4494
        %v5772 = vunpack.c.l.b16 %v4495
        %v5773 = vunpack.c.h.b16 %v4495
        %v5774 = vunpack.c.l.b16 %v4496
        %v5775 = vunpack.c.h.b16 %v4496
        %v5776 = vunpack.c.l.b16 %v4497
        %v5777 = vunpack.c.h.b16 %v4497
        %v5778 = vunpack.c.l.b16 %v4498
        %v5779 = vunpack.c.l.b16 %v4499
        %v5780 = vunpack.c.h.b16 %v4499
        %v5781 = vunpack.c.l.b16 %v4500
        %v5782 = vunpack.c.h.b16 %v4500
        %v5783 = vunpack.c.l.b16 %v4501
        %v5784 = vunpack.c.h.b16 %v4501
        %v5785 = vunpack.c.l.b16 %v4502
        %v5786 = vunpack.c.l.b16 %v4503
        %v5787 = vunpack.c.h.b16 %v4503
        %v5788 = vunpack.c.l.b16 %v4504
        %v5789 = vunpack.c.h.b16 %v4504
        %v5790 = vunpack.c.l.b16 %v4505
        %v5791 = vunpack.c.h.b16 %v4505
        %v5792 = vunpack.c.l.b16 %v4506
        %v5793 = vunpack.c.l.b16 %v4507
        %v5794 = vunpack.c.h.b16 %v4507
        %v5795 = vunpack.c.l.b16 %v4508
        %v5796 = vunpack.c.h.b16 %v4508
        %v5797 = vunpack.c.l.b16 %v4509
        %v5798 = vunpack.c.h.b16 %v4509
        %v5799 = vunpack.c.l.b16 %v4510
        %v5800 = vunpack.c.l.b16 %v4511
        %v5801 = vunpack.c.h.b16 %v4511
        %v5802 = vunpack.c.l.b16 %v4512
        %v5803 = vunpack.c.h.b16 %v4512
        %v5804 = vunpack.c.l.b16 %v4513
        %v5805 = vunpack.c.h.b16 %v4513
        %v5806 = vunpack.c.l.b16 %v4514
        %v5807 = vunpack.c.l.b16 %v4515
        %v5808 = vunpack.c.h.b16 %v4515
        %v5809 = vunpack.c.l.b16 %v4516
        %v5810 = vunpack.c.h.b16 %v4516
        %v5811 = vunpack.c.l.b16 %v4517
        %v5812 = vunpack.c.h.b16 %v4517
        %v5813 = vunpack.c.l.b16 %v4518
        %v5814 = vunpack.c.l.b16 %v4519
        %v5815 = vunpack.c.h.b16 %v4519
        %v5816 = vunpack.c.l.b16 %v4520
        %v5817 = vunpack.c.h.b16 %v4520
        %v5818 = vunpack.c.l.b16 %v4521
        %v5819 = vunpack.c.h.b16 %v4521
        %v5820 = vunpack.c.l.b16 %v4522
        %v5821 = vunpack.c.l.b16 %v4523
        %v5822 = vunpack.c.h.b16 %v4523
        %v5823 = vunpack.c.l.b16 %v4524
        %v5824 = vunpack.c.h.b16 %v4524
        %v5825 = vunpack.c.l.b16 %v4525
        %v5826 = vunpack.c.h.b16 %v4525
        %v5827 = vunpack.c.l.b16 %v4526
        %v5828 = vunpack.c.l.b16 %v4527
        %v5829 = vunpack.c.h.b16 %v4527
        %v5830 = vunpack.c.l.b16 %v4528
        %v5831 = vunpack.c.h.b16 %v4528
        %v5832 = vunpack.c.l.b16 %v4529
        %v5833 = vunpack.c.h.b16 %v4529
        %v5834 = vunpack.c.l.b16 %v4530
        %v5835 = vunpack.c.l.b16 %v4531
        %v5836 = vunpack.c.h.b16 %v4531
        %v5837 = vunpack.c.l.b16 %v4532
        %v5838 = vunpack.c.h.b16 %v4532
        %v5839 = vunpack.c.l.b16 %v4533
        %v5840 = vunpack.c.h.b16 %v4533
        %v5841 = vunpack.c.l.b16 %v4534
        %v5842 = vunpack.c.l.b16 %v4535
        %v5843 = vunpack.c.h.b16 %v4535
        %v5844 = vunpack.c.l.b16 %v4536
        %v5845 = vunpack.c.h.b16 %v4536
        %v5846 = vunpack.c.l.b16 %v4537
        %v5847 = vunpack.c.h.b16 %v4537
        %v5848 = vunpack.c.l.b16 %v4538
        %v5849 = vunpack.c.l.b16 %v4539
        %v5850 = vunpack.c.h.b16 %v4539
        %v5851 = vunpack.c.l.b16 %v4540
        %v5852 = vunpack.c.h.b16 %v4540
        %v5853 = vunpack.c.l.b16 %v4541
        %v5854 = vunpack.c.h.b16 %v4541
        %v5855 = vunpack.c.l.b16 %v4542
        %v5856 = vunpack.c.l.b16 %v4543
        %v5857 = vunpack.c.h.b16 %v4543
        %v5858 = vunpack.c.l.b16 %v4544
        %v5859 = vunpack.c.h.b16 %v4544
        %v5860 = vunpack.c.l.b16 %v4545
        %v5861 = vunpack.c.h.b16 %v4545
        %v5862 = vunpack.c.l.b16 %v4546
        %v5863 = vunpack.c.l.b16 %v4547
        %v5864 = vunpack.c.h.b16 %v4547
        %v5865 = vunpack.c.l.b16 %v4548
        %v5866 = vunpack.c.h.b16 %v4548
        %v5867 = vunpack.c.l.b16 %v4549
        %v5868 = vunpack.c.h.b16 %v4549
        %v5869 = vunpack.c.l.b16 %v4550
        %v5870 = vunpack.c.l.b16 %v4551
        %v5871 = vunpack.c.h.b16 %v4551
        %v5872 = vunpack.c.l.b16 %v4552
        %v5873 = vunpack.c.h.b16 %v4552
        %v5874 = vunpack.c.l.b16 %v4553
        %v5875 = vunpack.c.h.b16 %v4553
        %v5876 = vunpack.c.l.b16 %v4554
        %v5877 = vunpack.c.l.b16 %v4555
        %v5878 = vunpack.c.h.b16 %v4555
        %v5879 = vunpack.c.l.b16 %v4556
        %v5880 = vunpack.c.h.b16 %v4556
        %v5881 = vunpack.c.l.b16 %v4557
        %v5882 = vunpack.c.h.b16 %v4557
        %v5883 = vunpack.c.l.b16 %v4558
        %v5884 = vunpack.c.l.b16 %v4559
        %v5885 = vunpack.c.h.b16 %v4559
        %v5886 = vunpack.c.l.b16 %v4560
        %v5887 = vunpack.c.h.b16 %v4560
        %v5888 = vunpack.c.l.b16 %v4561
        %v5889 = vunpack.c.h.b16 %v4561
        %v5890 = vunpack.c.l.b16 %v4562
        %v5891 = vunpack.c.l.b16 %v4563
        %v5892 = vunpack.c.h.b16 %v4563
        %v5893 = vunpack.c.l.b16 %v4564
        %v5894 = vunpack.c.h.b16 %v4564
        %v5895 = vunpack.c.l.b16 %v4565
        %v5896 = vunpack.c.h.b16 %v4565
        %v5897 = vunpack.c.l.b16 %v4566
        %v5898 = vunpack.c.l.b16 %v4567
        %v5899 = vunpack.c.h.b16 %v4567
        %v5900 = vunpack.c.l.b16 %v4568
        %v5901 = vunpack.c.h.b16 %v4568
        %v5902 = vunpack.c.l.b16 %v4569
        %v5903 = vunpack.c.h.b16 %v4569
        %v5904 = vunpack.c.l.b16 %v4570
        %v5905 = vunpack.c.l.b16 %v4571
        %v5906 = vunpack.c.h.b16 %v4571
        %v5907 = vunpack.c.l.b16 %v4572
        %v5908 = vunpack.c.h.b16 %v4572
        %v5909 = vunpack.c.l.b16 %v4573
        %v5910 = vunpack.c.h.b16 %v4573
        %v5911 = vunpack.c.l.b16 %v4574
        %v5912 = vunpack.c.l.b16 %v4575
        %v5913 = vunpack.c.h.b16 %v4575
        %v5914 = vunpack.c.l.b16 %v4576
        %v5915 = vunpack.c.h.b16 %v4576
        %v5916 = vunpack.c.l.b16 %v4577
        %v5917 = vunpack.c.h.b16 %v4577
        %v5918 = vunpack.c.l.b16 %v4578
        %v5919 = vunpack.c.l.b16 %v4579
        %v5920 = vunpack.c.h.b16 %v4579
        %v5921 = vunpack.c.l.b16 %v4580
        %v5922 = vunpack.c.h.b16 %v4580
        %v5923 = vunpack.c.l.b16 %v4581
        %v5924 = vunpack.c.h.b16 %v4581
        %v5925 = vunpack.c.l.b16 %v4582
        %v5926 = vunpack.c.l.b16 %v4583
        %v5927 = vunpack.c.h.b16 %v4583
        %v5928 = vunpack.c.l.b16 %v4584
        %v5929 = vunpack.c.h.b16 %v4584
        %v5930 = vunpack.c.l.b16 %v4585
        %v5931 = vunpack.c.h.b16 %v4585
        %v5932 = vunpack.c.l.b16 %v4586
        %v5933 = vunpack.c.l.b16 %v4587
        %v5934 = vunpack.c.h.b16 %v4587
        %v5935 = vunpack.c.l.b16 %v4588
        %v5936 = vunpack.c.h.b16 %v4588
        %v5937 = vunpack.c.l.b16 %v4589
        %v5938 = vunpack.c.h.b16 %v4589
        %v5939 = vunpack.c.l.b16 %v4590
        %v5940 = vunpack.c.l.b16 %v4591
        %v5941 = vunpack.c.h.b16 %v4591
        %v5942 = vunpack.c.l.b16 %v4592
        %v5943 = vunpack.c.h.b16 %v4592
        %v5944 = vunpack.c.l.b16 %v4593
        %v5945 = vunpack.c.h.b16 %v4593
        %v5946 = vunpack.c.l.b16 %v4594
        %v5947 = vunpack.c.l.b16 %v4595
        %v5948 = vunpack.c.h.b16 %v4595
        %v5949 = vunpack.c.l.b16 %v4596
        %v5950 = vunpack.c.h.b16 %v4596
        %v5951 = vunpack.c.l.b16 %v4597
        %v5952 = vunpack.c.h.b16 %v4597
        %v5953 = vunpack.c.l.b16 %v4598
        %v5954 = vunpack.c.l.b16 %v4599
        %v5955 = vunpack.c.h.b16 %v4599
        %v5956 = vunpack.c.l.b16 %v4600
        %v5957 = vunpack.c.h.b16 %v4600
        %v5958 = vunpack.c.l.b16 %v4601
        %v5959 = vunpack.c.h.b16 %v4601
        %v5960 = vunpack.c.l.b16 %v4602
        %v5961 = vunpack.c.l.b16 %v4603
        %v5962 = vunpack.c.h.b16 %v4603
        %v5963 = vunpack.c.l.b16 %v4604
        %v5964 = vunpack.c.h.b16 %v4604
        %v5965 = vunpack.c.l.b16 %v4605
        %v5966 = vunpack.c.h.b16 %v4605
        %v5967 = vunpack.c.l.b16 %v4606
        %v5968 = vunpack.c.l.b16 %v4607
        %v5969 = vunpack.c.h.b16 %v4607
        %v5970 = vunpack.c.l.b16 %v4608
        %v5971 = vunpack.c.h.b16 %v4608
        %v5972 = vunpack.c.l.b16 %v4609
        %v5973 = vunpack.c.h.b16 %v4609
        %v5974 = vunpack.c.l.b16 %v4610
        %v5975 = vunpack.c.l.b16 %v4611
        %v5976 = vunpack.c.h.b16 %v4611
        %v5977 = vunpack.c.l.b16 %v4612
        %v5978 = vunpack.c.h.b16 %v4612
        %v5979 = vunpack.c.l.b16 %v4613
        %v5980 = vunpack.c.h.b16 %v4613
        %v5981 = vunpack.c.l.b16 %v4614
        %v5982 = vunpack.c.l.b16 %v4615
        %v5983 = vunpack.c.h.b16 %v4615
        %v5984 = vunpack.c.l.b16 %v4616
        %v5985 = vunpack.c.h.b16 %v4616
        %v5986 = vunpack.c.l.b16 %v4617
        %v5987 = vunpack.c.h.b16 %v4617
        %v5988 = vunpack.c.l.b16 %v4618
        %v5989 = vunpack.c.l.b16 %v4619
        %v5990 = vunpack.c.h.b16 %v4619
        %v5991 = vunpack.c.l.b16 %v4620
        %v5992 = vunpack.c.h.b16 %v4620
        %v5993 = vunpack.c.l.b16 %v4621
        %v5994 = vunpack.c.h.b16 %v4621
        %v5995 = vunpack.c.l.b16 %v4622
        %v5996 = vunpack.c.l.b16 %v4623
        %v5997 = vunpack.c.h.b16 %v4623
        %v5998 = vunpack.c.l.b16 %v4624
        %v5999 = vunpack.c.h.b16 %v4624
        %v6000 = vunpack.c.l.b16 %v4625
        %v6001 = vunpack.c.h.b16 %v4625
        %v6002 = vunpack.c.l.b16 %v4626
        %v6003 = vunpack.c.l.b16 %v4627
        %v6004 = vunpack.c.h.b16 %v4627
        %v6005 = vunpack.c.l.b16 %v4628
        %v6006 = vunpack.c.h.b16 %v4628
        %v6007 = vunpack.c.l.b16 %v4629
        %v6008 = vunpack.c.h.b16 %v4629
        %v6009 = vunpack.c.l.b16 %v4630
        %v6010 = vunpack.c.l.b16 %v4631
        %v6011 = vunpack.c.h.b16 %v4631
        %v6012 = vunpack.c.l.b16 %v4632
        %v6013 = vunpack.c.h.b16 %v4632
        %v6014 = vunpack.c.l.b16 %v4633
        %v6015 = vunpack.c.h.b16 %v4633
        %v6016 = vunpack.c.l.b16 %v4634
        %v6017 = vunpack.c.l.b16 %v4635
        %v6018 = vunpack.c.h.b16 %v4635
        %v6019 = vunpack.c.l.b16 %v4636
        %v6020 = vunpack.c.h.b16 %v4636
        %v6021 = vunpack.c.l.b16 %v4637
        %v6022 = vunpack.c.h.b16 %v4637
        %v6023 = vunpack.c.l.b16 %v4638
        %v6024 = vunpack.c.l.b16 %v4639
        %v6025 = vunpack.c.h.b16 %v4639
        %v6026 = vunpack.c.l.b16 %v4640
        %v6027 = vunpack.c.h.b16 %v4640
        %v6028 = vunpack.c.l.b16 %v4641
        %v6029 = vunpack.c.h.b16 %v4641
        %v6030 = vunpack.c.l.b16 %v4642
        %v6031 = vunpack.c.l.b16 %v4643
        %v6032 = vunpack.c.h.b16 %v4643
        %v6033 = vunpack.c.l.b16 %v4644
        %v6034 = vunpack.c.h.b16 %v4644
        %v6035 = vunpack.c.l.b16 %v4645
        %v6036 = vunpack.c.h.b16 %v4645
        %v6037 = vunpack.c.l.b16 %v4646
        %v6038 = vunpack.c.l.b16 %v4647
        %v6039 = vunpack.c.h.b16 %v4647
        %v6040 = vunpack.c.l.b16 %v4648
        %v6041 = vunpack.c.h.b16 %v4648
        %v6042 = vunpack.c.l.b16 %v4649
        %v6043 = vunpack.c.h.b16 %v4649
        %v6044 = vunpack.c.l.b16 %v4650
        %v6045 = vunpack.c.l.b16 %v4651
        %v6046 = vunpack.c.h.b16 %v4651
        %v6047 = vunpack.c.l.b16 %v4652
        %v6048 = vunpack.c.h.b16 %v4652
        %v6049 = vunpack.c.l.b16 %v4653
        %v6050 = vunpack.c.h.b16 %v4653
        %v6051 = vunpack.c.l.b16 %v4654
        %v6052 = vunpack.c.l.b16 %v4655
        %v6053 = vunpack.c.h.b16 %v4655
        %v6054 = vunpack.c.l.b16 %v4656
        %v6055 = vunpack.c.h.b16 %v4656
        %v6056 = vunpack.c.l.b16 %v4657
        %v6057 = vunpack.c.h.b16 %v4657
        %v6058 = vunpack.c.l.b16 %v4658
        %v6059 = vunpack.c.l.b16 %v4659
        %v6060 = vunpack.c.h.b16 %v4659
        %v6061 = vunpack.c.l.b16 %v4660
        %v6062 = vunpack.c.h.b16 %v4660
        %v6063 = vunpack.c.l.b16 %v4661
        %v6064 = vunpack.c.h.b16 %v4661
        %v6065 = vunpack.c.l.b16 %v4662
        %v6066 = vunpack.c.l.b16 %v4663
        %v6067 = vunpack.c.h.b16 %v4663
        %v6068 = vunpack.c.l.b16 %v4664
        %v6069 = vunpack.c.h.b16 %v4664
        %v6070 = vunpack.c.l.b16 %v4665
        %v6071 = vunpack.c.h.b16 %v4665
        %v6072 = vunpack.c.l.b16 %v4666
        %v6073 = vunpack.c.l.b16 %v4667
        %v6074 = vunpack.c.h.b16 %v4667
        %v6075 = vunpack.c.l.b16 %v4668
        %v6076 = vunpack.c.h.b16 %v4668
        %v6077 = vunpack.c.l.b16 %v4669
        %v6078 = vunpack.c.h.b16 %v4669
        %v6079 = vunpack.c.l.b16 %v4670
        %v6080 = vunpack.c.l.b16 %v4671
        %v6081 = vunpack.c.h.b16 %v4671
        %v6082 = vunpack.c.l.b16 %v4672
        %v6083 = vunpack.c.h.b16 %v4672
        %v6084 = vunpack.c.l.b16 %v4673
        %v6085 = vunpack.c.h.b16 %v4673
        %v6086 = vunpack.c.l.b16 %v4674
        %v6087 = vunpack.c.l.b16 %v4675
        %v6088 = vunpack.c.h.b16 %v4675
        %v6089 = vunpack.c.l.b16 %v4676
        %v6090 = vunpack.c.h.b16 %v4676
        %v6091 = vunpack.c.l.b16 %v4677
        %v6092 = vunpack.c.h.b16 %v4677
        %v6093 = vunpack.c.l.b16 %v4678
        %v6094 = vunpack.c.l.b16 %v4679
        %v6095 = vunpack.c.h.b16 %v4679
        %v6096 = vunpack.c.l.b16 %v4680
        %v6097 = vunpack.c.h.b16 %v4680
        %v6098 = vunpack.c.l.b16 %v4681
        %v6099 = vunpack.c.h.b16 %v4681
        %v6100 = vunpack.c.l.b16 %v4682
        %v6101 = vunpack.c.l.b16 %v4683
        %v6102 = vunpack.c.h.b16 %v4683
        %v6103 = vunpack.c.l.b16 %v4684
        %v6104 = vunpack.c.h.b16 %v4684
        %v6105 = vunpack.c.l.b16 %v4685
        %v6106 = vunpack.c.h.b16 %v4685
        %v6107 = vunpack.c.l.b16 %v4686
        %v6108 = vunpack.c.l.b16 %v4687
        %v6109 = vunpack.c.h.b16 %v4687
        %v6110 = vunpack.c.l.b16 %v4688
        %v6111 = vunpack.c.h.b16 %v4688
        %v6112 = vunpack.c.l.b16 %v4689
        %v6113 = vunpack.c.h.b16 %v4689
        %v6114 = vunpack.c.l.b16 %v4690
        %v6115 = vunpack.c.l.b16 %v4691
        %v6116 = vunpack.c.h.b16 %v4691
        %v6117 = vunpack.c.l.b16 %v4692
        %v6118 = vunpack.c.h.b16 %v4692
        %v6119 = vunpack.c.l.b16 %v4693
        %v6120 = vunpack.c.h.b16 %v4693
        %v6121 = vunpack.c.l.b16 %v4694
        %v6122 = vunpack.c.l.b16 %v4695
        %v6123 = vunpack.c.h.b16 %v4695
        %v6124 = vunpack.c.l.b16 %v4696
        %v6125 = vunpack.c.h.b16 %v4696
        %v6126 = vunpack.c.l.b16 %v4697
        %v6127 = vunpack.c.h.b16 %v4697
        %v6128 = vunpack.c.l.b16 %v4698
        %v6129 = vunpack.c.l.b16 %v4699
        %v6130 = vunpack.c.h.b16 %v4699
        %v6131 = vunpack.c.l.b16 %v4700
        %v6132 = vunpack.c.h.b16 %v4700
        %v6133 = vunpack.c.l.b16 %v4701
        %v6134 = vunpack.c.h.b16 %v4701
        %v6135 = vunpack.c.l.b16 %v4702
        %v6136 = vunpack.c.l.b16 %v4703
        %v6137 = vunpack.c.h.b16 %v4703
        %v6138 = vunpack.c.l.b16 %v4704
        %v6139 = vunpack.c.h.b16 %v4704
        %v6140 = vunpack.c.l.b16 %v4705
        %v6141 = vunpack.c.h.b16 %v4705
        %v6142 = vunpack.c.l.b16 %v4706
        %v6143 = vunpack.c.l.b16 %v4707
        %v6144 = vunpack.c.h.b16 %v4707
        %v6145 = vunpack.c.l.b16 %v4708
        %v6146 = vunpack.c.h.b16 %v4708
        %v6147 = vunpack.c.l.b16 %v4709
        %v6148 = vunpack.c.h.b16 %v4709
        %v6149 = vunpack.c.l.b16 %v4710
        %v6150 = vunpack.c.l.b16 %v4711
        %v6151 = vunpack.c.h.b16 %v4711
        %v6152 = vunpack.c.l.b16 %v4712
        %v6153 = vunpack.c.h.b16 %v4712
        %v6154 = vunpack.c.l.b16 %v4713
        %v6155 = vunpack.c.h.b16 %v4713
        %v6156 = vunpack.c.l.b16 %v4714
        %v6157 = vunpack.c.l.b16 %v4715
        %v6158 = vunpack.c.h.b16 %v4715
        %v6159 = vunpack.c.l.b16 %v4716
        %v6160 = vunpack.c.h.b16 %v4716
        %v6161 = vunpack.c.l.b16 %v4717
        %v6162 = vunpack.c.h.b16 %v4717
        %v6163 = vunpack.c.l.b16 %v4718
        %v6164 = vpack.c.b16 %v5275, %v5268
        %v6165 = vpack.c.b16 %v5276, %v5269
        %v6166 = vpack.c.b16 %v5277, %v5270
        %v6167 = vpack.c.b16 %v5278, %v5271
        %v6168 = vpack.c.b16 %v5279, %v5272
        %v6169 = vpack.c.b16 %v5280, %v5273
        %v6170 = vpack.c.b16 %v5281, %v5274
        %v6171 = vpack.c.b16 %v5289, %v5282
        %v6172 = vpack.c.b16 %v5290, %v5283
        %v6173 = vpack.c.b16 %v5291, %v5284
        %v6174 = vpack.c.b16 %v5292, %v5285
        %v6175 = vpack.c.b16 %v5293, %v5286
        %v6176 = vpack.c.b16 %v5294, %v5287
        %v6177 = vpack.c.b16 %v5295, %v5288
        %v6178 = vpack.c.b16 %v5303, %v5296
        %v6179 = vpack.c.b16 %v5304, %v5297
        %v6180 = vpack.c.b16 %v5305, %v5298
        %v6181 = vpack.c.b16 %v5306, %v5299
        %v6182 = vpack.c.b16 %v5307, %v5300
        %v6183 = vpack.c.b16 %v5308, %v5301
        %v6184 = vpack.c.b16 %v5309, %v5302
        %v6185 = vpack.c.b16 %v5317, %v5310
        %v6186 = vpack.c.b16 %v5318, %v5311
        %v6187 = vpack.c.b16 %v5319, %v5312
        %v6188 = vpack.c.b16 %v5320, %v5313
        %v6189 = vpack.c.b16 %v5321, %v5314
        %v6190 = vpack.c.b16 %v5322, %v5315
        %v6191 = vpack.c.b16 %v5323, %v5316
        %v6192 = vpack.c.b16 %v5331, %v5324
        %v6193 = vpack.c.b16 %v5332, %v5325
        %v6194 = vpack.c.b16 %v5333, %v5326
        %v6195 = vpack.c.b16 %v5334, %v5327
        %v6196 = vpack.c.b16 %v5335, %v5328
        %v6197 = vpack.c.b16 %v5336, %v5329
        %v6198 = vpack.c.b16 %v5337, %v5330
        %v6199 = vpack.c.b16 %v5345, %v5338
        %v6200 = vpack.c.b16 %v5346, %v5339
        %v6201 = vpack.c.b16 %v5347, %v5340
        %v6202 = vpack.c.b16 %v5348, %v5341
        %v6203 = vpack.c.b16 %v5349, %v5342
        %v6204 = vpack.c.b16 %v5350, %v5343
        %v6205 = vpack.c.b16 %v5351, %v5344
        %v6206 = vpack.c.b16 %v5359, %v5352
        %v6207 = vpack.c.b16 %v5360, %v5353
        %v6208 = vpack.c.b16 %v5361, %v5354
        %v6209 = vpack.c.b16 %v5362, %v5355
        %v6210 = vpack.c.b16 %v5363, %v5356
        %v6211 = vpack.c.b16 %v5364, %v5357
        %v6212 = vpack.c.b16 %v5365, %v5358
        %v6213 = vpack.c.b16 %v5373, %v5366
        %v6214 = vpack.c.b16 %v5374, %v5367
        %v6215 = vpack.c.b16 %v5375, %v5368
        %v6216 = vpack.c.b16 %v5376, %v5369
        %v6217 = vpack.c.b16 %v5377, %v5370
        %v6218 = vpack.c.b16 %v5378, %v5371
        %v6219 = vpack.c.b16 %v5379, %v5372
        %v6220 = vpack.c.b16 %v5387, %v5380
        %v6221 = vpack.c.b16 %v5388, %v5381
        %v6222 = vpack.c.b16 %v5389, %v5382
        %v6223 = vpack.c.b16 %v5390, %v5383
        %v6224 = vpack.c.b16 %v5391, %v5384
        %v6225 = vpack.c.b16 %v5392, %v5385
        %v6226 = vpack.c.b16 %v5393, %v5386
        %v6227 = vpack.c.b16 %v5401, %v5394
        %v6228 = vpack.c.b16 %v5402, %v5395
        %v6229 = vpack.c.b16 %v5403, %v5396
        %v6230 = vpack.c.b16 %v5404, %v5397
        %v6231 = vpack.c.b16 %v5405, %v5398
        %v6232 = vpack.c.b16 %v5406, %v5399
        %v6233 = vpack.c.b16 %v5407, %v5400
        %v6234 = vpack.c.b16 %v5415, %v5408
        %v6235 = vpack.c.b16 %v5416, %v5409
        %v6236 = vpack.c.b16 %v5417, %v5410
        %v6237 = vpack.c.b16 %v5418, %v5411
        %v6238 = vpack.c.b16 %v5419, %v5412
        %v6239 = vpack.c.b16 %v5420, %v5413
        %v6240 = vpack.c.b16 %v5421, %v5414
        %v6241 = vpack.c.b16 %v5429, %v5422
        %v6242 = vpack.c.b16 %v5430, %v5423
        %v6243 = vpack.c.b16 %v5431, %v5424
        %v6244 = vpack.c.b16 %v5432, %v5425
        %v6245 = vpack.c.b16 %v5433, %v5426
        %v6246 = vpack.c.b16 %v5434, %v5427
        %v6247 = vpack.c.b16 %v5435, %v5428
        %v6248 = vpack.c.b16 %v5443, %v5436
        %v6249 = vpack.c.b16 %v5444, %v5437
        %v6250 = vpack.c.b16 %v5445, %v5438
        %v6251 = vpack.c.b16 %v5446, %v5439
        %v6252 = vpack.c.b16 %v5447, %v5440
        %v6253 = vpack.c.b16 %v5448, %v5441
        %v6254 = vpack.c.b16 %v5449, %v5442
        %v6255 = vpack.c.b16 %v5457, %v5450
        %v6256 = vpack.c.b16 %v5458, %v5451
        %v6257 = vpack.c.b16 %v5459, %v5452
        %v6258 = vpack.c.b16 %v5460, %v5453
        %v6259 = vpack.c.b16 %v5461, %v5454
        %v6260 = vpack.c.b16 %v5462, %v5455
        %v6261 = vpack.c.b16 %v5463, %v5456
        %v6262 = vpack.c.b16 %v5471, %v5464
        %v6263 = vpack.c.b16 %v5472, %v5465
        %v6264 = vpack.c.b16 %v5473, %v5466
        %v6265 = vpack.c.b16 %v5474, %v5467
        %v6266 = vpack.c.b16 %v5475, %v5468
        %v6267 = vpack.c.b16 %v5476, %v5469
        %v6268 = vpack.c.b16 %v5477, %v5470
        %v6269 = vpack.c.b16 %v5485, %v5478
        %v6270 = vpack.c.b16 %v5486, %v5479
        %v6271 = vpack.c.b16 %v5487, %v5480
        %v6272 = vpack.c.b16 %v5488, %v5481
        %v6273 = vpack.c.b16 %v5489, %v5482
        %v6274 = vpack.c.b16 %v5490, %v5483
        %v6275 = vpack.c.b16 %v5491, %v5484
        %v6276 = vpack.c.b16 %v5499, %v5492
        %v6277 = vpack.c.b16 %v5500, %v5493
        %v6278 = vpack.c.b16 %v5501, %v5494
        %v6279 = vpack.c.b16 %v5502, %v5495
        %v6280 = vpack.c.b16 %v5503, %v5496
        %v6281 = vpack.c.b16 %v5504, %v5497
        %v6282 = vpack.c.b16 %v5505, %v5498
        %v6283 = vpack.c.b16 %v5513, %v5506
        %v6284 = vpack.c.b16 %v5514, %v5507
        %v6285 = vpack.c.b16 %v5515, %v5508
        %v6286 = vpack.c.b16 %v5516, %v5509
        %v6287 = vpack.c.b16 %v5517, %v5510
        %v6288 = vpack.c.b16 %v5518, %v5511
        %v6289 = vpack.c.b16 %v5519, %v5512
        %v6290 = vpack.c.b16 %v5527, %v5520
        %v6291 = vpack.c.b16 %v5528, %v5521
        %v6292 = vpack.c.b16 %v5529, %v5522
        %v6293 = vpack.c.b16 %v5530, %v5523
        %v6294 = vpack.c.b16 %v5531, %v5524
        %v6295 = vpack.c.b16 %v5532, %v5525
        %v6296 = vpack.c.b16 %v5533, %v5526
        %v6297 = vpack.c.b16 %v5541, %v5534
        %v6298 = vpack.c.b16 %v5542, %v5535
        %v6299 = vpack.c.b16 %v5543, %v5536
        %v6300 = vpack.c.b16 %v5544, %v5537
        %v6301 = vpack.c.b16 %v5545, %v5538
        %v6302 = vpack.c.b16 %v5546, %v5539
        %v6303 = vpack.c.b16 %v5547, %v5540
        %v6304 = vpack.c.b16 %v5555, %v5548
        %v6305 = vpack.c.b16 %v5556, %v5549
        %v6306 = vpack.c.b16 %v5557, %v5550
        %v6307 = vpack.c.b16 %v5558, %v5551
        %v6308 = vpack.c.b16 %v5559, %v5552
        %v6309 = vpack.c.b16 %v5560, %v5553
        %v6310 = vpack.c.b16 %v5561, %v5554
        %v6311 = vpack.c.b16 %v5569, %v5562
        %v6312 = vpack.c.b16 %v5570, %v5563
        %v6313 = vpack.c.b16 %v5571, %v5564
        %v6314 = vpack.c.b16 %v5572, %v5565
        %v6315 = vpack.c.b16 %v5573, %v5566
        %v6316 = vpack.c.b16 %v5574, %v5567
        %v6317 = vpack.c.b16 %v5575, %v5568
        %v6318 = vpack.c.b16 %v5583, %v5576
        %v6319 = vpack.c.b16 %v5584, %v5577
        %v6320 = vpack.c.b16 %v5585, %v5578
        %v6321 = vpack.c.b16 %v5586, %v5579
        %v6322 = vpack.c.b16 %v5587, %v5580
        %v6323 = vpack.c.b16 %v5588, %v5581
        %v6324 = vpack.c.b16 %v5589, %v5582
        %v6325 = vpack.c.b16 %v5597, %v5590
        %v6326 = vpack.c.b16 %v5598, %v5591
        %v6327 = vpack.c.b16 %v5599, %v5592
        %v6328 = vpack.c.b16 %v5600, %v5593
        %v6329 = vpack.c.b16 %v5601, %v5594
        %v6330 = vpack.c.b16 %v5602, %v5595
        %v6331 = vpack.c.b16 %v5603, %v5596
        %v6332 = vpack.c.b16 %v5611, %v5604
        %v6333 = vpack.c.b16 %v5612, %v5605
        %v6334 = vpack.c.b16 %v5613, %v5606
        %v6335 = vpack.c.b16 %v5614, %v5607
        %v6336 = vpack.c.b16 %v5615, %v5608
        %v6337 = vpack.c.b16 %v5616, %v5609
        %v6338 = vpack.c.b16 %v5617, %v5610
        %v6339 = vpack.c.b16 %v5625, %v5618
        %v6340 = vpack.c.b16 %v5626, %v5619
        %v6341 = vpack.c.b16 %v5627, %v5620
        %v6342 = vpack.c.b16 %v5628, %v5621
        %v6343 = vpack.c.b16 %v5629, %v5622
        %v6344 = vpack.c.b16 %v5630, %v5623
        %v6345 = vpack.c.b16 %v5631, %v5624
        %v6346 = vpack.c.b16 %v5639, %v5632
        %v6347 = vpack.c.b16 %v5640, %v5633
        %v6348 = vpack.c.b16 %v5641, %v5634
        %v6349 = vpack.c.b16 %v5642, %v5635
        %v6350 = vpack.c.b16 %v5643, %v5636
        %v6351 = vpack.c.b16 %v5644, %v5637
        %v6352 = vpack.c.b16 %v5645, %v5638
        %v6353 = vpack.c.b16 %v5653, %v5646
        %v6354 = vpack.c.b16 %v5654, %v5647
        %v6355 = vpack.c.b16 %v5655, %v5648
        %v6356 = vpack.c.b16 %v5656, %v5649
        %v6357 = vpack.c.b16 %v5657, %v5650
        %v6358 = vpack.c.b16 %v5658, %v5651
        %v6359 = vpack.c.b16 %v5659, %v5652
        %v6360 = vpack.c.b16 %v5667, %v5660
        %v6361 = vpack.c.b16 %v5668, %v5661
        %v6362 = vpack.c.b16 %v5669, %v5662
        %v6363 = vpack.c.b16 %v5670, %v5663
        %v6364 = vpack.c.b16 %v5671, %v5664
        %v6365 = vpack.c.b16 %v5672, %v5665
        %v6366 = vpack.c.b16 %v5673, %v5666
        %v6367 = vpack.c.b16 %v5681, %v5674
        %v6368 = vpack.c.b16 %v5682, %v5675
        %v6369 = vpack.c.b16 %v5683, %v5676
        %v6370 = vpack.c.b16 %v5684, %v5677
        %v6371 = vpack.c.b16 %v5685, %v5678
        %v6372 = vpack.c.b16 %v5686, %v5679
        %v6373 = vpack.c.b16 %v5687, %v5680
        %v6374 = vpack.c.b16 %v5695, %v5688
        %v6375 = vpack.c.b16 %v5696, %v5689
        %v6376 = vpack.c.b16 %v5697, %v5690
        %v6377 = vpack.c.b16 %v5698, %v5691
        %v6378 = vpack.c.b16 %v5699, %v5692
        %v6379 = vpack.c.b16 %v5700, %v5693
        %v6380 = vpack.c.b16 %v5701, %v5694
        %v6381 = vpack.c.b16 %v5709, %v5702
        %v6382 = vpack.c.b16 %v5710, %v5703
        %v6383 = vpack.c.b16 %v5711, %v5704
        %v6384 = vpack.c.b16 %v5712, %v5705
        %v6385 = vpack.c.b16 %v5713, %v5706
        %v6386 = vpack.c.b16 %v5714, %v5707
        %v6387 = vpack.c.b16 %v5715, %v5708
        %v6388 = vpack.c.b16 %v5723, %v5716
        %v6389 = vpack.c.b16 %v5724, %v5717
        %v6390 = vpack.c.b16 %v5725, %v5718
        %v6391 = vpack.c.b16 %v5726, %v5719
        %v6392 = vpack.c.b16 %v5727, %v5720
        %v6393 = vpack.c.b16 %v5728, %v5721
        %v6394 = vpack.c.b16 %v5729, %v5722
        %v6395 = vpack.c.b16 %v5737, %v5730
        %v6396 = vpack.c.b16 %v5738, %v5731
        %v6397 = vpack.c.b16 %v5739, %v5732
        %v6398 = vpack.c.b16 %v5740, %v5733
        %v6399 = vpack.c.b16 %v5741, %v5734
        %v6400 = vpack.c.b16 %v5742, %v5735
        %v6401 = vpack.c.b16 %v5743, %v5736
        %v6402 = vpack.c.b16 %v5751, %v5744
        %v6403 = vpack.c.b16 %v5752, %v5745
        %v6404 = vpack.c.b16 %v5753, %v5746
        %v6405 = vpack.c.b16 %v5754, %v5747
        %v6406 = vpack.c.b16 %v5755, %v5748
        %v6407 = vpack.c.b16 %v5756, %v5749
        %v6408 = vpack.c.b16 %v5757, %v5750
        %v6409 = vpack.c.b16 %v5765, %v5758
        %v6410 = vpack.c.b16 %v5766, %v5759
        %v6411 = vpack.c.b16 %v5767, %v5760
        %v6412 = vpack.c.b16 %v5768, %v5761
        %v6413 = vpack.c.b16 %v5769, %v5762
        %v6414 = vpack.c.b16 %v5770, %v5763
        %v6415 = vpack.c.b16 %v5771, %v5764
        %v6416 = vpack.c.b16 %v5779, %v5772
        %v6417 = vpack.c.b16 %v5780, %v5773
        %v6418 = vpack.c.b16 %v5781, %v5774
        %v6419 = vpack.c.b16 %v5782, %v5775
        %v6420 = vpack.c.b16 %v5783, %v5776
        %v6421 = vpack.c.b16 %v5784, %v5777
        %v6422 = vpack.c.b16 %v5785, %v5778
        %v6423 = vpack.c.b16 %v5793, %v5786
        %v6424 = vpack.c.b16 %v5794, %v5787
        %v6425 = vpack.c.b16 %v5795, %v5788
        %v6426 = vpack.c.b16 %v5796, %v5789
        %v6427 = vpack.c.b16 %v5797, %v5790
        %v6428 = vpack.c.b16 %v5798, %v5791
        %v6429 = vpack.c.b16 %v5799, %v5792
        %v6430 = vpack.c.b16 %v5807, %v5800
        %v6431 = vpack.c.b16 %v5808, %v5801
        %v6432 = vpack.c.b16 %v5809, %v5802
        %v6433 = vpack.c.b16 %v5810, %v5803
        %v6434 = vpack.c.b16 %v5811, %v5804
        %v6435 = vpack.c.b16 %v5812, %v5805
        %v6436 = vpack.c.b16 %v5813, %v5806
        %v6437 = vpack.c.b16 %v5821, %v5814
        %v6438 = vpack.c.b16 %v5822, %v5815
        %v6439 = vpack.c.b16 %v5823, %v5816
        %v6440 = vpack.c.b16 %v5824, %v5817
        %v6441 = vpack.c.b16 %v5825, %v5818
        %v6442 = vpack.c.b16 %v5826, %v5819
        %v6443 = vpack.c.b16 %v5827, %v5820
        %v6444 = vpack.c.b16 %v5835, %v5828
        %v6445 = vpack.c.b16 %v5836, %v5829
        %v6446 = vpack.c.b16 %v5837, %v5830
        %v6447 = vpack.c.b16 %v5838, %v5831
        %v6448 = vpack.c.b16 %v5839, %v5832
        %v6449 = vpack.c.b16 %v5840, %v5833
        %v6450 = vpack.c.b16 %v5841, %v5834
        %v6451 = vpack.c.b16 %v5849, %v5842
        %v6452 = vpack.c.b16 %v5850, %v5843
        %v6453 = vpack.c.b16 %v5851, %v5844
        %v6454 = vpack.c.b16 %v5852, %v5845
        %v6455 = vpack.c.b16 %v5853, %v5846
        %v6456 = vpack.c.b16 %v5854, %v5847
        %v6457 = vpack.c.b16 %v5855, %v5848
        %v6458 = vpack.c.b16 %v5863, %v5856
        %v6459 = vpack.c.b16 %v5864, %v5857
        %v6460 = vpack.c.b16 %v5865, %v5858
        %v6461 = vpack.c.b16 %v5866, %v5859
        %v6462 = vpack.c.b16 %v5867, %v5860
        %v6463 = vpack.c.b16 %v5868, %v5861
        %v6464 = vpack.c.b16 %v5869, %v5862
        %v6465 = vpack.c.b16 %v5877, %v5870
        %v6466 = vpack.c.b16 %v5878, %v5871
        %v6467 = vpack.c.b16 %v5879, %v5872
        %v6468 = vpack.c.b16 %v5880, %v5873
        %v6469 = vpack.c.b16 %v5881, %v5874
        %v6470 = vpack.c.b16 %v5882, %v5875
        %v6471 = vpack.c.b16 %v5883, %v5876
        %v6472 = vpack.c.b16 %v5891, %v5884
        %v6473 = vpack.c.b16 %v5892, %v5885
        %v6474 = vpack.c.b16 %v5893, %v5886
        %v6475 = vpack.c.b16 %v5894, %v5887
        %v6476 = vpack.c.b16 %v5895, %v5888
        %v6477 = vpack.c.b16 %v5896, %v5889
        %v6478 = vpack.c.b16 %v5897, %v5890
        %v6479 = vpack.c.b16 %v5905, %v5898
        %v6480 = vpack.c.b16 %v5906, %v5899
        %v6481 = vpack.c.b16 %v5907, %v5900
        %v6482 = vpack.c.b16 %v5908, %v5901
        %v6483 = vpack.c.b16 %v5909, %v5902
        %v6484 = vpack.c.b16 %v5910, %v5903
        %v6485 = vpack.c.b16 %v5911, %v5904
        %v6486 = vpack.c.b16 %v5919, %v5912
        %v6487 = vpack.c.b16 %v5920, %v5913
        %v6488 = vpack.c.b16 %v5921, %v5914
        %v6489 = vpack.c.b16 %v5922, %v5915
        %v6490 = vpack.c.b16 %v5923, %v5916
        %v6491 = vpack.c.b16 %v5924, %v5917
        %v6492 = vpack.c.b16 %v5925, %v5918
        %v6493 = vpack.c.b16 %v5933, %v5926
        %v6494 = vpack.c.b16 %v5934, %v5927
        %v6495 = vpack.c.b16 %v5935, %v5928
        %v6496 = vpack.c.b16 %v5936, %v5929
        %v6497 = vpack.c.b16 %v5937, %v5930
        %v6498 = vpack.c.b16 %v5938, %v5931
        %v6499 = vpack.c.b16 %v5939, %v5932
        %v6500 = vpack.c.b16 %v5947, %v5940
        %v6501 = vpack.c.b16 %v5948, %v5941
        %v6502 = vpack.c.b16 %v5949, %v5942
        %v6503 = vpack.c.b16 %v5950, %v5943
        %v6504 = vpack.c.b16 %v5951, %v5944
        %v6505 = vpack.c.b16 %v5952, %v5945
        %v6506 = vpack.c.b16 %v5953, %v5946
        %v6507 = vpack.c.b16 %v5961, %v5954
        %v6508 = vpack.c.b16 %v5962, %v5955
        %v6509 = vpack.c.b16 %v5963, %v5956
        %v6510 = vpack.c.b16 %v5964, %v5957
        %v6511 = vpack.c.b16 %v5965, %v5958
        %v6512 = vpack.c.b16 %v5966, %v5959
        %v6513 = vpack.c.b16 %v5967, %v5960
        %v6514 = vpack.c.b16 %v5975, %v5968
        %v6515 = vpack.c.b16 %v5976, %v5969
        %v6516 = vpack.c.b16 %v5977, %v5970
        %v6517 = vpack.c.b16 %v5978, %v5971
        %v6518 = vpack.c.b16 %v5979, %v5972
        %v6519 = vpack.c.b16 %v5980, %v5973
        %v6520 = vpack.c.b16 %v5981, %v5974
        %v6521 = vpack.c.b16 %v5989, %v5982
        %v6522 = vpack.c.b16 %v5990, %v5983
        %v6523 = vpack.c.b16 %v5991, %v5984
        %v6524 = vpack.c.b16 %v5992, %v5985
        %v6525 = vpack.c.b16 %v5993, %v5986
        %v6526 = vpack.c.b16 %v5994, %v5987
        %v6527 = vpack.c.b16 %v5995, %v5988
        %v6528 = vpack.c.b16 %v6003, %v5996
        %v6529 = vpack.c.b16 %v6004, %v5997
        %v6530 = vpack.c.b16 %v6005, %v5998
        %v6531 = vpack.c.b16 %v6006, %v5999
        %v6532 = vpack.c.b16 %v6007, %v6000
        %v6533 = vpack.c.b16 %v6008, %v6001
        %v6534 = vpack.c.b16 %v6009, %v6002
        %v6535 = vpack.c.b16 %v6017, %v6010
        %v6536 = vpack.c.b16 %v6018, %v6011
        %v6537 = vpack.c.b16 %v6019, %v6012
        %v6538 = vpack.c.b16 %v6020, %v6013
        %v6539 = vpack.c.b16 %v6021, %v6014
        %v6540 = vpack.c.b16 %v6022, %v6015
        %v6541 = vpack.c.b16 %v6023, %v6016
        %v6542 = vpack.c.b16 %v6031, %v6024
        %v6543 = vpack.c.b16 %v6032, %v6025
        %v6544 = vpack.c.b16 %v6033, %v6026
        %v6545 = vpack.c.b16 %v6034, %v6027
        %v6546 = vpack.c.b16 %v6035, %v6028
        %v6547 = vpack.c.b16 %v6036, %v6029
        %v6548 = vpack.c.b16 %v6037, %v6030
        %v6549 = vpack.c.b16 %v6045, %v6038
        %v6550 = vpack.c.b16 %v6046, %v6039
        %v6551 = vpack.c.b16 %v6047, %v6040
        %v6552 = vpack.c.b16 %v6048, %v6041
        %v6553 = vpack.c.b16 %v6049, %v6042
        %v6554 = vpack.c.b16 %v6050, %v6043
        %v6555 = vpack.c.b16 %v6051, %v6044
        %v6556 = vpack.c.b16 %v6059, %v6052
        %v6557 = vpack.c.b16 %v6060, %v6053
        %v6558 = vpack.c.b16 %v6061, %v6054
        %v6559 = vpack.c.b16 %v6062, %v6055
        %v6560 = vpack.c.b16 %v6063, %v6056
        %v6561 = vpack.c.b16 %v6064, %v6057
        %v6562 = vpack.c.b16 %v6065, %v6058
        %v6563 = vpack.c.b16 %v6073, %v6066
        %v6564 = vpack.c.b16 %v6074, %v6067
        %v6565 = vpack.c.b16 %v6075, %v6068
        %v6566 = vpack.c.b16 %v6076, %v6069
        %v6567 = vpack.c.b16 %v6077, %v6070
        %v6568 = vpack.c.b16 %v6078, %v6071
        %v6569 = vpack.c.b16 %v6079, %v6072
        %v6570 = vpack.c.b16 %v6087, %v6080
        %v6571 = vpack.c.b16 %v6088, %v6081
        %v6572 = vpack.c.b16 %v6089, %v6082
        %v6573 = vpack.c.b16 %v6090, %v6083
        %v6574 = vpack.c.b16 %v6091, %v6084
        %v6575 = vpack.c.b16 %v6092, %v6085
        %v6576 = vpack.c.b16 %v6093, %v6086
        %v6577 = vpack.c.b16 %v6101, %v6094
        %v6578 = vpack.c.b16 %v6102, %v6095
        %v6579 = vpack.c.b16 %v6103, %v6096
        %v6580 = vpack.c.b16 %v6104, %v6097
        %v6581 = vpack.c.b16 %v6105, %v6098
        %v6582 = vpack.c.b16 %v6106, %v6099
        %v6583 = vpack.c.b16 %v6107, %v6100
        %v6584 = vpack.c.b16 %v6115, %v6108
        %v6585 = vpack.c.b16 %v6116, %v6109
        %v6586 = vpack.c.b16 %v6117, %v6110
        %v6587 = vpack.c.b16 %v6118, %v6111
        %v6588 = vpack.c.b16 %v6119, %v6112
        %v6589 = vpack.c.b16 %v6120, %v6113
        %v6590 = vpack.c.b16 %v6121, %v6114
        %v6591 = vpack.c.b16 %v6129, %v6122
        %v6592 = vpack.c.b16 %v6130, %v6123
        %v6593 = vpack.c.b16 %v6131, %v6124
        %v6594 = vpack.c.b16 %v6132, %v6125
        %v6595 = vpack.c.b16 %v6133, %v6126
        %v6596 = vpack.c.b16 %v6134, %v6127
        %v6597 = vpack.c.b16 %v6135, %v6128
        %v6598 = vpack.c.b16 %v6143, %v6136
        %v6599 = vpack.c.b16 %v6144, %v6137
        %v6600 = vpack.c.b16 %v6145, %v6138
        %v6601 = vpack.c.b16 %v6146, %v6139
        %v6602 = vpack.c.b16 %v6147, %v6140
        %v6603 = vpack.c.b16 %v6148, %v6141
        %v6604 = vpack.c.b16 %v6149, %v6142
        %v6605 = vpack.c.b16 %v6157, %v6150
        %v6606 = vpack.c.b16 %v6158, %v6151
        %v6607 = vpack.c.b16 %v6159, %v6152
        %v6608 = vpack.c.b16 %v6160, %v6153
        %v6609 = vpack.c.b16 %v6161, %v6154
        %v6610 = vpack.c.b16 %v6162, %v6155
        %v6611 = vpack.c.b16 %v6163, %v6156
        %7060 = vmatprep.subr.bf16.mxu0 %v6214
        %7061 = vmatpush1.bf16.msra.mxu0 %v6213
        %7062 = vmatprep.subr.bf16.mxu0 %v6207
        %7063 = vmatpush1.bf16.msra.mxu0 %v6206
        %7064 = vmatprep.subr.bf16.mxu0 %v6200
        %7065 = vmatpush1.bf16.msra.mxu0 %v6199
        %7066 = vmatprep.subr.bf16.mxu0 %v6193
        %7067 = vmatpush1.bf16.msra.mxu0 %v6192
        %7068 = vmatprep.subr.bf16.mxu0 %v6186
        %7069 = vmatpush1.bf16.msra.mxu0 %v6185
        %7070 = vmatprep.subr.bf16.mxu0 %v6179
        %7071 = vmatpush1.bf16.msra.mxu0 %v6178
        %7072 = vmatprep.subr.bf16.mxu0 %v6172
        %7073 = vmatpush1.bf16.msra.mxu0 %v6171
        %7074 = vmatprep.subr.bf16.mxu0 %v6165
        %7075 = vmatpush1.bf16.msra.mxu0 %v6164
        %7076 = vmatprep.subr.bf16.mxu0 %v6270
        %7077 = vmatpush2.bf16.msra.mxu0 %v6269
        %7078 = vmatprep.subr.bf16.mxu0 %v6263
        %7079 = vmatpush2.bf16.msra.mxu0 %v6262
        %7080 = vmatprep.subr.bf16.mxu0 %v6256
        %7081 = vmatpush2.bf16.msra.mxu0 %v6255
        %7082 = vmatprep.subr.bf16.mxu0 %v6249
        %7083 = vmatpush2.bf16.msra.mxu0 %v6248
        %7084 = vmatprep.subr.bf16.mxu0 %v6242
        %7085 = vmatpush2.bf16.msra.mxu0 %v6241
        %7086 = vmatprep.subr.bf16.mxu0 %v6235
        %7087 = vmatpush2.bf16.msra.mxu0 %v6234
        %7088 = vmatprep.subr.bf16.mxu0 %v6228
        %7089 = vmatpush2.bf16.msra.mxu0 %v6227
        %7090 = vmatprep.subr.bf16.mxu0 %v6221
        %7091 = vmatpush2.bf16.msra.mxu0 %v6220
        %7092 = vmatprep.mubr.bf16.mxu0 %v4200
        %7093 = vmatmul.mubr.bf16.gmra.mxu0 %v4199
        %v7094 = vpop.f32.mrf.mxu0
        %v7095 = vadd.f32 %v4724, %v7094
        %v7096 = vpop.f32.mrf.mxu0
        %v7097 = vadd.f32 %v4728, %v7096
        %v7098 = vpop.f32.mrf.mxu0
        %v7099 = vpop.f32.mrf.mxu0
        %7100 = vdwg.mxu0
        %7101 = vmatprep.subr.bf16.mxu0 %v6326
        %7102 = vmatpush1.bf16.msra.mxu0 %v6325
        %7103 = vmatprep.subr.bf16.mxu0 %v6319
        %7104 = vmatpush1.bf16.msra.mxu0 %v6318
        %7105 = vmatprep.subr.bf16.mxu0 %v6312
        %7106 = vmatpush1.bf16.msra.mxu0 %v6311
        %7107 = vmatprep.subr.bf16.mxu0 %v6305
        %7108 = vmatpush1.bf16.msra.mxu0 %v6304
        %7109 = vmatprep.subr.bf16.mxu0 %v6298
        %7110 = vmatpush1.bf16.msra.mxu0 %v6297
        %7111 = vmatprep.subr.bf16.mxu0 %v6291
        %7112 = vmatpush1.bf16.msra.mxu0 %v6290
        %7113 = vmatprep.subr.bf16.mxu0 %v6284
        %7114 = vmatpush1.bf16.msra.mxu0 %v6283
        %7115 = vmatprep.subr.bf16.mxu0 %v6277
        %7116 = vmatpush1.bf16.msra.mxu0 %v6276
        %7117 = vmatprep.subr.bf16.mxu0 %v6382
        %7118 = vmatpush2.bf16.msra.mxu0 %v6381
        %7119 = vmatprep.subr.bf16.mxu0 %v6375
        %7120 = vmatpush2.bf16.msra.mxu0 %v6374
        %7121 = vmatprep.subr.bf16.mxu0 %v6368
        %7122 = vmatpush2.bf16.msra.mxu0 %v6367
        %7123 = vmatprep.subr.bf16.mxu0 %v6361
        %7124 = vmatpush2.bf16.msra.mxu0 %v6360
        %7125 = vmatprep.subr.bf16.mxu0 %v6354
        %7126 = vmatpush2.bf16.msra.mxu0 %v6353
        %7127 = vmatprep.subr.bf16.mxu0 %v6347
        %7128 = vmatpush2.bf16.msra.mxu0 %v6346
        %7129 = vmatprep.subr.bf16.mxu0 %v6340
        %7130 = vmatpush2.bf16.msra.mxu0 %v6339
        %7131 = vmatprep.subr.bf16.mxu0 %v6333
        %7132 = vmatpush2.bf16.msra.mxu0 %v6332
        %7133 = vmatprep.mubr.bf16.mxu0 %v4202
        %7134 = vmatmul.mubr.bf16.gmra.mxu0 %v4201
        %v7135 = vpop.f32.mrf.mxu0
        %v7136 = vadd.f32 %v7095, %v7135
        %v7137 = vpop.f32.mrf.mxu0
        %v7138 = vadd.f32 %v7097, %v7137
        %v7139 = vpop.f32.mrf.mxu0
        %v7140 = vpop.f32.mrf.mxu0
        %7141 = vdwg.mxu0
        %7142 = vmatprep.subr.bf16.mxu0 %v6438
        %7143 = vmatpush1.bf16.msra.mxu0 %v6437
        %7144 = vmatprep.subr.bf16.mxu0 %v6431
        %7145 = vmatpush1.bf16.msra.mxu0 %v6430
        %7146 = vmatprep.subr.bf16.mxu0 %v6424
        %7147 = vmatpush1.bf16.msra.mxu0 %v6423
        %7148 = vmatprep.subr.bf16.mxu0 %v6417
        %7149 = vmatpush1.bf16.msra.mxu0 %v6416
        %7150 = vmatprep.subr.bf16.mxu0 %v6410
        %7151 = vmatpush1.bf16.msra.mxu0 %v6409
        %7152 = vmatprep.subr.bf16.mxu0 %v6403
        %7153 = vmatpush1.bf16.msra.mxu0 %v6402
        %7154 = vmatprep.subr.bf16.mxu0 %v6396
        %7155 = vmatpush1.bf16.msra.mxu0 %v6395
        %7156 = vmatprep.subr.bf16.mxu0 %v6389
        %7157 = vmatpush1.bf16.msra.mxu0 %v6388
        %7158 = vmatprep.subr.bf16.mxu0 %v6494
        %7159 = vmatpush2.bf16.msra.mxu0 %v6493
        %7160 = vmatprep.subr.bf16.mxu0 %v6487
        %7161 = vmatpush2.bf16.msra.mxu0 %v6486
        %7162 = vmatprep.subr.bf16.mxu0 %v6480
        %7163 = vmatpush2.bf16.msra.mxu0 %v6479
        %7164 = vmatprep.subr.bf16.mxu0 %v6473
        %7165 = vmatpush2.bf16.msra.mxu0 %v6472
        %7166 = vmatprep.subr.bf16.mxu0 %v6466
        %7167 = vmatpush2.bf16.msra.mxu0 %v6465
        %7168 = vmatprep.subr.bf16.mxu0 %v6459
        %7169 = vmatpush2.bf16.msra.mxu0 %v6458
        %7170 = vmatprep.subr.bf16.mxu0 %v6452
        %7171 = vmatpush2.bf16.msra.mxu0 %v6451
        %7172 = vmatprep.subr.bf16.mxu0 %v6445
        %7173 = vmatpush2.bf16.msra.mxu0 %v6444
        %7174 = vmatprep.mubr.bf16.mxu0 %v4204
        %7175 = vmatmul.mubr.bf16.gmra.mxu0 %v4203
        %v7176 = vpop.f32.mrf.mxu0
        %v7177 = vadd.f32 %v7136, %v7176
        %v7178 = vpop.f32.mrf.mxu0
        %v7179 = vadd.f32 %v7138, %v7178
        %v7180 = vpop.f32.mrf.mxu0
        %v7181 = vpop.f32.mrf.mxu0
        %7182 = vdwg.mxu0
        %7183 = vmatprep.subr.bf16.mxu0 %v6550
        %7184 = vmatpush1.bf16.msra.mxu0 %v6549
        %7185 = vmatprep.subr.bf16.mxu0 %v6543
        %7186 = vmatpush1.bf16.msra.mxu0 %v6542
        %7187 = vmatprep.subr.bf16.mxu0 %v6536
        %7188 = vmatpush1.bf16.msra.mxu0 %v6535
        %7189 = vmatprep.subr.bf16.mxu0 %v6529
        %7190 = vmatpush1.bf16.msra.mxu0 %v6528
        %7191 = vmatprep.subr.bf16.mxu0 %v6522
        %7192 = vmatpush1.bf16.msra.mxu0 %v6521
        %7193 = vmatprep.subr.bf16.mxu0 %v6515
        %7194 = vmatpush1.bf16.msra.mxu0 %v6514
        %7195 = vmatprep.subr.bf16.mxu0 %v6508
        %7196 = vmatpush1.bf16.msra.mxu0 %v6507
        %7197 = vmatprep.subr.bf16.mxu0 %v6501
        %7198 = vmatpush1.bf16.msra.mxu0 %v6500
        %7199 = vmatprep.subr.bf16.mxu0 %v6606
        %7200 = vmatpush2.bf16.msra.mxu0 %v6605
        %7201 = vmatprep.subr.bf16.mxu0 %v6599
        %7202 = vmatpush2.bf16.msra.mxu0 %v6598
        %7203 = vmatprep.subr.bf16.mxu0 %v6592
        %7204 = vmatpush2.bf16.msra.mxu0 %v6591
        %7205 = vmatprep.subr.bf16.mxu0 %v6585
        %7206 = vmatpush2.bf16.msra.mxu0 %v6584
        %7207 = vmatprep.subr.bf16.mxu0 %v6578
        %7208 = vmatpush2.bf16.msra.mxu0 %v6577
        %7209 = vmatprep.subr.bf16.mxu0 %v6571
        %7210 = vmatpush2.bf16.msra.mxu0 %v6570
        %7211 = vmatprep.subr.bf16.mxu0 %v6564
        %7212 = vmatpush2.bf16.msra.mxu0 %v6563
        %7213 = vmatprep.subr.bf16.mxu0 %v6557
        %7214 = vmatpush2.bf16.msra.mxu0 %v6556
        %7215 = vmatprep.mubr.bf16.mxu0 %v4206
        %7216 = vmatmul.mubr.bf16.gmra.mxu0 %v4205
        %v7217 = vpop.f32.mrf.mxu0
        %v7218 = vadd.f32 %v7177, %v7217
        %v7219 = vpop.f32.mrf.mxu0
        %v7220 = vadd.f32 %v7179, %v7219
        %v7221 = vpop.f32.mrf.mxu0
        %v7222 = vpop.f32.mrf.mxu0
        %7223 = vdwg.mxu0
        %7224 = vmatprep.subr.bf16.mxu0 %v6216
        %7225 = vmatpush1.bf16.msra.mxu0 %v6215
        %7226 = vmatprep.subr.bf16.mxu0 %v6209
        %7227 = vmatpush1.bf16.msra.mxu0 %v6208
        %7228 = vmatprep.subr.bf16.mxu0 %v6202
        %7229 = vmatpush1.bf16.msra.mxu0 %v6201
        %7230 = vmatprep.subr.bf16.mxu0 %v6195
        %7231 = vmatpush1.bf16.msra.mxu0 %v6194
        %7232 = vmatprep.subr.bf16.mxu0 %v6188
        %7233 = vmatpush1.bf16.msra.mxu0 %v6187
        %7234 = vmatprep.subr.bf16.mxu0 %v6181
        %7235 = vmatpush1.bf16.msra.mxu0 %v6180
        %7236 = vmatprep.subr.bf16.mxu0 %v6174
        %7237 = vmatpush1.bf16.msra.mxu0 %v6173
        %7238 = vmatprep.subr.bf16.mxu0 %v6167
        %7239 = vmatpush1.bf16.msra.mxu0 %v6166
        %7240 = vmatprep.subr.bf16.mxu0 %v6272
        %7241 = vmatpush2.bf16.msra.mxu0 %v6271
        %7242 = vmatprep.subr.bf16.mxu0 %v6265
        %7243 = vmatpush2.bf16.msra.mxu0 %v6264
        %7244 = vmatprep.subr.bf16.mxu0 %v6258
        %7245 = vmatpush2.bf16.msra.mxu0 %v6257
        %7246 = vmatprep.subr.bf16.mxu0 %v6251
        %7247 = vmatpush2.bf16.msra.mxu0 %v6250
        %7248 = vmatprep.subr.bf16.mxu0 %v6244
        %7249 = vmatpush2.bf16.msra.mxu0 %v6243
        %7250 = vmatprep.subr.bf16.mxu0 %v6237
        %7251 = vmatpush2.bf16.msra.mxu0 %v6236
        %7252 = vmatprep.subr.bf16.mxu0 %v6230
        %7253 = vmatpush2.bf16.msra.mxu0 %v6229
        %7254 = vmatprep.subr.bf16.mxu0 %v6223
        %7255 = vmatpush2.bf16.msra.mxu0 %v6222
        %7256 = vmatprep.mubr.bf16.mxu0 %v4200
        %7257 = vmatmul.mubr.bf16.gmra.mxu0 %v4199
        %v7258 = vpop.f32.mrf.mxu0
        %v7259 = vadd.f32 %v4732, %v7258
        %v7260 = vpop.f32.mrf.mxu0
        %v7261 = vadd.f32 %v4736, %v7260
        %v7262 = vpop.f32.mrf.mxu0
        %v7263 = vpop.f32.mrf.mxu0
        %7264 = vdwg.mxu0
        %7265 = vmatprep.subr.bf16.mxu0 %v6328
        %7266 = vmatpush1.bf16.msra.mxu0 %v6327
        %7267 = vmatprep.subr.bf16.mxu0 %v6321
        %7268 = vmatpush1.bf16.msra.mxu0 %v6320
        %7269 = vmatprep.subr.bf16.mxu0 %v6314
        %7270 = vmatpush1.bf16.msra.mxu0 %v6313
        %7271 = vmatprep.subr.bf16.mxu0 %v6307
        %7272 = vmatpush1.bf16.msra.mxu0 %v6306
        %7273 = vmatprep.subr.bf16.mxu0 %v6300
        %7274 = vmatpush1.bf16.msra.mxu0 %v6299
        %7275 = vmatprep.subr.bf16.mxu0 %v6293
        %7276 = vmatpush1.bf16.msra.mxu0 %v6292
        %7277 = vmatprep.subr.bf16.mxu0 %v6286
        %7278 = vmatpush1.bf16.msra.mxu0 %v6285
        %7279 = vmatprep.subr.bf16.mxu0 %v6279
        %7280 = vmatpush1.bf16.msra.mxu0 %v6278
        %7281 = vmatprep.subr.bf16.mxu0 %v6384
        %7282 = vmatpush2.bf16.msra.mxu0 %v6383
        %7283 = vmatprep.subr.bf16.mxu0 %v6377
        %7284 = vmatpush2.bf16.msra.mxu0 %v6376
        %7285 = vmatprep.subr.bf16.mxu0 %v6370
        %7286 = vmatpush2.bf16.msra.mxu0 %v6369
        %7287 = vmatprep.subr.bf16.mxu0 %v6363
        %7288 = vmatpush2.bf16.msra.mxu0 %v6362
        %7289 = vmatprep.subr.bf16.mxu0 %v6356
        %7290 = vmatpush2.bf16.msra.mxu0 %v6355
        %7291 = vmatprep.subr.bf16.mxu0 %v6349
        %7292 = vmatpush2.bf16.msra.mxu0 %v6348
        %7293 = vmatprep.subr.bf16.mxu0 %v6342
        %7294 = vmatpush2.bf16.msra.mxu0 %v6341
        %7295 = vmatprep.subr.bf16.mxu0 %v6335
        %7296 = vmatpush2.bf16.msra.mxu0 %v6334
        %7297 = vmatprep.mubr.bf16.mxu0 %v4202
        %7298 = vmatmul.mubr.bf16.gmra.mxu0 %v4201
        %v7299 = vpop.f32.mrf.mxu0
        %v7300 = vadd.f32 %v7259, %v7299
        %v7301 = vpop.f32.mrf.mxu0
        %v7302 = vadd.f32 %v7261, %v7301
        %v7303 = vpop.f32.mrf.mxu0
        %v7304 = vpop.f32.mrf.mxu0
        %7305 = vdwg.mxu0
        %7306 = vmatprep.subr.bf16.mxu0 %v6440
        %7307 = vmatpush1.bf16.msra.mxu0 %v6439
        %7308 = vmatprep.subr.bf16.mxu0 %v6433
        %7309 = vmatpush1.bf16.msra.mxu0 %v6432
        %7310 = vmatprep.subr.bf16.mxu0 %v6426
        %7311 = vmatpush1.bf16.msra.mxu0 %v6425
        %7312 = vmatprep.subr.bf16.mxu0 %v6419
        %7313 = vmatpush1.bf16.msra.mxu0 %v6418
        %7314 = vmatprep.subr.bf16.mxu0 %v6412
        %7315 = vmatpush1.bf16.msra.mxu0 %v6411
        %7316 = vmatprep.subr.bf16.mxu0 %v6405
        %7317 = vmatpush1.bf16.msra.mxu0 %v6404
        %7318 = vmatprep.subr.bf16.mxu0 %v6398
        %7319 = vmatpush1.bf16.msra.mxu0 %v6397
        %7320 = vmatprep.subr.bf16.mxu0 %v6391
        %7321 = vmatpush1.bf16.msra.mxu0 %v6390
        %7322 = vmatprep.subr.bf16.mxu0 %v6496
        %7323 = vmatpush2.bf16.msra.mxu0 %v6495
        %7324 = vmatprep.subr.bf16.mxu0 %v6489
        %7325 = vmatpush2.bf16.msra.mxu0 %v6488
        %7326 = vmatprep.subr.bf16.mxu0 %v6482
        %7327 = vmatpush2.bf16.msra.mxu0 %v6481
        %7328 = vmatprep.subr.bf16.mxu0 %v6475
        %7329 = vmatpush2.bf16.msra.mxu0 %v6474
        %7330 = vmatprep.subr.bf16.mxu0 %v6468
        %7331 = vmatpush2.bf16.msra.mxu0 %v6467
        %7332 = vmatprep.subr.bf16.mxu0 %v6461
        %7333 = vmatpush2.bf16.msra.mxu0 %v6460
        %7334 = vmatprep.subr.bf16.mxu0 %v6454
        %7335 = vmatpush2.bf16.msra.mxu0 %v6453
        %7336 = vmatprep.subr.bf16.mxu0 %v6447
        %7337 = vmatpush2.bf16.msra.mxu0 %v6446
        %7338 = vmatprep.mubr.bf16.mxu0 %v4204
        %7339 = vmatmul.mubr.bf16.gmra.mxu0 %v4203
        %v7340 = vpop.f32.mrf.mxu0
        %v7341 = vadd.f32 %v7300, %v7340
        %v7342 = vpop.f32.mrf.mxu0
        %v7343 = vadd.f32 %v7302, %v7342
        %v7344 = vpop.f32.mrf.mxu0
        %v7345 = vpop.f32.mrf.mxu0
        %7346 = vdwg.mxu0
        %7347 = vmatprep.subr.bf16.mxu0 %v6552
        %7348 = vmatpush1.bf16.msra.mxu0 %v6551
        %7349 = vmatprep.subr.bf16.mxu0 %v6545
        %7350 = vmatpush1.bf16.msra.mxu0 %v6544
        %7351 = vmatprep.subr.bf16.mxu0 %v6538
        %7352 = vmatpush1.bf16.msra.mxu0 %v6537
        %7353 = vmatprep.subr.bf16.mxu0 %v6531
        %7354 = vmatpush1.bf16.msra.mxu0 %v6530
        %7355 = vmatprep.subr.bf16.mxu0 %v6524
        %7356 = vmatpush1.bf16.msra.mxu0 %v6523
        %7357 = vmatprep.subr.bf16.mxu0 %v6517
        %7358 = vmatpush1.bf16.msra.mxu0 %v6516
        %7359 = vmatprep.subr.bf16.mxu0 %v6510
        %7360 = vmatpush1.bf16.msra.mxu0 %v6509
        %7361 = vmatprep.subr.bf16.mxu0 %v6503
        %7362 = vmatpush1.bf16.msra.mxu0 %v6502
        %7363 = vmatprep.subr.bf16.mxu0 %v6608
        %7364 = vmatpush2.bf16.msra.mxu0 %v6607
        %7365 = vmatprep.subr.bf16.mxu0 %v6601
        %7366 = vmatpush2.bf16.msra.mxu0 %v6600
        %7367 = vmatprep.subr.bf16.mxu0 %v6594
        %7368 = vmatpush2.bf16.msra.mxu0 %v6593
        %7369 = vmatprep.subr.bf16.mxu0 %v6587
        %7370 = vmatpush2.bf16.msra.mxu0 %v6586
        %7371 = vmatprep.subr.bf16.mxu0 %v6580
        %7372 = vmatpush2.bf16.msra.mxu0 %v6579
        %7373 = vmatprep.subr.bf16.mxu0 %v6573
        %7374 = vmatpush2.bf16.msra.mxu0 %v6572
        %7375 = vmatprep.subr.bf16.mxu0 %v6566
        %7376 = vmatpush2.bf16.msra.mxu0 %v6565
        %7377 = vmatprep.subr.bf16.mxu0 %v6559
        %7378 = vmatpush2.bf16.msra.mxu0 %v6558
        %7379 = vmatprep.mubr.bf16.mxu0 %v4206
        %7380 = vmatmul.mubr.bf16.gmra.mxu0 %v4205
        %v7381 = vpop.f32.mrf.mxu0
        %v7382 = vadd.f32 %v7341, %v7381
        %v7383 = vpop.f32.mrf.mxu0
        %v7384 = vadd.f32 %v7343, %v7383
        %v7385 = vpop.f32.mrf.mxu0
        %v7386 = vpop.f32.mrf.mxu0
        %7387 = vdwg.mxu0
        %7388 = vmatprep.subr.bf16.mxu0 %v6218
        %7389 = vmatpush1.bf16.msra.mxu0 %v6217
        %7390 = vmatprep.subr.bf16.mxu0 %v6211
        %7391 = vmatpush1.bf16.msra.mxu0 %v6210
        %7392 = vmatprep.subr.bf16.mxu0 %v6204
        %7393 = vmatpush1.bf16.msra.mxu0 %v6203
        %7394 = vmatprep.subr.bf16.mxu0 %v6197
        %7395 = vmatpush1.bf16.msra.mxu0 %v6196
        %7396 = vmatprep.subr.bf16.mxu0 %v6190
        %7397 = vmatpush1.bf16.msra.mxu0 %v6189
        %7398 = vmatprep.subr.bf16.mxu0 %v6183
        %7399 = vmatpush1.bf16.msra.mxu0 %v6182
        %7400 = vmatprep.subr.bf16.mxu0 %v6176
        %7401 = vmatpush1.bf16.msra.mxu0 %v6175
        %7402 = vmatprep.subr.bf16.mxu0 %v6169
        %7403 = vmatpush1.bf16.msra.mxu0 %v6168
        %7404 = vmatprep.subr.bf16.mxu0 %v6274
        %7405 = vmatpush2.bf16.msra.mxu0 %v6273
        %7406 = vmatprep.subr.bf16.mxu0 %v6267
        %7407 = vmatpush2.bf16.msra.mxu0 %v6266
        %7408 = vmatprep.subr.bf16.mxu0 %v6260
        %7409 = vmatpush2.bf16.msra.mxu0 %v6259
        %7410 = vmatprep.subr.bf16.mxu0 %v6253
        %7411 = vmatpush2.bf16.msra.mxu0 %v6252
        %7412 = vmatprep.subr.bf16.mxu0 %v6246
        %7413 = vmatpush2.bf16.msra.mxu0 %v6245
        %7414 = vmatprep.subr.bf16.mxu0 %v6239
        %7415 = vmatpush2.bf16.msra.mxu0 %v6238
        %7416 = vmatprep.subr.bf16.mxu0 %v6232
        %7417 = vmatpush2.bf16.msra.mxu0 %v6231
        %7418 = vmatprep.subr.bf16.mxu0 %v6225
        %7419 = vmatpush2.bf16.msra.mxu0 %v6224
        %7420 = vmatprep.mubr.bf16.mxu0 %v4200
        %7421 = vmatmul.mubr.bf16.gmra.mxu0 %v4199
        %v7422 = vpop.f32.mrf.mxu0
        %v7423 = vadd.f32 %v4740, %v7422
        %v7424 = vpop.f32.mrf.mxu0
        %v7425 = vadd.f32 %v4744, %v7424
        %v7426 = vpop.f32.mrf.mxu0
        %v7427 = vpop.f32.mrf.mxu0
        %7428 = vdwg.mxu0
        %7429 = vmatprep.subr.bf16.mxu0 %v6330
        %7430 = vmatpush1.bf16.msra.mxu0 %v6329
        %7431 = vmatprep.subr.bf16.mxu0 %v6323
        %7432 = vmatpush1.bf16.msra.mxu0 %v6322
        %7433 = vmatprep.subr.bf16.mxu0 %v6316
        %7434 = vmatpush1.bf16.msra.mxu0 %v6315
        %7435 = vmatprep.subr.bf16.mxu0 %v6309
        %7436 = vmatpush1.bf16.msra.mxu0 %v6308
        %7437 = vmatprep.subr.bf16.mxu0 %v6302
        %7438 = vmatpush1.bf16.msra.mxu0 %v6301
        %7439 = vmatprep.subr.bf16.mxu0 %v6295
        %7440 = vmatpush1.bf16.msra.mxu0 %v6294
        %7441 = vmatprep.subr.bf16.mxu0 %v6288
        %7442 = vmatpush1.bf16.msra.mxu0 %v6287
        %7443 = vmatprep.subr.bf16.mxu0 %v6281
        %7444 = vmatpush1.bf16.msra.mxu0 %v6280
        %7445 = vmatprep.subr.bf16.mxu0 %v6386
        %7446 = vmatpush2.bf16.msra.mxu0 %v6385
        %7447 = vmatprep.subr.bf16.mxu0 %v6379
        %7448 = vmatpush2.bf16.msra.mxu0 %v6378
        %7449 = vmatprep.subr.bf16.mxu0 %v6372
        %7450 = vmatpush2.bf16.msra.mxu0 %v6371
        %7451 = vmatprep.subr.bf16.mxu0 %v6365
        %7452 = vmatpush2.bf16.msra.mxu0 %v6364
        %7453 = vmatprep.subr.bf16.mxu0 %v6358
        %7454 = vmatpush2.bf16.msra.mxu0 %v6357
        %7455 = vmatprep.subr.bf16.mxu0 %v6351
        %7456 = vmatpush2.bf16.msra.mxu0 %v6350
        %7457 = vmatprep.subr.bf16.mxu0 %v6344
        %7458 = vmatpush2.bf16.msra.mxu0 %v6343
        %7459 = vmatprep.subr.bf16.mxu0 %v6337
        %7460 = vmatpush2.bf16.msra.mxu0 %v6336
        %7461 = vmatprep.mubr.bf16.mxu0 %v4202
        %7462 = vmatmul.mubr.bf16.gmra.mxu0 %v4201
        %v7463 = vpop.f32.mrf.mxu0
        %v7464 = vadd.f32 %v7423, %v7463
        %v7465 = vpop.f32.mrf.mxu0
        %v7466 = vadd.f32 %v7425, %v7465
        %v7467 = vpop.f32.mrf.mxu0
        %v7468 = vpop.f32.mrf.mxu0
        %7469 = vdwg.mxu0
        %7470 = vmatprep.subr.bf16.mxu0 %v6442
        %7471 = vmatpush1.bf16.msra.mxu0 %v6441
        %7472 = vmatprep.subr.bf16.mxu0 %v6435
        %7473 = vmatpush1.bf16.msra.mxu0 %v6434
        %7474 = vmatprep.subr.bf16.mxu0 %v6428
        %7475 = vmatpush1.bf16.msra.mxu0 %v6427
        %7476 = vmatprep.subr.bf16.mxu0 %v6421
        %7477 = vmatpush1.bf16.msra.mxu0 %v6420
        %7478 = vmatprep.subr.bf16.mxu0 %v6414
        %7479 = vmatpush1.bf16.msra.mxu0 %v6413
        %7480 = vmatprep.subr.bf16.mxu0 %v6407
        %7481 = vmatpush1.bf16.msra.mxu0 %v6406
        %7482 = vmatprep.subr.bf16.mxu0 %v6400
        %7483 = vmatpush1.bf16.msra.mxu0 %v6399
        %7484 = vmatprep.subr.bf16.mxu0 %v6393
        %7485 = vmatpush1.bf16.msra.mxu0 %v6392
        %7486 = vmatprep.subr.bf16.mxu0 %v6498
        %7487 = vmatpush2.bf16.msra.mxu0 %v6497
        %7488 = vmatprep.subr.bf16.mxu0 %v6491
        %7489 = vmatpush2.bf16.msra.mxu0 %v6490
        %7490 = vmatprep.subr.bf16.mxu0 %v6484
        %7491 = vmatpush2.bf16.msra.mxu0 %v6483
        %7492 = vmatprep.subr.bf16.mxu0 %v6477
        %7493 = vmatpush2.bf16.msra.mxu0 %v6476
        %7494 = vmatprep.subr.bf16.mxu0 %v6470
        %7495 = vmatpush2.bf16.msra.mxu0 %v6469
        %7496 = vmatprep.subr.bf16.mxu0 %v6463
        %7497 = vmatpush2.bf16.msra.mxu0 %v6462
        %7498 = vmatprep.subr.bf16.mxu0 %v6456
        %7499 = vmatpush2.bf16.msra.mxu0 %v6455
        %7500 = vmatprep.subr.bf16.mxu0 %v6449
        %7501 = vmatpush2.bf16.msra.mxu0 %v6448
        %7502 = vmatprep.mubr.bf16.mxu0 %v4204
        %7503 = vmatmul.mubr.bf16.gmra.mxu0 %v4203
        %v7504 = vpop.f32.mrf.mxu0
        %v7505 = vadd.f32 %v7464, %v7504
        %v7506 = vpop.f32.mrf.mxu0
        %v7507 = vadd.f32 %v7466, %v7506
        %v7508 = vpop.f32.mrf.mxu0
        %v7509 = vpop.f32.mrf.mxu0
        %7510 = vdwg.mxu0
        %7511 = vmatprep.subr.bf16.mxu0 %v6554
        %7512 = vmatpush1.bf16.msra.mxu0 %v6553
        %7513 = vmatprep.subr.bf16.mxu0 %v6547
        %7514 = vmatpush1.bf16.msra.mxu0 %v6546
        %7515 = vmatprep.subr.bf16.mxu0 %v6540
        %7516 = vmatpush1.bf16.msra.mxu0 %v6539
        %7517 = vmatprep.subr.bf16.mxu0 %v6533
        %7518 = vmatpush1.bf16.msra.mxu0 %v6532
        %7519 = vmatprep.subr.bf16.mxu0 %v6526
        %7520 = vmatpush1.bf16.msra.mxu0 %v6525
        %7521 = vmatprep.subr.bf16.mxu0 %v6519
        %7522 = vmatpush1.bf16.msra.mxu0 %v6518
        %7523 = vmatprep.subr.bf16.mxu0 %v6512
        %7524 = vmatpush1.bf16.msra.mxu0 %v6511
        %7525 = vmatprep.subr.bf16.mxu0 %v6505
        %7526 = vmatpush1.bf16.msra.mxu0 %v6504
        %7527 = vmatprep.subr.bf16.mxu0 %v6610
        %7528 = vmatpush2.bf16.msra.mxu0 %v6609
        %7529 = vmatprep.subr.bf16.mxu0 %v6603
        %7530 = vmatpush2.bf16.msra.mxu0 %v6602
        %7531 = vmatprep.subr.bf16.mxu0 %v6596
        %7532 = vmatpush2.bf16.msra.mxu0 %v6595
        %7533 = vmatprep.subr.bf16.mxu0 %v6589
        %7534 = vmatpush2.bf16.msra.mxu0 %v6588
        %7535 = vmatprep.subr.bf16.mxu0 %v6582
        %7536 = vmatpush2.bf16.msra.mxu0 %v6581
        %7537 = vmatprep.subr.bf16.mxu0 %v6575
        %7538 = vmatpush2.bf16.msra.mxu0 %v6574
        %7539 = vmatprep.subr.bf16.mxu0 %v6568
        %7540 = vmatpush2.bf16.msra.mxu0 %v6567
        %7541 = vmatprep.subr.bf16.mxu0 %v6561
        %7542 = vmatpush2.bf16.msra.mxu0 %v6560
        %7543 = vmatprep.mubr.bf16.mxu0 %v4206
        %7544 = vmatmul.mubr.bf16.gmra.mxu0 %v4205
        %v7545 = vpop.f32.mrf.mxu0
        %v7546 = vadd.f32 %v7505, %v7545
        %v7547 = vpop.f32.mrf.mxu0
        %v7548 = vadd.f32 %v7507, %v7547
        %v7549 = vpop.f32.mrf.mxu0
        %v7550 = vpop.f32.mrf.mxu0
        %7551 = vdwg.mxu0
        %7552 = vmatprep.subr.bf16.mxu0 0
        %7553 = vmatpush1.bf16.msra.mxu0 %v6219
        %7554 = vmatprep.subr.bf16.mxu0 0
        %7555 = vmatpush1.bf16.msra.mxu0 %v6212
        %7556 = vmatprep.subr.bf16.mxu0 0
        %7557 = vmatpush1.bf16.msra.mxu0 %v6205
        %7558 = vmatprep.subr.bf16.mxu0 0
        %7559 = vmatpush1.bf16.msra.mxu0 %v6198
        %7560 = vmatprep.subr.bf16.mxu0 0
        %7561 = vmatpush1.bf16.msra.mxu0 %v6191
        %7562 = vmatprep.subr.bf16.mxu0 0
        %7563 = vmatpush1.bf16.msra.mxu0 %v6184
        %7564 = vmatprep.subr.bf16.mxu0 0
        %7565 = vmatpush1.bf16.msra.mxu0 %v6177
        %7566 = vmatprep.subr.bf16.mxu0 0
        %7567 = vmatpush1.bf16.msra.mxu0 %v6170
        %7568 = vmatprep.subr.bf16.mxu0 0
        %7569 = vmatpush2.bf16.msra.mxu0 %v6275
        %7570 = vmatprep.subr.bf16.mxu0 0
        %7571 = vmatpush2.bf16.msra.mxu0 %v6268
        %7572 = vmatprep.subr.bf16.mxu0 0
        %7573 = vmatpush2.bf16.msra.mxu0 %v6261
        %7574 = vmatprep.subr.bf16.mxu0 0
        %7575 = vmatpush2.bf16.msra.mxu0 %v6254
        %7576 = vmatprep.subr.bf16.mxu0 0
        %7577 = vmatpush2.bf16.msra.mxu0 %v6247
        %7578 = vmatprep.subr.bf16.mxu0 0
        %7579 = vmatpush2.bf16.msra.mxu0 %v6240
        %7580 = vmatprep.subr.bf16.mxu0 0
        %7581 = vmatpush2.bf16.msra.mxu0 %v6233
        %7582 = vmatprep.subr.bf16.mxu0 0
        %7583 = vmatpush2.bf16.msra.mxu0 %v6226
        %7584 = vmatprep.mubr.bf16.mxu0 %v4200
        %7585 = vmatmul.mubr.bf16.gmra.mxu0 %v4199
        %v7586 = vpop.f32.mrf.mxu0
        %v7587 = vadd.f32 %v4748, %v7586
        %v7588 = vpop.f32.mrf.mxu0
        %v7589 = vpop.f32.mrf.mxu0
        %v7590 = vpop.f32.mrf.mxu0
        %7591 = vdwg.mxu0
        %7592 = vmatprep.subr.bf16.mxu0 0
        %7593 = vmatpush1.bf16.msra.mxu0 %v6331
        %7594 = vmatprep.subr.bf16.mxu0 0
        %7595 = vmatpush1.bf16.msra.mxu0 %v6324
        %7596 = vmatprep.subr.bf16.mxu0 0
        %7597 = vmatpush1.bf16.msra.mxu0 %v6317
        %7598 = vmatprep.subr.bf16.mxu0 0
        %7599 = vmatpush1.bf16.msra.mxu0 %v6310
        %7600 = vmatprep.subr.bf16.mxu0 0
        %7601 = vmatpush1.bf16.msra.mxu0 %v6303
        %7602 = vmatprep.subr.bf16.mxu0 0
        %7603 = vmatpush1.bf16.msra.mxu0 %v6296
        %7604 = vmatprep.subr.bf16.mxu0 0
        %7605 = vmatpush1.bf16.msra.mxu0 %v6289
        %7606 = vmatprep.subr.bf16.mxu0 0
        %7607 = vmatpush1.bf16.msra.mxu0 %v6282
        %7608 = vmatprep.subr.bf16.mxu0 0
        %7609 = vmatpush2.bf16.msra.mxu0 %v6387
        %7610 = vmatprep.subr.bf16.mxu0 0
        %7611 = vmatpush2.bf16.msra.mxu0 %v6380
        %7612 = vmatprep.subr.bf16.mxu0 0
        %7613 = vmatpush2.bf16.msra.mxu0 %v6373
        %7614 = vmatprep.subr.bf16.mxu0 0
        %7615 = vmatpush2.bf16.msra.mxu0 %v6366
        %7616 = vmatprep.subr.bf16.mxu0 0
        %7617 = vmatpush2.bf16.msra.mxu0 %v6359
        %7618 = vmatprep.subr.bf16.mxu0 0
        %7619 = vmatpush2.bf16.msra.mxu0 %v6352
        %7620 = vmatprep.subr.bf16.mxu0 0
        %7621 = vmatpush2.bf16.msra.mxu0 %v6345
        %7622 = vmatprep.subr.bf16.mxu0 0
        %7623 = vmatpush2.bf16.msra.mxu0 %v6338
        %7624 = vmatprep.mubr.bf16.mxu0 %v4202
        %7625 = vmatmul.mubr.bf16.gmra.mxu0 %v4201
        %v7626 = vpop.f32.mrf.mxu0
        %v7627 = vadd.f32 %v7587, %v7626
        %v7628 = vpop.f32.mrf.mxu0
        %v7629 = vpop.f32.mrf.mxu0
        %v7630 = vpop.f32.mrf.mxu0
        %7631 = vdwg.mxu0
        %7632 = vmatprep.subr.bf16.mxu0 0
        %7633 = vmatpush1.bf16.msra.mxu0 %v6443
        %7634 = vmatprep.subr.bf16.mxu0 0
        %7635 = vmatpush1.bf16.msra.mxu0 %v6436
        %7636 = vmatprep.subr.bf16.mxu0 0
        %7637 = vmatpush1.bf16.msra.mxu0 %v6429
        %7638 = vmatprep.subr.bf16.mxu0 0
        %7639 = vmatpush1.bf16.msra.mxu0 %v6422
        %7640 = vmatprep.subr.bf16.mxu0 0
        %7641 = vmatpush1.bf16.msra.mxu0 %v6415
        %7642 = vmatprep.subr.bf16.mxu0 0
        %7643 = vmatpush1.bf16.msra.mxu0 %v6408
        %7644 = vmatprep.subr.bf16.mxu0 0
        %7645 = vmatpush1.bf16.msra.mxu0 %v6401
        %7646 = vmatprep.subr.bf16.mxu0 0
        %7647 = vmatpush1.bf16.msra.mxu0 %v6394
        %7648 = vmatprep.subr.bf16.mxu0 0
        %7649 = vmatpush2.bf16.msra.mxu0 %v6499
        %7650 = vmatprep.subr.bf16.mxu0 0
        %7651 = vmatpush2.bf16.msra.mxu0 %v6492
        %7652 = vmatprep.subr.bf16.mxu0 0
        %7653 = vmatpush2.bf16.msra.mxu0 %v6485
        %7654 = vmatprep.subr.bf16.mxu0 0
        %7655 = vmatpush2.bf16.msra.mxu0 %v6478
        %7656 = vmatprep.subr.bf16.mxu0 0
        %7657 = vmatpush2.bf16.msra.mxu0 %v6471
        %7658 = vmatprep.subr.bf16.mxu0 0
        %7659 = vmatpush2.bf16.msra.mxu0 %v6464
        %7660 = vmatprep.subr.bf16.mxu0 0
        %7661 = vmatpush2.bf16.msra.mxu0 %v6457
        %7662 = vmatprep.subr.bf16.mxu0 0
        %7663 = vmatpush2.bf16.msra.mxu0 %v6450
        %7664 = vmatprep.mubr.bf16.mxu0 %v4204
        %7665 = vmatmul.mubr.bf16.gmra.mxu0 %v4203
        %v7666 = vpop.f32.mrf.mxu0
        %v7667 = vadd.f32 %v7627, %v7666
        %v7668 = vpop.f32.mrf.mxu0
        %v7669 = vpop.f32.mrf.mxu0
        %v7670 = vpop.f32.mrf.mxu0
        %7671 = vdwg.mxu0
        %7672 = vmatprep.subr.bf16.mxu0 0
        %7673 = vmatpush1.bf16.msra.mxu0 %v6555
        %7674 = vmatprep.subr.bf16.mxu0 0
        %7675 = vmatpush1.bf16.msra.mxu0 %v6548
        %7676 = vmatprep.subr.bf16.mxu0 0
        %7677 = vmatpush1.bf16.msra.mxu0 %v6541
        %7678 = vmatprep.subr.bf16.mxu0 0
        %7679 = vmatpush1.bf16.msra.mxu0 %v6534
        %7680 = vmatprep.subr.bf16.mxu0 0
        %7681 = vmatpush1.bf16.msra.mxu0 %v6527
        %7682 = vmatprep.subr.bf16.mxu0 0
        %7683 = vmatpush1.bf16.msra.mxu0 %v6520
        %7684 = vmatprep.subr.bf16.mxu0 0
        %7685 = vmatpush1.bf16.msra.mxu0 %v6513
        %7686 = vmatprep.subr.bf16.mxu0 0
        %7687 = vmatpush1.bf16.msra.mxu0 %v6506
        %7688 = vmatprep.subr.bf16.mxu0 0
        %7689 = vmatpush2.bf16.msra.mxu0 %v6611
        %7690 = vmatprep.subr.bf16.mxu0 0
        %7691 = vmatpush2.bf16.msra.mxu0 %v6604
        %7692 = vmatprep.subr.bf16.mxu0 0
        %7693 = vmatpush2.bf16.msra.mxu0 %v6597
        %7694 = vmatprep.subr.bf16.mxu0 0
        %7695 = vmatpush2.bf16.msra.mxu0 %v6590
        %7696 = vmatprep.subr.bf16.mxu0 0
        %7697 = vmatpush2.bf16.msra.mxu0 %v6583
        %7698 = vmatprep.subr.bf16.mxu0 0
        %7699 = vmatpush2.bf16.msra.mxu0 %v6576
        %7700 = vmatprep.subr.bf16.mxu0 0
        %7701 = vmatpush2.bf16.msra.mxu0 %v6569
        %7702 = vmatprep.subr.bf16.mxu0 0
        %7703 = vmatpush2.bf16.msra.mxu0 %v6562
        %7704 = vmatprep.mubr.bf16.mxu0 %v4206
        %7705 = vmatmul.mubr.bf16.gmra.mxu0 %v4205
        %v7706 = vpop.f32.mrf.mxu0
        %v7707 = vadd.f32 %v7667, %v7706
        %v7708 = vpop.f32.mrf.mxu0
        %v7709 = vpop.f32.mrf.mxu0
        %v7710 = vpop.f32.mrf.mxu0
        %7711 = vdwg.mxu0
        %v7712 = vmax.f32 %v7218, 0.0
        %v7713 = vmax.f32 %v7220, 0.0
        %v7714 = vmax.f32 %v7382, 0.0
        %v7715 = vmax.f32 %v7384, 0.0
        %v7716 = vmax.f32 %v7546, 0.0
        %v7717 = vmax.f32 %v7548, 0.0
        %v7718 = vmax.f32 %v7707, 0.0
        %v7719 = vpack.c.bf16 %v7712, %v7712
        %v7720 = vpack.c.bf16 %v7713, %v7713
        %v7721 = vpack.c.bf16 %v7714, %v7714
        %v7722 = vpack.c.bf16 %v7715, %v7715
        %v7723 = vpack.c.bf16 %v7716, %v7716
        %v7724 = vpack.c.bf16 %v7717, %v7717
        %v7725 = vpack.c.bf16 %v7718, %v7718
        %v7726 = vld [vmem:[%s5] sm:$0xff]
        %v7727 = vld [vmem:[%s5 + $0x8] sm:$0xff]
        %v7728 = vld [vmem:[%s5 + $0x10] sm:$0xff]
        %v7729 = vld [vmem:[%s5 + $0x18] sm:$0xff]
        %v7730 = vld [vmem:[%s5 + $0x20] sm:$0xff]
        %v7731 = vld [vmem:[%s5 + $0x28] sm:$0xff]
        %v7732 = vld [vmem:[%s5 + $0x30] sm:$0xff]
        %v7733 = vld [vmem:[%s5 + $0x38] sm:$0xff]
        %v7734 = vld [vmem:[%s5 + $0x40] sm:$0xff]
        %v7735 = vld [vmem:[%s5 + $0x48] sm:$0xff]
        %v7736 = vld [vmem:[%s5 + $0x50] sm:$0xff]
        %v7737 = vld [vmem:[%s5 + $0x58] sm:$0xff]
        %v7738 = vld [vmem:[%s5 + $0x60] sm:$0xff]
        %v7739 = vld [vmem:[%s5 + $0x68] sm:$0xff]
        %v7740 = vld [vmem:[%s5 + $0x70] sm:$0xff]
        %v7741 = vld [vmem:[%s5 + $0x78] sm:$0xff]
        %v7742 = vld [vmem:[%s5 + $0x80] sm:$0xff]
        %v7743 = vld [vmem:[%s5 + $0x88] sm:$0xff]
        %v7744 = vld [vmem:[%s5 + $0x90] sm:$0xff]
        %v7745 = vld [vmem:[%s5 + $0x98] sm:$0xff]
        %v7746 = vld [vmem:[%s5 + $0xa0] sm:$0xff]
        %v7747 = vld [vmem:[%s5 + $0xa8] sm:$0xff]
        %v7748 = vld [vmem:[%s5 + $0xb0] sm:$0xff]
        %v7749 = vld [vmem:[%s5 + $0xb8] sm:$0xff]
        %v7750 = vld [vmem:[%s5 + $0xc0] sm:$0xff]
        %v7751 = vld [vmem:[%s5 + $0xc8] sm:$0xff]
        %v7752 = vld [vmem:[%s5 + $0xd0] sm:$0xff]
        %v7753 = vld [vmem:[%s5 + $0xd8] sm:$0xff]
        %v7754 = vld [vmem:[%s5 + $0xe0] sm:$0xff]
        %v7755 = vld [vmem:[%s5 + $0xe8] sm:$0xff]
        %v7756 = vld [vmem:[%s5 + $0xf0] sm:$0xff]
        %v7757 = vld [vmem:[%s5 + $0xf8] sm:$0xff]
        %v7758 = vld [vmem:[%s5 + $0x100] sm:$0xff]
        %v7759 = vld [vmem:[%s5 + $0x108] sm:$0xff]
        %v7760 = vld [vmem:[%s5 + $0x110] sm:$0xff]
        %v7761 = vld [vmem:[%s5 + $0x118] sm:$0xff]
        %v7762 = vld [vmem:[%s5 + $0x120] sm:$0xff]
        %v7763 = vld [vmem:[%s5 + $0x128] sm:$0xff]
        %v7764 = vld [vmem:[%s5 + $0x130] sm:$0xff]
        %v7765 = vld [vmem:[%s5 + $0x138] sm:$0xff]
        %v7766 = vld [vmem:[%s5 + $0x140] sm:$0xff]
        %v7767 = vld [vmem:[%s5 + $0x148] sm:$0xff]
        %v7768 = vld [vmem:[%s5 + $0x150] sm:$0xff]
        %v7769 = vld [vmem:[%s5 + $0x158] sm:$0xff]
        %v7770 = vld [vmem:[%s5 + $0x160] sm:$0xff]
        %v7771 = vld [vmem:[%s5 + $0x168] sm:$0xff]
        %v7772 = vld [vmem:[%s5 + $0x170] sm:$0xff]
        %v7773 = vld [vmem:[%s5 + $0x178] sm:$0xff]
        %v7774 = vld [vmem:[%s5 + $0x180] sm:$0xff]
        %v7775 = vld [vmem:[%s5 + $0x188] sm:$0xff]
        %v7776 = vld [vmem:[%s5 + $0x190] sm:$0xff]
        %v7777 = vld [vmem:[%s5 + $0x198] sm:$0xff]
        %v7778 = vld [vmem:[%s5 + $0x1a0] sm:$0xff]
        %v7779 = vld [vmem:[%s5 + $0x1a8] sm:$0xff]
        %v7780 = vld [vmem:[%s5 + $0x1b0] sm:$0xff]
        %v7781 = vld [vmem:[%s5 + $0x1b8] sm:$0xff]
        %v7782 = vld [vmem:[%s5 + $0x1c0] sm:$0xff]
        %v7783 = vld [vmem:[%s5 + $0x1c8] sm:$0xff]
        %v7784 = vld [vmem:[%s5 + $0x1d0] sm:$0xff]
        %v7785 = vld [vmem:[%s5 + $0x1d8] sm:$0xff]
        %v7786 = vld [vmem:[%s5 + $0x1e0] sm:$0xff]
        %v7787 = vld [vmem:[%s5 + $0x1e8] sm:$0xff]
        %v7788 = vld [vmem:[%s5 + $0x1f0] sm:$0xff]
        %v7789 = vld [vmem:[%s5 + $0x1f8] sm:$0xff]
        %v7790 = vld [vmem:[%s5 + $0x200] sm:$0xff]
        %v7791 = vld [vmem:[%s5 + $0x208] sm:$0xff]
        %v7792 = vld [vmem:[%s5 + $0x210] sm:$0xff]
        %v7793 = vld [vmem:[%s5 + $0x218] sm:$0xff]
        %v7794 = vld [vmem:[%s5 + $0x220] sm:$0xff]
        %v7795 = vld [vmem:[%s5 + $0x228] sm:$0xff]
        %v7796 = vld [vmem:[%s5 + $0x230] sm:$0xff]
        %v7797 = vld [vmem:[%s5 + $0x238] sm:$0xff]
        %v7798 = vld [vmem:[%s5 + $0x240] sm:$0xff]
        %v7799 = vld [vmem:[%s5 + $0x248] sm:$0xff]
        %v7800 = vld [vmem:[%s5 + $0x250] sm:$0xff]
        %v7801 = vld [vmem:[%s5 + $0x258] sm:$0xff]
        %v7802 = vld [vmem:[%s5 + $0x260] sm:$0xff]
        %v7803 = vld [vmem:[%s5 + $0x268] sm:$0xff]
        %v7804 = vld [vmem:[%s5 + $0x270] sm:$0xff]
        %v7805 = vld [vmem:[%s5 + $0x278] sm:$0xff]
        %v7806 = vld [vmem:[%s5 + $0x280] sm:$0xff]
        %v7807 = vld [vmem:[%s5 + $0x288] sm:$0xff]
        %v7808 = vld [vmem:[%s5 + $0x290] sm:$0xff]
        %v7809 = vld [vmem:[%s5 + $0x298] sm:$0xff]
        %v7810 = vld [vmem:[%s5 + $0x2a0] sm:$0xff]
        %v7811 = vld [vmem:[%s5 + $0x2a8] sm:$0xff]
        %v7812 = vld [vmem:[%s5 + $0x2b0] sm:$0xff]
        %v7813 = vld [vmem:[%s5 + $0x2b8] sm:$0xff]
        %v7814 = vld [vmem:[%s5 + $0x2c0] sm:$0xff]
        %v7815 = vld [vmem:[%s5 + $0x2c8] sm:$0xff]
        %v7816 = vld [vmem:[%s5 + $0x2d0] sm:$0xff]
        %v7817 = vld [vmem:[%s5 + $0x2d8] sm:$0xff]
        %v7818 = vld [vmem:[%s5 + $0x2e0] sm:$0xff]
        %v7819 = vld [vmem:[%s5 + $0x2e8] sm:$0xff]
        %v7820 = vld [vmem:[%s5 + $0x2f0] sm:$0xff]
        %v7821 = vld [vmem:[%s5 + $0x2f8] sm:$0xff]
        %v7822 = vld [vmem:[%s5 + $0x300] sm:$0xff]
        %v7823 = vld [vmem:[%s5 + $0x308] sm:$0xff]
        %v7824 = vld [vmem:[%s5 + $0x310] sm:$0xff]
        %v7825 = vld [vmem:[%s5 + $0x318] sm:$0xff]
        %v7826 = vld [vmem:[%s5 + $0x320] sm:$0xff]
        %v7827 = vld [vmem:[%s5 + $0x328] sm:$0xff]
        %v7828 = vld [vmem:[%s5 + $0x330] sm:$0xff]
        %v7829 = vld [vmem:[%s5 + $0x338] sm:$0xff]
        %v7830 = vld [vmem:[%s5 + $0x340] sm:$0xff]
        %v7831 = vld [vmem:[%s5 + $0x348] sm:$0xff]
        %v7832 = vld [vmem:[%s5 + $0x350] sm:$0xff]
        %v7833 = vld [vmem:[%s5 + $0x358] sm:$0xff]
        %v7834 = vld [vmem:[%s5 + $0x360] sm:$0xff]
        %v7835 = vld [vmem:[%s5 + $0x368] sm:$0xff]
        %v7836 = vld [vmem:[%s5 + $0x370] sm:$0xff]
        %v7837 = vld [vmem:[%s5 + $0x378] sm:$0xff]
        %v7838 = vld [vmem:[%s5 + $0x380] sm:$0xff]
        %v7839 = vld [vmem:[%s5 + $0x388] sm:$0xff]
        %v7840 = vld [vmem:[%s5 + $0x390] sm:$0xff]
        %v7841 = vld [vmem:[%s5 + $0x398] sm:$0xff]
        %v7842 = vld [vmem:[%s5 + $0x3a0] sm:$0xff]
        %v7843 = vld [vmem:[%s5 + $0x3a8] sm:$0xff]
        %v7844 = vld [vmem:[%s5 + $0x3b0] sm:$0xff]
        %v7845 = vld [vmem:[%s5 + $0x3b8] sm:$0xff]
        %v7846 = vld [vmem:[%s5 + $0x3c0] sm:$0xff]
        %v7847 = vld [vmem:[%s5 + $0x3c8] sm:$0xff]
        %v7848 = vld [vmem:[%s5 + $0x3d0] sm:$0xff]
        %v7849 = vld [vmem:[%s5 + $0x3d8] sm:$0xff]
        %v7850 = vld [vmem:[%s5 + $0x3e0] sm:$0xff]
        %v7851 = vld [vmem:[%s5 + $0x3e8] sm:$0xff]
        %v7852 = vld [vmem:[%s5 + $0x3f0] sm:$0xff]
        %v7853 = vld [vmem:[%s5 + $0x3f8] sm:$0xff]
        %v7854 = vld [vmem:[%s5 + $0x400] sm:$0xff]
        %v7855 = vld [vmem:[%s5 + $0x408] sm:$0xff]
        %v7856 = vld [vmem:[%s5 + $0x410] sm:$0xff]
        %v7857 = vld [vmem:[%s5 + $0x418] sm:$0xff]
        %v7858 = vld [vmem:[%s5 + $0x420] sm:$0xff]
        %v7859 = vld [vmem:[%s5 + $0x428] sm:$0xff]
        %v7860 = vld [vmem:[%s5 + $0x430] sm:$0xff]
        %v7861 = vld [vmem:[%s5 + $0x438] sm:$0xff]
        %v7862 = vld [vmem:[%s5 + $0x440] sm:$0xff]
        %v7863 = vld [vmem:[%s5 + $0x448] sm:$0xff]
        %v7864 = vld [vmem:[%s5 + $0x450] sm:$0xff]
        %v7865 = vld [vmem:[%s5 + $0x458] sm:$0xff]
        %v7866 = vld [vmem:[%s5 + $0x460] sm:$0xff]
        %v7867 = vld [vmem:[%s5 + $0x468] sm:$0xff]
        %v7868 = vld [vmem:[%s5 + $0x470] sm:$0xff]
        %v7869 = vld [vmem:[%s5 + $0x478] sm:$0xff]
        %v7870 = vld [vmem:[%s5 + $0x480] sm:$0xff]
        %v7871 = vld [vmem:[%s5 + $0x488] sm:$0xff]
        %v7872 = vld [vmem:[%s5 + $0x490] sm:$0xff]
        %v7873 = vld [vmem:[%s5 + $0x498] sm:$0xff]
        %v7874 = vld [vmem:[%s5 + $0x4a0] sm:$0xff]
        %v7875 = vld [vmem:[%s5 + $0x4a8] sm:$0xff]
        %v7876 = vld [vmem:[%s5 + $0x4b0] sm:$0xff]
        %v7877 = vld [vmem:[%s5 + $0x4b8] sm:$0xff]
        %v7878 = vld [vmem:[%s5 + $0x4c0] sm:$0xff]
        %v7879 = vld [vmem:[%s5 + $0x4c8] sm:$0xff]
        %v7880 = vld [vmem:[%s5 + $0x4d0] sm:$0xff]
        %v7881 = vld [vmem:[%s5 + $0x4d8] sm:$0xff]
        %v7882 = vld [vmem:[%s5 + $0x4e0] sm:$0xff]
        %v7883 = vld [vmem:[%s5 + $0x4e8] sm:$0xff]
        %v7884 = vld [vmem:[%s5 + $0x4f0] sm:$0xff]
        %v7885 = vld [vmem:[%s5 + $0x4f8] sm:$0xff]
        %v7886 = vld [vmem:[%s5 + $0x500] sm:$0xff]
        %v7887 = vld [vmem:[%s5 + $0x508] sm:$0xff]
        %v7888 = vld [vmem:[%s5 + $0x510] sm:$0xff]
        %v7889 = vld [vmem:[%s5 + $0x518] sm:$0xff]
        %v7890 = vld [vmem:[%s5 + $0x520] sm:$0xff]
        %v7891 = vld [vmem:[%s5 + $0x528] sm:$0xff]
        %v7892 = vld [vmem:[%s5 + $0x530] sm:$0xff]
        %v7893 = vld [vmem:[%s5 + $0x538] sm:$0xff]
        %v7894 = vld [vmem:[%s5 + $0x540] sm:$0xff]
        %v7895 = vld [vmem:[%s5 + $0x548] sm:$0xff]
        %v7896 = vld [vmem:[%s5 + $0x550] sm:$0xff]
        %v7897 = vld [vmem:[%s5 + $0x558] sm:$0xff]
        %v7898 = vld [vmem:[%s5 + $0x560] sm:$0xff]
        %v7899 = vld [vmem:[%s5 + $0x568] sm:$0xff]
        %v7900 = vld [vmem:[%s5 + $0x570] sm:$0xff]
        %v7901 = vld [vmem:[%s5 + $0x578] sm:$0xff]
        %v7902 = vld [vmem:[%s5 + $0x580] sm:$0xff]
        %v7903 = vld [vmem:[%s5 + $0x588] sm:$0xff]
        %v7904 = vld [vmem:[%s5 + $0x590] sm:$0xff]
        %v7905 = vld [vmem:[%s5 + $0x598] sm:$0xff]
        %v7906 = vld [vmem:[%s5 + $0x5a0] sm:$0xff]
        %v7907 = vld [vmem:[%s5 + $0x5a8] sm:$0xff]
        %v7908 = vld [vmem:[%s5 + $0x5b0] sm:$0xff]
        %v7909 = vld [vmem:[%s5 + $0x5b8] sm:$0xff]
        %v7910 = vld [vmem:[%s5 + $0x5c0] sm:$0xff]
        %v7911 = vld [vmem:[%s5 + $0x5c8] sm:$0xff]
        %v7912 = vld [vmem:[%s5 + $0x5d0] sm:$0xff]
        %v7913 = vld [vmem:[%s5 + $0x5d8] sm:$0xff]
        %v7914 = vld [vmem:[%s5 + $0x5e0] sm:$0xff]
        %v7915 = vld [vmem:[%s5 + $0x5e8] sm:$0xff]
        %v7916 = vld [vmem:[%s5 + $0x5f0] sm:$0xff]
        %v7917 = vld [vmem:[%s5 + $0x5f8] sm:$0xff]
        %v7918 = vld [vmem:[%s5 + $0x600] sm:$0xff]
        %v7919 = vld [vmem:[%s5 + $0x608] sm:$0xff]
        %v7920 = vld [vmem:[%s5 + $0x610] sm:$0xff]
        %v7921 = vld [vmem:[%s5 + $0x618] sm:$0xff]
        %v7922 = vld [vmem:[%s5 + $0x620] sm:$0xff]
        %v7923 = vld [vmem:[%s5 + $0x628] sm:$0xff]
        %v7924 = vld [vmem:[%s5 + $0x630] sm:$0xff]
        %v7925 = vld [vmem:[%s5 + $0x638] sm:$0xff]
        %v7926 = vld [vmem:[%s5 + $0x640] sm:$0xff]
        %v7927 = vld [vmem:[%s5 + $0x648] sm:$0xff]
        %v7928 = vld [vmem:[%s5 + $0x650] sm:$0xff]
        %v7929 = vld [vmem:[%s5 + $0x658] sm:$0xff]
        %v7930 = vld [vmem:[%s5 + $0x660] sm:$0xff]
        %v7931 = vld [vmem:[%s5 + $0x668] sm:$0xff]
        %v7932 = vld [vmem:[%s5 + $0x670] sm:$0xff]
        %v7933 = vld [vmem:[%s5 + $0x678] sm:$0xff]
        %v7934 = vld [vmem:[%s5 + $0x680] sm:$0xff]
        %v7935 = vld [vmem:[%s5 + $0x688] sm:$0xff]
        %v7936 = vld [vmem:[%s5 + $0x690] sm:$0xff]
        %v7937 = vld [vmem:[%s5 + $0x698] sm:$0xff]
        %v7938 = vld [vmem:[%s5 + $0x6a0] sm:$0xff]
        %v7939 = vld [vmem:[%s5 + $0x6a8] sm:$0xff]
        %v7940 = vld [vmem:[%s5 + $0x6b0] sm:$0xff]
        %v7941 = vld [vmem:[%s5 + $0x6b8] sm:$0xff]
        %v7942 = vld [vmem:[%s5 + $0x6c0] sm:$0xff]
        %v7943 = vld [vmem:[%s5 + $0x6c8] sm:$0xff]
        %v7944 = vld [vmem:[%s5 + $0x6d0] sm:$0xff]
        %v7945 = vld [vmem:[%s5 + $0x6d8] sm:$0xff]
        %v7946 = vld [vmem:[%s5 + $0x6e0] sm:$0xff]
        %v7947 = vld [vmem:[%s5 + $0x6e8] sm:$0xff]
        %v7948 = vld [vmem:[%s5 + $0x6f0] sm:$0xff]
        %v7949 = vld [vmem:[%s5 + $0x6f8] sm:$0xff]
        %v7950 = vld [vmem:[%s6] sm:$0xf]
        %v7952 = vlaneseq
        %v7953 = vshrl.u32 %v7952, 7
        %v7954 = vsub.s32 0, %v7953
        %v7955 = vrot.slane %v7950, %v7954
        %v7956 = vlaneseq
        %v7957 = vshrl.u32 %v7956, 7
        %v7958 = vsub.s32 1, %v7957
        %v7959 = vrot.slane %v7950, %v7958
        %v7960 = vlaneseq
        %v7961 = vshrl.u32 %v7960, 7
        %v7962 = vsub.s32 2, %v7961
        %v7963 = vrot.slane %v7950, %v7962
        %v7964 = vlaneseq
        %v7965 = vshrl.u32 %v7964, 7
        %v7966 = vsub.s32 3, %v7965
        %v7967 = vrot.slane %v7950, %v7966
        %v8196 = vunpack.c.l.b16 %v7726
        %v8197 = vunpack.c.h.b16 %v7726
        %v8198 = vunpack.c.l.b16 %v7727
        %v8199 = vunpack.c.h.b16 %v7727
        %v8200 = vunpack.c.l.b16 %v7728
        %v8201 = vunpack.c.h.b16 %v7728
        %v8202 = vunpack.c.l.b16 %v7729
        %v8203 = vunpack.c.h.b16 %v7729
        %v8204 = vunpack.c.l.b16 %v7730
        %v8205 = vunpack.c.h.b16 %v7730
        %v8206 = vunpack.c.l.b16 %v7731
        %v8207 = vunpack.c.h.b16 %v7731
        %v8208 = vunpack.c.l.b16 %v7732
        %v8209 = vunpack.c.h.b16 %v7732
        %v8210 = vunpack.c.l.b16 %v7733
        %v8211 = vunpack.c.h.b16 %v7733
        %v8212 = vunpack.c.l.b16 %v7734
        %v8213 = vunpack.c.h.b16 %v7734
        %v8214 = vunpack.c.l.b16 %v7735
        %v8215 = vunpack.c.h.b16 %v7735
        %v8216 = vunpack.c.l.b16 %v7736
        %v8217 = vunpack.c.h.b16 %v7736
        %v8218 = vunpack.c.l.b16 %v7737
        %v8219 = vunpack.c.h.b16 %v7737
        %v8220 = vunpack.c.l.b16 %v7738
        %v8221 = vunpack.c.h.b16 %v7738
        %v8222 = vunpack.c.l.b16 %v7739
        %v8223 = vunpack.c.h.b16 %v7739
        %v8224 = vunpack.c.l.b16 %v7740
        %v8225 = vunpack.c.h.b16 %v7740
        %v8226 = vunpack.c.l.b16 %v7741
        %v8227 = vunpack.c.h.b16 %v7741
        %v8228 = vunpack.c.l.b16 %v7742
        %v8229 = vunpack.c.h.b16 %v7742
        %v8230 = vunpack.c.l.b16 %v7743
        %v8231 = vunpack.c.h.b16 %v7743
        %v8232 = vunpack.c.l.b16 %v7744
        %v8233 = vunpack.c.h.b16 %v7744
        %v8234 = vunpack.c.l.b16 %v7745
        %v8235 = vunpack.c.h.b16 %v7745
        %v8236 = vunpack.c.l.b16 %v7746
        %v8237 = vunpack.c.h.b16 %v7746
        %v8238 = vunpack.c.l.b16 %v7747
        %v8239 = vunpack.c.h.b16 %v7747
        %v8240 = vunpack.c.l.b16 %v7748
        %v8241 = vunpack.c.h.b16 %v7748
        %v8242 = vunpack.c.l.b16 %v7749
        %v8243 = vunpack.c.h.b16 %v7749
        %v8244 = vunpack.c.l.b16 %v7750
        %v8245 = vunpack.c.h.b16 %v7750
        %v8246 = vunpack.c.l.b16 %v7751
        %v8247 = vunpack.c.h.b16 %v7751
        %v8248 = vunpack.c.l.b16 %v7752
        %v8249 = vunpack.c.h.b16 %v7752
        %v8250 = vunpack.c.l.b16 %v7753
        %v8251 = vunpack.c.h.b16 %v7753
        %v8252 = vunpack.c.l.b16 %v7754
        %v8253 = vunpack.c.h.b16 %v7754
        %v8254 = vunpack.c.l.b16 %v7755
        %v8255 = vunpack.c.h.b16 %v7755
        %v8256 = vunpack.c.l.b16 %v7756
        %v8257 = vunpack.c.h.b16 %v7756
        %v8258 = vunpack.c.l.b16 %v7757
        %v8259 = vunpack.c.h.b16 %v7757
        %v8260 = vunpack.c.l.b16 %v7758
        %v8261 = vunpack.c.h.b16 %v7758
        %v8262 = vunpack.c.l.b16 %v7759
        %v8263 = vunpack.c.h.b16 %v7759
        %v8264 = vunpack.c.l.b16 %v7760
        %v8265 = vunpack.c.h.b16 %v7760
        %v8266 = vunpack.c.l.b16 %v7761
        %v8267 = vunpack.c.h.b16 %v7761
        %v8268 = vunpack.c.l.b16 %v7762
        %v8269 = vunpack.c.h.b16 %v7762
        %v8270 = vunpack.c.l.b16 %v7763
        %v8271 = vunpack.c.h.b16 %v7763
        %v8272 = vunpack.c.l.b16 %v7764
        %v8273 = vunpack.c.h.b16 %v7764
        %v8274 = vunpack.c.l.b16 %v7765
        %v8275 = vunpack.c.h.b16 %v7765
        %v8276 = vunpack.c.l.b16 %v7766
        %v8277 = vunpack.c.h.b16 %v7766
        %v8278 = vunpack.c.l.b16 %v7767
        %v8279 = vunpack.c.h.b16 %v7767
        %v8280 = vunpack.c.l.b16 %v7768
        %v8281 = vunpack.c.h.b16 %v7768
        %v8282 = vunpack.c.l.b16 %v7769
        %v8283 = vunpack.c.h.b16 %v7769
        %v8284 = vunpack.c.l.b16 %v7770
        %v8285 = vunpack.c.h.b16 %v7770
        %v8286 = vunpack.c.l.b16 %v7771
        %v8287 = vunpack.c.h.b16 %v7771
        %v8288 = vunpack.c.l.b16 %v7772
        %v8289 = vunpack.c.h.b16 %v7772
        %v8290 = vunpack.c.l.b16 %v7773
        %v8291 = vunpack.c.h.b16 %v7773
        %v8292 = vunpack.c.l.b16 %v7774
        %v8293 = vunpack.c.h.b16 %v7774
        %v8294 = vunpack.c.l.b16 %v7775
        %v8295 = vunpack.c.h.b16 %v7775
        %v8296 = vunpack.c.l.b16 %v7776
        %v8297 = vunpack.c.h.b16 %v7776
        %v8298 = vunpack.c.l.b16 %v7777
        %v8299 = vunpack.c.h.b16 %v7777
        %v8300 = vunpack.c.l.b16 %v7778
        %v8301 = vunpack.c.h.b16 %v7778
        %v8302 = vunpack.c.l.b16 %v7779
        %v8303 = vunpack.c.h.b16 %v7779
        %v8304 = vunpack.c.l.b16 %v7780
        %v8305 = vunpack.c.h.b16 %v7780
        %v8306 = vunpack.c.l.b16 %v7781
        %v8307 = vunpack.c.h.b16 %v7781
        %v8308 = vunpack.c.l.b16 %v7782
        %v8309 = vunpack.c.h.b16 %v7782
        %v8310 = vunpack.c.l.b16 %v7783
        %v8311 = vunpack.c.h.b16 %v7783
        %v8312 = vunpack.c.l.b16 %v7784
        %v8313 = vunpack.c.h.b16 %v7784
        %v8314 = vunpack.c.l.b16 %v7785
        %v8315 = vunpack.c.h.b16 %v7785
        %v8316 = vunpack.c.l.b16 %v7786
        %v8317 = vunpack.c.h.b16 %v7786
        %v8318 = vunpack.c.l.b16 %v7787
        %v8319 = vunpack.c.h.b16 %v7787
        %v8320 = vunpack.c.l.b16 %v7788
        %v8321 = vunpack.c.h.b16 %v7788
        %v8322 = vunpack.c.l.b16 %v7789
        %v8323 = vunpack.c.h.b16 %v7789
        %v8324 = vunpack.c.l.b16 %v7790
        %v8325 = vunpack.c.h.b16 %v7790
        %v8326 = vunpack.c.l.b16 %v7791
        %v8327 = vunpack.c.h.b16 %v7791
        %v8328 = vunpack.c.l.b16 %v7792
        %v8329 = vunpack.c.h.b16 %v7792
        %v8330 = vunpack.c.l.b16 %v7793
        %v8331 = vunpack.c.h.b16 %v7793
        %v8332 = vunpack.c.l.b16 %v7794
        %v8333 = vunpack.c.h.b16 %v7794
        %v8334 = vunpack.c.l.b16 %v7795
        %v8335 = vunpack.c.h.b16 %v7795
        %v8336 = vunpack.c.l.b16 %v7796
        %v8337 = vunpack.c.h.b16 %v7796
        %v8338 = vunpack.c.l.b16 %v7797
        %v8339 = vunpack.c.h.b16 %v7797
        %v8340 = vunpack.c.l.b16 %v7798
        %v8341 = vunpack.c.h.b16 %v7798
        %v8342 = vunpack.c.l.b16 %v7799
        %v8343 = vunpack.c.h.b16 %v7799
        %v8344 = vunpack.c.l.b16 %v7800
        %v8345 = vunpack.c.h.b16 %v7800
        %v8346 = vunpack.c.l.b16 %v7801
        %v8347 = vunpack.c.h.b16 %v7801
        %v8348 = vunpack.c.l.b16 %v7802
        %v8349 = vunpack.c.h.b16 %v7802
        %v8350 = vunpack.c.l.b16 %v7803
        %v8351 = vunpack.c.h.b16 %v7803
        %v8352 = vunpack.c.l.b16 %v7804
        %v8353 = vunpack.c.h.b16 %v7804
        %v8354 = vunpack.c.l.b16 %v7805
        %v8355 = vunpack.c.h.b16 %v7805
        %v8356 = vunpack.c.l.b16 %v7806
        %v8357 = vunpack.c.h.b16 %v7806
        %v8358 = vunpack.c.l.b16 %v7807
        %v8359 = vunpack.c.h.b16 %v7807
        %v8360 = vunpack.c.l.b16 %v7808
        %v8361 = vunpack.c.h.b16 %v7808
        %v8362 = vunpack.c.l.b16 %v7809
        %v8363 = vunpack.c.h.b16 %v7809
        %v8364 = vunpack.c.l.b16 %v7810
        %v8365 = vunpack.c.h.b16 %v7810
        %v8366 = vunpack.c.l.b16 %v7811
        %v8367 = vunpack.c.h.b16 %v7811
        %v8368 = vunpack.c.l.b16 %v7812
        %v8369 = vunpack.c.h.b16 %v7812
        %v8370 = vunpack.c.l.b16 %v7813
        %v8371 = vunpack.c.h.b16 %v7813
        %v8372 = vunpack.c.l.b16 %v7814
        %v8373 = vunpack.c.h.b16 %v7814
        %v8374 = vunpack.c.l.b16 %v7815
        %v8375 = vunpack.c.h.b16 %v7815
        %v8376 = vunpack.c.l.b16 %v7816
        %v8377 = vunpack.c.h.b16 %v7816
        %v8378 = vunpack.c.l.b16 %v7817
        %v8379 = vunpack.c.h.b16 %v7817
        %v8380 = vunpack.c.l.b16 %v7818
        %v8381 = vunpack.c.h.b16 %v7818
        %v8382 = vunpack.c.l.b16 %v7819
        %v8383 = vunpack.c.h.b16 %v7819
        %v8384 = vunpack.c.l.b16 %v7820
        %v8385 = vunpack.c.h.b16 %v7820
        %v8386 = vunpack.c.l.b16 %v7821
        %v8387 = vunpack.c.h.b16 %v7821
        %v8388 = vunpack.c.l.b16 %v7822
        %v8389 = vunpack.c.h.b16 %v7822
        %v8390 = vunpack.c.l.b16 %v7823
        %v8391 = vunpack.c.h.b16 %v7823
        %v8392 = vunpack.c.l.b16 %v7824
        %v8393 = vunpack.c.h.b16 %v7824
        %v8394 = vunpack.c.l.b16 %v7825
        %v8395 = vunpack.c.h.b16 %v7825
        %v8396 = vunpack.c.l.b16 %v7826
        %v8397 = vunpack.c.h.b16 %v7826
        %v8398 = vunpack.c.l.b16 %v7827
        %v8399 = vunpack.c.h.b16 %v7827
        %v8400 = vunpack.c.l.b16 %v7828
        %v8401 = vunpack.c.h.b16 %v7828
        %v8402 = vunpack.c.l.b16 %v7829
        %v8403 = vunpack.c.h.b16 %v7829
        %v8404 = vunpack.c.l.b16 %v7830
        %v8405 = vunpack.c.h.b16 %v7830
        %v8406 = vunpack.c.l.b16 %v7831
        %v8407 = vunpack.c.h.b16 %v7831
        %v8408 = vunpack.c.l.b16 %v7832
        %v8409 = vunpack.c.h.b16 %v7832
        %v8410 = vunpack.c.l.b16 %v7833
        %v8411 = vunpack.c.h.b16 %v7833
        %v8412 = vunpack.c.l.b16 %v7834
        %v8413 = vunpack.c.h.b16 %v7834
        %v8414 = vunpack.c.l.b16 %v7835
        %v8415 = vunpack.c.h.b16 %v7835
        %v8416 = vunpack.c.l.b16 %v7836
        %v8417 = vunpack.c.h.b16 %v7836
        %v8418 = vunpack.c.l.b16 %v7837
        %v8419 = vunpack.c.h.b16 %v7837
        %v8420 = vunpack.c.l.b16 %v7838
        %v8421 = vunpack.c.h.b16 %v7838
        %v8422 = vunpack.c.l.b16 %v7839
        %v8423 = vunpack.c.h.b16 %v7839
        %v8424 = vunpack.c.l.b16 %v7840
        %v8425 = vunpack.c.h.b16 %v7840
        %v8426 = vunpack.c.l.b16 %v7841
        %v8427 = vunpack.c.h.b16 %v7841
        %v8428 = vunpack.c.l.b16 %v7842
        %v8429 = vunpack.c.h.b16 %v7842
        %v8430 = vunpack.c.l.b16 %v7843
        %v8431 = vunpack.c.h.b16 %v7843
        %v8432 = vunpack.c.l.b16 %v7844
        %v8433 = vunpack.c.h.b16 %v7844
        %v8434 = vunpack.c.l.b16 %v7845
        %v8435 = vunpack.c.h.b16 %v7845
        %v8436 = vunpack.c.l.b16 %v7846
        %v8437 = vunpack.c.h.b16 %v7846
        %v8438 = vunpack.c.l.b16 %v7847
        %v8439 = vunpack.c.h.b16 %v7847
        %v8440 = vunpack.c.l.b16 %v7848
        %v8441 = vunpack.c.h.b16 %v7848
        %v8442 = vunpack.c.l.b16 %v7849
        %v8443 = vunpack.c.h.b16 %v7849
        %v8444 = vunpack.c.l.b16 %v7850
        %v8445 = vunpack.c.h.b16 %v7850
        %v8446 = vunpack.c.l.b16 %v7851
        %v8447 = vunpack.c.h.b16 %v7851
        %v8448 = vunpack.c.l.b16 %v7852
        %v8449 = vunpack.c.h.b16 %v7852
        %v8450 = vunpack.c.l.b16 %v7853
        %v8451 = vunpack.c.h.b16 %v7853
        %v8452 = vunpack.c.l.b16 %v7854
        %v8453 = vunpack.c.h.b16 %v7854
        %v8454 = vunpack.c.l.b16 %v7855
        %v8455 = vunpack.c.h.b16 %v7855
        %v8456 = vunpack.c.l.b16 %v7856
        %v8457 = vunpack.c.h.b16 %v7856
        %v8458 = vunpack.c.l.b16 %v7857
        %v8459 = vunpack.c.h.b16 %v7857
        %v8460 = vunpack.c.l.b16 %v7858
        %v8461 = vunpack.c.h.b16 %v7858
        %v8462 = vunpack.c.l.b16 %v7859
        %v8463 = vunpack.c.h.b16 %v7859
        %v8464 = vunpack.c.l.b16 %v7860
        %v8465 = vunpack.c.h.b16 %v7860
        %v8466 = vunpack.c.l.b16 %v7861
        %v8467 = vunpack.c.h.b16 %v7861
        %v8468 = vunpack.c.l.b16 %v7862
        %v8469 = vunpack.c.h.b16 %v7862
        %v8470 = vunpack.c.l.b16 %v7863
        %v8471 = vunpack.c.h.b16 %v7863
        %v8472 = vunpack.c.l.b16 %v7864
        %v8473 = vunpack.c.h.b16 %v7864
        %v8474 = vunpack.c.l.b16 %v7865
        %v8475 = vunpack.c.h.b16 %v7865
        %v8476 = vunpack.c.l.b16 %v7866
        %v8477 = vunpack.c.h.b16 %v7866
        %v8478 = vunpack.c.l.b16 %v7867
        %v8479 = vunpack.c.h.b16 %v7867
        %v8480 = vunpack.c.l.b16 %v7868
        %v8481 = vunpack.c.h.b16 %v7868
        %v8482 = vunpack.c.l.b16 %v7869
        %v8483 = vunpack.c.h.b16 %v7869
        %v8484 = vunpack.c.l.b16 %v7870
        %v8485 = vunpack.c.h.b16 %v7870
        %v8486 = vunpack.c.l.b16 %v7871
        %v8487 = vunpack.c.h.b16 %v7871
        %v8488 = vunpack.c.l.b16 %v7872
        %v8489 = vunpack.c.h.b16 %v7872
        %v8490 = vunpack.c.l.b16 %v7873
        %v8491 = vunpack.c.h.b16 %v7873
        %v8492 = vunpack.c.l.b16 %v7874
        %v8493 = vunpack.c.h.b16 %v7874
        %v8494 = vunpack.c.l.b16 %v7875
        %v8495 = vunpack.c.h.b16 %v7875
        %v8496 = vunpack.c.l.b16 %v7876
        %v8497 = vunpack.c.h.b16 %v7876
        %v8498 = vunpack.c.l.b16 %v7877
        %v8499 = vunpack.c.h.b16 %v7877
        %v8500 = vunpack.c.l.b16 %v7878
        %v8501 = vunpack.c.h.b16 %v7878
        %v8502 = vunpack.c.l.b16 %v7879
        %v8503 = vunpack.c.h.b16 %v7879
        %v8504 = vunpack.c.l.b16 %v7880
        %v8505 = vunpack.c.h.b16 %v7880
        %v8506 = vunpack.c.l.b16 %v7881
        %v8507 = vunpack.c.h.b16 %v7881
        %v8508 = vunpack.c.l.b16 %v7882
        %v8509 = vunpack.c.h.b16 %v7882
        %v8510 = vunpack.c.l.b16 %v7883
        %v8511 = vunpack.c.h.b16 %v7883
        %v8512 = vunpack.c.l.b16 %v7884
        %v8513 = vunpack.c.h.b16 %v7884
        %v8514 = vunpack.c.l.b16 %v7885
        %v8515 = vunpack.c.h.b16 %v7885
        %v8516 = vunpack.c.l.b16 %v7886
        %v8517 = vunpack.c.h.b16 %v7886
        %v8518 = vunpack.c.l.b16 %v7887
        %v8519 = vunpack.c.h.b16 %v7887
        %v8520 = vunpack.c.l.b16 %v7888
        %v8521 = vunpack.c.h.b16 %v7888
        %v8522 = vunpack.c.l.b16 %v7889
        %v8523 = vunpack.c.h.b16 %v7889
        %v8524 = vunpack.c.l.b16 %v7890
        %v8525 = vunpack.c.h.b16 %v7890
        %v8526 = vunpack.c.l.b16 %v7891
        %v8527 = vunpack.c.h.b16 %v7891
        %v8528 = vunpack.c.l.b16 %v7892
        %v8529 = vunpack.c.h.b16 %v7892
        %v8530 = vunpack.c.l.b16 %v7893
        %v8531 = vunpack.c.h.b16 %v7893
        %v8532 = vunpack.c.l.b16 %v7894
        %v8533 = vunpack.c.h.b16 %v7894
        %v8534 = vunpack.c.l.b16 %v7895
        %v8535 = vunpack.c.h.b16 %v7895
        %v8536 = vunpack.c.l.b16 %v7896
        %v8537 = vunpack.c.h.b16 %v7896
        %v8538 = vunpack.c.l.b16 %v7897
        %v8539 = vunpack.c.h.b16 %v7897
        %v8540 = vunpack.c.l.b16 %v7898
        %v8541 = vunpack.c.h.b16 %v7898
        %v8542 = vunpack.c.l.b16 %v7899
        %v8543 = vunpack.c.h.b16 %v7899
        %v8544 = vunpack.c.l.b16 %v7900
        %v8545 = vunpack.c.h.b16 %v7900
        %v8546 = vunpack.c.l.b16 %v7901
        %v8547 = vunpack.c.h.b16 %v7901
        %v8548 = vunpack.c.l.b16 %v7902
        %v8549 = vunpack.c.h.b16 %v7902
        %v8550 = vunpack.c.l.b16 %v7903
        %v8551 = vunpack.c.h.b16 %v7903
        %v8552 = vunpack.c.l.b16 %v7904
        %v8553 = vunpack.c.h.b16 %v7904
        %v8554 = vunpack.c.l.b16 %v7905
        %v8555 = vunpack.c.h.b16 %v7905
        %v8556 = vunpack.c.l.b16 %v7906
        %v8557 = vunpack.c.h.b16 %v7906
        %v8558 = vunpack.c.l.b16 %v7907
        %v8559 = vunpack.c.h.b16 %v7907
        %v8560 = vunpack.c.l.b16 %v7908
        %v8561 = vunpack.c.h.b16 %v7908
        %v8562 = vunpack.c.l.b16 %v7909
        %v8563 = vunpack.c.h.b16 %v7909
        %v8564 = vunpack.c.l.b16 %v7910
        %v8565 = vunpack.c.h.b16 %v7910
        %v8566 = vunpack.c.l.b16 %v7911
        %v8567 = vunpack.c.h.b16 %v7911
        %v8568 = vunpack.c.l.b16 %v7912
        %v8569 = vunpack.c.h.b16 %v7912
        %v8570 = vunpack.c.l.b16 %v7913
        %v8571 = vunpack.c.h.b16 %v7913
        %v8572 = vunpack.c.l.b16 %v7914
        %v8573 = vunpack.c.h.b16 %v7914
        %v8574 = vunpack.c.l.b16 %v7915
        %v8575 = vunpack.c.h.b16 %v7915
        %v8576 = vunpack.c.l.b16 %v7916
        %v8577 = vunpack.c.h.b16 %v7916
        %v8578 = vunpack.c.l.b16 %v7917
        %v8579 = vunpack.c.h.b16 %v7917
        %v8580 = vunpack.c.l.b16 %v7918
        %v8581 = vunpack.c.h.b16 %v7918
        %v8582 = vunpack.c.l.b16 %v7919
        %v8583 = vunpack.c.h.b16 %v7919
        %v8584 = vunpack.c.l.b16 %v7920
        %v8585 = vunpack.c.h.b16 %v7920
        %v8586 = vunpack.c.l.b16 %v7921
        %v8587 = vunpack.c.h.b16 %v7921
        %v8588 = vunpack.c.l.b16 %v7922
        %v8589 = vunpack.c.h.b16 %v7922
        %v8590 = vunpack.c.l.b16 %v7923
        %v8591 = vunpack.c.h.b16 %v7923
        %v8592 = vunpack.c.l.b16 %v7924
        %v8593 = vunpack.c.h.b16 %v7924
        %v8594 = vunpack.c.l.b16 %v7925
        %v8595 = vunpack.c.h.b16 %v7925
        %v8596 = vunpack.c.l.b16 %v7926
        %v8597 = vunpack.c.h.b16 %v7926
        %v8598 = vunpack.c.l.b16 %v7927
        %v8599 = vunpack.c.h.b16 %v7927
        %v8600 = vunpack.c.l.b16 %v7928
        %v8601 = vunpack.c.h.b16 %v7928
        %v8602 = vunpack.c.l.b16 %v7929
        %v8603 = vunpack.c.h.b16 %v7929
        %v8604 = vunpack.c.l.b16 %v7930
        %v8605 = vunpack.c.h.b16 %v7930
        %v8606 = vunpack.c.l.b16 %v7931
        %v8607 = vunpack.c.h.b16 %v7931
        %v8608 = vunpack.c.l.b16 %v7932
        %v8609 = vunpack.c.h.b16 %v7932
        %v8610 = vunpack.c.l.b16 %v7933
        %v8611 = vunpack.c.h.b16 %v7933
        %v8612 = vunpack.c.l.b16 %v7934
        %v8613 = vunpack.c.h.b16 %v7934
        %v8614 = vunpack.c.l.b16 %v7935
        %v8615 = vunpack.c.h.b16 %v7935
        %v8616 = vunpack.c.l.b16 %v7936
        %v8617 = vunpack.c.h.b16 %v7936
        %v8618 = vunpack.c.l.b16 %v7937
        %v8619 = vunpack.c.h.b16 %v7937
        %v8620 = vunpack.c.l.b16 %v7938
        %v8621 = vunpack.c.h.b16 %v7938
        %v8622 = vunpack.c.l.b16 %v7939
        %v8623 = vunpack.c.h.b16 %v7939
        %v8624 = vunpack.c.l.b16 %v7940
        %v8625 = vunpack.c.h.b16 %v7940
        %v8626 = vunpack.c.l.b16 %v7941
        %v8627 = vunpack.c.h.b16 %v7941
        %v8628 = vunpack.c.l.b16 %v7942
        %v8629 = vunpack.c.h.b16 %v7942
        %v8630 = vunpack.c.l.b16 %v7943
        %v8631 = vunpack.c.h.b16 %v7943
        %v8632 = vunpack.c.l.b16 %v7944
        %v8633 = vunpack.c.h.b16 %v7944
        %v8634 = vunpack.c.l.b16 %v7945
        %v8635 = vunpack.c.h.b16 %v7945
        %v8636 = vunpack.c.l.b16 %v7946
        %v8637 = vunpack.c.h.b16 %v7946
        %v8638 = vunpack.c.l.b16 %v7947
        %v8639 = vunpack.c.h.b16 %v7947
        %v8640 = vunpack.c.l.b16 %v7948
        %v8641 = vunpack.c.h.b16 %v7948
        %v8642 = vunpack.c.l.b16 %v7949
        %v8643 = vunpack.c.h.b16 %v7949
        %v8644 = vpack.c.b16 %v8200, %v8196
        %v8645 = vpack.c.b16 %v8201, %v8197
        %v8646 = vpack.c.b16 %v8202, %v8198
        %v8647 = vpack.c.b16 %v8203, %v8199
        %v8648 = vpack.c.b16 %v8208, %v8204
        %v8649 = vpack.c.b16 %v8209, %v8205
        %v8650 = vpack.c.b16 %v8210, %v8206
        %v8651 = vpack.c.b16 %v8211, %v8207
        %v8652 = vpack.c.b16 %v8216, %v8212
        %v8653 = vpack.c.b16 %v8217, %v8213
        %v8654 = vpack.c.b16 %v8218, %v8214
        %v8655 = vpack.c.b16 %v8219, %v8215
        %v8656 = vpack.c.b16 %v8224, %v8220
        %v8657 = vpack.c.b16 %v8225, %v8221
        %v8658 = vpack.c.b16 %v8226, %v8222
        %v8659 = vpack.c.b16 %v8227, %v8223
        %v8660 = vpack.c.b16 %v8232, %v8228
        %v8661 = vpack.c.b16 %v8233, %v8229
        %v8662 = vpack.c.b16 %v8234, %v8230
        %v8663 = vpack.c.b16 %v8235, %v8231
        %v8664 = vpack.c.b16 %v8240, %v8236
        %v8665 = vpack.c.b16 %v8241, %v8237
        %v8666 = vpack.c.b16 %v8242, %v8238
        %v8667 = vpack.c.b16 %v8243, %v8239
        %v8668 = vpack.c.b16 %v8248, %v8244
        %v8669 = vpack.c.b16 %v8249, %v8245
        %v8670 = vpack.c.b16 %v8250, %v8246
        %v8671 = vpack.c.b16 %v8251, %v8247
        %v8672 = vpack.c.b16 %v8256, %v8252
        %v8673 = vpack.c.b16 %v8257, %v8253
        %v8674 = vpack.c.b16 %v8258, %v8254
        %v8675 = vpack.c.b16 %v8259, %v8255
        %v8676 = vpack.c.b16 %v8264, %v8260
        %v8677 = vpack.c.b16 %v8265, %v8261
        %v8678 = vpack.c.b16 %v8266, %v8262
        %v8679 = vpack.c.b16 %v8267, %v8263
        %v8680 = vpack.c.b16 %v8272, %v8268
        %v8681 = vpack.c.b16 %v8273, %v8269
        %v8682 = vpack.c.b16 %v8274, %v8270
        %v8683 = vpack.c.b16 %v8275, %v8271
        %v8684 = vpack.c.b16 %v8280, %v8276
        %v8685 = vpack.c.b16 %v8281, %v8277
        %v8686 = vpack.c.b16 %v8282, %v8278
        %v8687 = vpack.c.b16 %v8283, %v8279
        %v8688 = vpack.c.b16 %v8288, %v8284
        %v8689 = vpack.c.b16 %v8289, %v8285
        %v8690 = vpack.c.b16 %v8290, %v8286
        %v8691 = vpack.c.b16 %v8291, %v8287
        %v8692 = vpack.c.b16 %v8296, %v8292
        %v8693 = vpack.c.b16 %v8297, %v8293
        %v8694 = vpack.c.b16 %v8298, %v8294
        %v8695 = vpack.c.b16 %v8299, %v8295
        %v8696 = vpack.c.b16 %v8304, %v8300
        %v8697 = vpack.c.b16 %v8305, %v8301
        %v8698 = vpack.c.b16 %v8306, %v8302
        %v8699 = vpack.c.b16 %v8307, %v8303
        %v8700 = vpack.c.b16 %v8312, %v8308
        %v8701 = vpack.c.b16 %v8313, %v8309
        %v8702 = vpack.c.b16 %v8314, %v8310
        %v8703 = vpack.c.b16 %v8315, %v8311
        %v8704 = vpack.c.b16 %v8320, %v8316
        %v8705 = vpack.c.b16 %v8321, %v8317
        %v8706 = vpack.c.b16 %v8322, %v8318
        %v8707 = vpack.c.b16 %v8323, %v8319
        %v8708 = vpack.c.b16 %v8328, %v8324
        %v8709 = vpack.c.b16 %v8329, %v8325
        %v8710 = vpack.c.b16 %v8330, %v8326
        %v8711 = vpack.c.b16 %v8331, %v8327
        %v8712 = vpack.c.b16 %v8336, %v8332
        %v8713 = vpack.c.b16 %v8337, %v8333
        %v8714 = vpack.c.b16 %v8338, %v8334
        %v8715 = vpack.c.b16 %v8339, %v8335
        %v8716 = vpack.c.b16 %v8344, %v8340
        %v8717 = vpack.c.b16 %v8345, %v8341
        %v8718 = vpack.c.b16 %v8346, %v8342
        %v8719 = vpack.c.b16 %v8347, %v8343
        %v8720 = vpack.c.b16 %v8352, %v8348
        %v8721 = vpack.c.b16 %v8353, %v8349
        %v8722 = vpack.c.b16 %v8354, %v8350
        %v8723 = vpack.c.b16 %v8355, %v8351
        %v8724 = vpack.c.b16 %v8360, %v8356
        %v8725 = vpack.c.b16 %v8361, %v8357
        %v8726 = vpack.c.b16 %v8362, %v8358
        %v8727 = vpack.c.b16 %v8363, %v8359
        %v8728 = vpack.c.b16 %v8368, %v8364
        %v8729 = vpack.c.b16 %v8369, %v8365
        %v8730 = vpack.c.b16 %v8370, %v8366
        %v8731 = vpack.c.b16 %v8371, %v8367
        %v8732 = vpack.c.b16 %v8376, %v8372
        %v8733 = vpack.c.b16 %v8377, %v8373
        %v8734 = vpack.c.b16 %v8378, %v8374
        %v8735 = vpack.c.b16 %v8379, %v8375
        %v8736 = vpack.c.b16 %v8384, %v8380
        %v8737 = vpack.c.b16 %v8385, %v8381
        %v8738 = vpack.c.b16 %v8386, %v8382
        %v8739 = vpack.c.b16 %v8387, %v8383
        %v8740 = vpack.c.b16 %v8392, %v8388
        %v8741 = vpack.c.b16 %v8393, %v8389
        %v8742 = vpack.c.b16 %v8394, %v8390
        %v8743 = vpack.c.b16 %v8395, %v8391
        %v8744 = vpack.c.b16 %v8400, %v8396
        %v8745 = vpack.c.b16 %v8401, %v8397
        %v8746 = vpack.c.b16 %v8402, %v8398
        %v8747 = vpack.c.b16 %v8403, %v8399
        %v8748 = vpack.c.b16 %v8408, %v8404
        %v8749 = vpack.c.b16 %v8409, %v8405
        %v8750 = vpack.c.b16 %v8410, %v8406
        %v8751 = vpack.c.b16 %v8411, %v8407
        %v8752 = vpack.c.b16 %v8416, %v8412
        %v8753 = vpack.c.b16 %v8417, %v8413
        %v8754 = vpack.c.b16 %v8418, %v8414
        %v8755 = vpack.c.b16 %v8419, %v8415
        %v8756 = vpack.c.b16 %v8424, %v8420
        %v8757 = vpack.c.b16 %v8425, %v8421
        %v8758 = vpack.c.b16 %v8426, %v8422
        %v8759 = vpack.c.b16 %v8427, %v8423
        %v8760 = vpack.c.b16 %v8432, %v8428
        %v8761 = vpack.c.b16 %v8433, %v8429
        %v8762 = vpack.c.b16 %v8434, %v8430
        %v8763 = vpack.c.b16 %v8435, %v8431
        %v8764 = vpack.c.b16 %v8440, %v8436
        %v8765 = vpack.c.b16 %v8441, %v8437
        %v8766 = vpack.c.b16 %v8442, %v8438
        %v8767 = vpack.c.b16 %v8443, %v8439
        %v8768 = vpack.c.b16 %v8448, %v8444
        %v8769 = vpack.c.b16 %v8449, %v8445
        %v8770 = vpack.c.b16 %v8450, %v8446
        %v8771 = vpack.c.b16 %v8451, %v8447
        %v8772 = vpack.c.b16 %v8456, %v8452
        %v8773 = vpack.c.b16 %v8457, %v8453
        %v8774 = vpack.c.b16 %v8458, %v8454
        %v8775 = vpack.c.b16 %v8459, %v8455
        %v8776 = vpack.c.b16 %v8464, %v8460
        %v8777 = vpack.c.b16 %v8465, %v8461
        %v8778 = vpack.c.b16 %v8466, %v8462
        %v8779 = vpack.c.b16 %v8467, %v8463
        %v8780 = vpack.c.b16 %v8472, %v8468
        %v8781 = vpack.c.b16 %v8473, %v8469
        %v8782 = vpack.c.b16 %v8474, %v8470
        %v8783 = vpack.c.b16 %v8475, %v8471
        %v8784 = vpack.c.b16 %v8480, %v8476
        %v8785 = vpack.c.b16 %v8481, %v8477
        %v8786 = vpack.c.b16 %v8482, %v8478
        %v8787 = vpack.c.b16 %v8483, %v8479
        %v8788 = vpack.c.b16 %v8488, %v8484
        %v8789 = vpack.c.b16 %v8489, %v8485
        %v8790 = vpack.c.b16 %v8490, %v8486
        %v8791 = vpack.c.b16 %v8491, %v8487
        %v8792 = vpack.c.b16 %v8496, %v8492
        %v8793 = vpack.c.b16 %v8497, %v8493
        %v8794 = vpack.c.b16 %v8498, %v8494
        %v8795 = vpack.c.b16 %v8499, %v8495
        %v8796 = vpack.c.b16 %v8504, %v8500
        %v8797 = vpack.c.b16 %v8505, %v8501
        %v8798 = vpack.c.b16 %v8506, %v8502
        %v8799 = vpack.c.b16 %v8507, %v8503
        %v8800 = vpack.c.b16 %v8512, %v8508
        %v8801 = vpack.c.b16 %v8513, %v8509
        %v8802 = vpack.c.b16 %v8514, %v8510
        %v8803 = vpack.c.b16 %v8515, %v8511
        %v8804 = vpack.c.b16 %v8520, %v8516
        %v8805 = vpack.c.b16 %v8521, %v8517
        %v8806 = vpack.c.b16 %v8522, %v8518
        %v8807 = vpack.c.b16 %v8523, %v8519
        %v8808 = vpack.c.b16 %v8528, %v8524
        %v8809 = vpack.c.b16 %v8529, %v8525
        %v8810 = vpack.c.b16 %v8530, %v8526
        %v8811 = vpack.c.b16 %v8531, %v8527
        %v8812 = vpack.c.b16 %v8536, %v8532
        %v8813 = vpack.c.b16 %v8537, %v8533
        %v8814 = vpack.c.b16 %v8538, %v8534
        %v8815 = vpack.c.b16 %v8539, %v8535
        %v8816 = vpack.c.b16 %v8544, %v8540
        %v8817 = vpack.c.b16 %v8545, %v8541
        %v8818 = vpack.c.b16 %v8546, %v8542
        %v8819 = vpack.c.b16 %v8547, %v8543
        %v8820 = vpack.c.b16 %v8552, %v8548
        %v8821 = vpack.c.b16 %v8553, %v8549
        %v8822 = vpack.c.b16 %v8554, %v8550
        %v8823 = vpack.c.b16 %v8555, %v8551
        %v8824 = vpack.c.b16 %v8560, %v8556
        %v8825 = vpack.c.b16 %v8561, %v8557
        %v8826 = vpack.c.b16 %v8562, %v8558
        %v8827 = vpack.c.b16 %v8563, %v8559
        %v8828 = vpack.c.b16 %v8568, %v8564
        %v8829 = vpack.c.b16 %v8569, %v8565
        %v8830 = vpack.c.b16 %v8570, %v8566
        %v8831 = vpack.c.b16 %v8571, %v8567
        %v8832 = vpack.c.b16 %v8576, %v8572
        %v8833 = vpack.c.b16 %v8577, %v8573
        %v8834 = vpack.c.b16 %v8578, %v8574
        %v8835 = vpack.c.b16 %v8579, %v8575
        %v8836 = vpack.c.b16 %v8584, %v8580
        %v8837 = vpack.c.b16 %v8585, %v8581
        %v8838 = vpack.c.b16 %v8586, %v8582
        %v8839 = vpack.c.b16 %v8587, %v8583
        %v8840 = vpack.c.b16 %v8592, %v8588
        %v8841 = vpack.c.b16 %v8593, %v8589
        %v8842 = vpack.c.b16 %v8594, %v8590
        %v8843 = vpack.c.b16 %v8595, %v8591
        %v8844 = vpack.c.b16 %v8600, %v8596
        %v8845 = vpack.c.b16 %v8601, %v8597
        %v8846 = vpack.c.b16 %v8602, %v8598
        %v8847 = vpack.c.b16 %v8603, %v8599
        %v8848 = vpack.c.b16 %v8608, %v8604
        %v8849 = vpack.c.b16 %v8609, %v8605
        %v8850 = vpack.c.b16 %v8610, %v8606
        %v8851 = vpack.c.b16 %v8611, %v8607
        %v8852 = vpack.c.b16 %v8616, %v8612
        %v8853 = vpack.c.b16 %v8617, %v8613
        %v8854 = vpack.c.b16 %v8618, %v8614
        %v8855 = vpack.c.b16 %v8619, %v8615
        %v8856 = vpack.c.b16 %v8624, %v8620
        %v8857 = vpack.c.b16 %v8625, %v8621
        %v8858 = vpack.c.b16 %v8626, %v8622
        %v8859 = vpack.c.b16 %v8627, %v8623
        %v8860 = vpack.c.b16 %v8632, %v8628
        %v8861 = vpack.c.b16 %v8633, %v8629
        %v8862 = vpack.c.b16 %v8634, %v8630
        %v8863 = vpack.c.b16 %v8635, %v8631
        %v8864 = vpack.c.b16 %v8640, %v8636
        %v8865 = vpack.c.b16 %v8641, %v8637
        %v8866 = vpack.c.b16 %v8642, %v8638
        %v8867 = vpack.c.b16 %v8643, %v8639
        %9092 = vmatprep.subr.bf16.mxu0 %v8673
        %9093 = vmatpush1.bf16.msra.mxu0 %v8672
        %9094 = vmatprep.subr.bf16.mxu0 %v8669
        %9095 = vmatpush1.bf16.msra.mxu0 %v8668
        %9096 = vmatprep.subr.bf16.mxu0 %v8665
        %9097 = vmatpush1.bf16.msra.mxu0 %v8664
        %9098 = vmatprep.subr.bf16.mxu0 %v8661
        %9099 = vmatpush1.bf16.msra.mxu0 %v8660
        %9100 = vmatprep.subr.bf16.mxu0 %v8657
        %9101 = vmatpush1.bf16.msra.mxu0 %v8656
        %9102 = vmatprep.subr.bf16.mxu0 %v8653
        %9103 = vmatpush1.bf16.msra.mxu0 %v8652
        %9104 = vmatprep.subr.bf16.mxu0 %v8649
        %9105 = vmatpush1.bf16.msra.mxu0 %v8648
        %9106 = vmatprep.subr.bf16.mxu0 %v8645
        %9107 = vmatpush1.bf16.msra.mxu0 %v8644
        %9108 = vmatprep.subr.bf16.mxu0 %v8705
        %9109 = vmatpush2.bf16.msra.mxu0 %v8704
        %9110 = vmatprep.subr.bf16.mxu0 %v8701
        %9111 = vmatpush2.bf16.msra.mxu0 %v8700
        %9112 = vmatprep.subr.bf16.mxu0 %v8697
        %9113 = vmatpush2.bf16.msra.mxu0 %v8696
        %9114 = vmatprep.subr.bf16.mxu0 %v8693
        %9115 = vmatpush2.bf16.msra.mxu0 %v8692
        %9116 = vmatprep.subr.bf16.mxu0 %v8689
        %9117 = vmatpush2.bf16.msra.mxu0 %v8688
        %9118 = vmatprep.subr.bf16.mxu0 %v8685
        %9119 = vmatpush2.bf16.msra.mxu0 %v8684
        %9120 = vmatprep.subr.bf16.mxu0 %v8681
        %9121 = vmatpush2.bf16.msra.mxu0 %v8680
        %9122 = vmatprep.subr.bf16.mxu0 %v8677
        %9123 = vmatpush2.bf16.msra.mxu0 %v8676
        %9124 = vmatprep.mubr.bf16.mxu0 %v7720
        %9125 = vmatmul.mubr.bf16.gmra.mxu0 %v7719
        %v9126 = vpop.f32.mrf.mxu0
        %v9127 = vadd.f32 %v7955, %v9126
        %v9128 = vpop.f32.mrf.mxu0
        %v9129 = vadd.f32 %v7959, %v9128
        %v9130 = vpop.f32.mrf.mxu0
        %v9131 = vpop.f32.mrf.mxu0
        %9132 = vdwg.mxu0
        %9133 = vmatprep.subr.bf16.mxu0 %v8737
        %9134 = vmatpush1.bf16.msra.mxu0 %v8736
        %9135 = vmatprep.subr.bf16.mxu0 %v8733
        %9136 = vmatpush1.bf16.msra.mxu0 %v8732
        %9137 = vmatprep.subr.bf16.mxu0 %v8729
        %9138 = vmatpush1.bf16.msra.mxu0 %v8728
        %9139 = vmatprep.subr.bf16.mxu0 %v8725
        %9140 = vmatpush1.bf16.msra.mxu0 %v8724
        %9141 = vmatprep.subr.bf16.mxu0 %v8721
        %9142 = vmatpush1.bf16.msra.mxu0 %v8720
        %9143 = vmatprep.subr.bf16.mxu0 %v8717
        %9144 = vmatpush1.bf16.msra.mxu0 %v8716
        %9145 = vmatprep.subr.bf16.mxu0 %v8713
        %9146 = vmatpush1.bf16.msra.mxu0 %v8712
        %9147 = vmatprep.subr.bf16.mxu0 %v8709
        %9148 = vmatpush1.bf16.msra.mxu0 %v8708
        %9149 = vmatprep.subr.bf16.mxu0 %v8769
        %9150 = vmatpush2.bf16.msra.mxu0 %v8768
        %9151 = vmatprep.subr.bf16.mxu0 %v8765
        %9152 = vmatpush2.bf16.msra.mxu0 %v8764
        %9153 = vmatprep.subr.bf16.mxu0 %v8761
        %9154 = vmatpush2.bf16.msra.mxu0 %v8760
        %9155 = vmatprep.subr.bf16.mxu0 %v8757
        %9156 = vmatpush2.bf16.msra.mxu0 %v8756
        %9157 = vmatprep.subr.bf16.mxu0 %v8753
        %9158 = vmatpush2.bf16.msra.mxu0 %v8752
        %9159 = vmatprep.subr.bf16.mxu0 %v8749
        %9160 = vmatpush2.bf16.msra.mxu0 %v8748
        %9161 = vmatprep.subr.bf16.mxu0 %v8745
        %9162 = vmatpush2.bf16.msra.mxu0 %v8744
        %9163 = vmatprep.subr.bf16.mxu0 %v8741
        %9164 = vmatpush2.bf16.msra.mxu0 %v8740
        %9165 = vmatprep.mubr.bf16.mxu0 %v7722
        %9166 = vmatmul.mubr.bf16.gmra.mxu0 %v7721
        %v9167 = vpop.f32.mrf.mxu0
        %v9168 = vadd.f32 %v9127, %v9167
        %v9169 = vpop.f32.mrf.mxu0
        %v9170 = vadd.f32 %v9129, %v9169
        %v9171 = vpop.f32.mrf.mxu0
        %v9172 = vpop.f32.mrf.mxu0
        %9173 = vdwg.mxu0
        %9174 = vmatprep.subr.bf16.mxu0 %v8801
        %9175 = vmatpush1.bf16.msra.mxu0 %v8800
        %9176 = vmatprep.subr.bf16.mxu0 %v8797
        %9177 = vmatpush1.bf16.msra.mxu0 %v8796
        %9178 = vmatprep.subr.bf16.mxu0 %v8793
        %9179 = vmatpush1.bf16.msra.mxu0 %v8792
        %9180 = vmatprep.subr.bf16.mxu0 %v8789
        %9181 = vmatpush1.bf16.msra.mxu0 %v8788
        %9182 = vmatprep.subr.bf16.mxu0 %v8785
        %9183 = vmatpush1.bf16.msra.mxu0 %v8784
        %9184 = vmatprep.subr.bf16.mxu0 %v8781
        %9185 = vmatpush1.bf16.msra.mxu0 %v8780
        %9186 = vmatprep.subr.bf16.mxu0 %v8777
        %9187 = vmatpush1.bf16.msra.mxu0 %v8776
        %9188 = vmatprep.subr.bf16.mxu0 %v8773
        %9189 = vmatpush1.bf16.msra.mxu0 %v8772
        %9190 = vmatprep.subr.bf16.mxu0 %v8833
        %9191 = vmatpush2.bf16.msra.mxu0 %v8832
        %9192 = vmatprep.subr.bf16.mxu0 %v8829
        %9193 = vmatpush2.bf16.msra.mxu0 %v8828
        %9194 = vmatprep.subr.bf16.mxu0 %v8825
        %9195 = vmatpush2.bf16.msra.mxu0 %v8824
        %9196 = vmatprep.subr.bf16.mxu0 %v8821
        %9197 = vmatpush2.bf16.msra.mxu0 %v8820
        %9198 = vmatprep.subr.bf16.mxu0 %v8817
        %9199 = vmatpush2.bf16.msra.mxu0 %v8816
        %9200 = vmatprep.subr.bf16.mxu0 %v8813
        %9201 = vmatpush2.bf16.msra.mxu0 %v8812
        %9202 = vmatprep.subr.bf16.mxu0 %v8809
        %9203 = vmatpush2.bf16.msra.mxu0 %v8808
        %9204 = vmatprep.subr.bf16.mxu0 %v8805
        %9205 = vmatpush2.bf16.msra.mxu0 %v8804
        %9206 = vmatprep.mubr.bf16.mxu0 %v7724
        %9207 = vmatmul.mubr.bf16.gmra.mxu0 %v7723
        %v9208 = vpop.f32.mrf.mxu0
        %v9209 = vadd.f32 %v9168, %v9208
        %v9210 = vpop.f32.mrf.mxu0
        %v9211 = vadd.f32 %v9170, %v9210
        %v9212 = vpop.f32.mrf.mxu0
        %v9213 = vpop.f32.mrf.mxu0
        %9214 = vdwg.mxu0
        %9215 = vmatprep.subr.bf16.mxu0 %v8865
        %9216 = vmatpush1.bf16.msra.mxu0 %v8864
        %9217 = vmatprep.subr.bf16.mxu0 %v8861
        %9218 = vmatpush1.bf16.msra.mxu0 %v8860
        %9219 = vmatprep.subr.bf16.mxu0 %v8857
        %9220 = vmatpush1.bf16.msra.mxu0 %v8856
        %9221 = vmatprep.subr.bf16.mxu0 %v8853
        %9222 = vmatpush1.bf16.msra.mxu0 %v8852
        %9223 = vmatprep.subr.bf16.mxu0 %v8849
        %9224 = vmatpush1.bf16.msra.mxu0 %v8848
        %9225 = vmatprep.subr.bf16.mxu0 %v8845
        %9226 = vmatpush1.bf16.msra.mxu0 %v8844
        %9227 = vmatprep.subr.bf16.mxu0 %v8841
        %9228 = vmatpush1.bf16.msra.mxu0 %v8840
        %9229 = vmatprep.subr.bf16.mxu0 %v8837
        %9230 = vmatpush1.bf16.msra.mxu0 %v8836
        %9231 = vmatprep.subr.bf16.mxu0 0
        %9232 = vmatpush2.bf16.msra.mxu0 0
        %9233 = vmatprep.subr.bf16.mxu0 0
        %9234 = vmatpush2.bf16.msra.mxu0 0
        %9235 = vmatprep.subr.bf16.mxu0 0
        %9236 = vmatpush2.bf16.msra.mxu0 0
        %9237 = vmatprep.subr.bf16.mxu0 0
        %9238 = vmatpush2.bf16.msra.mxu0 0
        %9239 = vmatprep.subr.bf16.mxu0 0
        %9240 = vmatpush2.bf16.msra.mxu0 0
        %9241 = vmatprep.subr.bf16.mxu0 0
        %9242 = vmatpush2.bf16.msra.mxu0 0
        %9243 = vmatprep.subr.bf16.mxu0 0
        %9244 = vmatpush2.bf16.msra.mxu0 0
        %9245 = vmatprep.subr.bf16.mxu0 0
        %9246 = vmatpush2.bf16.msra.mxu0 0
        %9247 = vmatprep.mubr.bf16.mxu0 0
        %9248 = vmatmul.mubr.bf16.gmra.mxu0 %v7725
        %v9249 = vpop.f32.mrf.mxu0
        %v9250 = vadd.f32 %v9209, %v9249
        %v9251 = vpop.f32.mrf.mxu0
        %v9252 = vadd.f32 %v9211, %v9251
        %v9253 = vpop.f32.mrf.mxu0
        %v9254 = vpop.f32.mrf.mxu0
        %9255 = vdwg.mxu0
        %9256 = vmatprep.subr.bf16.mxu0 %v8675
        %9257 = vmatpush1.bf16.msra.mxu0 %v8674
        %9258 = vmatprep.subr.bf16.mxu0 %v8671
        %9259 = vmatpush1.bf16.msra.mxu0 %v8670
        %9260 = vmatprep.subr.bf16.mxu0 %v8667
        %9261 = vmatpush1.bf16.msra.mxu0 %v8666
        %9262 = vmatprep.subr.bf16.mxu0 %v8663
        %9263 = vmatpush1.bf16.msra.mxu0 %v8662
        %9264 = vmatprep.subr.bf16.mxu0 %v8659
        %9265 = vmatpush1.bf16.msra.mxu0 %v8658
        %9266 = vmatprep.subr.bf16.mxu0 %v8655
        %9267 = vmatpush1.bf16.msra.mxu0 %v8654
        %9268 = vmatprep.subr.bf16.mxu0 %v8651
        %9269 = vmatpush1.bf16.msra.mxu0 %v8650
        %9270 = vmatprep.subr.bf16.mxu0 %v8647
        %9271 = vmatpush1.bf16.msra.mxu0 %v8646
        %9272 = vmatprep.subr.bf16.mxu0 %v8707
        %9273 = vmatpush2.bf16.msra.mxu0 %v8706
        %9274 = vmatprep.subr.bf16.mxu0 %v8703
        %9275 = vmatpush2.bf16.msra.mxu0 %v8702
        %9276 = vmatprep.subr.bf16.mxu0 %v8699
        %9277 = vmatpush2.bf16.msra.mxu0 %v8698
        %9278 = vmatprep.subr.bf16.mxu0 %v8695
        %9279 = vmatpush2.bf16.msra.mxu0 %v8694
        %9280 = vmatprep.subr.bf16.mxu0 %v8691
        %9281 = vmatpush2.bf16.msra.mxu0 %v8690
        %9282 = vmatprep.subr.bf16.mxu0 %v8687
        %9283 = vmatpush2.bf16.msra.mxu0 %v8686
        %9284 = vmatprep.subr.bf16.mxu0 %v8683
        %9285 = vmatpush2.bf16.msra.mxu0 %v8682
        %9286 = vmatprep.subr.bf16.mxu0 %v8679
        %9287 = vmatpush2.bf16.msra.mxu0 %v8678
        %9288 = vmatprep.mubr.bf16.mxu0 %v7720
        %9289 = vmatmul.mubr.bf16.gmra.mxu0 %v7719
        %v9290 = vpop.f32.mrf.mxu0
        %v9291 = vadd.f32 %v7963, %v9290
        %v9292 = vpop.f32.mrf.mxu0
        %v9293 = vadd.f32 %v7967, %v9292
        %v9294 = vpop.f32.mrf.mxu0
        %v9295 = vpop.f32.mrf.mxu0
        %9296 = vdwg.mxu0
        %9297 = vmatprep.subr.bf16.mxu0 %v8739
        %9298 = vmatpush1.bf16.msra.mxu0 %v8738
        %9299 = vmatprep.subr.bf16.mxu0 %v8735
        %9300 = vmatpush1.bf16.msra.mxu0 %v8734
        %9301 = vmatprep.subr.bf16.mxu0 %v8731
        %9302 = vmatpush1.bf16.msra.mxu0 %v8730
        %9303 = vmatprep.subr.bf16.mxu0 %v8727
        %9304 = vmatpush1.bf16.msra.mxu0 %v8726
        %9305 = vmatprep.subr.bf16.mxu0 %v8723
        %9306 = vmatpush1.bf16.msra.mxu0 %v8722
        %9307 = vmatprep.subr.bf16.mxu0 %v8719
        %9308 = vmatpush1.bf16.msra.mxu0 %v8718
        %9309 = vmatprep.subr.bf16.mxu0 %v8715
        %9310 = vmatpush1.bf16.msra.mxu0 %v8714
        %9311 = vmatprep.subr.bf16.mxu0 %v8711
        %9312 = vmatpush1.bf16.msra.mxu0 %v8710
        %9313 = vmatprep.subr.bf16.mxu0 %v8771
        %9314 = vmatpush2.bf16.msra.mxu0 %v8770
        %9315 = vmatprep.subr.bf16.mxu0 %v8767
        %9316 = vmatpush2.bf16.msra.mxu0 %v8766
        %9317 = vmatprep.subr.bf16.mxu0 %v8763
        %9318 = vmatpush2.bf16.msra.mxu0 %v8762
        %9319 = vmatprep.subr.bf16.mxu0 %v8759
        %9320 = vmatpush2.bf16.msra.mxu0 %v8758
        %9321 = vmatprep.subr.bf16.mxu0 %v8755
        %9322 = vmatpush2.bf16.msra.mxu0 %v8754
        %9323 = vmatprep.subr.bf16.mxu0 %v8751
        %9324 = vmatpush2.bf16.msra.mxu0 %v8750
        %9325 = vmatprep.subr.bf16.mxu0 %v8747
        %9326 = vmatpush2.bf16.msra.mxu0 %v8746
        %9327 = vmatprep.subr.bf16.mxu0 %v8743
        %9328 = vmatpush2.bf16.msra.mxu0 %v8742
        %9329 = vmatprep.mubr.bf16.mxu0 %v7722
        %9330 = vmatmul.mubr.bf16.gmra.mxu0 %v7721
        %v9331 = vpop.f32.mrf.mxu0
        %v9332 = vadd.f32 %v9291, %v9331
        %v9333 = vpop.f32.mrf.mxu0
        %v9334 = vadd.f32 %v9293, %v9333
        %v9335 = vpop.f32.mrf.mxu0
        %v9336 = vpop.f32.mrf.mxu0
        %9337 = vdwg.mxu0
        %9338 = vmatprep.subr.bf16.mxu0 %v8803
        %9339 = vmatpush1.bf16.msra.mxu0 %v8802
        %9340 = vmatprep.subr.bf16.mxu0 %v8799
        %9341 = vmatpush1.bf16.msra.mxu0 %v8798
        %9342 = vmatprep.subr.bf16.mxu0 %v8795
        %9343 = vmatpush1.bf16.msra.mxu0 %v8794
        %9344 = vmatprep.subr.bf16.mxu0 %v8791
        %9345 = vmatpush1.bf16.msra.mxu0 %v8790
        %9346 = vmatprep.subr.bf16.mxu0 %v8787
        %9347 = vmatpush1.bf16.msra.mxu0 %v8786
        %9348 = vmatprep.subr.bf16.mxu0 %v8783
        %9349 = vmatpush1.bf16.msra.mxu0 %v8782
        %9350 = vmatprep.subr.bf16.mxu0 %v8779
        %9351 = vmatpush1.bf16.msra.mxu0 %v8778
        %9352 = vmatprep.subr.bf16.mxu0 %v8775
        %9353 = vmatpush1.bf16.msra.mxu0 %v8774
        %9354 = vmatprep.subr.bf16.mxu0 %v8835
        %9355 = vmatpush2.bf16.msra.mxu0 %v8834
        %9356 = vmatprep.subr.bf16.mxu0 %v8831
        %9357 = vmatpush2.bf16.msra.mxu0 %v8830
        %9358 = vmatprep.subr.bf16.mxu0 %v8827
        %9359 = vmatpush2.bf16.msra.mxu0 %v8826
        %9360 = vmatprep.subr.bf16.mxu0 %v8823
        %9361 = vmatpush2.bf16.msra.mxu0 %v8822
        %9362 = vmatprep.subr.bf16.mxu0 %v8819
        %9363 = vmatpush2.bf16.msra.mxu0 %v8818
        %9364 = vmatprep.subr.bf16.mxu0 %v8815
        %9365 = vmatpush2.bf16.msra.mxu0 %v8814
        %9366 = vmatprep.subr.bf16.mxu0 %v8811
        %9367 = vmatpush2.bf16.msra.mxu0 %v8810
        %9368 = vmatprep.subr.bf16.mxu0 %v8807
        %9369 = vmatpush2.bf16.msra.mxu0 %v8806
        %9370 = vmatprep.mubr.bf16.mxu0 %v7724
        %9371 = vmatmul.mubr.bf16.gmra.mxu0 %v7723
        %v9372 = vpop.f32.mrf.mxu0
        %v9373 = vadd.f32 %v9332, %v9372
        %v9374 = vpop.f32.mrf.mxu0
        %v9375 = vadd.f32 %v9334, %v9374
        %v9376 = vpop.f32.mrf.mxu0
        %v9377 = vpop.f32.mrf.mxu0
        %9378 = vdwg.mxu0
        %9379 = vmatprep.subr.bf16.mxu0 %v8867
        %9380 = vmatpush1.bf16.msra.mxu0 %v8866
        %9381 = vmatprep.subr.bf16.mxu0 %v8863
        %9382 = vmatpush1.bf16.msra.mxu0 %v8862
        %9383 = vmatprep.subr.bf16.mxu0 %v8859
        %9384 = vmatpush1.bf16.msra.mxu0 %v8858
        %9385 = vmatprep.subr.bf16.mxu0 %v8855
        %9386 = vmatpush1.bf16.msra.mxu0 %v8854
        %9387 = vmatprep.subr.bf16.mxu0 %v8851
        %9388 = vmatpush1.bf16.msra.mxu0 %v8850
        %9389 = vmatprep.subr.bf16.mxu0 %v8847
        %9390 = vmatpush1.bf16.msra.mxu0 %v8846
        %9391 = vmatprep.subr.bf16.mxu0 %v8843
        %9392 = vmatpush1.bf16.msra.mxu0 %v8842
        %9393 = vmatprep.subr.bf16.mxu0 %v8839
        %9394 = vmatpush1.bf16.msra.mxu0 %v8838
        %9395 = vmatprep.subr.bf16.mxu0 0
        %9396 = vmatpush2.bf16.msra.mxu0 0
        %9397 = vmatprep.subr.bf16.mxu0 0
        %9398 = vmatpush2.bf16.msra.mxu0 0
        %9399 = vmatprep.subr.bf16.mxu0 0
        %9400 = vmatpush2.bf16.msra.mxu0 0
        %9401 = vmatprep.subr.bf16.mxu0 0
        %9402 = vmatpush2.bf16.msra.mxu0 0
        %9403 = vmatprep.subr.bf16.mxu0 0
        %9404 = vmatpush2.bf16.msra.mxu0 0
        %9405 = vmatprep.subr.bf16.mxu0 0
        %9406 = vmatpush2.bf16.msra.mxu0 0
        %9407 = vmatprep.subr.bf16.mxu0 0
        %9408 = vmatpush2.bf16.msra.mxu0 0
        %9409 = vmatprep.subr.bf16.mxu0 0
        %9410 = vmatpush2.bf16.msra.mxu0 0
        %9411 = vmatprep.mubr.bf16.mxu0 0
        %9412 = vmatmul.mubr.bf16.gmra.mxu0 %v7725
        %v9413 = vpop.f32.mrf.mxu0
        %v9414 = vadd.f32 %v9373, %v9413
        %v9415 = vpop.f32.mrf.mxu0
        %v9416 = vadd.f32 %v9375, %v9415
        %v9417 = vpop.f32.mrf.mxu0
        %v9418 = vpop.f32.mrf.mxu0
        %9419 = vdwg.mxu0
        %9420 = vst [vmem:[%s331] sm:$0xff] %v9250
        %9421 = vst [vmem:[%s331 + $0x8] sm:$0xff] %v9252
        %9422 = vst [vmem:[%s331 + $0x10] sm:$0xff] %v9414
        %9423 = vst [vmem:[%s331 + $0x18] sm:$0xff] %v9416
      $region56: #{rescnn_encoder_forward.3} parent=47 // pred_fallthru
        _
      %p9424 = scmp.lt.s32.totalorder %s22, 0
      %s9425 = scalar_select %p9424, %s22, 0
      %s9426 = smul.addr %s9425, 4
      %s9427 = smul.addr %s9426, 8
      %s9428 = scalar_lea.vmem %s7, %s9427
      // Predicated region
      $region57: #{rescnn_encoder_forward.3} parent=47 // pred_check
        %p9429 = pneg %p207
      $region58: #{rescnn_encoder_forward.3} parent=47 // pred_check_branch
        %9431 = sbr.rel (%p9429) target = $region60
      $region59: #{rescnn_encoder_forward.3} parent=47 // pred_region
        _
      $region60: #{rescnn_encoder_forward.3} parent=47 // pred_fallthru
        _
      // Predicated region
      $region61: #{rescnn_encoder_forward.3} parent=47 // pred_check
        %p9432 = pneg %p207
      $region62: #{rescnn_encoder_forward.3} parent=47 // pred_check_branch
        %9434 = sbr.rel (%p9432) target = $region64
      $region63: #{rescnn_encoder_forward.3} parent=47 // pred_region
        %p9435 = scmp.lt.s32.totalorder %s22, 0
        %s9436 = scalar_select %p9435, %s22, 0
        %s9437 = smul.addr %s9436, 4
        %s9438 = smul.addr %s9437, 8
        %s9439 = scalar_lea.vmem %s7, %s9438
      $region64: #{rescnn_encoder_forward.3} parent=47 // pred_fallthru
        _
    $region48: #{rescnn_encoder_forward.3} parent=5 // pred_fallthru
      _
    %p9440 = scmp.le.s32.totalorder 2, %s13
    // Predicated region
    $region65: #{rescnn_encoder_forward.3} parent=5 // pred_check
      %p9441 = pneg %p9440
    $region66: #{rescnn_encoder_forward.3} parent=5 // pred_check_branch
      %9443 = sbr.rel (%p9441) target = $region68
    $region67: #{rescnn_encoder_forward.3} parent=5 // pred_region
      %s9444 = ssub.s32 %s13, 2
    $region68: #{rescnn_encoder_forward.3} parent=5 // pred_fallthru
      _
  $region6: #{rescnn_encoder_forward.3} parent=0 // loop_footer
    %s17 = sadd.s32 1, %s13
  $region7: #{rescnn_encoder_forward.3} parent=0 // loop_footer_branch
    %12 = sbr.rel target = $region3
  $region8: #{rescnn_encoder_forward.3} parent=0 // loop_exit
    _

</llo_original>
